<compile_context>
chip_gen: v7x
topology: tpu7x:2x2x1
jax: 0.10.0
libtpu: 0.0.40
codegen_flags: <defaults>
</compile_context>

<pallas_src>
import functools
import math

import jax
import jax.numpy as jnp
from jax.experimental import pallas as pl
from jax.experimental.pallas import tpu as pltpu


# ----------------------------------------------------------------------------
# helpers
# ----------------------------------------------------------------------------
def _sublane(dtype):
    """Native sublane multiple for a dtype (8 for 4-byte, 16 for bf16, 32 for int8)."""
    return max(8, 32 // jnp.dtype(dtype).itemsize)


def _pick_tile(dim, target, mult):
    """Largest tile <= target that divides `dim` and is a multiple of `mult`;
    falls back to the full dim (always a legal block)."""
    if dim <= target:
        return dim
    t = (min(target, dim) // mult) * mult
    while t >= mult:
        if dim % t == 0:
            return t
        t -= mult
    return dim


def _vmem_params(need_bytes):
    """Only raise the scoped VMEM limit when the working set needs it, and cap at
    ~75% of the physical capacity (64 MiB on v7x, 128 MiB on v5e/v6e)."""
    if need_bytes <= 24 * 1024 * 1024:
        return {}
    try:
        cap = int(pltpu.get_tpu_info().vmem_capacity_bytes)
    except Exception:
        cap = 64 * 1024 * 1024
    return {"vmem_limit_bytes": int(min(need_bytes + (8 << 20), int(cap * 0.75)))}


# ----------------------------------------------------------------------------
# fused linear kernel: Y = act(X @ W + b) [+ residual, LayerNorm]
# ----------------------------------------------------------------------------
def _linear_kernel(x_ref, w_ref, b_ref, *rest, activation, fuse_ln, eps):
    if fuse_ln:
        res_ref, g_ref, beta_ref, o_ref, acc_ref = rest
    else:
        o_ref, acc_ref = rest

    k = pl.program_id(2)

    @pl.when(k == 0)
    def _init():
        acc_ref[...] = jnp.zeros_like(acc_ref)

    acc_ref[...] += jnp.dot(x_ref[...], w_ref[...],
                            preferred_element_type=jnp.float32)

    @pl.when(k == pl.num_programs(2) - 1)
    def _epilogue():
        y = acc_ref[...] + b_ref[...].astype(jnp.float32)
        if activation == "relu":
            y = jnp.maximum(y, 0.0)
        if fuse_ln:
            y = y + res_ref[...].astype(jnp.float32)
            mu = jnp.mean(y, axis=-1, keepdims=True)
            var = jnp.mean(jnp.square(y - mu), axis=-1, keepdims=True)
            y = (y - mu) * jax.lax.rsqrt(var + eps)
            y = y * g_ref[...].astype(jnp.float32) + beta_ref[...].astype(jnp.float32)
        o_ref[...] = y.astype(o_ref.dtype)


def linear_pallas(x, w, b, *, residual=None, gamma=None, beta=None,
                  activation=None, eps=1e-5, out_dtype=None,
                  tm=256, tn=512, tk=512):
    M, K = x.shape
    K2, N = w.shape
    assert K == K2, (x.shape, w.shape)
    fuse_ln = gamma is not None
    out_dtype = out_dtype or x.dtype

    sub = _sublane(x.dtype)
    tm_e = _pick_tile(M, tm, sub)
    tk_e = _pick_tile(K, tk, 128)
    # LayerNorm epilogue needs the whole feature row resident -> full-N tile.
    tn_e = N if fuse_ln else _pick_tile(N, tn, 128)

    # v7x has 2 TensorCores: when fuse_ln collapses the N axis to one block, keep the
    # parallel M axis at >=2 blocks (only bother when M is large enough to matter).
    if fuse_ln and M // tm_e == 1 and M >= 512 and (M // 2) % sub == 0:
        tm_e = M // 2

    grid = (M // tm_e, N // tn_e, K // tk_e)

    in_specs = [
        pl.BlockSpec((tm_e, tk_e), lambda i, j, k: (i, k)),
        pl.BlockSpec((tk_e, tn_e), lambda i, j, k: (k, j)),   # no dependence on i
        pl.BlockSpec((1, tn_e), lambda i, j, k: (0, j)),
    ]
    inputs = [x, w, b]
    if fuse_ln:
        in_specs += [
            pl.BlockSpec((tm_e, tn_e), lambda i, j, k: (i, j)),
            pl.BlockSpec((1, tn_e), lambda i, j, k: (0, j)),
            pl.BlockSpec((1, tn_e), lambda i, j, k: (0, j)),
        ]
        inputs += [residual, gamma, beta]

    # working set: double-buffered inputs + outputs, plus the resident accumulator
    isz_x = jnp.dtype(x.dtype).itemsize
    in_bytes = tm_e * tk_e * isz_x + tk_e * tn_e * jnp.dtype(w.dtype).itemsize + tn_e * 4
    if fuse_ln:
        in_bytes += tm_e * tn_e * jnp.dtype(residual.dtype).itemsize + 2 * tn_e * 4
    out_bytes = tm_e * tn_e * jnp.dtype(out_dtype).itemsize
    need = 2 * (in_bytes + out_bytes) + tm_e * tn_e * 4

    kernel = functools.partial(_linear_kernel, activation=activation,
                               fuse_ln=fuse_ln, eps=eps)
    return pl.pallas_call(
        kernel,
        out_shape=jax.ShapeDtypeStruct((M, N), out_dtype),
        grid_spec=pltpu.PrefetchScalarGridSpec(
            num_scalar_prefetch=0,
            grid=grid,
            in_specs=in_specs,
            out_specs=pl.BlockSpec((tm_e, tn_e), lambda i, j, k: (i, j)),
            scratch_shapes=[pltpu.VMEM((tm_e, tn_e), jnp.float32)],
        ),
        compiler_params=pltpu.CompilerParams(
            dimension_semantics=("parallel", "parallel", "arbitrary"),
            **_vmem_params(need)),
    )(*inputs)


# ----------------------------------------------------------------------------
# flash attention kernel (online softmax, in-kernel prefix mask, all heads/step)
# ----------------------------------------------------------------------------
def _flash_attn_kernel(lens_ref, q_ref, k_ref, v_ref, o_ref,
                       m_sc, l_sc, acc_sc, *, n_head, sm_scale):
    ki = pl.program_id(2)
    tq, D = q_ref.shape
    tkv = k_ref.shape[0]
    dh = D // n_head

    @pl.when(ki == 0)
    def _init():
        m_sc[...] = jnp.full_like(m_sc, -jnp.inf)
        l_sc[...] = jnp.zeros_like(l_sc)
        acc_sc[...] = jnp.zeros_like(acc_sc)

    # prefix mask built in-kernel from per-row valid lengths (no HBM bias tensor)
    col = jax.lax.broadcasted_iota(jnp.int32, (tq, tkv), 1) + ki * tkv
    valid = col < lens_ref[...]                       # (tq, tkv) bool

    for h in range(n_head):                           # static unroll over heads
        sl = pl.ds(h * dh, dh)
        qh = q_ref[:, sl] * sm_scale                  # scale q (tq*dh), not scores
        s = jnp.einsum("qd,kd->qk", qh, k_ref[:, sl],
                       preferred_element_type=jnp.float32)
        s = jnp.where(valid, s, -1e30)                # mask BEFORE the running max

        m_prev = m_sc[h]
        m_new = jnp.maximum(m_prev, jnp.max(s, axis=-1, keepdims=True))
        alpha = jnp.exp(m_prev - m_new)
        p = jnp.exp(s - m_new)
        l_sc[h] = alpha * l_sc[h] + jnp.sum(p, axis=-1, keepdims=True)
        acc_sc[h] = alpha * acc_sc[h] + jnp.dot(
            p.astype(v_ref.dtype), v_ref[:, sl], preferred_element_type=jnp.float32)
        m_sc[h] = m_new

    @pl.when(ki == pl.num_programs(2) - 1)
    def _finalize():
        approx = o_ref.dtype != jnp.float32           # exact reciprocal for f32 parity
        ctx = [acc_sc[h] * pl.reciprocal(l_sc[h], approx=approx)
               for h in range(n_head)]
        o_ref[...] = jnp.concatenate(ctx, axis=-1).astype(o_ref.dtype)


def mha_flash(q_src, q_col, kv_src, k_col, v_col, kv_lens, *,
              B, Sq, Skv, D, n_head, sm_scale, tq=256, tkv=256):
    """Multi-head attention over packed activations.

    q_src:  (B*Sq, *) array; the query lives in column block `q_col` (block width D).
    kv_src: (B*Skv, *) array; K / V live in column blocks `k_col` / `v_col`.
    kv_lens: (B*Sq, 1) int32 valid-kv prefix length per query row (causal / padding).
    Output: (B*Sq, D) context in the same row layout (lane-dense, no head reshuffle).
    """
    # NOTE: 256 tiles suit v6e/v7x's 2x256 MXU; on v5e prefer tq=tkv=128.
    sub = _sublane(q_src.dtype)
    tq_e = _pick_tile(Sq, tq, sub)
    tkv_e = _pick_tile(Skv, tkv, sub)
    nq = Sq // tq_e
    nk = Skv // tkv_e
    dh = D // n_head

    kernel = functools.partial(_flash_attn_kernel, n_head=n_head, sm_scale=sm_scale)
    return pl.pallas_call(
        kernel,
        out_shape=jax.ShapeDtypeStruct((B * Sq, D), q_src.dtype),
        grid_spec=pltpu.PrefetchScalarGridSpec(
            num_scalar_prefetch=0,
            grid=(B, nq, nk),
            in_specs=[
                pl.BlockSpec((tq_e, 1), lambda b, qi, ki: (b * nq + qi, 0)),
                pl.BlockSpec((tq_e, D), lambda b, qi, ki: (b * nq + qi, q_col)),
                pl.BlockSpec((tkv_e, D), lambda b, qi, ki: (b * nk + ki, k_col)),
                pl.BlockSpec((tkv_e, D), lambda b, qi, ki: (b * nk + ki, v_col)),
            ],
            out_specs=pl.BlockSpec((tq_e, D), lambda b, qi, ki: (b * nq + qi, 0)),
            scratch_shapes=[
                pltpu.VMEM((n_head, tq_e, 1), jnp.float32),    # running max
                pltpu.VMEM((n_head, tq_e, 1), jnp.float32),    # running denom
                pltpu.VMEM((n_head, tq_e, dh), jnp.float32),   # context accumulator
            ],
        ),
        compiler_params=pltpu.CompilerParams(
            dimension_semantics=("parallel", "parallel", "arbitrary")),
    )(kv_lens, q_src, kv_src, kv_src)


# ----------------------------------------------------------------------------
# embedding kernel: scalar-prefetched DMA row gather + positional add
# ----------------------------------------------------------------------------
def _embed_kernel(ids_ref, tok_hbm, pos_ref, o_ref, buf, sems, *, tm, Sq):
    b = pl.program_id(0)
    qi = pl.program_id(1)
    base = b * Sq + qi * tm
    # gather `tm` embedding rows straight from HBM (table never sits in VMEM)
    for r in range(tm):
        idx = ids_ref[base + r]
        pltpu.make_async_copy(tok_hbm.at[idx], buf.at[r], sems.at[r]).start()
    for r in range(tm):
        pltpu.make_async_copy(tok_hbm.at[0], buf.at[r], sems.at[r]).wait()
    o_ref[...] = (buf[...].astype(jnp.float32)
                  + pos_ref[...].astype(jnp.float32)).astype(o_ref.dtype)


def embed_pallas(ids, tok_emb, pos_table, *, B, Sq, out_dtype):
    V, D = tok_emb.shape
    tm = _pick_tile(Sq, 64, 8)          # bounded unroll of per-row DMAs
    nq = Sq // tm
    kernel = functools.partial(_embed_kernel, tm=tm, Sq=Sq)
    return pl.pallas_call(
        kernel,
        out_shape=jax.ShapeDtypeStruct((B * Sq, D), out_dtype),
        grid_spec=pltpu.PrefetchScalarGridSpec(
            num_scalar_prefetch=1,                      # ids -> SMEM
            grid=(B, nq),
            in_specs=[
                pl.BlockSpec(memory_space=pl.ANY),      # token table stays in HBM
                pl.BlockSpec((tm, D), lambda b, qi, ids_ref: (qi, 0)),
            ],
            out_specs=pl.BlockSpec((tm, D), lambda b, qi, ids_ref: (b * nq + qi, 0)),
            scratch_shapes=[
                pltpu.VMEM((tm, D), tok_emb.dtype),
                pltpu.SemaphoreType.DMA((tm,)),
            ],
        ),
        compiler_params=pltpu.CompilerParams(
            dimension_semantics=("arbitrary", "arbitrary")),
    )(ids, tok_emb, pos_table)


# ----------------------------------------------------------------------------
# decoder composition
# ----------------------------------------------------------------------------
def _decoder_block(x2d, src2d, blk, t_lens, s_lens, B, Sq, Skv, n_head, eps):
    D = x2d.shape[-1]
    dh = D // n_head
    sm_scale = 1.0 / math.sqrt(dh)

    # --- self attention (packed qkv consumed in place) + fused out-proj/res/LN ---
    qkv = linear_pallas(x2d, blk["w_qkv"], blk["b_qkv"])            # (M, 3D)
    ctx = mha_flash(qkv, 0, qkv, 1, 2, t_lens, B=B, Sq=Sq, Skv=Sq, D=D,
                    n_head=n_head, sm_scale=sm_scale)
    x2d = linear_pallas(ctx, blk["w_o1"], blk["b_o1"], residual=x2d,
                        gamma=blk["g1"], beta=blk["beta1"], eps=eps, tm=128, tk=256)

    # --- cross attention (enc K/V projected once per layer, packed) -------------
    q = linear_pallas(x2d, blk["w_q2"], blk["b_q2"])                # (M, D)
    kv = linear_pallas(src2d, blk["w_kv2"], blk["b_kv2"])           # (Mkv, 2D)
    ctx = mha_flash(q, 0, kv, 0, 1, s_lens, B=B, Sq=Sq, Skv=Skv, D=D,
                    n_head=n_head, sm_scale=sm_scale)
    x2d = linear_pallas(ctx, blk["w_o2"], blk["b_o2"], residual=x2d,
                        gamma=blk["g2"], beta=blk["beta2"], eps=eps, tm=128, tk=256)

    # --- FFN: (matmul + ReLU) then (matmul + residual + LN) ---------------------
    h = linear_pallas(x2d, blk["w_ff1"], blk["b_ff1"], activation="relu")
    x2d = linear_pallas(h, blk["w_ff2"], blk["b_ff2"], residual=x2d,
                        gamma=blk["g3"], beta=blk["beta3"], eps=eps, tm=128, tk=256)
    return x2d


def decoder_forward(params, trg_ids, src, s_mask, t_mask, *, n_head, eps=1e-5):
    B, Sq = trg_ids.shape
    _, Skv, D = src.shape
    act_dtype = params["tok_emb"].dtype

    # TransformerEmbedding (dropout is identity in eval mode)
    ids = trg_ids.reshape(-1).astype(jnp.int32)
    x2d = embed_pallas(ids, params["tok_emb"], params["pos_table"],
                       B=B, Sq=Sq, out_dtype=act_dtype)

    src2d = src.astype(act_dtype).reshape(B * Skv, D)

    # Causal / padding masks are prefix masks per query row -> encode them as a
    # per-row valid-kv length (Skv x less HBM traffic than a dense additive bias).
    # TODO(synk): arbitrary non-prefix masks would need a dense-bias attention path.
    t_lens = jnp.sum(jnp.broadcast_to(t_mask, (B, Sq, Sq)).astype(jnp.int32),
                     axis=-1).reshape(B * Sq, 1)
    s_lens = jnp.sum(jnp.broadcast_to(s_mask, (B, Sq, Skv)).astype(jnp.int32),
                     axis=-1).reshape(B * Sq, 1)

    for blk in params["blocks"]:
        x2d = _decoder_block(x2d, src2d, blk, t_lens, s_lens,
                             B, Sq, Skv, n_head, eps)

    # final vocab projection (f32 logits, lane-dense output tiles)
    logits = linear_pallas(x2d, params["w_out"], params["b_out"],
                           out_dtype=jnp.float32)
    return logits.reshape(B, Sq, -1)


# ----------------------------------------------------------------------------
# parameter construction (matches nn.Embedding / nn.Linear / nn.LayerNorm layout)
# ----------------------------------------------------------------------------
def _sinusoid_table(max_len, d_model):
    pos = jnp.arange(max_len, dtype=jnp.float32)[:, None]
    i2 = jnp.arange(0, d_model, 2, dtype=jnp.float32)[None, :]
    angle = pos / jnp.power(10000.0, i2 / d_model)
    pe = jnp.zeros((max_len, d_model), jnp.float32)
    pe = pe.at[:, 0::2].set(jnp.sin(angle))
    pe = pe.at[:, 1::2].set(jnp.cos(angle))
    return pe


def init_params(key, vocab, d_model, d_hidden, n_block, n_head, max_len, dtype):
    f32 = jnp.float32
    keys = iter(jax.random.split(key, 8 + 16 * n_block))

    def nk():
        return next(keys)

    def dense(fan_in, fan_out):
        w = (jax.random.normal(nk(), (fan_in, fan_out), f32) / math.sqrt(fan_in)).astype(dtype)
        b = (jax.random.normal(nk(), (1, fan_out), f32) * 0.01).astype(f32)
        return w, b

    params = {
        "tok_emb": (jax.random.normal(nk(), (vocab, d_model), f32) * 0.02).astype(dtype),
        "pos_table": _sinusoid_table(max_len, d_model),
        "blocks": [],
    }
    for _ in range(n_block):
        blk = {}
        blk["w_qkv"], blk["b_qkv"] = dense(d_model, 3 * d_model)
        blk["w_o1"], blk["b_o1"] = dense(d_model, d_model)
        blk["g1"], blk["beta1"] = jnp.ones((1, d_model), f32), jnp.zeros((1, d_model), f32)
        blk["w_q2"], blk["b_q2"] = dense(d_model, d_model)
        blk["w_kv2"], blk["b_kv2"] = dense(d_model, 2 * d_model)
        blk["w_o2"], blk["b_o2"] = dense(d_model, d_model)
        blk["g2"], blk["beta2"] = jnp.ones((1, d_model), f32), jnp.zeros((1, d_model), f32)
        blk["w_ff1"], blk["b_ff1"] = dense(d_model, d_hidden)
        blk["w_ff2"], blk["b_ff2"] = dense(d_hidden, d_model)
        blk["g3"], blk["beta3"] = jnp.ones((1, d_model), f32), jnp.zeros((1, d_model), f32)
        params["blocks"].append(blk)
    params["w_out"], params["b_out"] = dense(d_model, vocab)
    return params


# ----------------------------------------------------------------------------
# pure-JAX reference (mirrors the PyTorch module semantics, f32 math, dense masks)
# ----------------------------------------------------------------------------
def reference_forward(params, trg_ids, src, s_mask, t_mask, *, n_head, eps=1e-5):
    f32 = jnp.float32
    B, Sq = trg_ids.shape
    _, Skv, D = src.shape
    H = n_head
    dh = D // H
    sm_scale = 1.0 / math.sqrt(dh)

    x = params["tok_emb"].astype(f32)[trg_ids] + params["pos_table"][:Sq][None]
    src_f = src.astype(f32)
    t_bias = jnp.where(jnp.broadcast_to(t_mask, (B, Sq, Sq)).astype(bool), 0.0, -1e9)
    s_bias = jnp.where(jnp.broadcast_to(s_mask, (B, Sq, Skv)).astype(bool), 0.0, -1e9)

    def ln(y, g, b):
        mu = jnp.mean(y, axis=-1, keepdims=True)
        var = jnp.mean((y - mu) ** 2, axis=-1, keepdims=True)
        return (y - mu) * jax.lax.rsqrt(var + eps) * g.reshape(1, 1, -1) + b.reshape(1, 1, -1)

    def split(y, S):
        return y.reshape(B, S, H, dh).transpose(0, 2, 1, 3)

    def attn(q, k, v, bias):
        s = jnp.einsum("bhqd,bhkd->bhqk", q, k) * sm_scale + bias[:, None]
        p = jax.nn.softmax(s, axis=-1)
        o = jnp.einsum("bhqk,bhkd->bhqd", p, v)
        return o.transpose(0, 2, 1, 3).reshape(B, -1, H * dh)

    for blk in params["blocks"]:
        qkv = x @ blk["w_qkv"].astype(f32) + blk["b_qkv"]
        q, k, v = jnp.split(qkv, 3, axis=-1)
        ctx = attn(split(q, Sq), split(k, Sq), split(v, Sq), t_bias)
        x = ln(ctx @ blk["w_o1"].astype(f32) + blk["b_o1"] + x, blk["g1"], blk["beta1"])

        q = x @ blk["w_q2"].astype(f32) + blk["b_q2"]
        kv = src_f @ blk["w_kv2"].astype(f32) + blk["b_kv2"]
        k, v = jnp.split(kv, 2, axis=-1)
        ctx = attn(split(q, Sq), split(k, Skv), split(v, Skv), s_bias)
        x = ln(ctx @ blk["w_o2"].astype(f32) + blk["b_o2"] + x, blk["g2"], blk["beta2"])

        h = jnp.maximum(x @ blk["w_ff1"].astype(f32) + blk["b_ff1"], 0.0)
        x = ln(h @ blk["w_ff2"].astype(f32) + blk["b_ff2"] + x, blk["g3"], blk["beta3"])

    return x @ params["w_out"].astype(f32) + params["b_out"]


# ----------------------------------------------------------------------------
# demo
# ----------------------------------------------------------------------------
if __name__ == "__main__":
    B, S_trg, S_src = 2, 8, 8
    d_model, d_hidden, n_head, n_block = 128, 256, 4, 2
    n_embedding, max_len = 256, 32

    key = jax.random.PRNGKey(0)
    kp, kt, ks = jax.random.split(key, 3)

    trg = jax.random.randint(kt, (B, S_trg), 0, n_embedding, dtype=jnp.int32)
    src = jax.random.normal(ks, (B, S_src, d_model), jnp.float32)

    # target mask: causal; source mask: pad out the last 2 src positions of batch 1
    causal = jnp.tril(jnp.ones((S_trg, S_trg), jnp.int32))
    t_mask = jnp.broadcast_to(causal[None], (B, S_trg, S_trg))
    src_valid = jnp.ones((B, S_src), jnp.int32).at[1, S_src - 2:].set(0)
    s_mask = jnp.broadcast_to(src_valid[:, None, :], (B, S_trg, S_src))

    fwd = jax.jit(functools.partial(decoder_forward, n_head=n_head))

    def run_and_check(dtype, tol):
        params = init_params(kp, n_embedding, d_model, d_hidden, n_block, n_head,
                             max_len, dtype)
        out = jax.block_until_ready(fwd(params, trg, src, s_mask, t_mask))
        assert out.shape == (B, S_trg, n_embedding)
        assert bool(jnp.isfinite(out).all())
        ref = reference_forward(params, trg, src, s_mask, t_mask, n_head=n_head)
        err = float(jnp.max(jnp.abs(out.astype(jnp.float32) - ref)))
        assert err < tol, f"{jnp.dtype(dtype).name}: max abs error {err} >= {tol}"
        return err

    # exact-math sanity check (f32), then the production-style bf16 config
    err_f32 = run_and_check(jnp.float32, 3e-2)
    err_bf16 = run_and_check(jnp.bfloat16, 3.5e-1)

    print("KERNEL_OK")
</pallas_src>

<mosaic_0001>
module attributes {stable_mosaic.version = 11 : i64} {
  func.func @_embed_kernel(%arg0: i32, %arg1: i32, %arg2: memref<16xi32, #tpu.memory_space<smem>>, %arg3: memref<256x128xf32, #tpu.memory_space<any>>, %arg4: memref<8x128xf32, #tpu.memory_space<vmem>>, %arg5: memref<8x128xf32, #tpu.memory_space<vmem>>, %arg6: memref<8x128xf32, #tpu.memory_space<vmem>>, %arg7: memref<8x!tpu.dma_semaphore, #tpu.memory_space<semaphore_mem>>) attributes {dimension_semantics = [#tpu.dimension_semantics<arbitrary>, #tpu.dimension_semantics<arbitrary>], iteration_bounds = array<i64: 2, 1>, scalar_prefetch = 1 : i64, scratch_operands = 2 : i64, tpu.core_type = #tpu.core_type<tc>, window_params = [{}, {transform_indices = @transform_1, window_bounds = array<i64: 8, 128>}, {transform_indices = @transform_2, window_bounds = array<i64: 8, 128>}]} {
    %c8_i32 = arith.constant 8 : i32
    %0 = arith.muli %arg0, %c8_i32 : i32
    %c8_i32_0 = arith.constant 8 : i32
    %1 = arith.muli %arg1, %c8_i32_0 : i32
    %2 = arith.addi %0, %1 : i32
    %c0_i32 = arith.constant 0 : i32
    %3 = arith.addi %2, %c0_i32 : i32
    %4 = arith.index_cast %3 : i32 to index
    %5 = memref.load %arg2[%4] : memref<16xi32, #tpu.memory_space<smem>>
    %c0_i32_1 = arith.constant 0 : i32
    %c0_i32_2 = arith.constant 0 : i32
    %c0_i32_3 = arith.constant 0 : i32
    %6 = tpu.memref_slice %arg3[%5, %c0_i32_3] : memref<256x128xf32, #tpu.memory_space<any>> -> memref<1x128xf32, #tpu.memory_space<any>>
    %7 = tpu.memref_squeeze %6 : memref<1x128xf32, #tpu.memory_space<any>> -> memref<128xf32, #tpu.memory_space<any>>
    %c0_i32_4 = arith.constant 0 : i32
    %8 = tpu.memref_slice %arg6[%c0_i32_1, %c0_i32_4] : memref<8x128xf32, #tpu.memory_space<vmem>> -> memref<1x128xf32, #tpu.memory_space<vmem>>
    %9 = tpu.memref_squeeze %8 : memref<1x128xf32, #tpu.memory_space<vmem>> -> memref<128xf32, #tpu.memory_space<vmem>>
    %10 = tpu.memref_slice %arg7[%c0_i32_2] : memref<8x!tpu.dma_semaphore, #tpu.memory_space<semaphore_mem>> -> memref<1x!tpu.dma_semaphore, #tpu.memory_space<semaphore_mem>>
    %11 = tpu.memref_squeeze %10 : memref<1x!tpu.dma_semaphore, #tpu.memory_space<semaphore_mem>> -> memref<!tpu.dma_semaphore, #tpu.memory_space<semaphore_mem>>
    tpu.enqueue_dma source(%7 : memref<128xf32, #tpu.memory_space<any>>) target(%9 : memref<128xf32, #tpu.memory_space<vmem>>) target_semaphore(%11 : memref<!tpu.dma_semaphore, #tpu.memory_space<semaphore_mem>>)
    %c1_i32 = arith.constant 1 : i32
    %12 = arith.addi %2, %c1_i32 : i32
    %13 = arith.index_cast %12 : i32 to index
    %14 = memref.load %arg2[%13] : memref<16xi32, #tpu.memory_space<smem>>
    %c1_i32_5 = arith.constant 1 : i32
    %c1_i32_6 = arith.constant 1 : i32
    %c0_i32_7 = arith.constant 0 : i32
    %15 = tpu.memref_slice %arg3[%14, %c0_i32_7] : memref<256x128xf32, #tpu.memory_space<any>> -> memref<1x128xf32, #tpu.memory_space<any>>
    %16 = tpu.memref_squeeze %15 : memref<1x128xf32, #tpu.memory_space<any>> -> memref<128xf32, #tpu.memory_space<any>>
    %c0_i32_8 = arith.constant 0 : i32
    %17 = tpu.memref_slice %arg6[%c1_i32_5, %c0_i32_8] : memref<8x128xf32, #tpu.memory_space<vmem>> -> memref<1x128xf32, #tpu.memory_space<vmem>>
    %18 = tpu.memref_squeeze %17 : memref<1x128xf32, #tpu.memory_space<vmem>> -> memref<128xf32, #tpu.memory_space<vmem>>
    %19 = tpu.memref_slice %arg7[%c1_i32_6] : memref<8x!tpu.dma_semaphore, #tpu.memory_space<semaphore_mem>> -> memref<1x!tpu.dma_semaphore, #tpu.memory_space<semaphore_mem>>
    %20 = tpu.memref_squeeze %19 : memref<1x!tpu.dma_semaphore, #tpu.memory_space<semaphore_mem>> -> memref<!tpu.dma_semaphore, #tpu.memory_space<semaphore_mem>>
    tpu.enqueue_dma source(%16 : memref<128xf32, #tpu.memory_space<any>>) target(%18 : memref<128xf32, #tpu.memory_space<vmem>>) target_semaphore(%20 : memref<!tpu.dma_semaphore, #tpu.memory_space<semaphore_mem>>)
    %c2_i32 = arith.constant 2 : i32
    %21 = arith.addi %2, %c2_i32 : i32
    %22 = arith.index_cast %21 : i32 to index
    %23 = memref.load %arg2[%22] : memref<16xi32, #tpu.memory_space<smem>>
    %c2_i32_9 = arith.constant 2 : i32
    %c2_i32_10 = arith.constant 2 : i32
    %c0_i32_11 = arith.constant 0 : i32
    %24 = tpu.memref_slice %arg3[%23, %c0_i32_11] : memref<256x128xf32, #tpu.memory_space<any>> -> memref<1x128xf32, #tpu.memory_space<any>>
    %25 = tpu.memref_squeeze %24 : memref<1x128xf32, #tpu.memory_space<any>> -> memref<128xf32, #tpu.memory_space<any>>
    %c0_i32_12 = arith.constant 0 : i32
    %26 = tpu.memref_slice %arg6[%c2_i32_9, %c0_i32_12] : memref<8x128xf32, #tpu.memory_space<vmem>> -> memref<1x128xf32, #tpu.memory_space<vmem>>
    %27 = tpu.memref_squeeze %26 : memref<1x128xf32, #tpu.memory_space<vmem>> -> memref<128xf32, #tpu.memory_space<vmem>>
    %28 = tpu.memref_slice %arg7[%c2_i32_10] : memref<8x!tpu.dma_semaphore, #tpu.memory_space<semaphore_mem>> -> memref<1x!tpu.dma_semaphore, #tpu.memory_space<semaphore_mem>>
    %29 = tpu.memref_squeeze %28 : memref<1x!tpu.dma_semaphore, #tpu.memory_space<semaphore_mem>> -> memref<!tpu.dma_semaphore, #tpu.memory_space<semaphore_mem>>
    tpu.enqueue_dma source(%25 : memref<128xf32, #tpu.memory_space<any>>) target(%27 : memref<128xf32, #tpu.memory_space<vmem>>) target_semaphore(%29 : memref<!tpu.dma_semaphore, #tpu.memory_space<semaphore_mem>>)
    %c3_i32 = arith.constant 3 : i32
    %30 = arith.addi %2, %c3_i32 : i32
    %31 = arith.index_cast %30 : i32 to index
    %32 = memref.load %arg2[%31] : memref<16xi32, #tpu.memory_space<smem>>
    %c3_i32_13 = arith.constant 3 : i32
    %c3_i32_14 = arith.constant 3 : i32
    %c0_i32_15 = arith.constant 0 : i32
    %33 = tpu.memref_slice %arg3[%32, %c0_i32_15] : memref<256x128xf32, #tpu.memory_space<any>> -> memref<1x128xf32, #tpu.memory_space<any>>
    %34 = tpu.memref_squeeze %33 : memref<1x128xf32, #tpu.memory_space<any>> -> memref<128xf32, #tpu.memory_space<any>>
    %c0_i32_16 = arith.constant 0 : i32
    %35 = tpu.memref_slice %arg6[%c3_i32_13, %c0_i32_16] : memref<8x128xf32, #tpu.memory_space<vmem>> -> memref<1x128xf32, #tpu.memory_space<vmem>>
    %36 = tpu.memref_squeeze %35 : memref<1x128xf32, #tpu.memory_space<vmem>> -> memref<128xf32, #tpu.memory_space<vmem>>
    %37 = tpu.memref_slice %arg7[%c3_i32_14] : memref<8x!tpu.dma_semaphore, #tpu.memory_space<semaphore_mem>> -> memref<1x!tpu.dma_semaphore, #tpu.memory_space<semaphore_mem>>
    %38 = tpu.memref_squeeze %37 : memref<1x!tpu.dma_semaphore, #tpu.memory_space<semaphore_mem>> -> memref<!tpu.dma_semaphore, #tpu.memory_space<semaphore_mem>>
    tpu.enqueue_dma source(%34 : memref<128xf32, #tpu.memory_space<any>>) target(%36 : memref<128xf32, #tpu.memory_space<vmem>>) target_semaphore(%38 : memref<!tpu.dma_semaphore, #tpu.memory_space<semaphore_mem>>)
    %c4_i32 = arith.constant 4 : i32
    %39 = arith.addi %2, %c4_i32 : i32
    %40 = arith.index_cast %39 : i32 to index
    %41 = memref.load %arg2[%40] : memref<16xi32, #tpu.memory_space<smem>>
    %c4_i32_17 = arith.constant 4 : i32
    %c4_i32_18 = arith.constant 4 : i32
    %c0_i32_19 = arith.constant 0 : i32
    %42 = tpu.memref_slice %arg3[%41, %c0_i32_19] : memref<256x128xf32, #tpu.memory_space<any>> -> memref<1x128xf32, #tpu.memory_space<any>>
    %43 = tpu.memref_squeeze %42 : memref<1x128xf32, #tpu.memory_space<any>> -> memref<128xf32, #tpu.memory_space<any>>
    %c0_i32_20 = arith.constant 0 : i32
    %44 = tpu.memref_slice %arg6[%c4_i32_17, %c0_i32_20] : memref<8x128xf32, #tpu.memory_space<vmem>> -> memref<1x128xf32, #tpu.memory_space<vmem>>
    %45 = tpu.memref_squeeze %44 : memref<1x128xf32, #tpu.memory_space<vmem>> -> memref<128xf32, #tpu.memory_space<vmem>>
    %46 = tpu.memref_slice %arg7[%c4_i32_18] : memref<8x!tpu.dma_semaphore, #tpu.memory_space<semaphore_mem>> -> memref<1x!tpu.dma_semaphore, #tpu.memory_space<semaphore_mem>>
    %47 = tpu.memref_squeeze %46 : memref<1x!tpu.dma_semaphore, #tpu.memory_space<semaphore_mem>> -> memref<!tpu.dma_semaphore, #tpu.memory_space<semaphore_mem>>
    tpu.enqueue_dma source(%43 : memref<128xf32, #tpu.memory_space<any>>) target(%45 : memref<128xf32, #tpu.memory_space<vmem>>) target_semaphore(%47 : memref<!tpu.dma_semaphore, #tpu.memory_space<semaphore_mem>>)
    %c5_i32 = arith.constant 5 : i32
    %48 = arith.addi %2, %c5_i32 : i32
    %49 = arith.index_cast %48 : i32 to index
    %50 = memref.load %arg2[%49] : memref<16xi32, #tpu.memory_space<smem>>
    %c5_i32_21 = arith.constant 5 : i32
    %c5_i32_22 = arith.constant 5 : i32
    %c0_i32_23 = arith.constant 0 : i32
    %51 = tpu.memref_slice %arg3[%50, %c0_i32_23] : memref<256x128xf32, #tpu.memory_space<any>> -> memref<1x128xf32, #tpu.memory_space<any>>
    %52 = tpu.memref_squeeze %51 : memref<1x128xf32, #tpu.memory_space<any>> -> memref<128xf32, #tpu.memory_space<any>>
    %c0_i32_24 = arith.constant 0 : i32
    %53 = tpu.memref_slice %arg6[%c5_i32_21, %c0_i32_24] : memref<8x128xf32, #tpu.memory_space<vmem>> -> memref<1x128xf32, #tpu.memory_space<vmem>>
    %54 = tpu.memref_squeeze %53 : memref<1x128xf32, #tpu.memory_space<vmem>> -> memref<128xf32, #tpu.memory_space<vmem>>
    %55 = tpu.memref_slice %arg7[%c5_i32_22] : memref<8x!tpu.dma_semaphore, #tpu.memory_space<semaphore_mem>> -> memref<1x!tpu.dma_semaphore, #tpu.memory_space<semaphore_mem>>
    %56 = tpu.memref_squeeze %55 : memref<1x!tpu.dma_semaphore, #tpu.memory_space<semaphore_mem>> -> memref<!tpu.dma_semaphore, #tpu.memory_space<semaphore_mem>>
    tpu.enqueue_dma source(%52 : memref<128xf32, #tpu.memory_space<any>>) target(%54 : memref<128xf32, #tpu.memory_space<vmem>>) target_semaphore(%56 : memref<!tpu.dma_semaphore, #tpu.memory_space<semaphore_mem>>)
    %c6_i32 = arith.constant 6 : i32
    %57 = arith.addi %2, %c6_i32 : i32
    %58 = arith.index_cast %57 : i32 to index
    %59 = memref.load %arg2[%58] : memref<16xi32, #tpu.memory_space<smem>>
    %c6_i32_25 = arith.constant 6 : i32
    %c6_i32_26 = arith.constant 6 : i32
    %c0_i32_27 = arith.constant 0 : i32
    %60 = tpu.memref_slice %arg3[%59, %c0_i32_27] : memref<256x128xf32, #tpu.memory_space<any>> -> memref<1x128xf32, #tpu.memory_space<any>>
    %61 = tpu.memref_squeeze %60 : memref<1x128xf32, #tpu.memory_space<any>> -> memref<128xf32, #tpu.memory_space<any>>
    %c0_i32_28 = arith.constant 0 : i32
    %62 = tpu.memref_slice %arg6[%c6_i32_25, %c0_i32_28] : memref<8x128xf32, #tpu.memory_space<vmem>> -> memref<1x128xf32, #tpu.memory_space<vmem>>
    %63 = tpu.memref_squeeze %62 : memref<1x128xf32, #tpu.memory_space<vmem>> -> memref<128xf32, #tpu.memory_space<vmem>>
    %64 = tpu.memref_slice %arg7[%c6_i32_26] : memref<8x!tpu.dma_semaphore, #tpu.memory_space<semaphore_mem>> -> memref<1x!tpu.dma_semaphore, #tpu.memory_space<semaphore_mem>>
    %65 = tpu.memref_squeeze %64 : memref<1x!tpu.dma_semaphore, #tpu.memory_space<semaphore_mem>> -> memref<!tpu.dma_semaphore, #tpu.memory_space<semaphore_mem>>
    tpu.enqueue_dma source(%61 : memref<128xf32, #tpu.memory_space<any>>) target(%63 : memref<128xf32, #tpu.memory_space<vmem>>) target_semaphore(%65 : memref<!tpu.dma_semaphore, #tpu.memory_space<semaphore_mem>>)
    %c7_i32 = arith.constant 7 : i32
    %66 = arith.addi %2, %c7_i32 : i32
    %67 = arith.index_cast %66 : i32 to index
    %68 = memref.load %arg2[%67] : memref<16xi32, #tpu.memory_space<smem>>
    %c7_i32_29 = arith.constant 7 : i32
    %c7_i32_30 = arith.constant 7 : i32
    %c0_i32_31 = arith.constant 0 : i32
    %69 = tpu.memref_slice %arg3[%68, %c0_i32_31] : memref<256x128xf32, #tpu.memory_space<any>> -> memref<1x128xf32, #tpu.memory_space<any>>
    %70 = tpu.memref_squeeze %69 : memref<1x128xf32, #tpu.memory_space<any>> -> memref<128xf32, #tpu.memory_space<any>>
    %c0_i32_32 = arith.constant 0 : i32
    %71 = tpu.memref_slice %arg6[%c7_i32_29, %c0_i32_32] : memref<8x128xf32, #tpu.memory_space<vmem>> -> memref<1x128xf32, #tpu.memory_space<vmem>>
    %72 = tpu.memref_squeeze %71 : memref<1x128xf32, #tpu.memory_space<vmem>> -> memref<128xf32, #tpu.memory_space<vmem>>
    %73 = tpu.memref_slice %arg7[%c7_i32_30] : memref<8x!tpu.dma_semaphore, #tpu.memory_space<semaphore_mem>> -> memref<1x!tpu.dma_semaphore, #tpu.memory_space<semaphore_mem>>
    %74 = tpu.memref_squeeze %73 : memref<1x!tpu.dma_semaphore, #tpu.memory_space<semaphore_mem>> -> memref<!tpu.dma_semaphore, #tpu.memory_space<semaphore_mem>>
    tpu.enqueue_dma source(%70 : memref<128xf32, #tpu.memory_space<any>>) target(%72 : memref<128xf32, #tpu.memory_space<vmem>>) target_semaphore(%74 : memref<!tpu.dma_semaphore, #tpu.memory_space<semaphore_mem>>)
    %c0_i32_33 = arith.constant 0 : i32
    %c0_i32_34 = arith.constant 0 : i32
    %c0_i32_35 = arith.constant 0 : i32
    %c0_i32_36 = arith.constant 0 : i32
    %75 = tpu.memref_slice %arg3[%c0_i32_33, %c0_i32_36] : memref<256x128xf32, #tpu.memory_space<any>> -> memref<1x128xf32, #tpu.memory_space<any>>
    %76 = tpu.memref_squeeze %75 : memref<1x128xf32, #tpu.memory_space<any>> -> memref<128xf32, #tpu.memory_space<any>>
    %c0_i32_37 = arith.constant 0 : i32
    %77 = tpu.memref_slice %arg6[%c0_i32_34, %c0_i32_37] : memref<8x128xf32, #tpu.memory_space<vmem>> -> memref<1x128xf32, #tpu.memory_space<vmem>>
    %78 = tpu.memref_squeeze %77 : memref<1x128xf32, #tpu.memory_space<vmem>> -> memref<128xf32, #tpu.memory_space<vmem>>
    %79 = tpu.memref_slice %arg7[%c0_i32_35] : memref<8x!tpu.dma_semaphore, #tpu.memory_space<semaphore_mem>> -> memref<1x!tpu.dma_semaphore, #tpu.memory_space<semaphore_mem>>
    %80 = tpu.memref_squeeze %79 : memref<1x!tpu.dma_semaphore, #tpu.memory_space<semaphore_mem>> -> memref<!tpu.dma_semaphore, #tpu.memory_space<semaphore_mem>>
    tpu.wait_dma2 semaphore(%80 : memref<!tpu.dma_semaphore, #tpu.memory_space<semaphore_mem>>) src(%76 : memref<128xf32, #tpu.memory_space<any>>) dst(%78 : memref<128xf32, #tpu.memory_space<vmem>>)
    %c0_i32_38 = arith.constant 0 : i32
    %c1_i32_39 = arith.constant 1 : i32
    %c1_i32_40 = arith.constant 1 : i32
    %c0_i32_41 = arith.constant 0 : i32
    %81 = tpu.memref_slice %arg3[%c0_i32_38, %c0_i32_41] : memref<256x128xf32, #tpu.memory_space<any>> -> memref<1x128xf32, #tpu.memory_space<any>>
    %82 = tpu.memref_squeeze %81 : memref<1x128xf32, #tpu.memory_space<any>> -> memref<128xf32, #tpu.memory_space<any>>
    %c0_i32_42 = arith.constant 0 : i32
    %83 = tpu.memref_slice %arg6[%c1_i32_39, %c0_i32_42] : memref<8x128xf32, #tpu.memory_space<vmem>> -> memref<1x128xf32, #tpu.memory_space<vmem>>
    %84 = tpu.memref_squeeze %83 : memref<1x128xf32, #tpu.memory_space<vmem>> -> memref<128xf32, #tpu.memory_space<vmem>>
    %85 = tpu.memref_slice %arg7[%c1_i32_40] : memref<8x!tpu.dma_semaphore, #tpu.memory_space<semaphore_mem>> -> memref<1x!tpu.dma_semaphore, #tpu.memory_space<semaphore_mem>>
    %86 = tpu.memref_squeeze %85 : memref<1x!tpu.dma_semaphore, #tpu.memory_space<semaphore_mem>> -> memref<!tpu.dma_semaphore, #tpu.memory_space<semaphore_mem>>
    tpu.wait_dma2 semaphore(%86 : memref<!tpu.dma_semaphore, #tpu.memory_space<semaphore_mem>>) src(%82 : memref<128xf32, #tpu.memory_space<any>>) dst(%84 : memref<128xf32, #tpu.memory_space<vmem>>)
    %c0_i32_43 = arith.constant 0 : i32
    %c2_i32_44 = arith.constant 2 : i32
    %c2_i32_45 = arith.constant 2 : i32
    %c0_i32_46 = arith.constant 0 : i32
    %87 = tpu.memref_slice %arg3[%c0_i32_43, %c0_i32_46] : memref<256x128xf32, #tpu.memory_space<any>> -> memref<1x128xf32, #tpu.memory_space<any>>
    %88 = tpu.memref_squeeze %87 : memref<1x128xf32, #tpu.memory_space<any>> -> memref<128xf32, #tpu.memory_space<any>>
    %c0_i32_47 = arith.constant 0 : i32
    %89 = tpu.memref_slice %arg6[%c2_i32_44, %c0_i32_47] : memref<8x128xf32, #tpu.memory_space<vmem>> -> memref<1x128xf32, #tpu.memory_space<vmem>>
    %90 = tpu.memref_squeeze %89 : memref<1x128xf32, #tpu.memory_space<vmem>> -> memref<128xf32, #tpu.memory_space<vmem>>
    %91 = tpu.memref_slice %arg7[%c2_i32_45] : memref<8x!tpu.dma_semaphore, #tpu.memory_space<semaphore_mem>> -> memref<1x!tpu.dma_semaphore, #tpu.memory_space<semaphore_mem>>
    %92 = tpu.memref_squeeze %91 : memref<1x!tpu.dma_semaphore, #tpu.memory_space<semaphore_mem>> -> memref<!tpu.dma_semaphore, #tpu.memory_space<semaphore_mem>>
    tpu.wait_dma2 semaphore(%92 : memref<!tpu.dma_semaphore, #tpu.memory_space<semaphore_mem>>) src(%88 : memref<128xf32, #tpu.memory_space<any>>) dst(%90 : memref<128xf32, #tpu.memory_space<vmem>>)
    %c0_i32_48 = arith.constant 0 : i32
    %c3_i32_49 = arith.constant 3 : i32
    %c3_i32_50 = arith.constant 3 : i32
    %c0_i32_51 = arith.constant 0 : i32
    %93 = tpu.memref_slice %arg3[%c0_i32_48, %c0_i32_51] : memref<256x128xf32, #tpu.memory_space<any>> -> memref<1x128xf32, #tpu.memory_space<any>>
    %94 = tpu.memref_squeeze %93 : memref<1x128xf32, #tpu.memory_space<any>> -> memref<128xf32, #tpu.memory_space<any>>
    %c0_i32_52 = arith.constant 0 : i32
    %95 = tpu.memref_slice %arg6[%c3_i32_49, %c0_i32_52] : memref<8x128xf32, #tpu.memory_space<vmem>> -> memref<1x128xf32, #tpu.memory_space<vmem>>
    %96 = tpu.memref_squeeze %95 : memref<1x128xf32, #tpu.memory_space<vmem>> -> memref<128xf32, #tpu.memory_space<vmem>>
    %97 = tpu.memref_slice %arg7[%c3_i32_50] : memref<8x!tpu.dma_semaphore, #tpu.memory_space<semaphore_mem>> -> memref<1x!tpu.dma_semaphore, #tpu.memory_space<semaphore_mem>>
    %98 = tpu.memref_squeeze %97 : memref<1x!tpu.dma_semaphore, #tpu.memory_space<semaphore_mem>> -> memref<!tpu.dma_semaphore, #tpu.memory_space<semaphore_mem>>
    tpu.wait_dma2 semaphore(%98 : memref<!tpu.dma_semaphore, #tpu.memory_space<semaphore_mem>>) src(%94 : memref<128xf32, #tpu.memory_space<any>>) dst(%96 : memref<128xf32, #tpu.memory_space<vmem>>)
    %c0_i32_53 = arith.constant 0 : i32
    %c4_i32_54 = arith.constant 4 : i32
    %c4_i32_55 = arith.constant 4 : i32
    %c0_i32_56 = arith.constant 0 : i32
    %99 = tpu.memref_slice %arg3[%c0_i32_53, %c0_i32_56] : memref<256x128xf32, #tpu.memory_space<any>> -> memref<1x128xf32, #tpu.memory_space<any>>
    %100 = tpu.memref_squeeze %99 : memref<1x128xf32, #tpu.memory_space<any>> -> memref<128xf32, #tpu.memory_space<any>>
    %c0_i32_57 = arith.constant 0 : i32
    %101 = tpu.memref_slice %arg6[%c4_i32_54, %c0_i32_57] : memref<8x128xf32, #tpu.memory_space<vmem>> -> memref<1x128xf32, #tpu.memory_space<vmem>>
    %102 = tpu.memref_squeeze %101 : memref<1x128xf32, #tpu.memory_space<vmem>> -> memref<128xf32, #tpu.memory_space<vmem>>
    %103 = tpu.memref_slice %arg7[%c4_i32_55] : memref<8x!tpu.dma_semaphore, #tpu.memory_space<semaphore_mem>> -> memref<1x!tpu.dma_semaphore, #tpu.memory_space<semaphore_mem>>
    %104 = tpu.memref_squeeze %103 : memref<1x!tpu.dma_semaphore, #tpu.memory_space<semaphore_mem>> -> memref<!tpu.dma_semaphore, #tpu.memory_space<semaphore_mem>>
    tpu.wait_dma2 semaphore(%104 : memref<!tpu.dma_semaphore, #tpu.memory_space<semaphore_mem>>) src(%100 : memref<128xf32, #tpu.memory_space<any>>) dst(%102 : memref<128xf32, #tpu.memory_space<vmem>>)
    %c0_i32_58 = arith.constant 0 : i32
    %c5_i32_59 = arith.constant 5 : i32
    %c5_i32_60 = arith.constant 5 : i32
    %c0_i32_61 = arith.constant 0 : i32
    %105 = tpu.memref_slice %arg3[%c0_i32_58, %c0_i32_61] : memref<256x128xf32, #tpu.memory_space<any>> -> memref<1x128xf32, #tpu.memory_space<any>>
    %106 = tpu.memref_squeeze %105 : memref<1x128xf32, #tpu.memory_space<any>> -> memref<128xf32, #tpu.memory_space<any>>
    %c0_i32_62 = arith.constant 0 : i32
    %107 = tpu.memref_slice %arg6[%c5_i32_59, %c0_i32_62] : memref<8x128xf32, #tpu.memory_space<vmem>> -> memref<1x128xf32, #tpu.memory_space<vmem>>
    %108 = tpu.memref_squeeze %107 : memref<1x128xf32, #tpu.memory_space<vmem>> -> memref<128xf32, #tpu.memory_space<vmem>>
    %109 = tpu.memref_slice %arg7[%c5_i32_60] : memref<8x!tpu.dma_semaphore, #tpu.memory_space<semaphore_mem>> -> memref<1x!tpu.dma_semaphore, #tpu.memory_space<semaphore_mem>>
    %110 = tpu.memref_squeeze %109 : memref<1x!tpu.dma_semaphore, #tpu.memory_space<semaphore_mem>> -> memref<!tpu.dma_semaphore, #tpu.memory_space<semaphore_mem>>
    tpu.wait_dma2 semaphore(%110 : memref<!tpu.dma_semaphore, #tpu.memory_space<semaphore_mem>>) src(%106 : memref<128xf32, #tpu.memory_space<any>>) dst(%108 : memref<128xf32, #tpu.memory_space<vmem>>)
    %c0_i32_63 = arith.constant 0 : i32
    %c6_i32_64 = arith.constant 6 : i32
    %c6_i32_65 = arith.constant 6 : i32
    %c0_i32_66 = arith.constant 0 : i32
    %111 = tpu.memref_slice %arg3[%c0_i32_63, %c0_i32_66] : memref<256x128xf32, #tpu.memory_space<any>> -> memref<1x128xf32, #tpu.memory_space<any>>
    %112 = tpu.memref_squeeze %111 : memref<1x128xf32, #tpu.memory_space<any>> -> memref<128xf32, #tpu.memory_space<any>>
    %c0_i32_67 = arith.constant 0 : i32
    %113 = tpu.memref_slice %arg6[%c6_i32_64, %c0_i32_67] : memref<8x128xf32, #tpu.memory_space<vmem>> -> memref<1x128xf32, #tpu.memory_space<vmem>>
    %114 = tpu.memref_squeeze %113 : memref<1x128xf32, #tpu.memory_space<vmem>> -> memref<128xf32, #tpu.memory_space<vmem>>
    %115 = tpu.memref_slice %arg7[%c6_i32_65] : memref<8x!tpu.dma_semaphore, #tpu.memory_space<semaphore_mem>> -> memref<1x!tpu.dma_semaphore, #tpu.memory_space<semaphore_mem>>
    %116 = tpu.memref_squeeze %115 : memref<1x!tpu.dma_semaphore, #tpu.memory_space<semaphore_mem>> -> memref<!tpu.dma_semaphore, #tpu.memory_space<semaphore_mem>>
    tpu.wait_dma2 semaphore(%116 : memref<!tpu.dma_semaphore, #tpu.memory_space<semaphore_mem>>) src(%112 : memref<128xf32, #tpu.memory_space<any>>) dst(%114 : memref<128xf32, #tpu.memory_space<vmem>>)
    %c0_i32_68 = arith.constant 0 : i32
    %c7_i32_69 = arith.constant 7 : i32
    %c7_i32_70 = arith.constant 7 : i32
    %c0_i32_71 = arith.constant 0 : i32
    %117 = tpu.memref_slice %arg3[%c0_i32_68, %c0_i32_71] : memref<256x128xf32, #tpu.memory_space<any>> -> memref<1x128xf32, #tpu.memory_space<any>>
    %118 = tpu.memref_squeeze %117 : memref<1x128xf32, #tpu.memory_space<any>> -> memref<128xf32, #tpu.memory_space<any>>
    %c0_i32_72 = arith.constant 0 : i32
    %119 = tpu.memref_slice %arg6[%c7_i32_69, %c0_i32_72] : memref<8x128xf32, #tpu.memory_space<vmem>> -> memref<1x128xf32, #tpu.memory_space<vmem>>
    %120 = tpu.memref_squeeze %119 : memref<1x128xf32, #tpu.memory_space<vmem>> -> memref<128xf32, #tpu.memory_space<vmem>>
    %121 = tpu.memref_slice %arg7[%c7_i32_70] : memref<8x!tpu.dma_semaphore, #tpu.memory_space<semaphore_mem>> -> memref<1x!tpu.dma_semaphore, #tpu.memory_space<semaphore_mem>>
    %122 = tpu.memref_squeeze %121 : memref<1x!tpu.dma_semaphore, #tpu.memory_space<semaphore_mem>> -> memref<!tpu.dma_semaphore, #tpu.memory_space<semaphore_mem>>
    tpu.wait_dma2 semaphore(%122 : memref<!tpu.dma_semaphore, #tpu.memory_space<semaphore_mem>>) src(%118 : memref<128xf32, #tpu.memory_space<any>>) dst(%120 : memref<128xf32, #tpu.memory_space<vmem>>)
    %c0 = arith.constant 0 : index
    %c0_73 = arith.constant 0 : index
    %123 = vector.load %arg6[%c0, %c0_73] : memref<8x128xf32, #tpu.memory_space<vmem>>, vector<8x128xf32>
    %c0_74 = arith.constant 0 : index
    %c0_75 = arith.constant 0 : index
    %124 = vector.load %arg4[%c0_74, %c0_75] : memref<8x128xf32, #tpu.memory_space<vmem>>, vector<8x128xf32>
    %125 = arith.addf %123, %124 : vector<8x128xf32>
    %c0_76 = arith.constant 0 : index
    %c0_77 = arith.constant 0 : index
    %126 = vector.load %arg5[%c0_76, %c0_77] : memref<8x128xf32, #tpu.memory_space<vmem>>, vector<8x128xf32>
    tpu.vector_store %arg5[%c0_76, %c0_77], %125 {strides = array<i32>} : memref<8x128xf32, #tpu.memory_space<vmem>>, vector<8x128xf32>,
    return
  }
  func.func @transform_1(%arg0: i32, %arg1: i32, %arg2: memref<16xi32, #tpu.memory_space<smem>>) -> (i32, i32) {
    %c0_i32 = arith.constant 0 : i32
    %c0_i32_0 = arith.constant 0 : i32
    return %arg1, %c0_i32 : i32, i32
  }
  func.func @transform_2(%arg0: i32, %arg1: i32, %arg2: memref<16xi32, #tpu.memory_space<smem>>) -> (i32, i32) {
    %c1_i32 = arith.constant 1 : i32
    %0 = arith.muli %arg0, %c1_i32 : i32
    %1 = arith.addi %0, %arg1 : i32
    %c0_i32 = arith.constant 0 : i32
    %c0_i32_0 = arith.constant 0 : i32
    return %1, %c0_i32 : i32, i32
  }
}

module attributes {stable_mosaic.version = 11 : i64} {
  func.func @_linear_kernel(%arg0: i32, %arg1: i32, %arg2: i32, %arg3: memref<16x128xf32, #tpu.memory_space<vmem>>, %arg4: memref<128x384xf32, #tpu.memory_space<vmem>>, %arg5: memref<1x384xf32, #tpu.memory_space<vmem>>, %arg6: memref<16x384xf32, #tpu.memory_space<vmem>>, %arg7: memref<16x384xf32, #tpu.memory_space<vmem>>) attributes {dimension_semantics = [#tpu.dimension_semantics<parallel>, #tpu.dimension_semantics<parallel>, #tpu.dimension_semantics<arbitrary>], iteration_bounds = array<i64: 1, 1, 1>, scalar_prefetch = 0 : i64, scratch_operands = 1 : i64, tpu.core_type = #tpu.core_type<tc>, window_params = [{transform_indices = @transform_0, window_bounds = array<i64: 16, 128>}, {transform_indices = @transform_1, window_bounds = array<i64: 128, 384>}, {transform_indices = @transform_2, window_bounds = array<i64: 1, 384>}, {transform_indices = @transform_3, window_bounds = array<i64: 16, 384>}]} {
    %c0_i32 = arith.constant 0 : i32
    %0 = arith.cmpi eq, %arg2, %c0_i32 : i32
    %1 = arith.extui %0 : i1 to i32
    %c0_i32_0 = arith.constant 0 : i32
    %2 = arith.cmpi ne, %1, %c0_i32_0 : i32
    scf.if %2 {
      %cst_10 = arith.constant 0.000000e+00 : f32
      %12 = vector.broadcast %cst_10 : f32 to vector<16x384xf32>
      %c0_11 = arith.constant 0 : index
      %c0_12 = arith.constant 0 : index
      %13 = vector.load %arg7[%c0_11, %c0_12] : memref<16x384xf32, #tpu.memory_space<vmem>>, vector<16x384xf32>
      tpu.vector_store %arg7[%c0_11, %c0_12], %12 {strides = array<i32>} : memref<16x384xf32, #tpu.memory_space<vmem>>, vector<16x384xf32>,
    } else {
    }
    %c0 = arith.constant 0 : index
    %c0_1 = arith.constant 0 : index
    %3 = vector.load %arg7[%c0, %c0_1] : memref<16x384xf32, #tpu.memory_space<vmem>>, vector<16x384xf32>
    %c0_2 = arith.constant 0 : index
    %c0_3 = arith.constant 0 : index
    %4 = vector.load %arg3[%c0_2, %c0_3] : memref<16x128xf32, #tpu.memory_space<vmem>>, vector<16x128xf32>
    %c0_4 = arith.constant 0 : index
    %c0_5 = arith.constant 0 : index
    %5 = vector.load %arg4[%c0_4, %c0_5] : memref<128x384xf32, #tpu.memory_space<vmem>>, vector<128x384xf32>
    %cst = arith.constant dense<0.000000e+00> : vector<16x384xf32>
    %6 = tpu.matmul %4, %5, %cst {dimension_numbers = #tpu.dot_dimension_numbers<[1], [0], [0], [1], [0, 0, 1, 1], [], []>} : vector<16x128xf32>, vector<128x384xf32>, vector<16x384xf32> -> vector<16x384xf32>
    %7 = arith.addf %3, %6 : vector<16x384xf32>
    %c0_6 = arith.constant 0 : index
    %c0_7 = arith.constant 0 : index
    %8 = vector.load %arg7[%c0_6, %c0_7] : memref<16x384xf32, #tpu.memory_space<vmem>>, vector<16x384xf32>
    tpu.vector_store %arg7[%c0_6, %c0_7], %7 {strides = array<i32>} : memref<16x384xf32, #tpu.memory_space<vmem>>, vector<16x384xf32>,
    %c0_i32_8 = arith.constant 0 : i32
    %9 = arith.cmpi eq, %arg2, %c0_i32_8 : i32
    %10 = arith.extui %9 : i1 to i32
    %c0_i32_9 = arith.constant 0 : i32
    %11 = arith.cmpi ne, %10, %c0_i32_9 : i32
    scf.if %11 {
      %c0_10 = arith.constant 0 : index
      %c0_11 = arith.constant 0 : index
      %12 = vector.load %arg7[%c0_10, %c0_11] : memref<16x384xf32, #tpu.memory_space<vmem>>, vector<16x384xf32>
      %c0_12 = arith.constant 0 : index
      %c0_13 = arith.constant 0 : index
      %13 = vector.load %arg5[%c0_12, %c0_13] : memref<1x384xf32, #tpu.memory_space<vmem>>, vector<1x384xf32>
      %14 = vector.broadcast %13 : vector<1x384xf32> to vector<16x384xf32>
      %15 = arith.addf %12, %14 : vector<16x384xf32>
      %c0_14 = arith.constant 0 : index
      %c0_15 = arith.constant 0 : index
      %16 = vector.load %arg6[%c0_14, %c0_15] : memref<16x384xf32, #tpu.memory_space<vmem>>, vector<16x384xf32>
      tpu.vector_store %arg6[%c0_14, %c0_15], %15 {strides = array<i32>} : memref<16x384xf32, #tpu.memory_space<vmem>>, vector<16x384xf32>,
    } else {
    }
    return
  }
  func.func @transform_0(%arg0: i32, %arg1: i32, %arg2: i32) -> (i32, i32) {
    %c0_i32 = arith.constant 0 : i32
    return %arg0, %arg2 : i32, i32
  }
  func.func @transform_1(%arg0: i32, %arg1: i32, %arg2: i32) -> (i32, i32) {
    %c0_i32 = arith.constant 0 : i32
    return %arg2, %arg1 : i32, i32
  }
  func.func @transform_2(%arg0: i32, %arg1: i32, %arg2: i32) -> (i32, i32) {
    %c0_i32 = arith.constant 0 : i32
    %c0_i32_0 = arith.constant 0 : i32
    return %c0_i32, %arg1 : i32, i32
  }
  func.func @transform_3(%arg0: i32, %arg1: i32, %arg2: i32) -> (i32, i32) {
    %c0_i32 = arith.constant 0 : i32
    return %arg0, %arg1 : i32, i32
  }
}

module attributes {stable_mosaic.version = 11 : i64} {
  func.func @_linear_kernel(%arg0: i32, %arg1: i32, %arg2: i32, %arg3: memref<16x128xf32, #tpu.memory_space<vmem>>, %arg4: memref<128x128xf32, #tpu.memory_space<vmem>>, %arg5: memref<1x128xf32, #tpu.memory_space<vmem>>, %arg6: memref<16x128xf32, #tpu.memory_space<vmem>>, %arg7: memref<1x128xf32, #tpu.memory_space<vmem>>, %arg8: memref<1x128xf32, #tpu.memory_space<vmem>>, %arg9: memref<16x128xf32, #tpu.memory_space<vmem>>, %arg10: memref<16x128xf32, #tpu.memory_space<vmem>>) attributes {dimension_semantics = [#tpu.dimension_semantics<parallel>, #tpu.dimension_semantics<parallel>, #tpu.dimension_semantics<arbitrary>], iteration_bounds = array<i64: 1, 1, 1>, scalar_prefetch = 0 : i64, scratch_operands = 1 : i64, tpu.core_type = #tpu.core_type<tc>, window_params = [{transform_indices = @transform_0, window_bounds = array<i64: 16, 128>}, {transform_indices = @transform_1, window_bounds = array<i64: 128, 128>}, {transform_indices = @transform_2, window_bounds = array<i64: 1, 128>}, {transform_indices = @transform_3, window_bounds = array<i64: 16, 128>}, {transform_indices = @transform_4, window_bounds = array<i64: 1, 128>}, {transform_indices = @transform_5, window_bounds = array<i64: 1, 128>}, {transform_indices = @transform_6, window_bounds = array<i64: 16, 128>}]} {
    %c0_i32 = arith.constant 0 : i32
    %0 = arith.cmpi eq, %arg2, %c0_i32 : i32
    %1 = arith.extui %0 : i1 to i32
    %c0_i32_0 = arith.constant 0 : i32
    %2 = arith.cmpi ne, %1, %c0_i32_0 : i32
    scf.if %2 {
      %cst_10 = arith.constant 0.000000e+00 : f32
      %12 = vector.broadcast %cst_10 : f32 to vector<16x128xf32>
      %c0_11 = arith.constant 0 : index
      %c0_12 = arith.constant 0 : index
      %13 = vector.load %arg10[%c0_11, %c0_12] : memref<16x128xf32, #tpu.memory_space<vmem>>, vector<16x128xf32>
      tpu.vector_store %arg10[%c0_11, %c0_12], %12 {strides = array<i32>} : memref<16x128xf32, #tpu.memory_space<vmem>>, vector<16x128xf32>,
    } else {
    }
    %c0 = arith.constant 0 : index
    %c0_1 = arith.constant 0 : index
    %3 = vector.load %arg10[%c0, %c0_1] : memref<16x128xf32, #tpu.memory_space<vmem>>, vector<16x128xf32>
    %c0_2 = arith.constant 0 : index
    %c0_3 = arith.constant 0 : index
    %4 = vector.load %arg3[%c0_2, %c0_3] : memref<16x128xf32, #tpu.memory_space<vmem>>, vector<16x128xf32>
    %c0_4 = arith.constant 0 : index
    %c0_5 = arith.constant 0 : index
    %5 = vector.load %arg4[%c0_4, %c0_5] : memref<128x128xf32, #tpu.memory_space<vmem>>, vector<128x128xf32>
    %cst = arith.constant dense<0.000000e+00> : vector<16x128xf32>
    %6 = tpu.matmul %4, %5, %cst {dimension_numbers = #tpu.dot_dimension_numbers<[1], [0], [0], [1], [0, 0, 1, 1], [], []>} : vector<16x128xf32>, vector<128x128xf32>, vector<16x128xf32> -> vector<16x128xf32>
    %7 = arith.addf %3, %6 : vector<16x128xf32>
    %c0_6 = arith.constant 0 : index
    %c0_7 = arith.constant 0 : index
    %8 = vector.load %arg10[%c0_6, %c0_7] : memref<16x128xf32, #tpu.memory_space<vmem>>, vector<16x128xf32>
    tpu.vector_store %arg10[%c0_6, %c0_7], %7 {strides = array<i32>} : memref<16x128xf32, #tpu.memory_space<vmem>>, vector<16x128xf32>,
    %c0_i32_8 = arith.constant 0 : i32
    %9 = arith.cmpi eq, %arg2, %c0_i32_8 : i32
    %10 = arith.extui %9 : i1 to i32
    %c0_i32_9 = arith.constant 0 : i32
    %11 = arith.cmpi ne, %10, %c0_i32_9 : i32
    scf.if %11 {
      %c0_10 = arith.constant 0 : index
      %c0_11 = arith.constant 0 : index
      %12 = vector.load %arg10[%c0_10, %c0_11] : memref<16x128xf32, #tpu.memory_space<vmem>>, vector<16x128xf32>
      %c0_12 = arith.constant 0 : index
      %c0_13 = arith.constant 0 : index
      %13 = vector.load %arg5[%c0_12, %c0_13] : memref<1x128xf32, #tpu.memory_space<vmem>>, vector<1x128xf32>
      %14 = vector.broadcast %13 : vector<1x128xf32> to vector<16x128xf32>
      %15 = arith.addf %12, %14 : vector<16x128xf32>
      %c0_14 = arith.constant 0 : index
      %c0_15 = arith.constant 0 : index
      %16 = vector.load %arg6[%c0_14, %c0_15] : memref<16x128xf32, #tpu.memory_space<vmem>>, vector<16x128xf32>
      %17 = arith.addf %15, %16 : vector<16x128xf32>
      %cst_16 = arith.constant dense<0.000000e+00> : vector<16xf32>
      %18 = vector.multi_reduction <add>, %17, %cst_16 [1] : vector<16x128xf32> to vector<16xf32>
      %19 = vector.shape_cast %18 : vector<16xf32> to vector<16x1xf32>
      %cst_17 = arith.constant 1.280000e+02 : f32
      %20 = vector.broadcast %cst_17 : f32 to vector<16x1xf32>
      %21 = arith.divf %19, %20 : vector<16x1xf32>
      %22 = vector.broadcast %21 : vector<16x1xf32> to vector<16x128xf32>
      %23 = arith.subf %17, %22 : vector<16x128xf32>
      %24 = arith.mulf %23, %23 : vector<16x128xf32>
      %cst_18 = arith.constant dense<0.000000e+00> : vector<16xf32>
      %25 = vector.multi_reduction <add>, %24, %cst_18 [1] : vector<16x128xf32> to vector<16xf32>
      %26 = vector.shape_cast %25 : vector<16xf32> to vector<16x1xf32>
      %cst_19 = arith.constant 1.280000e+02 : f32
      %27 = vector.broadcast %cst_19 : f32 to vector<16x1xf32>
      %28 = arith.divf %26, %27 : vector<16x1xf32>
      %29 = vector.broadcast %21 : vector<16x1xf32> to vector<16x128xf32>
      %30 = arith.subf %17, %29 : vector<16x128xf32>
      %cst_20 = arith.constant 9.99999974E-6 : f32
      %31 = vector.broadcast %cst_20 : f32 to vector<16x1xf32>
      %32 = arith.addf %28, %31 : vector<16x1xf32>
      %33 = math.rsqrt %32 : vector<16x1xf32>
      %34 = vector.broadcast %33 : vector<16x1xf32> to vector<16x128xf32>
      %35 = arith.mulf %30, %34 : vector<16x128xf32>
      %c0_21 = arith.constant 0 : index
      %c0_22 = arith.constant 0 : index
      %36 = vector.load %arg7[%c0_21, %c0_22] : memref<1x128xf32, #tpu.memory_space<vmem>>, vector<1x128xf32>
      %37 = vector.broadcast %36 : vector<1x128xf32> to vector<16x128xf32>
      %38 = arith.mulf %35, %37 : vector<16x128xf32>
      %c0_23 = arith.constant 0 : index
      %c0_24 = arith.constant 0 : index
      %39 = vector.load %arg8[%c0_23, %c0_24] : memref<1x128xf32, #tpu.memory_space<vmem>>, vector<1x128xf32>
      %40 = vector.broadcast %39 : vector<1x128xf32> to vector<16x128xf32>
      %41 = arith.addf %38, %40 : vector<16x128xf32>
      %c0_25 = arith.constant 0 : index
      %c0_26 = arith.constant 0 : index
      %42 = vector.load %arg9[%c0_25, %c0_26] : memref<16x128xf32, #tpu.memory_space<vmem>>, vector<16x128xf32>
      tpu.vector_store %arg9[%c0_25, %c0_26], %41 {strides = array<i32>} : memref<16x128xf32, #tpu.memory_space<vmem>>, vector<16x128xf32>,
    } else {
    }
    return
  }
  func.func @transform_0(%arg0: i32, %arg1: i32, %arg2: i32) -> (i32, i32) {
    %c0_i32 = arith.constant 0 : i32
    return %arg0, %arg2 : i32, i32
  }
  func.func @transform_1(%arg0: i32, %arg1: i32, %arg2: i32) -> (i32, i32) {
    %c0_i32 = arith.constant 0 : i32
    return %arg2, %arg1 : i32, i32
  }
  func.func @transform_2(%arg0: i32, %arg1: i32, %arg2: i32) -> (i32, i32) {
    %c0_i32 = arith.constant 0 : i32
    %c0_i32_0 = arith.constant 0 : i32
    return %c0_i32, %arg1 : i32, i32
  }
  func.func @transform_3(%arg0: i32, %arg1: i32, %arg2: i32) -> (i32, i32) {
    %c0_i32 = arith.constant 0 : i32
    return %arg0, %arg1 : i32, i32
  }
  func.func @transform_4(%arg0: i32, %arg1: i32, %arg2: i32) -> (i32, i32) {
    %c0_i32 = arith.constant 0 : i32
    %c0_i32_0 = arith.constant 0 : i32
    return %c0_i32, %arg1 : i32, i32
  }
  func.func @transform_5(%arg0: i32, %arg1: i32, %arg2: i32) -> (i32, i32) {
    %c0_i32 = arith.constant 0 : i32
    %c0_i32_0 = arith.constant 0 : i32
    return %c0_i32, %arg1 : i32, i32
  }
  func.func @transform_6(%arg0: i32, %arg1: i32, %arg2: i32) -> (i32, i32) {
    %c0_i32 = arith.constant 0 : i32
    return %arg0, %arg1 : i32, i32
  }
}

module attributes {stable_mosaic.version = 11 : i64} {
  func.func @_flash_attn_kernel(%arg0: i32, %arg1: i32, %arg2: i32, %arg3: memref<8x1xi32, #tpu.memory_space<vmem>>, %arg4: memref<8x128xf32, #tpu.memory_space<vmem>>, %arg5: memref<8x128xf32, #tpu.memory_space<vmem>>, %arg6: memref<8x128xf32, #tpu.memory_space<vmem>>, %arg7: memref<8x128xf32, #tpu.memory_space<vmem>>, %arg8: memref<4x8x1xf32, #tpu.memory_space<vmem>>, %arg9: memref<4x8x1xf32, #tpu.memory_space<vmem>>, %arg10: memref<4x8x32xf32, #tpu.memory_space<vmem>>) attributes {dimension_semantics = [#tpu.dimension_semantics<parallel>, #tpu.dimension_semantics<parallel>, #tpu.dimension_semantics<arbitrary>], iteration_bounds = array<i64: 2, 1, 1>, scalar_prefetch = 0 : i64, scratch_operands = 3 : i64, tpu.core_type = #tpu.core_type<tc>, window_params = [{transform_indices = @transform_0, window_bounds = array<i64: 8, 1>}, {transform_indices = @transform_1, window_bounds = array<i64: 8, 128>}, {transform_indices = @transform_2, window_bounds = array<i64: 8, 128>}, {transform_indices = @transform_3, window_bounds = array<i64: 8, 128>}, {transform_indices = @transform_4, window_bounds = array<i64: 8, 128>}]} {
    %c0_i32 = arith.constant 0 : i32
    %0 = arith.cmpi eq, %arg2, %c0_i32 : i32
    %1 = arith.extui %0 : i1 to i32
    %c0_i32_0 = arith.constant 0 : i32
    %2 = arith.cmpi ne, %1, %c0_i32_0 : i32
    scf.if %2 {
      %cst_117 = arith.constant 0xFF800000 : f32
      %169 = vector.broadcast %cst_117 : f32 to vector<4x8x1xf32>
      %c0_118 = arith.constant 0 : index
      %c0_119 = arith.constant 0 : index
      %c0_120 = arith.constant 0 : index
      %170 = vector.load %arg8[%c0_118, %c0_119, %c0_120] : memref<4x8x1xf32, #tpu.memory_space<vmem>>, vector<4x8x1xf32>
      tpu.vector_store %arg8[%c0_118, %c0_119, %c0_120], %169 {strides = array<i32>} : memref<4x8x1xf32, #tpu.memory_space<vmem>>, vector<4x8x1xf32>,
      %cst_121 = arith.constant 0.000000e+00 : f32
      %171 = vector.broadcast %cst_121 : f32 to vector<4x8x1xf32>
      %c0_122 = arith.constant 0 : index
      %c0_123 = arith.constant 0 : index
      %c0_124 = arith.constant 0 : index
      %172 = vector.load %arg9[%c0_122, %c0_123, %c0_124] : memref<4x8x1xf32, #tpu.memory_space<vmem>>, vector<4x8x1xf32>
      tpu.vector_store %arg9[%c0_122, %c0_123, %c0_124], %171 {strides = array<i32>} : memref<4x8x1xf32, #tpu.memory_space<vmem>>, vector<4x8x1xf32>,
      %cst_125 = arith.constant 0.000000e+00 : f32
      %173 = vector.broadcast %cst_125 : f32 to vector<4x8x32xf32>
      %c0_126 = arith.constant 0 : index
      %c0_127 = arith.constant 0 : index
      %c0_128 = arith.constant 0 : index
      %174 = vector.load %arg10[%c0_126, %c0_127, %c0_128] : memref<4x8x32xf32, #tpu.memory_space<vmem>>, vector<4x8x32xf32>
      tpu.vector_store %arg10[%c0_126, %c0_127, %c0_128], %173 {strides = array<i32>} : memref<4x8x32xf32, #tpu.memory_space<vmem>>, vector<4x8x32xf32>,
    } else {
    }
    %3 = tpu.iota {dimensions = array<i32: 1>} : vector<8x8xi32>
    %c8_i32 = arith.constant 8 : i32
    %4 = arith.muli %arg2, %c8_i32 : i32
    %5 = vector.broadcast %4 : i32 to vector<8x8xi32>
    %6 = arith.addi %3, %5 : vector<8x8xi32>
    %c0 = arith.constant 0 : index
    %c0_1 = arith.constant 0 : index
    %7 = vector.load %arg3[%c0, %c0_1] : memref<8x1xi32, #tpu.memory_space<vmem>>, vector<8x1xi32>
    %8 = vector.broadcast %7 : vector<8x1xi32> to vector<8x8xi32>
    %9 = arith.cmpi slt, %6, %8 : vector<8x8xi32>
    %c0_2 = arith.constant 0 : index
    %c0_3 = arith.constant 0 : index
    %10 = vector.load %arg4[%c0_2, %c0_3] : memref<8x128xf32, #tpu.memory_space<vmem>>, vector<8x32xf32>
    %cst = arith.constant 0.176776692 : f32
    %11 = vector.broadcast %cst : f32 to vector<8x32xf32>
    %12 = arith.mulf %10, %11 : vector<8x32xf32>
    %c0_4 = arith.constant 0 : index
    %c0_5 = arith.constant 0 : index
    %13 = vector.load %arg5[%c0_4, %c0_5] : memref<8x128xf32, #tpu.memory_space<vmem>>, vector<8x32xf32>
    "tpu.trace_start"() <{level = 10 : i32, message = "qd,kd->qk"}> : () -> ()
    %cst_6 = arith.constant dense<0.000000e+00> : vector<8x8xf32>
    %14 = tpu.matmul %12, %13, %cst_6 {dimension_numbers = #tpu.dot_dimension_numbers<[1], [1], [0], [0], [0, 0, 1, 0], [], []>} : vector<8x32xf32>, vector<8x32xf32>, vector<8x8xf32> -> vector<8x8xf32>
    %cst_7 = arith.constant -1.000000e+30 : f32
    "tpu.trace_stop"() : () -> ()
    %15 = vector.broadcast %cst_7 : f32 to vector<8x8xf32>
    %16 = arith.select %9, %14, %15 : vector<8x8xi1>, vector<8x8xf32>
    %c0_8 = arith.constant 0 : index
    %c0_9 = arith.constant 0 : index
    %c0_10 = arith.constant 0 : index
    %17 = vector.load %arg8[%c0_8, %c0_9, %c0_10] : memref<4x8x1xf32, #tpu.memory_space<vmem>>, vector<1x8x1xf32>
    %18 = vector.shape_cast %17 : vector<1x8x1xf32> to vector<8x1xf32>
    %cst_11 = arith.constant dense<0xFF800000> : vector<8xf32>
    %19 = vector.multi_reduction <maximumf>, %16, %cst_11 [1] : vector<8x8xf32> to vector<8xf32>
    %20 = vector.shape_cast %19 : vector<8xf32> to vector<8x1xf32>
    %21 = arith.maximumf %18, %20 : vector<8x1xf32>
    %22 = arith.subf %18, %21 : vector<8x1xf32>
    %23 = math.exp %22 : vector<8x1xf32>
    %24 = vector.broadcast %21 : vector<8x1xf32> to vector<8x8xf32>
    %25 = arith.subf %16, %24 : vector<8x8xf32>
    %26 = math.exp %25 : vector<8x8xf32>
    %c0_12 = arith.constant 0 : index
    %c0_13 = arith.constant 0 : index
    %c0_14 = arith.constant 0 : index
    %27 = vector.load %arg9[%c0_12, %c0_13, %c0_14] : memref<4x8x1xf32, #tpu.memory_space<vmem>>, vector<1x8x1xf32>
    %28 = vector.shape_cast %27 : vector<1x8x1xf32> to vector<8x1xf32>
    %29 = arith.mulf %23, %28 : vector<8x1xf32>
    %cst_15 = arith.constant dense<0.000000e+00> : vector<8xf32>
    %30 = vector.multi_reduction <add>, %26, %cst_15 [1] : vector<8x8xf32> to vector<8xf32>
    %31 = vector.shape_cast %30 : vector<8xf32> to vector<8x1xf32>
    %32 = arith.addf %29, %31 : vector<8x1xf32>
    %c0_16 = arith.constant 0 : index
    %c0_17 = arith.constant 0 : index
    %c0_18 = arith.constant 0 : index
    %33 = vector.load %arg9[%c0_16, %c0_17, %c0_18] : memref<4x8x1xf32, #tpu.memory_space<vmem>>, vector<1x8x1xf32>
    %34 = vector.shape_cast %33 : vector<1x8x1xf32> to vector<8x1xf32>
    %35 = vector.shape_cast %32 : vector<8x1xf32> to vector<1x8x1xf32>
    tpu.vector_store %arg9[%c0_16, %c0_17, %c0_18], %35 {strides = array<i32>} : memref<4x8x1xf32, #tpu.memory_space<vmem>>, vector<1x8x1xf32>,
    %c0_19 = arith.constant 0 : index
    %c0_20 = arith.constant 0 : index
    %c0_21 = arith.constant 0 : index
    %36 = vector.load %arg10[%c0_19, %c0_20, %c0_21] : memref<4x8x32xf32, #tpu.memory_space<vmem>>, vector<1x8x32xf32>
    %37 = vector.shape_cast %36 : vector<1x8x32xf32> to vector<8x32xf32>
    %38 = vector.broadcast %23 : vector<8x1xf32> to vector<8x32xf32>
    %39 = arith.mulf %38, %37 : vector<8x32xf32>
    %c0_22 = arith.constant 0 : index
    %c0_23 = arith.constant 0 : index
    %40 = vector.load %arg6[%c0_22, %c0_23] : memref<8x128xf32, #tpu.memory_space<vmem>>, vector<8x32xf32>
    %cst_24 = arith.constant dense<0.000000e+00> : vector<8x32xf32>
    %41 = tpu.matmul %26, %40, %cst_24 {dimension_numbers = #tpu.dot_dimension_numbers<[1], [0], [0], [1], [0, 0, 1, 1], [], []>} : vector<8x8xf32>, vector<8x32xf32>, vector<8x32xf32> -> vector<8x32xf32>
    %42 = arith.addf %39, %41 : vector<8x32xf32>
    %c0_25 = arith.constant 0 : index
    %c0_26 = arith.constant 0 : index
    %c0_27 = arith.constant 0 : index
    %43 = vector.load %arg10[%c0_25, %c0_26, %c0_27] : memref<4x8x32xf32, #tpu.memory_space<vmem>>, vector<1x8x32xf32>
    %44 = vector.shape_cast %43 : vector<1x8x32xf32> to vector<8x32xf32>
    %45 = vector.shape_cast %42 : vector<8x32xf32> to vector<1x8x32xf32>
    tpu.vector_store %arg10[%c0_25, %c0_26, %c0_27], %45 {strides = array<i32>} : memref<4x8x32xf32, #tpu.memory_space<vmem>>, vector<1x8x32xf32>,
    %c0_28 = arith.constant 0 : index
    %c0_29 = arith.constant 0 : index
    %c0_30 = arith.constant 0 : index
    %46 = vector.load %arg8[%c0_28, %c0_29, %c0_30] : memref<4x8x1xf32, #tpu.memory_space<vmem>>, vector<1x8x1xf32>
    %47 = vector.shape_cast %46 : vector<1x8x1xf32> to vector<8x1xf32>
    %48 = vector.shape_cast %21 : vector<8x1xf32> to vector<1x8x1xf32>
    tpu.vector_store %arg8[%c0_28, %c0_29, %c0_30], %48 {strides = array<i32>} : memref<4x8x1xf32, #tpu.memory_space<vmem>>, vector<1x8x1xf32>,
    %c0_31 = arith.constant 0 : index
    %c32 = arith.constant 32 : index
    %49 = vector.load %arg4[%c0_31, %c32] : memref<8x128xf32, #tpu.memory_space<vmem>>, vector<8x32xf32>
    %cst_32 = arith.constant 0.176776692 : f32
    %50 = vector.broadcast %cst_32 : f32 to vector<8x32xf32>
    %51 = arith.mulf %49, %50 : vector<8x32xf32>
    %c0_33 = arith.constant 0 : index
    %c32_34 = arith.constant 32 : index
    %52 = vector.load %arg5[%c0_33, %c32_34] : memref<8x128xf32, #tpu.memory_space<vmem>>, vector<8x32xf32>
    "tpu.trace_start"() <{level = 10 : i32, message = "qd,kd->qk"}> : () -> ()
    %cst_35 = arith.constant dense<0.000000e+00> : vector<8x8xf32>
    %53 = tpu.matmul %51, %52, %cst_35 {dimension_numbers = #tpu.dot_dimension_numbers<[1], [1], [0], [0], [0, 0, 1, 0], [], []>} : vector<8x32xf32>, vector<8x32xf32>, vector<8x8xf32> -> vector<8x8xf32>
    %cst_36 = arith.constant -1.000000e+30 : f32
    "tpu.trace_stop"() : () -> ()
    %54 = vector.broadcast %cst_36 : f32 to vector<8x8xf32>
    %55 = arith.select %9, %53, %54 : vector<8x8xi1>, vector<8x8xf32>
    %c1 = arith.constant 1 : index
    %c0_37 = arith.constant 0 : index
    %c0_38 = arith.constant 0 : index
    %56 = vector.load %arg8[%c1, %c0_37, %c0_38] : memref<4x8x1xf32, #tpu.memory_space<vmem>>, vector<1x8x1xf32>
    %57 = vector.shape_cast %56 : vector<1x8x1xf32> to vector<8x1xf32>
    %cst_39 = arith.constant dense<0xFF800000> : vector<8xf32>
    %58 = vector.multi_reduction <maximumf>, %55, %cst_39 [1] : vector<8x8xf32> to vector<8xf32>
    %59 = vector.shape_cast %58 : vector<8xf32> to vector<8x1xf32>
    %60 = arith.maximumf %57, %59 : vector<8x1xf32>
    %61 = arith.subf %57, %60 : vector<8x1xf32>
    %62 = math.exp %61 : vector<8x1xf32>
    %63 = vector.broadcast %60 : vector<8x1xf32> to vector<8x8xf32>
    %64 = arith.subf %55, %63 : vector<8x8xf32>
    %65 = math.exp %64 : vector<8x8xf32>
    %c1_40 = arith.constant 1 : index
    %c0_41 = arith.constant 0 : index
    %c0_42 = arith.constant 0 : index
    %66 = vector.load %arg9[%c1_40, %c0_41, %c0_42] : memref<4x8x1xf32, #tpu.memory_space<vmem>>, vector<1x8x1xf32>
    %67 = vector.shape_cast %66 : vector<1x8x1xf32> to vector<8x1xf32>
    %68 = arith.mulf %62, %67 : vector<8x1xf32>
    %cst_43 = arith.constant dense<0.000000e+00> : vector<8xf32>
    %69 = vector.multi_reduction <add>, %65, %cst_43 [1] : vector<8x8xf32> to vector<8xf32>
    %70 = vector.shape_cast %69 : vector<8xf32> to vector<8x1xf32>
    %71 = arith.addf %68, %70 : vector<8x1xf32>
    %c1_44 = arith.constant 1 : index
    %c0_45 = arith.constant 0 : index
    %c0_46 = arith.constant 0 : index
    %72 = vector.load %arg9[%c1_44, %c0_45, %c0_46] : memref<4x8x1xf32, #tpu.memory_space<vmem>>, vector<1x8x1xf32>
    %73 = vector.shape_cast %72 : vector<1x8x1xf32> to vector<8x1xf32>
    %74 = vector.shape_cast %71 : vector<8x1xf32> to vector<1x8x1xf32>
    tpu.vector_store %arg9[%c1_44, %c0_45, %c0_46], %74 {strides = array<i32>} : memref<4x8x1xf32, #tpu.memory_space<vmem>>, vector<1x8x1xf32>,
    %c1_47 = arith.constant 1 : index
    %c0_48 = arith.constant 0 : index
    %c0_49 = arith.constant 0 : index
    %75 = vector.load %arg10[%c1_47, %c0_48, %c0_49] : memref<4x8x32xf32, #tpu.memory_space<vmem>>, vector<1x8x32xf32>
    %76 = vector.shape_cast %75 : vector<1x8x32xf32> to vector<8x32xf32>
    %77 = vector.broadcast %62 : vector<8x1xf32> to vector<8x32xf32>
    %78 = arith.mulf %77, %76 : vector<8x32xf32>
    %c0_50 = arith.constant 0 : index
    %c32_51 = arith.constant 32 : index
    %79 = vector.load %arg6[%c0_50, %c32_51] : memref<8x128xf32, #tpu.memory_space<vmem>>, vector<8x32xf32>
    %cst_52 = arith.constant dense<0.000000e+00> : vector<8x32xf32>
    %80 = tpu.matmul %65, %79, %cst_52 {dimension_numbers = #tpu.dot_dimension_numbers<[1], [0], [0], [1], [0, 0, 1, 1], [], []>} : vector<8x8xf32>, vector<8x32xf32>, vector<8x32xf32> -> vector<8x32xf32>
    %81 = arith.addf %78, %80 : vector<8x32xf32>
    %c1_53 = arith.constant 1 : index
    %c0_54 = arith.constant 0 : index
    %c0_55 = arith.constant 0 : index
    %82 = vector.load %arg10[%c1_53, %c0_54, %c0_55] : memref<4x8x32xf32, #tpu.memory_space<vmem>>, vector<1x8x32xf32>
    %83 = vector.shape_cast %82 : vector<1x8x32xf32> to vector<8x32xf32>
    %84 = vector.shape_cast %81 : vector<8x32xf32> to vector<1x8x32xf32>
    tpu.vector_store %arg10[%c1_53, %c0_54, %c0_55], %84 {strides = array<i32>} : memref<4x8x32xf32, #tpu.memory_space<vmem>>, vector<1x8x32xf32>,
    %c1_56 = arith.constant 1 : index
    %c0_57 = arith.constant 0 : index
    %c0_58 = arith.constant 0 : index
    %85 = vector.load %arg8[%c1_56, %c0_57, %c0_58] : memref<4x8x1xf32, #tpu.memory_space<vmem>>, vector<1x8x1xf32>
    %86 = vector.shape_cast %85 : vector<1x8x1xf32> to vector<8x1xf32>
    %87 = vector.shape_cast %60 : vector<8x1xf32> to vector<1x8x1xf32>
    tpu.vector_store %arg8[%c1_56, %c0_57, %c0_58], %87 {strides = array<i32>} : memref<4x8x1xf32, #tpu.memory_space<vmem>>, vector<1x8x1xf32>,
    %c0_59 = arith.constant 0 : index
    %c64 = arith.constant 64 : index
    %88 = vector.load %arg4[%c0_59, %c64] : memref<8x128xf32, #tpu.memory_space<vmem>>, vector<8x32xf32>
    %cst_60 = arith.constant 0.176776692 : f32
    %89 = vector.broadcast %cst_60 : f32 to vector<8x32xf32>
    %90 = arith.mulf %88, %89 : vector<8x32xf32>
    %c0_61 = arith.constant 0 : index
    %c64_62 = arith.constant 64 : index
    %91 = vector.load %arg5[%c0_61, %c64_62] : memref<8x128xf32, #tpu.memory_space<vmem>>, vector<8x32xf32>
    "tpu.trace_start"() <{level = 10 : i32, message = "qd,kd->qk"}> : () -> ()
    %cst_63 = arith.constant dense<0.000000e+00> : vector<8x8xf32>
    %92 = tpu.matmul %90, %91, %cst_63 {dimension_numbers = #tpu.dot_dimension_numbers<[1], [1], [0], [0], [0, 0, 1, 0], [], []>} : vector<8x32xf32>, vector<8x32xf32>, vector<8x8xf32> -> vector<8x8xf32>
    %cst_64 = arith.constant -1.000000e+30 : f32
    "tpu.trace_stop"() : () -> ()
    %93 = vector.broadcast %cst_64 : f32 to vector<8x8xf32>
    %94 = arith.select %9, %92, %93 : vector<8x8xi1>, vector<8x8xf32>
    %c2 = arith.constant 2 : index
    %c0_65 = arith.constant 0 : index
    %c0_66 = arith.constant 0 : index
    %95 = vector.load %arg8[%c2, %c0_65, %c0_66] : memref<4x8x1xf32, #tpu.memory_space<vmem>>, vector<1x8x1xf32>
    %96 = vector.shape_cast %95 : vector<1x8x1xf32> to vector<8x1xf32>
    %cst_67 = arith.constant dense<0xFF800000> : vector<8xf32>
    %97 = vector.multi_reduction <maximumf>, %94, %cst_67 [1] : vector<8x8xf32> to vector<8xf32>
    %98 = vector.shape_cast %97 : vector<8xf32> to vector<8x1xf32>
    %99 = arith.maximumf %96, %98 : vector<8x1xf32>
    %100 = arith.subf %96, %99 : vector<8x1xf32>
    %101 = math.exp %100 : vector<8x1xf32>
    %102 = vector.broadcast %99 : vector<8x1xf32> to vector<8x8xf32>
    %103 = arith.subf %94, %102 : vector<8x8xf32>
    %104 = math.exp %103 : vector<8x8xf32>
    %c2_68 = arith.constant 2 : index
    %c0_69 = arith.constant 0 : index
    %c0_70 = arith.constant 0 : index
    %105 = vector.load %arg9[%c2_68, %c0_69, %c0_70] : memref<4x8x1xf32, #tpu.memory_space<vmem>>, vector<1x8x1xf32>
    %106 = vector.shape_cast %105 : vector<1x8x1xf32> to vector<8x1xf32>
    %107 = arith.mulf %101, %106 : vector<8x1xf32>
    %cst_71 = arith.constant dense<0.000000e+00> : vector<8xf32>
    %108 = vector.multi_reduction <add>, %104, %cst_71 [1] : vector<8x8xf32> to vector<8xf32>
    %109 = vector.shape_cast %108 : vector<8xf32> to vector<8x1xf32>
    %110 = arith.addf %107, %109 : vector<8x1xf32>
    %c2_72 = arith.constant 2 : index
    %c0_73 = arith.constant 0 : index
    %c0_74 = arith.constant 0 : index
    %111 = vector.load %arg9[%c2_72, %c0_73, %c0_74] : memref<4x8x1xf32, #tpu.memory_space<vmem>>, vector<1x8x1xf32>
    %112 = vector.shape_cast %111 : vector<1x8x1xf32> to vector<8x1xf32>
    %113 = vector.shape_cast %110 : vector<8x1xf32> to vector<1x8x1xf32>
    tpu.vector_store %arg9[%c2_72, %c0_73, %c0_74], %113 {strides = array<i32>} : memref<4x8x1xf32, #tpu.memory_space<vmem>>, vector<1x8x1xf32>,
    %c2_75 = arith.constant 2 : index
    %c0_76 = arith.constant 0 : index
    %c0_77 = arith.constant 0 : index
    %114 = vector.load %arg10[%c2_75, %c0_76, %c0_77] : memref<4x8x32xf32, #tpu.memory_space<vmem>>, vector<1x8x32xf32>
    %115 = vector.shape_cast %114 : vector<1x8x32xf32> to vector<8x32xf32>
    %116 = vector.broadcast %101 : vector<8x1xf32> to vector<8x32xf32>
    %117 = arith.mulf %116, %115 : vector<8x32xf32>
    %c0_78 = arith.constant 0 : index
    %c64_79 = arith.constant 64 : index
    %118 = vector.load %arg6[%c0_78, %c64_79] : memref<8x128xf32, #tpu.memory_space<vmem>>, vector<8x32xf32>
    %cst_80 = arith.constant dense<0.000000e+00> : vector<8x32xf32>
    %119 = tpu.matmul %104, %118, %cst_80 {dimension_numbers = #tpu.dot_dimension_numbers<[1], [0], [0], [1], [0, 0, 1, 1], [], []>} : vector<8x8xf32>, vector<8x32xf32>, vector<8x32xf32> -> vector<8x32xf32>
    %120 = arith.addf %117, %119 : vector<8x32xf32>
    %c2_81 = arith.constant 2 : index
    %c0_82 = arith.constant 0 : index
    %c0_83 = arith.constant 0 : index
    %121 = vector.load %arg10[%c2_81, %c0_82, %c0_83] : memref<4x8x32xf32, #tpu.memory_space<vmem>>, vector<1x8x32xf32>
    %122 = vector.shape_cast %121 : vector<1x8x32xf32> to vector<8x32xf32>
    %123 = vector.shape_cast %120 : vector<8x32xf32> to vector<1x8x32xf32>
    tpu.vector_store %arg10[%c2_81, %c0_82, %c0_83], %123 {strides = array<i32>} : memref<4x8x32xf32, #tpu.memory_space<vmem>>, vector<1x8x32xf32>,
    %c2_84 = arith.constant 2 : index
    %c0_85 = arith.constant 0 : index
    %c0_86 = arith.constant 0 : index
    %124 = vector.load %arg8[%c2_84, %c0_85, %c0_86] : memref<4x8x1xf32, #tpu.memory_space<vmem>>, vector<1x8x1xf32>
    %125 = vector.shape_cast %124 : vector<1x8x1xf32> to vector<8x1xf32>
    %126 = vector.shape_cast %99 : vector<8x1xf32> to vector<1x8x1xf32>
    tpu.vector_store %arg8[%c2_84, %c0_85, %c0_86], %126 {strides = array<i32>} : memref<4x8x1xf32, #tpu.memory_space<vmem>>, vector<1x8x1xf32>,
    %c0_87 = arith.constant 0 : index
    %c96 = arith.constant 96 : index
    %127 = vector.load %arg4[%c0_87, %c96] : memref<8x128xf32, #tpu.memory_space<vmem>>, vector<8x32xf32>
    %cst_88 = arith.constant 0.176776692 : f32
    %128 = vector.broadcast %cst_88 : f32 to vector<8x32xf32>
    %129 = arith.mulf %127, %128 : vector<8x32xf32>
    %c0_89 = arith.constant 0 : index
    %c96_90 = arith.constant 96 : index
    %130 = vector.load %arg5[%c0_89, %c96_90] : memref<8x128xf32, #tpu.memory_space<vmem>>, vector<8x32xf32>
    "tpu.trace_start"() <{level = 10 : i32, message = "qd,kd->qk"}> : () -> ()
    %cst_91 = arith.constant dense<0.000000e+00> : vector<8x8xf32>
    %131 = tpu.matmul %129, %130, %cst_91 {dimension_numbers = #tpu.dot_dimension_numbers<[1], [1], [0], [0], [0, 0, 1, 0], [], []>} : vector<8x32xf32>, vector<8x32xf32>, vector<8x8xf32> -> vector<8x8xf32>
    %cst_92 = arith.constant -1.000000e+30 : f32
    "tpu.trace_stop"() : () -> ()
    %132 = vector.broadcast %cst_92 : f32 to vector<8x8xf32>
    %133 = arith.select %9, %131, %132 : vector<8x8xi1>, vector<8x8xf32>
    %c3 = arith.constant 3 : index
    %c0_93 = arith.constant 0 : index
    %c0_94 = arith.constant 0 : index
    %134 = vector.load %arg8[%c3, %c0_93, %c0_94] : memref<4x8x1xf32, #tpu.memory_space<vmem>>, vector<1x8x1xf32>
    %135 = vector.shape_cast %134 : vector<1x8x1xf32> to vector<8x1xf32>
    %cst_95 = arith.constant dense<0xFF800000> : vector<8xf32>
    %136 = vector.multi_reduction <maximumf>, %133, %cst_95 [1] : vector<8x8xf32> to vector<8xf32>
    %137 = vector.shape_cast %136 : vector<8xf32> to vector<8x1xf32>
    %138 = arith.maximumf %135, %137 : vector<8x1xf32>
    %139 = arith.subf %135, %138 : vector<8x1xf32>
    %140 = math.exp %139 : vector<8x1xf32>
    %141 = vector.broadcast %138 : vector<8x1xf32> to vector<8x8xf32>
    %142 = arith.subf %133, %141 : vector<8x8xf32>
    %143 = math.exp %142 : vector<8x8xf32>
    %c3_96 = arith.constant 3 : index
    %c0_97 = arith.constant 0 : index
    %c0_98 = arith.constant 0 : index
    %144 = vector.load %arg9[%c3_96, %c0_97, %c0_98] : memref<4x8x1xf32, #tpu.memory_space<vmem>>, vector<1x8x1xf32>
    %145 = vector.shape_cast %144 : vector<1x8x1xf32> to vector<8x1xf32>
    %146 = arith.mulf %140, %145 : vector<8x1xf32>
    %cst_99 = arith.constant dense<0.000000e+00> : vector<8xf32>
    %147 = vector.multi_reduction <add>, %143, %cst_99 [1] : vector<8x8xf32> to vector<8xf32>
    %148 = vector.shape_cast %147 : vector<8xf32> to vector<8x1xf32>
    %149 = arith.addf %146, %148 : vector<8x1xf32>
    %c3_100 = arith.constant 3 : index
    %c0_101 = arith.constant 0 : index
    %c0_102 = arith.constant 0 : index
    %150 = vector.load %arg9[%c3_100, %c0_101, %c0_102] : memref<4x8x1xf32, #tpu.memory_space<vmem>>, vector<1x8x1xf32>
    %151 = vector.shape_cast %150 : vector<1x8x1xf32> to vector<8x1xf32>
    %152 = vector.shape_cast %149 : vector<8x1xf32> to vector<1x8x1xf32>
    tpu.vector_store %arg9[%c3_100, %c0_101, %c0_102], %152 {strides = array<i32>} : memref<4x8x1xf32, #tpu.memory_space<vmem>>, vector<1x8x1xf32>,
    %c3_103 = arith.constant 3 : index
    %c0_104 = arith.constant 0 : index
    %c0_105 = arith.constant 0 : index
    %153 = vector.load %arg10[%c3_103, %c0_104, %c0_105] : memref<4x8x32xf32, #tpu.memory_space<vmem>>, vector<1x8x32xf32>
    %154 = vector.shape_cast %153 : vector<1x8x32xf32> to vector<8x32xf32>
    %155 = vector.broadcast %140 : vector<8x1xf32> to vector<8x32xf32>
    %156 = arith.mulf %155, %154 : vector<8x32xf32>
    %c0_106 = arith.constant 0 : index
    %c96_107 = arith.constant 96 : index
    %157 = vector.load %arg6[%c0_106, %c96_107] : memref<8x128xf32, #tpu.memory_space<vmem>>, vector<8x32xf32>
    %cst_108 = arith.constant dense<0.000000e+00> : vector<8x32xf32>
    %158 = tpu.matmul %143, %157, %cst_108 {dimension_numbers = #tpu.dot_dimension_numbers<[1], [0], [0], [1], [0, 0, 1, 1], [], []>} : vector<8x8xf32>, vector<8x32xf32>, vector<8x32xf32> -> vector<8x32xf32>
    %159 = arith.addf %156, %158 : vector<8x32xf32>
    %c3_109 = arith.constant 3 : index
    %c0_110 = arith.constant 0 : index
    %c0_111 = arith.constant 0 : index
    %160 = vector.load %arg10[%c3_109, %c0_110, %c0_111] : memref<4x8x32xf32, #tpu.memory_space<vmem>>, vector<1x8x32xf32>
    %161 = vector.shape_cast %160 : vector<1x8x32xf32> to vector<8x32xf32>
    %162 = vector.shape_cast %159 : vector<8x32xf32> to vector<1x8x32xf32>
    tpu.vector_store %arg10[%c3_109, %c0_110, %c0_111], %162 {strides = array<i32>} : memref<4x8x32xf32, #tpu.memory_space<vmem>>, vector<1x8x32xf32>,
    %c3_112 = arith.constant 3 : index
    %c0_113 = arith.constant 0 : index
    %c0_114 = arith.constant 0 : index
    %163 = vector.load %arg8[%c3_112, %c0_113, %c0_114] : memref<4x8x1xf32, #tpu.memory_space<vmem>>, vector<1x8x1xf32>
    %164 = vector.shape_cast %163 : vector<1x8x1xf32> to vector<8x1xf32>
    %165 = vector.shape_cast %138 : vector<8x1xf32> to vector<1x8x1xf32>
    tpu.vector_store %arg8[%c3_112, %c0_113, %c0_114], %165 {strides = array<i32>} : memref<4x8x1xf32, #tpu.memory_space<vmem>>, vector<1x8x1xf32>,
    %c0_i32_115 = arith.constant 0 : i32
    %166 = arith.cmpi eq, %arg2, %c0_i32_115 : i32
    %167 = arith.extui %166 : i1 to i32
    %c0_i32_116 = arith.constant 0 : i32
    %168 = arith.cmpi ne, %167, %c0_i32_116 : i32
    scf.if %168 {
      %c0_117 = arith.constant 0 : index
      %c0_118 = arith.constant 0 : index
      %c0_119 = arith.constant 0 : index
      %169 = vector.load %arg10[%c0_117, %c0_118, %c0_119] : memref<4x8x32xf32, #tpu.memory_space<vmem>>, vector<1x8x32xf32>
      %170 = vector.shape_cast %169 : vector<1x8x32xf32> to vector<8x32xf32>
      %c0_120 = arith.constant 0 : index
      %c0_121 = arith.constant 0 : index
      %c0_122 = arith.constant 0 : index
      %171 = vector.load %arg9[%c0_120, %c0_121, %c0_122] : memref<4x8x1xf32, #tpu.memory_space<vmem>>, vector<1x8x1xf32>
      %172 = vector.shape_cast %171 : vector<1x8x1xf32> to vector<8x1xf32>
      %173 = tpu.reciprocal %172 : vector<8x1xf32> -> vector<8x1xf32>
      %174 = vector.broadcast %173 : vector<8x1xf32> to vector<8x32xf32>
      %175 = arith.mulf %170, %174 : vector<8x32xf32>
      %c1_123 = arith.constant 1 : index
      %c0_124 = arith.constant 0 : index
      %c0_125 = arith.constant 0 : index
      %176 = vector.load %arg10[%c1_123, %c0_124, %c0_125] : memref<4x8x32xf32, #tpu.memory_space<vmem>>, vector<1x8x32xf32>
      %177 = vector.shape_cast %176 : vector<1x8x32xf32> to vector<8x32xf32>
      %c1_126 = arith.constant 1 : index
      %c0_127 = arith.constant 0 : index
      %c0_128 = arith.constant 0 : index
      %178 = vector.load %arg9[%c1_126, %c0_127, %c0_128] : memref<4x8x1xf32, #tpu.memory_space<vmem>>, vector<1x8x1xf32>
      %179 = vector.shape_cast %178 : vector<1x8x1xf32> to vector<8x1xf32>
      %180 = tpu.reciprocal %179 : vector<8x1xf32> -> vector<8x1xf32>
      %181 = vector.broadcast %180 : vector<8x1xf32> to vector<8x32xf32>
      %182 = arith.mulf %177, %181 : vector<8x32xf32>
      %c2_129 = arith.constant 2 : index
      %c0_130 = arith.constant 0 : index
      %c0_131 = arith.constant 0 : index
      %183 = vector.load %arg10[%c2_129, %c0_130, %c0_131] : memref<4x8x32xf32, #tpu.memory_space<vmem>>, vector<1x8x32xf32>
      %184 = vector.shape_cast %183 : vector<1x8x32xf32> to vector<8x32xf32>
      %c2_132 = arith.constant 2 : index
      %c0_133 = arith.constant 0 : index
      %c0_134 = arith.constant 0 : index
      %185 = vector.load %arg9[%c2_132, %c0_133, %c0_134] : memref<4x8x1xf32, #tpu.memory_space<vmem>>, vector<1x8x1xf32>
      %186 = vector.shape_cast %185 : vector<1x8x1xf32> to vector<8x1xf32>
      %187 = tpu.reciprocal %186 : vector<8x1xf32> -> vector<8x1xf32>
      %188 = vector.broadcast %187 : vector<8x1xf32> to vector<8x32xf32>
      %189 = arith.mulf %184, %188 : vector<8x32xf32>
      %c3_135 = arith.constant 3 : index
      %c0_136 = arith.constant 0 : index
      %c0_137 = arith.constant 0 : index
      %190 = vector.load %arg10[%c3_135, %c0_136, %c0_137] : memref<4x8x32xf32, #tpu.memory_space<vmem>>, vector<1x8x32xf32>
      %191 = vector.shape_cast %190 : vector<1x8x32xf32> to vector<8x32xf32>
      %c3_138 = arith.constant 3 : index
      %c0_139 = arith.constant 0 : index
      %c0_140 = arith.constant 0 : index
      %192 = vector.load %arg9[%c3_138, %c0_139, %c0_140] : memref<4x8x1xf32, #tpu.memory_space<vmem>>, vector<1x8x1xf32>
      %193 = vector.shape_cast %192 : vector<1x8x1xf32> to vector<8x1xf32>
      %194 = tpu.reciprocal %193 : vector<8x1xf32> -> vector<8x1xf32>
      %195 = vector.broadcast %194 : vector<8x1xf32> to vector<8x32xf32>
      %196 = arith.mulf %191, %195 : vector<8x32xf32>
      %197 = tpu.concatenate %175, %182, %189, %196 in 1 : vector<8x32xf32>, vector<8x32xf32>, vector<8x32xf32>, vector<8x32xf32> -> vector<8x128xf32>
      %c0_141 = arith.constant 0 : index
      %c0_142 = arith.constant 0 : index
      %198 = vector.load %arg7[%c0_141, %c0_142] : memref<8x128xf32, #tpu.memory_space<vmem>>, vector<8x128xf32>
      tpu.vector_store %arg7[%c0_141, %c0_142], %197 {strides = array<i32>} : memref<8x128xf32, #tpu.memory_space<vmem>>, vector<8x128xf32>,
    } else {
    }
    return
  }
  func.func @transform_0(%arg0: i32, %arg1: i32, %arg2: i32) -> (i32, i32) {
    %c1_i32 = arith.constant 1 : i32
    %0 = arith.muli %arg0, %c1_i32 : i32
    %1 = arith.addi %0, %arg1 : i32
    %c0_i32 = arith.constant 0 : i32
    %c0_i32_0 = arith.constant 0 : i32
    return %1, %c0_i32 : i32, i32
  }
  func.func @transform_1(%arg0: i32, %arg1: i32, %arg2: i32) -> (i32, i32) {
    %c1_i32 = arith.constant 1 : i32
    %0 = arith.muli %arg0, %c1_i32 : i32
    %1 = arith.addi %0, %arg1 : i32
    %c0_i32 = arith.constant 0 : i32
    %c0_i32_0 = arith.constant 0 : i32
    return %1, %c0_i32 : i32, i32
  }
  func.func @transform_2(%arg0: i32, %arg1: i32, %arg2: i32) -> (i32, i32) {
    %c1_i32 = arith.constant 1 : i32
    %0 = arith.muli %arg0, %c1_i32 : i32
    %1 = arith.addi %0, %arg2 : i32
    %c1_i32_0 = arith.constant 1 : i32
    %c0_i32 = arith.constant 0 : i32
    return %1, %c1_i32_0 : i32, i32
  }
  func.func @transform_3(%arg0: i32, %arg1: i32, %arg2: i32) -> (i32, i32) {
    %c1_i32 = arith.constant 1 : i32
    %0 = arith.muli %arg0, %c1_i32 : i32
    %1 = arith.addi %0, %arg2 : i32
    %c2_i32 = arith.constant 2 : i32
    %c0_i32 = arith.constant 0 : i32
    return %1, %c2_i32 : i32, i32
  }
  func.func @transform_4(%arg0: i32, %arg1: i32, %arg2: i32) -> (i32, i32) {
    %c1_i32 = arith.constant 1 : i32
    %0 = arith.muli %arg0, %c1_i32 : i32
    %1 = arith.addi %0, %arg1 : i32
    %c0_i32 = arith.constant 0 : i32
    %c0_i32_0 = arith.constant 0 : i32
    return %1, %c0_i32 : i32, i32
  }
}

module attributes {stable_mosaic.version = 11 : i64} {
  func.func @_linear_kernel(%arg0: i32, %arg1: i32, %arg2: i32, %arg3: memref<16x128xf32, #tpu.memory_space<vmem>>, %arg4: memref<128x128xf32, #tpu.memory_space<vmem>>, %arg5: memref<1x128xf32, #tpu.memory_space<vmem>>, %arg6: memref<16x128xf32, #tpu.memory_space<vmem>>, %arg7: memref<16x128xf32, #tpu.memory_space<vmem>>) attributes {dimension_semantics = [#tpu.dimension_semantics<parallel>, #tpu.dimension_semantics<parallel>, #tpu.dimension_semantics<arbitrary>], iteration_bounds = array<i64: 1, 1, 1>, scalar_prefetch = 0 : i64, scratch_operands = 1 : i64, tpu.core_type = #tpu.core_type<tc>, window_params = [{transform_indices = @transform_0, window_bounds = array<i64: 16, 128>}, {transform_indices = @transform_1, window_bounds = array<i64: 128, 128>}, {transform_indices = @transform_2, window_bounds = array<i64: 1, 128>}, {transform_indices = @transform_3, window_bounds = array<i64: 16, 128>}]} {
    %c0_i32 = arith.constant 0 : i32
    %0 = arith.cmpi eq, %arg2, %c0_i32 : i32
    %1 = arith.extui %0 : i1 to i32
    %c0_i32_0 = arith.constant 0 : i32
    %2 = arith.cmpi ne, %1, %c0_i32_0 : i32
    scf.if %2 {
      %cst_10 = arith.constant 0.000000e+00 : f32
      %12 = vector.broadcast %cst_10 : f32 to vector<16x128xf32>
      %c0_11 = arith.constant 0 : index
      %c0_12 = arith.constant 0 : index
      %13 = vector.load %arg7[%c0_11, %c0_12] : memref<16x128xf32, #tpu.memory_space<vmem>>, vector<16x128xf32>
      tpu.vector_store %arg7[%c0_11, %c0_12], %12 {strides = array<i32>} : memref<16x128xf32, #tpu.memory_space<vmem>>, vector<16x128xf32>,
    } else {
    }
    %c0 = arith.constant 0 : index
    %c0_1 = arith.constant 0 : index
    %3 = vector.load %arg7[%c0, %c0_1] : memref<16x128xf32, #tpu.memory_space<vmem>>, vector<16x128xf32>
    %c0_2 = arith.constant 0 : index
    %c0_3 = arith.constant 0 : index
    %4 = vector.load %arg3[%c0_2, %c0_3] : memref<16x128xf32, #tpu.memory_space<vmem>>, vector<16x128xf32>
    %c0_4 = arith.constant 0 : index
    %c0_5 = arith.constant 0 : index
    %5 = vector.load %arg4[%c0_4, %c0_5] : memref<128x128xf32, #tpu.memory_space<vmem>>, vector<128x128xf32>
    %cst = arith.constant dense<0.000000e+00> : vector<16x128xf32>
    %6 = tpu.matmul %4, %5, %cst {dimension_numbers = #tpu.dot_dimension_numbers<[1], [0], [0], [1], [0, 0, 1, 1], [], []>} : vector<16x128xf32>, vector<128x128xf32>, vector<16x128xf32> -> vector<16x128xf32>
    %7 = arith.addf %3, %6 : vector<16x128xf32>
    %c0_6 = arith.constant 0 : index
    %c0_7 = arith.constant 0 : index
    %8 = vector.load %arg7[%c0_6, %c0_7] : memref<16x128xf32, #tpu.memory_space<vmem>>, vector<16x128xf32>
    tpu.vector_store %arg7[%c0_6, %c0_7], %7 {strides = array<i32>} : memref<16x128xf32, #tpu.memory_space<vmem>>, vector<16x128xf32>,
    %c0_i32_8 = arith.constant 0 : i32
    %9 = arith.cmpi eq, %arg2, %c0_i32_8 : i32
    %10 = arith.extui %9 : i1 to i32
    %c0_i32_9 = arith.constant 0 : i32
    %11 = arith.cmpi ne, %10, %c0_i32_9 : i32
    scf.if %11 {
      %c0_10 = arith.constant 0 : index
      %c0_11 = arith.constant 0 : index
      %12 = vector.load %arg7[%c0_10, %c0_11] : memref<16x128xf32, #tpu.memory_space<vmem>>, vector<16x128xf32>
      %c0_12 = arith.constant 0 : index
      %c0_13 = arith.constant 0 : index
      %13 = vector.load %arg5[%c0_12, %c0_13] : memref<1x128xf32, #tpu.memory_space<vmem>>, vector<1x128xf32>
      %14 = vector.broadcast %13 : vector<1x128xf32> to vector<16x128xf32>
      %15 = arith.addf %12, %14 : vector<16x128xf32>
      %c0_14 = arith.constant 0 : index
      %c0_15 = arith.constant 0 : index
      %16 = vector.load %arg6[%c0_14, %c0_15] : memref<16x128xf32, #tpu.memory_space<vmem>>, vector<16x128xf32>
      tpu.vector_store %arg6[%c0_14, %c0_15], %15 {strides = array<i32>} : memref<16x128xf32, #tpu.memory_space<vmem>>, vector<16x128xf32>,
    } else {
    }
    return
  }
  func.func @transform_0(%arg0: i32, %arg1: i32, %arg2: i32) -> (i32, i32) {
    %c0_i32 = arith.constant 0 : i32
    return %arg0, %arg2 : i32, i32
  }
  func.func @transform_1(%arg0: i32, %arg1: i32, %arg2: i32) -> (i32, i32) {
    %c0_i32 = arith.constant 0 : i32
    return %arg2, %arg1 : i32, i32
  }
  func.func @transform_2(%arg0: i32, %arg1: i32, %arg2: i32) -> (i32, i32) {
    %c0_i32 = arith.constant 0 : i32
    %c0_i32_0 = arith.constant 0 : i32
    return %c0_i32, %arg1 : i32, i32
  }
  func.func @transform_3(%arg0: i32, %arg1: i32, %arg2: i32) -> (i32, i32) {
    %c0_i32 = arith.constant 0 : i32
    return %arg0, %arg1 : i32, i32
  }
}

module attributes {stable_mosaic.version = 11 : i64} {
  func.func @_linear_kernel(%arg0: i32, %arg1: i32, %arg2: i32, %arg3: memref<16x128xf32, #tpu.memory_space<vmem>>, %arg4: memref<128x256xf32, #tpu.memory_space<vmem>>, %arg5: memref<1x256xf32, #tpu.memory_space<vmem>>, %arg6: memref<16x256xf32, #tpu.memory_space<vmem>>, %arg7: memref<16x256xf32, #tpu.memory_space<vmem>>) attributes {dimension_semantics = [#tpu.dimension_semantics<parallel>, #tpu.dimension_semantics<parallel>, #tpu.dimension_semantics<arbitrary>], iteration_bounds = array<i64: 1, 1, 1>, scalar_prefetch = 0 : i64, scratch_operands = 1 : i64, tpu.core_type = #tpu.core_type<tc>, window_params = [{transform_indices = @transform_0, window_bounds = array<i64: 16, 128>}, {transform_indices = @transform_1, window_bounds = array<i64: 128, 256>}, {transform_indices = @transform_2, window_bounds = array<i64: 1, 256>}, {transform_indices = @transform_3, window_bounds = array<i64: 16, 256>}]} {
    %c0_i32 = arith.constant 0 : i32
    %0 = arith.cmpi eq, %arg2, %c0_i32 : i32
    %1 = arith.extui %0 : i1 to i32
    %c0_i32_0 = arith.constant 0 : i32
    %2 = arith.cmpi ne, %1, %c0_i32_0 : i32
    scf.if %2 {
      %cst_10 = arith.constant 0.000000e+00 : f32
      %12 = vector.broadcast %cst_10 : f32 to vector<16x256xf32>
      %c0_11 = arith.constant 0 : index
      %c0_12 = arith.constant 0 : index
      %13 = vector.load %arg7[%c0_11, %c0_12] : memref<16x256xf32, #tpu.memory_space<vmem>>, vector<16x256xf32>
      tpu.vector_store %arg7[%c0_11, %c0_12], %12 {strides = array<i32>} : memref<16x256xf32, #tpu.memory_space<vmem>>, vector<16x256xf32>,
    } else {
    }
    %c0 = arith.constant 0 : index
    %c0_1 = arith.constant 0 : index
    %3 = vector.load %arg7[%c0, %c0_1] : memref<16x256xf32, #tpu.memory_space<vmem>>, vector<16x256xf32>
    %c0_2 = arith.constant 0 : index
    %c0_3 = arith.constant 0 : index
    %4 = vector.load %arg3[%c0_2, %c0_3] : memref<16x128xf32, #tpu.memory_space<vmem>>, vector<16x128xf32>
    %c0_4 = arith.constant 0 : index
    %c0_5 = arith.constant 0 : index
    %5 = vector.load %arg4[%c0_4, %c0_5] : memref<128x256xf32, #tpu.memory_space<vmem>>, vector<128x256xf32>
    %cst = arith.constant dense<0.000000e+00> : vector<16x256xf32>
    %6 = tpu.matmul %4, %5, %cst {dimension_numbers = #tpu.dot_dimension_numbers<[1], [0], [0], [1], [0, 0, 1, 1], [], []>} : vector<16x128xf32>, vector<128x256xf32>, vector<16x256xf32> -> vector<16x256xf32>
    %7 = arith.addf %3, %6 : vector<16x256xf32>
    %c0_6 = arith.constant 0 : index
    %c0_7 = arith.constant 0 : index
    %8 = vector.load %arg7[%c0_6, %c0_7] : memref<16x256xf32, #tpu.memory_space<vmem>>, vector<16x256xf32>
    tpu.vector_store %arg7[%c0_6, %c0_7], %7 {strides = array<i32>} : memref<16x256xf32, #tpu.memory_space<vmem>>, vector<16x256xf32>,
    %c0_i32_8 = arith.constant 0 : i32
    %9 = arith.cmpi eq, %arg2, %c0_i32_8 : i32
    %10 = arith.extui %9 : i1 to i32
    %c0_i32_9 = arith.constant 0 : i32
    %11 = arith.cmpi ne, %10, %c0_i32_9 : i32
    scf.if %11 {
      %c0_10 = arith.constant 0 : index
      %c0_11 = arith.constant 0 : index
      %12 = vector.load %arg7[%c0_10, %c0_11] : memref<16x256xf32, #tpu.memory_space<vmem>>, vector<16x256xf32>
      %c0_12 = arith.constant 0 : index
      %c0_13 = arith.constant 0 : index
      %13 = vector.load %arg5[%c0_12, %c0_13] : memref<1x256xf32, #tpu.memory_space<vmem>>, vector<1x256xf32>
      %14 = vector.broadcast %13 : vector<1x256xf32> to vector<16x256xf32>
      %15 = arith.addf %12, %14 : vector<16x256xf32>
      %c0_14 = arith.constant 0 : index
      %c0_15 = arith.constant 0 : index
      %16 = vector.load %arg6[%c0_14, %c0_15] : memref<16x256xf32, #tpu.memory_space<vmem>>, vector<16x256xf32>
      tpu.vector_store %arg6[%c0_14, %c0_15], %15 {strides = array<i32>} : memref<16x256xf32, #tpu.memory_space<vmem>>, vector<16x256xf32>,
    } else {
    }
    return
  }
  func.func @transform_0(%arg0: i32, %arg1: i32, %arg2: i32) -> (i32, i32) {
    %c0_i32 = arith.constant 0 : i32
    return %arg0, %arg2 : i32, i32
  }
  func.func @transform_1(%arg0: i32, %arg1: i32, %arg2: i32) -> (i32, i32) {
    %c0_i32 = arith.constant 0 : i32
    return %arg2, %arg1 : i32, i32
  }
  func.func @transform_2(%arg0: i32, %arg1: i32, %arg2: i32) -> (i32, i32) {
    %c0_i32 = arith.constant 0 : i32
    %c0_i32_0 = arith.constant 0 : i32
    return %c0_i32, %arg1 : i32, i32
  }
  func.func @transform_3(%arg0: i32, %arg1: i32, %arg2: i32) -> (i32, i32) {
    %c0_i32 = arith.constant 0 : i32
    return %arg0, %arg1 : i32, i32
  }
}

module attributes {stable_mosaic.version = 11 : i64} {
  func.func @_flash_attn_kernel(%arg0: i32, %arg1: i32, %arg2: i32, %arg3: memref<8x1xi32, #tpu.memory_space<vmem>>, %arg4: memref<8x128xf32, #tpu.memory_space<vmem>>, %arg5: memref<8x128xf32, #tpu.memory_space<vmem>>, %arg6: memref<8x128xf32, #tpu.memory_space<vmem>>, %arg7: memref<8x128xf32, #tpu.memory_space<vmem>>, %arg8: memref<4x8x1xf32, #tpu.memory_space<vmem>>, %arg9: memref<4x8x1xf32, #tpu.memory_space<vmem>>, %arg10: memref<4x8x32xf32, #tpu.memory_space<vmem>>) attributes {dimension_semantics = [#tpu.dimension_semantics<parallel>, #tpu.dimension_semantics<parallel>, #tpu.dimension_semantics<arbitrary>], iteration_bounds = array<i64: 2, 1, 1>, scalar_prefetch = 0 : i64, scratch_operands = 3 : i64, tpu.core_type = #tpu.core_type<tc>, window_params = [{transform_indices = @transform_0, window_bounds = array<i64: 8, 1>}, {transform_indices = @transform_1, window_bounds = array<i64: 8, 128>}, {transform_indices = @transform_2, window_bounds = array<i64: 8, 128>}, {transform_indices = @transform_3, window_bounds = array<i64: 8, 128>}, {transform_indices = @transform_4, window_bounds = array<i64: 8, 128>}]} {
    %c0_i32 = arith.constant 0 : i32
    %0 = arith.cmpi eq, %arg2, %c0_i32 : i32
    %1 = arith.extui %0 : i1 to i32
    %c0_i32_0 = arith.constant 0 : i32
    %2 = arith.cmpi ne, %1, %c0_i32_0 : i32
    scf.if %2 {
      %cst_117 = arith.constant 0xFF800000 : f32
      %169 = vector.broadcast %cst_117 : f32 to vector<4x8x1xf32>
      %c0_118 = arith.constant 0 : index
      %c0_119 = arith.constant 0 : index
      %c0_120 = arith.constant 0 : index
      %170 = vector.load %arg8[%c0_118, %c0_119, %c0_120] : memref<4x8x1xf32, #tpu.memory_space<vmem>>, vector<4x8x1xf32>
      tpu.vector_store %arg8[%c0_118, %c0_119, %c0_120], %169 {strides = array<i32>} : memref<4x8x1xf32, #tpu.memory_space<vmem>>, vector<4x8x1xf32>,
      %cst_121 = arith.constant 0.000000e+00 : f32
      %171 = vector.broadcast %cst_121 : f32 to vector<4x8x1xf32>
      %c0_122 = arith.constant 0 : index
      %c0_123 = arith.constant 0 : index
      %c0_124 = arith.constant 0 : index
      %172 = vector.load %arg9[%c0_122, %c0_123, %c0_124] : memref<4x8x1xf32, #tpu.memory_space<vmem>>, vector<4x8x1xf32>
      tpu.vector_store %arg9[%c0_122, %c0_123, %c0_124], %171 {strides = array<i32>} : memref<4x8x1xf32, #tpu.memory_space<vmem>>, vector<4x8x1xf32>,
      %cst_125 = arith.constant 0.000000e+00 : f32
      %173 = vector.broadcast %cst_125 : f32 to vector<4x8x32xf32>
      %c0_126 = arith.constant 0 : index
      %c0_127 = arith.constant 0 : index
      %c0_128 = arith.constant 0 : index
      %174 = vector.load %arg10[%c0_126, %c0_127, %c0_128] : memref<4x8x32xf32, #tpu.memory_space<vmem>>, vector<4x8x32xf32>
      tpu.vector_store %arg10[%c0_126, %c0_127, %c0_128], %173 {strides = array<i32>} : memref<4x8x32xf32, #tpu.memory_space<vmem>>, vector<4x8x32xf32>,
    } else {
    }
    %3 = tpu.iota {dimensions = array<i32: 1>} : vector<8x8xi32>
    %c8_i32 = arith.constant 8 : i32
    %4 = arith.muli %arg2, %c8_i32 : i32
    %5 = vector.broadcast %4 : i32 to vector<8x8xi32>
    %6 = arith.addi %3, %5 : vector<8x8xi32>
    %c0 = arith.constant 0 : index
    %c0_1 = arith.constant 0 : index
    %7 = vector.load %arg3[%c0, %c0_1] : memref<8x1xi32, #tpu.memory_space<vmem>>, vector<8x1xi32>
    %8 = vector.broadcast %7 : vector<8x1xi32> to vector<8x8xi32>
    %9 = arith.cmpi slt, %6, %8 : vector<8x8xi32>
    %c0_2 = arith.constant 0 : index
    %c0_3 = arith.constant 0 : index
    %10 = vector.load %arg4[%c0_2, %c0_3] : memref<8x128xf32, #tpu.memory_space<vmem>>, vector<8x32xf32>
    %cst = arith.constant 0.176776692 : f32
    %11 = vector.broadcast %cst : f32 to vector<8x32xf32>
    %12 = arith.mulf %10, %11 : vector<8x32xf32>
    %c0_4 = arith.constant 0 : index
    %c0_5 = arith.constant 0 : index
    %13 = vector.load %arg5[%c0_4, %c0_5] : memref<8x128xf32, #tpu.memory_space<vmem>>, vector<8x32xf32>
    "tpu.trace_start"() <{level = 10 : i32, message = "qd,kd->qk"}> : () -> ()
    %cst_6 = arith.constant dense<0.000000e+00> : vector<8x8xf32>
    %14 = tpu.matmul %12, %13, %cst_6 {dimension_numbers = #tpu.dot_dimension_numbers<[1], [1], [0], [0], [0, 0, 1, 0], [], []>} : vector<8x32xf32>, vector<8x32xf32>, vector<8x8xf32> -> vector<8x8xf32>
    %cst_7 = arith.constant -1.000000e+30 : f32
    "tpu.trace_stop"() : () -> ()
    %15 = vector.broadcast %cst_7 : f32 to vector<8x8xf32>
    %16 = arith.select %9, %14, %15 : vector<8x8xi1>, vector<8x8xf32>
    %c0_8 = arith.constant 0 : index
    %c0_9 = arith.constant 0 : index
    %c0_10 = arith.constant 0 : index
    %17 = vector.load %arg8[%c0_8, %c0_9, %c0_10] : memref<4x8x1xf32, #tpu.memory_space<vmem>>, vector<1x8x1xf32>
    %18 = vector.shape_cast %17 : vector<1x8x1xf32> to vector<8x1xf32>
    %cst_11 = arith.constant dense<0xFF800000> : vector<8xf32>
    %19 = vector.multi_reduction <maximumf>, %16, %cst_11 [1] : vector<8x8xf32> to vector<8xf32>
    %20 = vector.shape_cast %19 : vector<8xf32> to vector<8x1xf32>
    %21 = arith.maximumf %18, %20 : vector<8x1xf32>
    %22 = arith.subf %18, %21 : vector<8x1xf32>
    %23 = math.exp %22 : vector<8x1xf32>
    %24 = vector.broadcast %21 : vector<8x1xf32> to vector<8x8xf32>
    %25 = arith.subf %16, %24 : vector<8x8xf32>
    %26 = math.exp %25 : vector<8x8xf32>
    %c0_12 = arith.constant 0 : index
    %c0_13 = arith.constant 0 : index
    %c0_14 = arith.constant 0 : index
    %27 = vector.load %arg9[%c0_12, %c0_13, %c0_14] : memref<4x8x1xf32, #tpu.memory_space<vmem>>, vector<1x8x1xf32>
    %28 = vector.shape_cast %27 : vector<1x8x1xf32> to vector<8x1xf32>
    %29 = arith.mulf %23, %28 : vector<8x1xf32>
    %cst_15 = arith.constant dense<0.000000e+00> : vector<8xf32>
    %30 = vector.multi_reduction <add>, %26, %cst_15 [1] : vector<8x8xf32> to vector<8xf32>
    %31 = vector.shape_cast %30 : vector<8xf32> to vector<8x1xf32>
    %32 = arith.addf %29, %31 : vector<8x1xf32>
    %c0_16 = arith.constant 0 : index
    %c0_17 = arith.constant 0 : index
    %c0_18 = arith.constant 0 : index
    %33 = vector.load %arg9[%c0_16, %c0_17, %c0_18] : memref<4x8x1xf32, #tpu.memory_space<vmem>>, vector<1x8x1xf32>
    %34 = vector.shape_cast %33 : vector<1x8x1xf32> to vector<8x1xf32>
    %35 = vector.shape_cast %32 : vector<8x1xf32> to vector<1x8x1xf32>
    tpu.vector_store %arg9[%c0_16, %c0_17, %c0_18], %35 {strides = array<i32>} : memref<4x8x1xf32, #tpu.memory_space<vmem>>, vector<1x8x1xf32>,
    %c0_19 = arith.constant 0 : index
    %c0_20 = arith.constant 0 : index
    %c0_21 = arith.constant 0 : index
    %36 = vector.load %arg10[%c0_19, %c0_20, %c0_21] : memref<4x8x32xf32, #tpu.memory_space<vmem>>, vector<1x8x32xf32>
    %37 = vector.shape_cast %36 : vector<1x8x32xf32> to vector<8x32xf32>
    %38 = vector.broadcast %23 : vector<8x1xf32> to vector<8x32xf32>
    %39 = arith.mulf %38, %37 : vector<8x32xf32>
    %c0_22 = arith.constant 0 : index
    %c0_23 = arith.constant 0 : index
    %40 = vector.load %arg6[%c0_22, %c0_23] : memref<8x128xf32, #tpu.memory_space<vmem>>, vector<8x32xf32>
    %cst_24 = arith.constant dense<0.000000e+00> : vector<8x32xf32>
    %41 = tpu.matmul %26, %40, %cst_24 {dimension_numbers = #tpu.dot_dimension_numbers<[1], [0], [0], [1], [0, 0, 1, 1], [], []>} : vector<8x8xf32>, vector<8x32xf32>, vector<8x32xf32> -> vector<8x32xf32>
    %42 = arith.addf %39, %41 : vector<8x32xf32>
    %c0_25 = arith.constant 0 : index
    %c0_26 = arith.constant 0 : index
    %c0_27 = arith.constant 0 : index
    %43 = vector.load %arg10[%c0_25, %c0_26, %c0_27] : memref<4x8x32xf32, #tpu.memory_space<vmem>>, vector<1x8x32xf32>
    %44 = vector.shape_cast %43 : vector<1x8x32xf32> to vector<8x32xf32>
    %45 = vector.shape_cast %42 : vector<8x32xf32> to vector<1x8x32xf32>
    tpu.vector_store %arg10[%c0_25, %c0_26, %c0_27], %45 {strides = array<i32>} : memref<4x8x32xf32, #tpu.memory_space<vmem>>, vector<1x8x32xf32>,
    %c0_28 = arith.constant 0 : index
    %c0_29 = arith.constant 0 : index
    %c0_30 = arith.constant 0 : index
    %46 = vector.load %arg8[%c0_28, %c0_29, %c0_30] : memref<4x8x1xf32, #tpu.memory_space<vmem>>, vector<1x8x1xf32>
    %47 = vector.shape_cast %46 : vector<1x8x1xf32> to vector<8x1xf32>
    %48 = vector.shape_cast %21 : vector<8x1xf32> to vector<1x8x1xf32>
    tpu.vector_store %arg8[%c0_28, %c0_29, %c0_30], %48 {strides = array<i32>} : memref<4x8x1xf32, #tpu.memory_space<vmem>>, vector<1x8x1xf32>,
    %c0_31 = arith.constant 0 : index
    %c32 = arith.constant 32 : index
    %49 = vector.load %arg4[%c0_31, %c32] : memref<8x128xf32, #tpu.memory_space<vmem>>, vector<8x32xf32>
    %cst_32 = arith.constant 0.176776692 : f32
    %50 = vector.broadcast %cst_32 : f32 to vector<8x32xf32>
    %51 = arith.mulf %49, %50 : vector<8x32xf32>
    %c0_33 = arith.constant 0 : index
    %c32_34 = arith.constant 32 : index
    %52 = vector.load %arg5[%c0_33, %c32_34] : memref<8x128xf32, #tpu.memory_space<vmem>>, vector<8x32xf32>
    "tpu.trace_start"() <{level = 10 : i32, message = "qd,kd->qk"}> : () -> ()
    %cst_35 = arith.constant dense<0.000000e+00> : vector<8x8xf32>
    %53 = tpu.matmul %51, %52, %cst_35 {dimension_numbers = #tpu.dot_dimension_numbers<[1], [1], [0], [0], [0, 0, 1, 0], [], []>} : vector<8x32xf32>, vector<8x32xf32>, vector<8x8xf32> -> vector<8x8xf32>
    %cst_36 = arith.constant -1.000000e+30 : f32
    "tpu.trace_stop"() : () -> ()
    %54 = vector.broadcast %cst_36 : f32 to vector<8x8xf32>
    %55 = arith.select %9, %53, %54 : vector<8x8xi1>, vector<8x8xf32>
    %c1 = arith.constant 1 : index
    %c0_37 = arith.constant 0 : index
    %c0_38 = arith.constant 0 : index
    %56 = vector.load %arg8[%c1, %c0_37, %c0_38] : memref<4x8x1xf32, #tpu.memory_space<vmem>>, vector<1x8x1xf32>
    %57 = vector.shape_cast %56 : vector<1x8x1xf32> to vector<8x1xf32>
    %cst_39 = arith.constant dense<0xFF800000> : vector<8xf32>
    %58 = vector.multi_reduction <maximumf>, %55, %cst_39 [1] : vector<8x8xf32> to vector<8xf32>
    %59 = vector.shape_cast %58 : vector<8xf32> to vector<8x1xf32>
    %60 = arith.maximumf %57, %59 : vector<8x1xf32>
    %61 = arith.subf %57, %60 : vector<8x1xf32>
    %62 = math.exp %61 : vector<8x1xf32>
    %63 = vector.broadcast %60 : vector<8x1xf32> to vector<8x8xf32>
    %64 = arith.subf %55, %63 : vector<8x8xf32>
    %65 = math.exp %64 : vector<8x8xf32>
    %c1_40 = arith.constant 1 : index
    %c0_41 = arith.constant 0 : index
    %c0_42 = arith.constant 0 : index
    %66 = vector.load %arg9[%c1_40, %c0_41, %c0_42] : memref<4x8x1xf32, #tpu.memory_space<vmem>>, vector<1x8x1xf32>
    %67 = vector.shape_cast %66 : vector<1x8x1xf32> to vector<8x1xf32>
    %68 = arith.mulf %62, %67 : vector<8x1xf32>
    %cst_43 = arith.constant dense<0.000000e+00> : vector<8xf32>
    %69 = vector.multi_reduction <add>, %65, %cst_43 [1] : vector<8x8xf32> to vector<8xf32>
    %70 = vector.shape_cast %69 : vector<8xf32> to vector<8x1xf32>
    %71 = arith.addf %68, %70 : vector<8x1xf32>
    %c1_44 = arith.constant 1 : index
    %c0_45 = arith.constant 0 : index
    %c0_46 = arith.constant 0 : index
    %72 = vector.load %arg9[%c1_44, %c0_45, %c0_46] : memref<4x8x1xf32, #tpu.memory_space<vmem>>, vector<1x8x1xf32>
    %73 = vector.shape_cast %72 : vector<1x8x1xf32> to vector<8x1xf32>
    %74 = vector.shape_cast %71 : vector<8x1xf32> to vector<1x8x1xf32>
    tpu.vector_store %arg9[%c1_44, %c0_45, %c0_46], %74 {strides = array<i32>} : memref<4x8x1xf32, #tpu.memory_space<vmem>>, vector<1x8x1xf32>,
    %c1_47 = arith.constant 1 : index
    %c0_48 = arith.constant 0 : index
    %c0_49 = arith.constant 0 : index
    %75 = vector.load %arg10[%c1_47, %c0_48, %c0_49] : memref<4x8x32xf32, #tpu.memory_space<vmem>>, vector<1x8x32xf32>
    %76 = vector.shape_cast %75 : vector<1x8x32xf32> to vector<8x32xf32>
    %77 = vector.broadcast %62 : vector<8x1xf32> to vector<8x32xf32>
    %78 = arith.mulf %77, %76 : vector<8x32xf32>
    %c0_50 = arith.constant 0 : index
    %c32_51 = arith.constant 32 : index
    %79 = vector.load %arg6[%c0_50, %c32_51] : memref<8x128xf32, #tpu.memory_space<vmem>>, vector<8x32xf32>
    %cst_52 = arith.constant dense<0.000000e+00> : vector<8x32xf32>
    %80 = tpu.matmul %65, %79, %cst_52 {dimension_numbers = #tpu.dot_dimension_numbers<[1], [0], [0], [1], [0, 0, 1, 1], [], []>} : vector<8x8xf32>, vector<8x32xf32>, vector<8x32xf32> -> vector<8x32xf32>
    %81 = arith.addf %78, %80 : vector<8x32xf32>
    %c1_53 = arith.constant 1 : index
    %c0_54 = arith.constant 0 : index
    %c0_55 = arith.constant 0 : index
    %82 = vector.load %arg10[%c1_53, %c0_54, %c0_55] : memref<4x8x32xf32, #tpu.memory_space<vmem>>, vector<1x8x32xf32>
    %83 = vector.shape_cast %82 : vector<1x8x32xf32> to vector<8x32xf32>
    %84 = vector.shape_cast %81 : vector<8x32xf32> to vector<1x8x32xf32>
    tpu.vector_store %arg10[%c1_53, %c0_54, %c0_55], %84 {strides = array<i32>} : memref<4x8x32xf32, #tpu.memory_space<vmem>>, vector<1x8x32xf32>,
    %c1_56 = arith.constant 1 : index
    %c0_57 = arith.constant 0 : index
    %c0_58 = arith.constant 0 : index
    %85 = vector.load %arg8[%c1_56, %c0_57, %c0_58] : memref<4x8x1xf32, #tpu.memory_space<vmem>>, vector<1x8x1xf32>
    %86 = vector.shape_cast %85 : vector<1x8x1xf32> to vector<8x1xf32>
    %87 = vector.shape_cast %60 : vector<8x1xf32> to vector<1x8x1xf32>
    tpu.vector_store %arg8[%c1_56, %c0_57, %c0_58], %87 {strides = array<i32>} : memref<4x8x1xf32, #tpu.memory_space<vmem>>, vector<1x8x1xf32>,
    %c0_59 = arith.constant 0 : index
    %c64 = arith.constant 64 : index
    %88 = vector.load %arg4[%c0_59, %c64] : memref<8x128xf32, #tpu.memory_space<vmem>>, vector<8x32xf32>
    %cst_60 = arith.constant 0.176776692 : f32
    %89 = vector.broadcast %cst_60 : f32 to vector<8x32xf32>
    %90 = arith.mulf %88, %89 : vector<8x32xf32>
    %c0_61 = arith.constant 0 : index
    %c64_62 = arith.constant 64 : index
    %91 = vector.load %arg5[%c0_61, %c64_62] : memref<8x128xf32, #tpu.memory_space<vmem>>, vector<8x32xf32>
    "tpu.trace_start"() <{level = 10 : i32, message = "qd,kd->qk"}> : () -> ()
    %cst_63 = arith.constant dense<0.000000e+00> : vector<8x8xf32>
    %92 = tpu.matmul %90, %91, %cst_63 {dimension_numbers = #tpu.dot_dimension_numbers<[1], [1], [0], [0], [0, 0, 1, 0], [], []>} : vector<8x32xf32>, vector<8x32xf32>, vector<8x8xf32> -> vector<8x8xf32>
    %cst_64 = arith.constant -1.000000e+30 : f32
    "tpu.trace_stop"() : () -> ()
    %93 = vector.broadcast %cst_64 : f32 to vector<8x8xf32>
    %94 = arith.select %9, %92, %93 : vector<8x8xi1>, vector<8x8xf32>
    %c2 = arith.constant 2 : index
    %c0_65 = arith.constant 0 : index
    %c0_66 = arith.constant 0 : index
    %95 = vector.load %arg8[%c2, %c0_65, %c0_66] : memref<4x8x1xf32, #tpu.memory_space<vmem>>, vector<1x8x1xf32>
    %96 = vector.shape_cast %95 : vector<1x8x1xf32> to vector<8x1xf32>
    %cst_67 = arith.constant dense<0xFF800000> : vector<8xf32>
    %97 = vector.multi_reduction <maximumf>, %94, %cst_67 [1] : vector<8x8xf32> to vector<8xf32>
    %98 = vector.shape_cast %97 : vector<8xf32> to vector<8x1xf32>
    %99 = arith.maximumf %96, %98 : vector<8x1xf32>
    %100 = arith.subf %96, %99 : vector<8x1xf32>
    %101 = math.exp %100 : vector<8x1xf32>
    %102 = vector.broadcast %99 : vector<8x1xf32> to vector<8x8xf32>
    %103 = arith.subf %94, %102 : vector<8x8xf32>
    %104 = math.exp %103 : vector<8x8xf32>
    %c2_68 = arith.constant 2 : index
    %c0_69 = arith.constant 0 : index
    %c0_70 = arith.constant 0 : index
    %105 = vector.load %arg9[%c2_68, %c0_69, %c0_70] : memref<4x8x1xf32, #tpu.memory_space<vmem>>, vector<1x8x1xf32>
    %106 = vector.shape_cast %105 : vector<1x8x1xf32> to vector<8x1xf32>
    %107 = arith.mulf %101, %106 : vector<8x1xf32>
    %cst_71 = arith.constant dense<0.000000e+00> : vector<8xf32>
    %108 = vector.multi_reduction <add>, %104, %cst_71 [1] : vector<8x8xf32> to vector<8xf32>
    %109 = vector.shape_cast %108 : vector<8xf32> to vector<8x1xf32>
    %110 = arith.addf %107, %109 : vector<8x1xf32>
    %c2_72 = arith.constant 2 : index
    %c0_73 = arith.constant 0 : index
    %c0_74 = arith.constant 0 : index
    %111 = vector.load %arg9[%c2_72, %c0_73, %c0_74] : memref<4x8x1xf32, #tpu.memory_space<vmem>>, vector<1x8x1xf32>
    %112 = vector.shape_cast %111 : vector<1x8x1xf32> to vector<8x1xf32>
    %113 = vector.shape_cast %110 : vector<8x1xf32> to vector<1x8x1xf32>
    tpu.vector_store %arg9[%c2_72, %c0_73, %c0_74], %113 {strides = array<i32>} : memref<4x8x1xf32, #tpu.memory_space<vmem>>, vector<1x8x1xf32>,
    %c2_75 = arith.constant 2 : index
    %c0_76 = arith.constant 0 : index
    %c0_77 = arith.constant 0 : index
    %114 = vector.load %arg10[%c2_75, %c0_76, %c0_77] : memref<4x8x32xf32, #tpu.memory_space<vmem>>, vector<1x8x32xf32>
    %115 = vector.shape_cast %114 : vector<1x8x32xf32> to vector<8x32xf32>
    %116 = vector.broadcast %101 : vector<8x1xf32> to vector<8x32xf32>
    %117 = arith.mulf %116, %115 : vector<8x32xf32>
    %c0_78 = arith.constant 0 : index
    %c64_79 = arith.constant 64 : index
    %118 = vector.load %arg6[%c0_78, %c64_79] : memref<8x128xf32, #tpu.memory_space<vmem>>, vector<8x32xf32>
    %cst_80 = arith.constant dense<0.000000e+00> : vector<8x32xf32>
    %119 = tpu.matmul %104, %118, %cst_80 {dimension_numbers = #tpu.dot_dimension_numbers<[1], [0], [0], [1], [0, 0, 1, 1], [], []>} : vector<8x8xf32>, vector<8x32xf32>, vector<8x32xf32> -> vector<8x32xf32>
    %120 = arith.addf %117, %119 : vector<8x32xf32>
    %c2_81 = arith.constant 2 : index
    %c0_82 = arith.constant 0 : index
    %c0_83 = arith.constant 0 : index
    %121 = vector.load %arg10[%c2_81, %c0_82, %c0_83] : memref<4x8x32xf32, #tpu.memory_space<vmem>>, vector<1x8x32xf32>
    %122 = vector.shape_cast %121 : vector<1x8x32xf32> to vector<8x32xf32>
    %123 = vector.shape_cast %120 : vector<8x32xf32> to vector<1x8x32xf32>
    tpu.vector_store %arg10[%c2_81, %c0_82, %c0_83], %123 {strides = array<i32>} : memref<4x8x32xf32, #tpu.memory_space<vmem>>, vector<1x8x32xf32>,
    %c2_84 = arith.constant 2 : index
    %c0_85 = arith.constant 0 : index
    %c0_86 = arith.constant 0 : index
    %124 = vector.load %arg8[%c2_84, %c0_85, %c0_86] : memref<4x8x1xf32, #tpu.memory_space<vmem>>, vector<1x8x1xf32>
    %125 = vector.shape_cast %124 : vector<1x8x1xf32> to vector<8x1xf32>
    %126 = vector.shape_cast %99 : vector<8x1xf32> to vector<1x8x1xf32>
    tpu.vector_store %arg8[%c2_84, %c0_85, %c0_86], %126 {strides = array<i32>} : memref<4x8x1xf32, #tpu.memory_space<vmem>>, vector<1x8x1xf32>,
    %c0_87 = arith.constant 0 : index
    %c96 = arith.constant 96 : index
    %127 = vector.load %arg4[%c0_87, %c96] : memref<8x128xf32, #tpu.memory_space<vmem>>, vector<8x32xf32>
    %cst_88 = arith.constant 0.176776692 : f32
    %128 = vector.broadcast %cst_88 : f32 to vector<8x32xf32>
    %129 = arith.mulf %127, %128 : vector<8x32xf32>
    %c0_89 = arith.constant 0 : index
    %c96_90 = arith.constant 96 : index
    %130 = vector.load %arg5[%c0_89, %c96_90] : memref<8x128xf32, #tpu.memory_space<vmem>>, vector<8x32xf32>
    "tpu.trace_start"() <{level = 10 : i32, message = "qd,kd->qk"}> : () -> ()
    %cst_91 = arith.constant dense<0.000000e+00> : vector<8x8xf32>
    %131 = tpu.matmul %129, %130, %cst_91 {dimension_numbers = #tpu.dot_dimension_numbers<[1], [1], [0], [0], [0, 0, 1, 0], [], []>} : vector<8x32xf32>, vector<8x32xf32>, vector<8x8xf32> -> vector<8x8xf32>
    %cst_92 = arith.constant -1.000000e+30 : f32
    "tpu.trace_stop"() : () -> ()
    %132 = vector.broadcast %cst_92 : f32 to vector<8x8xf32>
    %133 = arith.select %9, %131, %132 : vector<8x8xi1>, vector<8x8xf32>
    %c3 = arith.constant 3 : index
    %c0_93 = arith.constant 0 : index
    %c0_94 = arith.constant 0 : index
    %134 = vector.load %arg8[%c3, %c0_93, %c0_94] : memref<4x8x1xf32, #tpu.memory_space<vmem>>, vector<1x8x1xf32>
    %135 = vector.shape_cast %134 : vector<1x8x1xf32> to vector<8x1xf32>
    %cst_95 = arith.constant dense<0xFF800000> : vector<8xf32>
    %136 = vector.multi_reduction <maximumf>, %133, %cst_95 [1] : vector<8x8xf32> to vector<8xf32>
    %137 = vector.shape_cast %136 : vector<8xf32> to vector<8x1xf32>
    %138 = arith.maximumf %135, %137 : vector<8x1xf32>
    %139 = arith.subf %135, %138 : vector<8x1xf32>
    %140 = math.exp %139 : vector<8x1xf32>
    %141 = vector.broadcast %138 : vector<8x1xf32> to vector<8x8xf32>
    %142 = arith.subf %133, %141 : vector<8x8xf32>
    %143 = math.exp %142 : vector<8x8xf32>
    %c3_96 = arith.constant 3 : index
    %c0_97 = arith.constant 0 : index
    %c0_98 = arith.constant 0 : index
    %144 = vector.load %arg9[%c3_96, %c0_97, %c0_98] : memref<4x8x1xf32, #tpu.memory_space<vmem>>, vector<1x8x1xf32>
    %145 = vector.shape_cast %144 : vector<1x8x1xf32> to vector<8x1xf32>
    %146 = arith.mulf %140, %145 : vector<8x1xf32>
    %cst_99 = arith.constant dense<0.000000e+00> : vector<8xf32>
    %147 = vector.multi_reduction <add>, %143, %cst_99 [1] : vector<8x8xf32> to vector<8xf32>
    %148 = vector.shape_cast %147 : vector<8xf32> to vector<8x1xf32>
    %149 = arith.addf %146, %148 : vector<8x1xf32>
    %c3_100 = arith.constant 3 : index
    %c0_101 = arith.constant 0 : index
    %c0_102 = arith.constant 0 : index
    %150 = vector.load %arg9[%c3_100, %c0_101, %c0_102] : memref<4x8x1xf32, #tpu.memory_space<vmem>>, vector<1x8x1xf32>
    %151 = vector.shape_cast %150 : vector<1x8x1xf32> to vector<8x1xf32>
    %152 = vector.shape_cast %149 : vector<8x1xf32> to vector<1x8x1xf32>
    tpu.vector_store %arg9[%c3_100, %c0_101, %c0_102], %152 {strides = array<i32>} : memref<4x8x1xf32, #tpu.memory_space<vmem>>, vector<1x8x1xf32>,
    %c3_103 = arith.constant 3 : index
    %c0_104 = arith.constant 0 : index
    %c0_105 = arith.constant 0 : index
    %153 = vector.load %arg10[%c3_103, %c0_104, %c0_105] : memref<4x8x32xf32, #tpu.memory_space<vmem>>, vector<1x8x32xf32>
    %154 = vector.shape_cast %153 : vector<1x8x32xf32> to vector<8x32xf32>
    %155 = vector.broadcast %140 : vector<8x1xf32> to vector<8x32xf32>
    %156 = arith.mulf %155, %154 : vector<8x32xf32>
    %c0_106 = arith.constant 0 : index
    %c96_107 = arith.constant 96 : index
    %157 = vector.load %arg6[%c0_106, %c96_107] : memref<8x128xf32, #tpu.memory_space<vmem>>, vector<8x32xf32>
    %cst_108 = arith.constant dense<0.000000e+00> : vector<8x32xf32>
    %158 = tpu.matmul %143, %157, %cst_108 {dimension_numbers = #tpu.dot_dimension_numbers<[1], [0], [0], [1], [0, 0, 1, 1], [], []>} : vector<8x8xf32>, vector<8x32xf32>, vector<8x32xf32> -> vector<8x32xf32>
    %159 = arith.addf %156, %158 : vector<8x32xf32>
    %c3_109 = arith.constant 3 : index
    %c0_110 = arith.constant 0 : index
    %c0_111 = arith.constant 0 : index
    %160 = vector.load %arg10[%c3_109, %c0_110, %c0_111] : memref<4x8x32xf32, #tpu.memory_space<vmem>>, vector<1x8x32xf32>
    %161 = vector.shape_cast %160 : vector<1x8x32xf32> to vector<8x32xf32>
    %162 = vector.shape_cast %159 : vector<8x32xf32> to vector<1x8x32xf32>
    tpu.vector_store %arg10[%c3_109, %c0_110, %c0_111], %162 {strides = array<i32>} : memref<4x8x32xf32, #tpu.memory_space<vmem>>, vector<1x8x32xf32>,
    %c3_112 = arith.constant 3 : index
    %c0_113 = arith.constant 0 : index
    %c0_114 = arith.constant 0 : index
    %163 = vector.load %arg8[%c3_112, %c0_113, %c0_114] : memref<4x8x1xf32, #tpu.memory_space<vmem>>, vector<1x8x1xf32>
    %164 = vector.shape_cast %163 : vector<1x8x1xf32> to vector<8x1xf32>
    %165 = vector.shape_cast %138 : vector<8x1xf32> to vector<1x8x1xf32>
    tpu.vector_store %arg8[%c3_112, %c0_113, %c0_114], %165 {strides = array<i32>} : memref<4x8x1xf32, #tpu.memory_space<vmem>>, vector<1x8x1xf32>,
    %c0_i32_115 = arith.constant 0 : i32
    %166 = arith.cmpi eq, %arg2, %c0_i32_115 : i32
    %167 = arith.extui %166 : i1 to i32
    %c0_i32_116 = arith.constant 0 : i32
    %168 = arith.cmpi ne, %167, %c0_i32_116 : i32
    scf.if %168 {
      %c0_117 = arith.constant 0 : index
      %c0_118 = arith.constant 0 : index
      %c0_119 = arith.constant 0 : index
      %169 = vector.load %arg10[%c0_117, %c0_118, %c0_119] : memref<4x8x32xf32, #tpu.memory_space<vmem>>, vector<1x8x32xf32>
      %170 = vector.shape_cast %169 : vector<1x8x32xf32> to vector<8x32xf32>
      %c0_120 = arith.constant 0 : index
      %c0_121 = arith.constant 0 : index
      %c0_122 = arith.constant 0 : index
      %171 = vector.load %arg9[%c0_120, %c0_121, %c0_122] : memref<4x8x1xf32, #tpu.memory_space<vmem>>, vector<1x8x1xf32>
      %172 = vector.shape_cast %171 : vector<1x8x1xf32> to vector<8x1xf32>
      %173 = tpu.reciprocal %172 : vector<8x1xf32> -> vector<8x1xf32>
      %174 = vector.broadcast %173 : vector<8x1xf32> to vector<8x32xf32>
      %175 = arith.mulf %170, %174 : vector<8x32xf32>
      %c1_123 = arith.constant 1 : index
      %c0_124 = arith.constant 0 : index
      %c0_125 = arith.constant 0 : index
      %176 = vector.load %arg10[%c1_123, %c0_124, %c0_125] : memref<4x8x32xf32, #tpu.memory_space<vmem>>, vector<1x8x32xf32>
      %177 = vector.shape_cast %176 : vector<1x8x32xf32> to vector<8x32xf32>
      %c1_126 = arith.constant 1 : index
      %c0_127 = arith.constant 0 : index
      %c0_128 = arith.constant 0 : index
      %178 = vector.load %arg9[%c1_126, %c0_127, %c0_128] : memref<4x8x1xf32, #tpu.memory_space<vmem>>, vector<1x8x1xf32>
      %179 = vector.shape_cast %178 : vector<1x8x1xf32> to vector<8x1xf32>
      %180 = tpu.reciprocal %179 : vector<8x1xf32> -> vector<8x1xf32>
      %181 = vector.broadcast %180 : vector<8x1xf32> to vector<8x32xf32>
      %182 = arith.mulf %177, %181 : vector<8x32xf32>
      %c2_129 = arith.constant 2 : index
      %c0_130 = arith.constant 0 : index
      %c0_131 = arith.constant 0 : index
      %183 = vector.load %arg10[%c2_129, %c0_130, %c0_131] : memref<4x8x32xf32, #tpu.memory_space<vmem>>, vector<1x8x32xf32>
      %184 = vector.shape_cast %183 : vector<1x8x32xf32> to vector<8x32xf32>
      %c2_132 = arith.constant 2 : index
      %c0_133 = arith.constant 0 : index
      %c0_134 = arith.constant 0 : index
      %185 = vector.load %arg9[%c2_132, %c0_133, %c0_134] : memref<4x8x1xf32, #tpu.memory_space<vmem>>, vector<1x8x1xf32>
      %186 = vector.shape_cast %185 : vector<1x8x1xf32> to vector<8x1xf32>
      %187 = tpu.reciprocal %186 : vector<8x1xf32> -> vector<8x1xf32>
      %188 = vector.broadcast %187 : vector<8x1xf32> to vector<8x32xf32>
      %189 = arith.mulf %184, %188 : vector<8x32xf32>
      %c3_135 = arith.constant 3 : index
      %c0_136 = arith.constant 0 : index
      %c0_137 = arith.constant 0 : index
      %190 = vector.load %arg10[%c3_135, %c0_136, %c0_137] : memref<4x8x32xf32, #tpu.memory_space<vmem>>, vector<1x8x32xf32>
      %191 = vector.shape_cast %190 : vector<1x8x32xf32> to vector<8x32xf32>
      %c3_138 = arith.constant 3 : index
      %c0_139 = arith.constant 0 : index
      %c0_140 = arith.constant 0 : index
      %192 = vector.load %arg9[%c3_138, %c0_139, %c0_140] : memref<4x8x1xf32, #tpu.memory_space<vmem>>, vector<1x8x1xf32>
      %193 = vector.shape_cast %192 : vector<1x8x1xf32> to vector<8x1xf32>
      %194 = tpu.reciprocal %193 : vector<8x1xf32> -> vector<8x1xf32>
      %195 = vector.broadcast %194 : vector<8x1xf32> to vector<8x32xf32>
      %196 = arith.mulf %191, %195 : vector<8x32xf32>
      %197 = tpu.concatenate %175, %182, %189, %196 in 1 : vector<8x32xf32>, vector<8x32xf32>, vector<8x32xf32>, vector<8x32xf32> -> vector<8x128xf32>
      %c0_141 = arith.constant 0 : index
      %c0_142 = arith.constant 0 : index
      %198 = vector.load %arg7[%c0_141, %c0_142] : memref<8x128xf32, #tpu.memory_space<vmem>>, vector<8x128xf32>
      tpu.vector_store %arg7[%c0_141, %c0_142], %197 {strides = array<i32>} : memref<8x128xf32, #tpu.memory_space<vmem>>, vector<8x128xf32>,
    } else {
    }
    return
  }
  func.func @transform_0(%arg0: i32, %arg1: i32, %arg2: i32) -> (i32, i32) {
    %c1_i32 = arith.constant 1 : i32
    %0 = arith.muli %arg0, %c1_i32 : i32
    %1 = arith.addi %0, %arg1 : i32
    %c0_i32 = arith.constant 0 : i32
    %c0_i32_0 = arith.constant 0 : i32
    return %1, %c0_i32 : i32, i32
  }
  func.func @transform_1(%arg0: i32, %arg1: i32, %arg2: i32) -> (i32, i32) {
    %c1_i32 = arith.constant 1 : i32
    %0 = arith.muli %arg0, %c1_i32 : i32
    %1 = arith.addi %0, %arg1 : i32
    %c0_i32 = arith.constant 0 : i32
    %c0_i32_0 = arith.constant 0 : i32
    return %1, %c0_i32 : i32, i32
  }
  func.func @transform_2(%arg0: i32, %arg1: i32, %arg2: i32) -> (i32, i32) {
    %c1_i32 = arith.constant 1 : i32
    %0 = arith.muli %arg0, %c1_i32 : i32
    %1 = arith.addi %0, %arg2 : i32
    %c0_i32 = arith.constant 0 : i32
    %c0_i32_0 = arith.constant 0 : i32
    return %1, %c0_i32 : i32, i32
  }
  func.func @transform_3(%arg0: i32, %arg1: i32, %arg2: i32) -> (i32, i32) {
    %c1_i32 = arith.constant 1 : i32
    %0 = arith.muli %arg0, %c1_i32 : i32
    %1 = arith.addi %0, %arg2 : i32
    %c1_i32_0 = arith.constant 1 : i32
    %c0_i32 = arith.constant 0 : i32
    return %1, %c1_i32_0 : i32, i32
  }
  func.func @transform_4(%arg0: i32, %arg1: i32, %arg2: i32) -> (i32, i32) {
    %c1_i32 = arith.constant 1 : i32
    %0 = arith.muli %arg0, %c1_i32 : i32
    %1 = arith.addi %0, %arg1 : i32
    %c0_i32 = arith.constant 0 : i32
    %c0_i32_0 = arith.constant 0 : i32
    return %1, %c0_i32 : i32, i32
  }
}

module attributes {stable_mosaic.version = 11 : i64} {
  func.func @_linear_kernel(%arg0: i32, %arg1: i32, %arg2: i32, %arg3: memref<16x128xf32, #tpu.memory_space<vmem>>, %arg4: memref<128x256xf32, #tpu.memory_space<vmem>>, %arg5: memref<1x256xf32, #tpu.memory_space<vmem>>, %arg6: memref<16x256xf32, #tpu.memory_space<vmem>>, %arg7: memref<16x256xf32, #tpu.memory_space<vmem>>) attributes {dimension_semantics = [#tpu.dimension_semantics<parallel>, #tpu.dimension_semantics<parallel>, #tpu.dimension_semantics<arbitrary>], iteration_bounds = array<i64: 1, 1, 1>, scalar_prefetch = 0 : i64, scratch_operands = 1 : i64, tpu.core_type = #tpu.core_type<tc>, window_params = [{transform_indices = @transform_0, window_bounds = array<i64: 16, 128>}, {transform_indices = @transform_1, window_bounds = array<i64: 128, 256>}, {transform_indices = @transform_2, window_bounds = array<i64: 1, 256>}, {transform_indices = @transform_3, window_bounds = array<i64: 16, 256>}]} {
    %c0_i32 = arith.constant 0 : i32
    %0 = arith.cmpi eq, %arg2, %c0_i32 : i32
    %1 = arith.extui %0 : i1 to i32
    %c0_i32_0 = arith.constant 0 : i32
    %2 = arith.cmpi ne, %1, %c0_i32_0 : i32
    scf.if %2 {
      %cst_10 = arith.constant 0.000000e+00 : f32
      %12 = vector.broadcast %cst_10 : f32 to vector<16x256xf32>
      %c0_11 = arith.constant 0 : index
      %c0_12 = arith.constant 0 : index
      %13 = vector.load %arg7[%c0_11, %c0_12] : memref<16x256xf32, #tpu.memory_space<vmem>>, vector<16x256xf32>
      tpu.vector_store %arg7[%c0_11, %c0_12], %12 {strides = array<i32>} : memref<16x256xf32, #tpu.memory_space<vmem>>, vector<16x256xf32>,
    } else {
    }
    %c0 = arith.constant 0 : index
    %c0_1 = arith.constant 0 : index
    %3 = vector.load %arg7[%c0, %c0_1] : memref<16x256xf32, #tpu.memory_space<vmem>>, vector<16x256xf32>
    %c0_2 = arith.constant 0 : index
    %c0_3 = arith.constant 0 : index
    %4 = vector.load %arg3[%c0_2, %c0_3] : memref<16x128xf32, #tpu.memory_space<vmem>>, vector<16x128xf32>
    %c0_4 = arith.constant 0 : index
    %c0_5 = arith.constant 0 : index
    %5 = vector.load %arg4[%c0_4, %c0_5] : memref<128x256xf32, #tpu.memory_space<vmem>>, vector<128x256xf32>
    %cst = arith.constant dense<0.000000e+00> : vector<16x256xf32>
    %6 = tpu.matmul %4, %5, %cst {dimension_numbers = #tpu.dot_dimension_numbers<[1], [0], [0], [1], [0, 0, 1, 1], [], []>} : vector<16x128xf32>, vector<128x256xf32>, vector<16x256xf32> -> vector<16x256xf32>
    %7 = arith.addf %3, %6 : vector<16x256xf32>
    %c0_6 = arith.constant 0 : index
    %c0_7 = arith.constant 0 : index
    %8 = vector.load %arg7[%c0_6, %c0_7] : memref<16x256xf32, #tpu.memory_space<vmem>>, vector<16x256xf32>
    tpu.vector_store %arg7[%c0_6, %c0_7], %7 {strides = array<i32>} : memref<16x256xf32, #tpu.memory_space<vmem>>, vector<16x256xf32>,
    %c0_i32_8 = arith.constant 0 : i32
    %9 = arith.cmpi eq, %arg2, %c0_i32_8 : i32
    %10 = arith.extui %9 : i1 to i32
    %c0_i32_9 = arith.constant 0 : i32
    %11 = arith.cmpi ne, %10, %c0_i32_9 : i32
    scf.if %11 {
      %c0_10 = arith.constant 0 : index
      %c0_11 = arith.constant 0 : index
      %12 = vector.load %arg7[%c0_10, %c0_11] : memref<16x256xf32, #tpu.memory_space<vmem>>, vector<16x256xf32>
      %c0_12 = arith.constant 0 : index
      %c0_13 = arith.constant 0 : index
      %13 = vector.load %arg5[%c0_12, %c0_13] : memref<1x256xf32, #tpu.memory_space<vmem>>, vector<1x256xf32>
      %14 = vector.broadcast %13 : vector<1x256xf32> to vector<16x256xf32>
      %15 = arith.addf %12, %14 : vector<16x256xf32>
      %cst_14 = arith.constant 0.000000e+00 : f32
      %16 = vector.broadcast %cst_14 : f32 to vector<16x256xf32>
      %17 = arith.maximumf %15, %16 : vector<16x256xf32>
      %c0_15 = arith.constant 0 : index
      %c0_16 = arith.constant 0 : index
      %18 = vector.load %arg6[%c0_15, %c0_16] : memref<16x256xf32, #tpu.memory_space<vmem>>, vector<16x256xf32>
      tpu.vector_store %arg6[%c0_15, %c0_16], %17 {strides = array<i32>} : memref<16x256xf32, #tpu.memory_space<vmem>>, vector<16x256xf32>,
    } else {
    }
    return
  }
  func.func @transform_0(%arg0: i32, %arg1: i32, %arg2: i32) -> (i32, i32) {
    %c0_i32 = arith.constant 0 : i32
    return %arg0, %arg2 : i32, i32
  }
  func.func @transform_1(%arg0: i32, %arg1: i32, %arg2: i32) -> (i32, i32) {
    %c0_i32 = arith.constant 0 : i32
    return %arg2, %arg1 : i32, i32
  }
  func.func @transform_2(%arg0: i32, %arg1: i32, %arg2: i32) -> (i32, i32) {
    %c0_i32 = arith.constant 0 : i32
    %c0_i32_0 = arith.constant 0 : i32
    return %c0_i32, %arg1 : i32, i32
  }
  func.func @transform_3(%arg0: i32, %arg1: i32, %arg2: i32) -> (i32, i32) {
    %c0_i32 = arith.constant 0 : i32
    return %arg0, %arg1 : i32, i32
  }
}

module attributes {stable_mosaic.version = 11 : i64} {
  func.func @_linear_kernel(%arg0: i32, %arg1: i32, %arg2: i32, %arg3: memref<16x256xf32, #tpu.memory_space<vmem>>, %arg4: memref<256x128xf32, #tpu.memory_space<vmem>>, %arg5: memref<1x128xf32, #tpu.memory_space<vmem>>, %arg6: memref<16x128xf32, #tpu.memory_space<vmem>>, %arg7: memref<1x128xf32, #tpu.memory_space<vmem>>, %arg8: memref<1x128xf32, #tpu.memory_space<vmem>>, %arg9: memref<16x128xf32, #tpu.memory_space<vmem>>, %arg10: memref<16x128xf32, #tpu.memory_space<vmem>>) attributes {dimension_semantics = [#tpu.dimension_semantics<parallel>, #tpu.dimension_semantics<parallel>, #tpu.dimension_semantics<arbitrary>], iteration_bounds = array<i64: 1, 1, 1>, scalar_prefetch = 0 : i64, scratch_operands = 1 : i64, tpu.core_type = #tpu.core_type<tc>, window_params = [{transform_indices = @transform_0, window_bounds = array<i64: 16, 256>}, {transform_indices = @transform_1, window_bounds = array<i64: 256, 128>}, {transform_indices = @transform_2, window_bounds = array<i64: 1, 128>}, {transform_indices = @transform_3, window_bounds = array<i64: 16, 128>}, {transform_indices = @transform_4, window_bounds = array<i64: 1, 128>}, {transform_indices = @transform_5, window_bounds = array<i64: 1, 128>}, {transform_indices = @transform_6, window_bounds = array<i64: 16, 128>}]} {
    %c0_i32 = arith.constant 0 : i32
    %0 = arith.cmpi eq, %arg2, %c0_i32 : i32
    %1 = arith.extui %0 : i1 to i32
    %c0_i32_0 = arith.constant 0 : i32
    %2 = arith.cmpi ne, %1, %c0_i32_0 : i32
    scf.if %2 {
      %cst_10 = arith.constant 0.000000e+00 : f32
      %12 = vector.broadcast %cst_10 : f32 to vector<16x128xf32>
      %c0_11 = arith.constant 0 : index
      %c0_12 = arith.constant 0 : index
      %13 = vector.load %arg10[%c0_11, %c0_12] : memref<16x128xf32, #tpu.memory_space<vmem>>, vector<16x128xf32>
      tpu.vector_store %arg10[%c0_11, %c0_12], %12 {strides = array<i32>} : memref<16x128xf32, #tpu.memory_space<vmem>>, vector<16x128xf32>,
    } else {
    }
    %c0 = arith.constant 0 : index
    %c0_1 = arith.constant 0 : index
    %3 = vector.load %arg10[%c0, %c0_1] : memref<16x128xf32, #tpu.memory_space<vmem>>, vector<16x128xf32>
    %c0_2 = arith.constant 0 : index
    %c0_3 = arith.constant 0 : index
    %4 = vector.load %arg3[%c0_2, %c0_3] : memref<16x256xf32, #tpu.memory_space<vmem>>, vector<16x256xf32>
    %c0_4 = arith.constant 0 : index
    %c0_5 = arith.constant 0 : index
    %5 = vector.load %arg4[%c0_4, %c0_5] : memref<256x128xf32, #tpu.memory_space<vmem>>, vector<256x128xf32>
    %cst = arith.constant dense<0.000000e+00> : vector<16x128xf32>
    %6 = tpu.matmul %4, %5, %cst {dimension_numbers = #tpu.dot_dimension_numbers<[1], [0], [0], [1], [0, 0, 1, 1], [], []>} : vector<16x256xf32>, vector<256x128xf32>, vector<16x128xf32> -> vector<16x128xf32>
    %7 = arith.addf %3, %6 : vector<16x128xf32>
    %c0_6 = arith.constant 0 : index
    %c0_7 = arith.constant 0 : index
    %8 = vector.load %arg10[%c0_6, %c0_7] : memref<16x128xf32, #tpu.memory_space<vmem>>, vector<16x128xf32>
    tpu.vector_store %arg10[%c0_6, %c0_7], %7 {strides = array<i32>} : memref<16x128xf32, #tpu.memory_space<vmem>>, vector<16x128xf32>,
    %c0_i32_8 = arith.constant 0 : i32
    %9 = arith.cmpi eq, %arg2, %c0_i32_8 : i32
    %10 = arith.extui %9 : i1 to i32
    %c0_i32_9 = arith.constant 0 : i32
    %11 = arith.cmpi ne, %10, %c0_i32_9 : i32
    scf.if %11 {
      %c0_10 = arith.constant 0 : index
      %c0_11 = arith.constant 0 : index
      %12 = vector.load %arg10[%c0_10, %c0_11] : memref<16x128xf32, #tpu.memory_space<vmem>>, vector<16x128xf32>
      %c0_12 = arith.constant 0 : index
      %c0_13 = arith.constant 0 : index
      %13 = vector.load %arg5[%c0_12, %c0_13] : memref<1x128xf32, #tpu.memory_space<vmem>>, vector<1x128xf32>
      %14 = vector.broadcast %13 : vector<1x128xf32> to vector<16x128xf32>
      %15 = arith.addf %12, %14 : vector<16x128xf32>
      %c0_14 = arith.constant 0 : index
      %c0_15 = arith.constant 0 : index
      %16 = vector.load %arg6[%c0_14, %c0_15] : memref<16x128xf32, #tpu.memory_space<vmem>>, vector<16x128xf32>
      %17 = arith.addf %15, %16 : vector<16x128xf32>
      %cst_16 = arith.constant dense<0.000000e+00> : vector<16xf32>
      %18 = vector.multi_reduction <add>, %17, %cst_16 [1] : vector<16x128xf32> to vector<16xf32>
      %19 = vector.shape_cast %18 : vector<16xf32> to vector<16x1xf32>
      %cst_17 = arith.constant 1.280000e+02 : f32
      %20 = vector.broadcast %cst_17 : f32 to vector<16x1xf32>
      %21 = arith.divf %19, %20 : vector<16x1xf32>
      %22 = vector.broadcast %21 : vector<16x1xf32> to vector<16x128xf32>
      %23 = arith.subf %17, %22 : vector<16x128xf32>
      %24 = arith.mulf %23, %23 : vector<16x128xf32>
      %cst_18 = arith.constant dense<0.000000e+00> : vector<16xf32>
      %25 = vector.multi_reduction <add>, %24, %cst_18 [1] : vector<16x128xf32> to vector<16xf32>
      %26 = vector.shape_cast %25 : vector<16xf32> to vector<16x1xf32>
      %cst_19 = arith.constant 1.280000e+02 : f32
      %27 = vector.broadcast %cst_19 : f32 to vector<16x1xf32>
      %28 = arith.divf %26, %27 : vector<16x1xf32>
      %29 = vector.broadcast %21 : vector<16x1xf32> to vector<16x128xf32>
      %30 = arith.subf %17, %29 : vector<16x128xf32>
      %cst_20 = arith.constant 9.99999974E-6 : f32
      %31 = vector.broadcast %cst_20 : f32 to vector<16x1xf32>
      %32 = arith.addf %28, %31 : vector<16x1xf32>
      %33 = math.rsqrt %32 : vector<16x1xf32>
      %34 = vector.broadcast %33 : vector<16x1xf32> to vector<16x128xf32>
      %35 = arith.mulf %30, %34 : vector<16x128xf32>
      %c0_21 = arith.constant 0 : index
      %c0_22 = arith.constant 0 : index
      %36 = vector.load %arg7[%c0_21, %c0_22] : memref<1x128xf32, #tpu.memory_space<vmem>>, vector<1x128xf32>
      %37 = vector.broadcast %36 : vector<1x128xf32> to vector<16x128xf32>
      %38 = arith.mulf %35, %37 : vector<16x128xf32>
      %c0_23 = arith.constant 0 : index
      %c0_24 = arith.constant 0 : index
      %39 = vector.load %arg8[%c0_23, %c0_24] : memref<1x128xf32, #tpu.memory_space<vmem>>, vector<1x128xf32>
      %40 = vector.broadcast %39 : vector<1x128xf32> to vector<16x128xf32>
      %41 = arith.addf %38, %40 : vector<16x128xf32>
      %c0_25 = arith.constant 0 : index
      %c0_26 = arith.constant 0 : index
      %42 = vector.load %arg9[%c0_25, %c0_26] : memref<16x128xf32, #tpu.memory_space<vmem>>, vector<16x128xf32>
      tpu.vector_store %arg9[%c0_25, %c0_26], %41 {strides = array<i32>} : memref<16x128xf32, #tpu.memory_space<vmem>>, vector<16x128xf32>,
    } else {
    }
    return
  }
  func.func @transform_0(%arg0: i32, %arg1: i32, %arg2: i32) -> (i32, i32) {
    %c0_i32 = arith.constant 0 : i32
    return %arg0, %arg2 : i32, i32
  }
  func.func @transform_1(%arg0: i32, %arg1: i32, %arg2: i32) -> (i32, i32) {
    %c0_i32 = arith.constant 0 : i32
    return %arg2, %arg1 : i32, i32
  }
  func.func @transform_2(%arg0: i32, %arg1: i32, %arg2: i32) -> (i32, i32) {
    %c0_i32 = arith.constant 0 : i32
    %c0_i32_0 = arith.constant 0 : i32
    return %c0_i32, %arg1 : i32, i32
  }
  func.func @transform_3(%arg0: i32, %arg1: i32, %arg2: i32) -> (i32, i32) {
    %c0_i32 = arith.constant 0 : i32
    return %arg0, %arg1 : i32, i32
  }
  func.func @transform_4(%arg0: i32, %arg1: i32, %arg2: i32) -> (i32, i32) {
    %c0_i32 = arith.constant 0 : i32
    %c0_i32_0 = arith.constant 0 : i32
    return %c0_i32, %arg1 : i32, i32
  }
  func.func @transform_5(%arg0: i32, %arg1: i32, %arg2: i32) -> (i32, i32) {
    %c0_i32 = arith.constant 0 : i32
    %c0_i32_0 = arith.constant 0 : i32
    return %c0_i32, %arg1 : i32, i32
  }
  func.func @transform_6(%arg0: i32, %arg1: i32, %arg2: i32) -> (i32, i32) {
    %c0_i32 = arith.constant 0 : i32
    return %arg0, %arg1 : i32, i32
  }
}

module attributes {stable_mosaic.version = 11 : i64} {
  func.func @_linear_kernel(%arg0: i32, %arg1: i32, %arg2: i32, %arg3: memref<16x128xf32, #tpu.memory_space<vmem>>, %arg4: memref<128x256xf32, #tpu.memory_space<vmem>>, %arg5: memref<1x256xf32, #tpu.memory_space<vmem>>, %arg6: memref<16x256xf32, #tpu.memory_space<vmem>>, %arg7: memref<16x256xf32, #tpu.memory_space<vmem>>) attributes {dimension_semantics = [#tpu.dimension_semantics<parallel>, #tpu.dimension_semantics<parallel>, #tpu.dimension_semantics<arbitrary>], iteration_bounds = array<i64: 1, 1, 1>, scalar_prefetch = 0 : i64, scratch_operands = 1 : i64, tpu.core_type = #tpu.core_type<tc>, window_params = [{transform_indices = @transform_0, window_bounds = array<i64: 16, 128>}, {transform_indices = @transform_1, window_bounds = array<i64: 128, 256>}, {transform_indices = @transform_2, window_bounds = array<i64: 1, 256>}, {transform_indices = @transform_3, window_bounds = array<i64: 16, 256>}]} {
    %c0_i32 = arith.constant 0 : i32
    %0 = arith.cmpi eq, %arg2, %c0_i32 : i32
    %1 = arith.extui %0 : i1 to i32
    %c0_i32_0 = arith.constant 0 : i32
    %2 = arith.cmpi ne, %1, %c0_i32_0 : i32
    scf.if %2 {
      %cst_10 = arith.constant 0.000000e+00 : f32
      %12 = vector.broadcast %cst_10 : f32 to vector<16x256xf32>
      %c0_11 = arith.constant 0 : index
      %c0_12 = arith.constant 0 : index
      %13 = vector.load %arg7[%c0_11, %c0_12] : memref<16x256xf32, #tpu.memory_space<vmem>>, vector<16x256xf32>
      tpu.vector_store %arg7[%c0_11, %c0_12], %12 {strides = array<i32>} : memref<16x256xf32, #tpu.memory_space<vmem>>, vector<16x256xf32>,
    } else {
    }
    %c0 = arith.constant 0 : index
    %c0_1 = arith.constant 0 : index
    %3 = vector.load %arg7[%c0, %c0_1] : memref<16x256xf32, #tpu.memory_space<vmem>>, vector<16x256xf32>
    %c0_2 = arith.constant 0 : index
    %c0_3 = arith.constant 0 : index
    %4 = vector.load %arg3[%c0_2, %c0_3] : memref<16x128xf32, #tpu.memory_space<vmem>>, vector<16x128xf32>
    %c0_4 = arith.constant 0 : index
    %c0_5 = arith.constant 0 : index
    %5 = vector.load %arg4[%c0_4, %c0_5] : memref<128x256xf32, #tpu.memory_space<vmem>>, vector<128x256xf32>
    %cst = arith.constant dense<0.000000e+00> : vector<16x256xf32>
    %6 = tpu.matmul %4, %5, %cst {dimension_numbers = #tpu.dot_dimension_numbers<[1], [0], [0], [1], [0, 0, 1, 1], [], []>} : vector<16x128xf32>, vector<128x256xf32>, vector<16x256xf32> -> vector<16x256xf32>
    %7 = arith.addf %3, %6 : vector<16x256xf32>
    %c0_6 = arith.constant 0 : index
    %c0_7 = arith.constant 0 : index
    %8 = vector.load %arg7[%c0_6, %c0_7] : memref<16x256xf32, #tpu.memory_space<vmem>>, vector<16x256xf32>
    tpu.vector_store %arg7[%c0_6, %c0_7], %7 {strides = array<i32>} : memref<16x256xf32, #tpu.memory_space<vmem>>, vector<16x256xf32>,
    %c0_i32_8 = arith.constant 0 : i32
    %9 = arith.cmpi eq, %arg2, %c0_i32_8 : i32
    %10 = arith.extui %9 : i1 to i32
    %c0_i32_9 = arith.constant 0 : i32
    %11 = arith.cmpi ne, %10, %c0_i32_9 : i32
    scf.if %11 {
      %c0_10 = arith.constant 0 : index
      %c0_11 = arith.constant 0 : index
      %12 = vector.load %arg7[%c0_10, %c0_11] : memref<16x256xf32, #tpu.memory_space<vmem>>, vector<16x256xf32>
      %c0_12 = arith.constant 0 : index
      %c0_13 = arith.constant 0 : index
      %13 = vector.load %arg5[%c0_12, %c0_13] : memref<1x256xf32, #tpu.memory_space<vmem>>, vector<1x256xf32>
      %14 = vector.broadcast %13 : vector<1x256xf32> to vector<16x256xf32>
      %15 = arith.addf %12, %14 : vector<16x256xf32>
      %c0_14 = arith.constant 0 : index
      %c0_15 = arith.constant 0 : index
      %16 = vector.load %arg6[%c0_14, %c0_15] : memref<16x256xf32, #tpu.memory_space<vmem>>, vector<16x256xf32>
      tpu.vector_store %arg6[%c0_14, %c0_15], %15 {strides = array<i32>} : memref<16x256xf32, #tpu.memory_space<vmem>>, vector<16x256xf32>,
    } else {
    }
    return
  }
  func.func @transform_0(%arg0: i32, %arg1: i32, %arg2: i32) -> (i32, i32) {
    %c0_i32 = arith.constant 0 : i32
    return %arg0, %arg2 : i32, i32
  }
  func.func @transform_1(%arg0: i32, %arg1: i32, %arg2: i32) -> (i32, i32) {
    %c0_i32 = arith.constant 0 : i32
    return %arg2, %arg1 : i32, i32
  }
  func.func @transform_2(%arg0: i32, %arg1: i32, %arg2: i32) -> (i32, i32) {
    %c0_i32 = arith.constant 0 : i32
    %c0_i32_0 = arith.constant 0 : i32
    return %c0_i32, %arg1 : i32, i32
  }
  func.func @transform_3(%arg0: i32, %arg1: i32, %arg2: i32) -> (i32, i32) {
    %c0_i32 = arith.constant 0 : i32
    return %arg0, %arg1 : i32, i32
  }
}

</mosaic_0001>

<llo_original>
// kernel: decoder_forward.20
$region0: #{decoder_forward.20}
  #allocation0 [shape = 'u32[]', space=smem, size = 0x4, offset = 0x4, fixed_abs, tag = 'smem constant byte address 0x4 - core index']
  #allocation1 [shape = 'u32[144,128]{1,0:T(1,128)}', space=vmem, size = 0x12000, scoped, tag = 'internal scratch']
  #allocation2 [shape = 'f32[8,128]{1,0:T(8,128)}', space=vmem, size = 0x1000, scoped, tag = 'scratch operand']
  #allocation3 [shape = 's32[8]{0}', space=sflag, size = 0x20, scoped, tag = 'scratch operand']
  #allocation4 [shape = 's32[1]{0}', space=sflag, size = 0x4, scoped, tag = 'scoped memory for decoder_forward.20']
  #allocation5 [shape = 'u8[512]{0}', space=smem, size = 0x200, scoped, tag = 'prefetched SMEM operand 0']
  #allocation6 [shape = 's32[]', space=sflag, size = 0x4, offset = 0, fixed_abs, tag = 'sflag constant byte address 0x0 - dummy sync flag']
  #allocation7 [shape = 's32[]', space=sflag, size = 0x4, offset = 0, fixed_abs, tag = 'sflag constant byte address 0x0 - dummy sync flag']
  #allocation8 [shape = 'u32[]', space=smem, size = 0x4, offset = 0x44, fixed_abs, tag = 'smem constant byte address 0x44 - assertion arg 0']
  #allocation9 [shape = 'u32[]', space=smem, size = 0x4, offset = 0x48, fixed_abs, tag = 'smem constant byte address 0x48 - assertion arg 1']
  #allocation10 [shape = 's32[]', space=sflag, size = 0x4, offset = 0, fixed_abs, tag = 'sflag constant byte address 0x0 - dummy sync flag']
  #allocation11 [shape = 's32[]', space=sflag, size = 0x4, offset = 0, fixed_abs, tag = 'sflag constant byte address 0x0 - dummy sync flag']
  #allocation12 [shape = 's32[]', space=sflag, size = 0x4, offset = 0, fixed_abs, tag = 'sflag constant byte address 0x0 - dummy sync flag']
  #allocation13 [shape = 's32[]', space=sflag, size = 0x4, offset = 0, fixed_abs, tag = 'sflag constant byte address 0x0 - dummy sync flag']
  #allocation14 [shape = 's32[]', space=sflag, size = 0x4, offset = 0, fixed_abs, tag = 'sflag constant byte address 0x0 - dummy sync flag']
  #allocation15 [shape = 's32[]', space=sflag, size = 0x4, offset = 0, fixed_abs, tag = 'sflag constant byte address 0x0 - dummy sync flag']
  #allocation16 [shape = 's32[]', space=sflag, size = 0x4, offset = 0, fixed_abs, tag = 'sflag constant byte address 0x0 - dummy sync flag']
  #allocation17 [shape = 's32[]', space=sflag, size = 0x4, offset = 0, fixed_abs, tag = 'sflag constant byte address 0x0 - dummy sync flag']
  #allocation18 [shape = 's32[]', space=sflag, size = 0x4, offset = 0, fixed_abs, tag = 'sflag constant byte address 0x0 - dummy sync flag']
  #allocation19 [shape = 's32[]', space=sflag, size = 0x4, offset = 0, fixed_abs, tag = 'sflag constant byte address 0x0 - dummy sync flag']
  #allocation20 [shape = 's32[]', space=sflag, size = 0x4, offset = 0, fixed_abs, tag = 'sflag constant byte address 0x0 - dummy sync flag']
  #allocation21 [shape = 's32[]', space=sflag, size = 0x4, offset = 0, fixed_abs, tag = 'sflag constant byte address 0x0 - dummy sync flag']
  #allocation22 [shape = 's32[]', space=sflag, size = 0x4, offset = 0, fixed_abs, tag = 'sflag constant byte address 0x0 - dummy sync flag']
  #allocation23 [shape = 's32[]', space=sflag, size = 0x4, offset = 0, fixed_abs, tag = 'sflag constant byte address 0x0 - dummy sync flag']
  %s0 = inlined_call_operand.vmem [shape: s32[16], index: 0, kind: input, shape index: {}]
  %s1 = inlined_call_operand.hbm [shape: f32[256,128], index: 1, kind: input, shape index: {}]
  %s2 = inlined_call_operand.vmem [shape: f32[32,128], index: 2, kind: input, shape index: {}]
  %s3 = inlined_call_operand.vmem [shape: f32[16,128], index: 3, kind: output, shape index: {}]
  %s4 = sld [smem:[#allocation0]]
  $region69: #{decoder_forward.20} parent=0
    _
  %s6 = ssub.s32 1, %s4
  %s7 = scalar_select 0, %s6, %s4
  %s8 = sshll.u32 %s0, 4
  %s9 = int_to_ptr.vmem [resolvable:$true] %s8
  %11 = dma.vmem_to_smem %s9, 16, [#allocation5], [#allocation4]
  %12 = dma.done [#allocation4], 16
  %13 = sfence
  loop: start=0, step=1, limit=4
  $region2: #{decoder_forward.20} parent=0 // loop_pre_header
    _
  $region3: #{decoder_forward.20} parent=0 // loop_header
    %s15 = sphi 0, %s19
    %p16 = scmp.ge.s32.totalorder %s15, 4
    %s22 = sphi 0, %s34
    %s23 = sphi 0, %s30
    %s24 = sphi 0, %s22
    %s25 = sphi 0, %s23
    %s26 = sphi 0, %s24
    %s27 = sphi 0, %s25
    %s37 = sphi 0, %s39
    %s40 = sphi 0, %s37
    %s41 = sphi 0, %s40
    %s57 = sphi 0, %s41
    %s65 = sphi 0, %s67
    %s68 = sphi 0, %s65
    %s69 = sphi 0, %s68
    %s85 = sphi 0, %s69
  $region4: #{decoder_forward.20} parent=0 // loop_header_branch
    %18 = sbr.rel (%p16) target = $region8
  $region5: #{decoder_forward.20} parent=0 // loop_body
    %s20 = ssub.s32 %s15, 1
    %s21 = ssub.s32 %s15, 2
    %s28 = sadd.s32 1, %s23
    %p29 = scmp.ge.s32.totalorder %s28, 1
    %s30 = scalar_select %p29, 0, %s28
    %s31 = sadd.s32 1, %s22
    %s32 = scalar_select %p29, %s31, %s22
    %p33 = scmp.ge.s32.totalorder %s32, 2
    %s34 = scalar_select %p33, 0, %s32
    %s35 = ssub.s32 %s23, %s30
    %p36 = scmp.eq.s32.totalorder %s35, 0
    %s38 = sadd.s32 %s37, 1
    %s39 = scalar_select %p36, %s37, %s38
    %p42 = pneg %p36
    %p43 = scmp.eq.s32.totalorder %s15, 1
    %p44 = por %p42, %p43
    %p45 = scmp.ne.s32.totalorder %s37, %s40
    %p46 = scmp.eq.s32.totalorder %s15, 0
    %p47 = por %p45, %p46
    %p48 = scmp.ne.s32.totalorder %s37, %s40
    %p49 = scmp.eq.s32.totalorder %s20, 1
    %p50 = por %p48, %p49
    %p51 = scmp.ne.s32.totalorder %s40, %s41
    %p52 = scmp.eq.s32.totalorder %s20, 0
    %p53 = por %p51, %p52
    %p54 = scmp.ne.s32.totalorder %s40, %s41
    %p55 = scmp.eq.s32.totalorder %s21, 1
    %p56 = por %p54, %p55
    %p58 = scmp.ne.s32.totalorder %s41, %s57
    %p59 = scmp.eq.s32.totalorder %s21, 0
    %p60 = por %p58, %p59
    %s61 = sadd.s32 %s22, %s23
    %s62 = sadd.s32 %s34, %s30
    %s63 = ssub.s32 %s61, %s62
    %p64 = scmp.eq.s32.totalorder %s63, 0
    %s66 = sadd.s32 %s65, 1
    %s67 = scalar_select %p64, %s65, %s66
    %p70 = pneg %p64
    %p71 = scmp.eq.s32.totalorder %s15, 1
    %p72 = por %p70, %p71
    %p73 = scmp.ne.s32.totalorder %s65, %s68
    %p74 = scmp.eq.s32.totalorder %s15, 0
    %p75 = por %p73, %p74
    %p76 = scmp.ne.s32.totalorder %s65, %s68
    %p77 = scmp.eq.s32.totalorder %s20, 1
    %p78 = por %p76, %p77
    %p79 = scmp.ne.s32.totalorder %s68, %s69
    %p80 = scmp.eq.s32.totalorder %s20, 0
    %p81 = por %p79, %p80
    %p82 = scmp.ne.s32.totalorder %s68, %s69
    %p83 = scmp.eq.s32.totalorder %s21, 1
    %p84 = por %p82, %p83
    %p86 = scmp.ne.s32.totalorder %s69, %s85
    %p87 = scmp.eq.s32.totalorder %s21, 0
    %p88 = por %p86, %p87
    %p89 = scmp.le.s32.totalorder 1, %s15
    %p90 = scmp.lt.s32.totalorder %s15, 3
    %p91 = pnand %p89, %p90
    %p92 = pneg %p91
    // Predicated region
    $region9: #{decoder_forward.20} parent=5 // pred_check
      _
    $region10: #{decoder_forward.20} parent=5 // pred_check_branch
      %94 = sbr.rel (%p91) target = $region12
    $region11: #{decoder_forward.20} parent=5 // pred_region
      %s95 = ssub.s32 %s15, 1
      // Predicated region
      $region13: #{decoder_forward.20} parent=11 // pred_check
        %p96 = pneg %p53
      $region14: #{decoder_forward.20} parent=11 // pred_check_branch
        %98 = sbr.rel (%p96) target = $region16
      $region15: #{decoder_forward.20} parent=11 // pred_region
        %p99 = scmp.lt.s32.totalorder %s25, 3
        %s100 = scalar_select %p99, %s25, 3
        %s101 = smul.addr %s100, 8
        %s102 = scalar_lea.vmem %s2, %s101
      $region16: #{decoder_forward.20} parent=11 // pred_fallthru
        _
    $region12: #{decoder_forward.20} parent=5 // pred_fallthru
      _
    %p103 = scmp.lt.s32.totalorder %s15, 2
    // Predicated region
    $region17: #{decoder_forward.20} parent=5 // pred_check
      %p104 = pneg %p103
    $region18: #{decoder_forward.20} parent=5 // pred_check_branch
      %106 = sbr.rel (%p104) target = $region20
    $region19: #{decoder_forward.20} parent=5 // pred_region
      _
    $region20: #{decoder_forward.20} parent=5 // pred_fallthru
      _
    %p107 = scmp.le.s32.totalorder 1, %s15
    %p108 = scmp.lt.s32.totalorder %s15, 3
    %p109 = pnand %p107, %p108
    %p110 = pneg %p109
    // Predicated region
    $region21: #{decoder_forward.20} parent=5 // pred_check
      _
    $region22: #{decoder_forward.20} parent=5 // pred_check_branch
      %112 = sbr.rel (%p109) target = $region24
    $region23: #{decoder_forward.20} parent=5 // pred_region
      %s113 = ssub.s32 %s15, 1
      %p114 = scmp.lt.s32.totalorder %s25, 3
      %s115 = scalar_select %p114, %s25, 3
      %s116 = smul.addr %s115, 8
      %s117 = scalar_lea.vmem %s2, %s116
      %p118 = pneg %p53
      %p119 = pneg %p50
      %p120 = pneg %p81
      %p121 = pneg %p78
      %s122 = sadd.s32 %s24, %s25
      %p123 = scmp.lt.s32.totalorder %s122, 1
      %s124 = scalar_select %p123, %s122, 1
      %s125 = smul.addr %s124, 8
      %s126 = scalar_lea.vmem %s3, %s125
      %p127 = scmp.lt.s32.totalorder %s25, 3
      %s128 = scalar_select %p127, %s25, 3
      %s129 = smul.addr %s128, 8
      %s130 = scalar_lea.vmem %s2, %s129
      %s131 = sadd.s32 %s24, %s25
      %p132 = scmp.lt.s32.totalorder %s131, 1
      %s133 = scalar_select %p132, %s131, 1
      %s134 = smul.addr %s133, 8
      %s135 = scalar_lea.vmem %s3, %s134
      %s136 = sadd.s32 %s24, %s25
      %s137 = smul.u32 %s24, 8
      %s138 = smul.u32 %s25, 8
      %s139 = sadd.s32 %s137, %s138
      %s140 = sld [smem:[#allocation5 + %s139]]
      %s141 = smul.addr %s140, 16
      %s142 = scalar_lea.hbm %s1, %s141
      // Predicated region
      $region25: #{decoder_forward.20} parent=23 // pred_check
        _
      $region26: #{decoder_forward.20} parent=23 // pred_check_branch
        %144 = sbr.rel target = $region28
      $region27: #{decoder_forward.20} parent=23 // pred_region
        %145 = sst [smem:[#allocation8]] [#allocation7]
        %146 = sst [smem:[#allocation9]] [#allocation6]
      $region28: #{decoder_forward.20} parent=23 // pred_fallthru
        _
      %148 = shalt.err (0)
      %s150 = sshll.u32 [#allocation2], 4
      %s151 = int_to_ptr.vmem [resolvable:$true] %s150
      %153 = dma.hbm_to_vmem [thread:$0]  %s142, 16, %s151, [#allocation3]
      %s154 = sadd.s32 %s139, 1
      %s155 = sld [smem:[#allocation5 + %s154]]
      %s156 = smul.addr %s155, 16
      %s157 = scalar_lea.hbm %s1, %s156
      %s158 = scalar_lea.vmem [#allocation2], 1
      %s159 = scalar_lea.sflag [#allocation3], 1
      // Predicated region
      $region29: #{decoder_forward.20} parent=23 // pred_check
        _
      $region30: #{decoder_forward.20} parent=23 // pred_check_branch
        %161 = sbr.rel target = $region32
      $region31: #{decoder_forward.20} parent=23 // pred_region
        %162 = sst [smem:[#allocation8]] [#allocation11]
        %163 = sst [smem:[#allocation9]] [#allocation10]
      $region32: #{decoder_forward.20} parent=23 // pred_fallthru
        _
      %165 = shalt.err (0)
      %s167 = sshll.u32 %s158, 4
      %s168 = int_to_ptr.vmem [resolvable:$true] %s167
      %170 = dma.hbm_to_vmem [thread:$0]  %s157, 16, %s168, %s159
      %s171 = sadd.s32 %s139, 2
      %s172 = sld [smem:[#allocation5 + %s171]]
      %s173 = smul.addr %s172, 16
      %s174 = scalar_lea.hbm %s1, %s173
      %s175 = scalar_lea.vmem [#allocation2], 2
      %s176 = scalar_lea.sflag [#allocation3], 2
      // Predicated region
      $region33: #{decoder_forward.20} parent=23 // pred_check
        _
      $region34: #{decoder_forward.20} parent=23 // pred_check_branch
        %178 = sbr.rel target = $region36
      $region35: #{decoder_forward.20} parent=23 // pred_region
        %179 = sst [smem:[#allocation8]] [#allocation13]
        %180 = sst [smem:[#allocation9]] [#allocation12]
      $region36: #{decoder_forward.20} parent=23 // pred_fallthru
        _
      %182 = shalt.err (0)
      %s184 = sshll.u32 %s175, 4
      %s185 = int_to_ptr.vmem [resolvable:$true] %s184
      %187 = dma.hbm_to_vmem [thread:$0]  %s174, 16, %s185, %s176
      %s188 = sadd.s32 %s139, 3
      %s189 = sld [smem:[#allocation5 + %s188]]
      %s190 = smul.addr %s189, 16
      %s191 = scalar_lea.hbm %s1, %s190
      %s192 = scalar_lea.vmem [#allocation2], 3
      %s193 = scalar_lea.sflag [#allocation3], 3
      // Predicated region
      $region37: #{decoder_forward.20} parent=23 // pred_check
        _
      $region38: #{decoder_forward.20} parent=23 // pred_check_branch
        %195 = sbr.rel target = $region40
      $region39: #{decoder_forward.20} parent=23 // pred_region
        %196 = sst [smem:[#allocation8]] [#allocation15]
        %197 = sst [smem:[#allocation9]] [#allocation14]
      $region40: #{decoder_forward.20} parent=23 // pred_fallthru
        _
      %199 = shalt.err (0)
      %s201 = sshll.u32 %s192, 4
      %s202 = int_to_ptr.vmem [resolvable:$true] %s201
      %204 = dma.hbm_to_vmem [thread:$0]  %s191, 16, %s202, %s193
      %s205 = sadd.s32 %s139, 4
      %s206 = sld [smem:[#allocation5 + %s205]]
      %s207 = smul.addr %s206, 16
      %s208 = scalar_lea.hbm %s1, %s207
      %s209 = scalar_lea.vmem [#allocation2], 4
      %s210 = scalar_lea.sflag [#allocation3], 4
      // Predicated region
      $region41: #{decoder_forward.20} parent=23 // pred_check
        _
      $region42: #{decoder_forward.20} parent=23 // pred_check_branch
        %212 = sbr.rel target = $region44
      $region43: #{decoder_forward.20} parent=23 // pred_region
        %213 = sst [smem:[#allocation8]] [#allocation17]
        %214 = sst [smem:[#allocation9]] [#allocation16]
      $region44: #{decoder_forward.20} parent=23 // pred_fallthru
        _
      %216 = shalt.err (0)
      %s218 = sshll.u32 %s209, 4
      %s219 = int_to_ptr.vmem [resolvable:$true] %s218
      %221 = dma.hbm_to_vmem [thread:$0]  %s208, 16, %s219, %s210
      %s222 = sadd.s32 %s139, 5
      %s223 = sld [smem:[#allocation5 + %s222]]
      %s224 = smul.addr %s223, 16
      %s225 = scalar_lea.hbm %s1, %s224
      %s226 = scalar_lea.vmem [#allocation2], 5
      %s227 = scalar_lea.sflag [#allocation3], 5
      // Predicated region
      $region45: #{decoder_forward.20} parent=23 // pred_check
        _
      $region46: #{decoder_forward.20} parent=23 // pred_check_branch
        %229 = sbr.rel target = $region48
      $region47: #{decoder_forward.20} parent=23 // pred_region
        %230 = sst [smem:[#allocation8]] [#allocation19]
        %231 = sst [smem:[#allocation9]] [#allocation18]
      $region48: #{decoder_forward.20} parent=23 // pred_fallthru
        _
      %233 = shalt.err (0)
      %s235 = sshll.u32 %s226, 4
      %s236 = int_to_ptr.vmem [resolvable:$true] %s235
      %238 = dma.hbm_to_vmem [thread:$0]  %s225, 16, %s236, %s227
      %s239 = sadd.s32 %s139, 6
      %s240 = sld [smem:[#allocation5 + %s239]]
      %s241 = smul.addr %s240, 16
      %s242 = scalar_lea.hbm %s1, %s241
      %s243 = scalar_lea.vmem [#allocation2], 6
      %s244 = scalar_lea.sflag [#allocation3], 6
      // Predicated region
      $region49: #{decoder_forward.20} parent=23 // pred_check
        _
      $region50: #{decoder_forward.20} parent=23 // pred_check_branch
        %246 = sbr.rel target = $region52
      $region51: #{decoder_forward.20} parent=23 // pred_region
        %247 = sst [smem:[#allocation8]] [#allocation21]
        %248 = sst [smem:[#allocation9]] [#allocation20]
      $region52: #{decoder_forward.20} parent=23 // pred_fallthru
        _
      %250 = shalt.err (0)
      %s252 = sshll.u32 %s243, 4
      %s253 = int_to_ptr.vmem [resolvable:$true] %s252
      %255 = dma.hbm_to_vmem [thread:$0]  %s242, 16, %s253, %s244
      %s256 = sadd.s32 %s139, 7
      %s257 = sld [smem:[#allocation5 + %s256]]
      %s258 = smul.addr %s257, 16
      %s259 = scalar_lea.hbm %s1, %s258
      %s260 = scalar_lea.vmem [#allocation2], 7
      %s261 = scalar_lea.sflag [#allocation3], 7
      // Predicated region
      $region53: #{decoder_forward.20} parent=23 // pred_check
        _
      $region54: #{decoder_forward.20} parent=23 // pred_check_branch
        %263 = sbr.rel target = $region56
      $region55: #{decoder_forward.20} parent=23 // pred_region
        %264 = sst [smem:[#allocation8]] [#allocation23]
        %265 = sst [smem:[#allocation9]] [#allocation22]
      $region56: #{decoder_forward.20} parent=23 // pred_fallthru
        _
      %267 = shalt.err (0)
      %s269 = sshll.u32 %s260, 4
      %s270 = int_to_ptr.vmem [resolvable:$true] %s269
      %272 = dma.hbm_to_vmem [thread:$0]  %s259, 16, %s270, %s261
      %274 = dma.done [#allocation3], 16
      %276 = dma.done %s159, 16
      %278 = dma.done %s176, 16
      %280 = dma.done %s193, 16
      %282 = dma.done %s210, 16
      %284 = dma.done %s227, 16
      %286 = dma.done %s244, 16
      %288 = dma.done %s261, 16
      %v289 = vld [vmem:[#allocation2] sm:$0xff]
      %v290 = vld [vmem:[%s130] sm:$0xff]
      %v291 = vadd.f32 %v289, %v290
      %292 = vst [vmem:[%s135] sm:$0xff] %v291
      %s293 = sadd.s32 %s24, %s25
      %p294 = scmp.lt.s32.totalorder %s293, 1
      %s295 = scalar_select %p294, %s293, 1
      %s296 = smul.addr %s295, 8
      %s297 = scalar_lea.vmem %s3, %s296
      // Predicated region
      $region57: #{decoder_forward.20} parent=23 // pred_check
        %p298 = pneg %p78
      $region58: #{decoder_forward.20} parent=23 // pred_check_branch
        %300 = sbr.rel (%p298) target = $region60
      $region59: #{decoder_forward.20} parent=23 // pred_region
        %s301 = sadd.s32 %s24, %s25
      $region60: #{decoder_forward.20} parent=23 // pred_fallthru
        _
    $region24: #{decoder_forward.20} parent=5 // pred_fallthru
      _
    %p302 = scmp.le.s32.totalorder 2, %s15
    // Predicated region
    $region61: #{decoder_forward.20} parent=5 // pred_check
      %p303 = pneg %p302
    $region62: #{decoder_forward.20} parent=5 // pred_check_branch
      %305 = sbr.rel (%p303) target = $region64
    $region63: #{decoder_forward.20} parent=5 // pred_region
      %s306 = ssub.s32 %s15, 2
      // Predicated region
      $region65: #{decoder_forward.20} parent=63 // pred_check
        %p307 = pneg %p84
      $region66: #{decoder_forward.20} parent=63 // pred_check_branch
        %309 = sbr.rel (%p307) target = $region68
      $region67: #{decoder_forward.20} parent=63 // pred_region
        %s310 = sadd.s32 %s26, %s27
        %p311 = scmp.lt.s32.totalorder %s310, 1
        %s312 = scalar_select %p311, %s310, 1
        %s313 = smul.addr %s312, 8
        %s314 = scalar_lea.vmem %s3, %s313
      $region68: #{decoder_forward.20} parent=63 // pred_fallthru
        _
    $region64: #{decoder_forward.20} parent=5 // pred_fallthru
      _
  $region6: #{decoder_forward.20} parent=0 // loop_footer
    %s19 = sadd.s32 1, %s15
  $region7: #{decoder_forward.20} parent=0 // loop_footer_branch
    %14 = sbr.rel target = $region3
  $region8: #{decoder_forward.20} parent=0 // loop_exit
    _
  %315 = vsyncmov [#allocation3]
  %s316 = vpop.sfrf %315
  %p317 = scmp.eq.s32.totalorder %s316, 0
  %p318 = pneg %p317
  %320 = shalt.err (%p318)
  %s321 = scalar_lea.sflag [#allocation3], 1
  %322 = vsyncmov %s321
  %s323 = vpop.sfrf %322
  %p324 = scmp.eq.s32.totalorder %s323, 0
  %p325 = pneg %p324
  %327 = shalt.err (%p325)
  %s328 = scalar_lea.sflag [#allocation3], 2
  %329 = vsyncmov %s328
  %s330 = vpop.sfrf %329
  %p331 = scmp.eq.s32.totalorder %s330, 0
  %p332 = pneg %p331
  %334 = shalt.err (%p332)
  %s335 = scalar_lea.sflag [#allocation3], 3
  %336 = vsyncmov %s335
  %s337 = vpop.sfrf %336
  %p338 = scmp.eq.s32.totalorder %s337, 0
  %p339 = pneg %p338
  %341 = shalt.err (%p339)
  %s342 = scalar_lea.sflag [#allocation3], 4
  %343 = vsyncmov %s342
  %s344 = vpop.sfrf %343
  %p345 = scmp.eq.s32.totalorder %s344, 0
  %p346 = pneg %p345
  %348 = shalt.err (%p346)
  %s349 = scalar_lea.sflag [#allocation3], 5
  %350 = vsyncmov %s349
  %s351 = vpop.sfrf %350
  %p352 = scmp.eq.s32.totalorder %s351, 0
  %p353 = pneg %p352
  %355 = shalt.err (%p353)
  %s356 = scalar_lea.sflag [#allocation3], 6
  %357 = vsyncmov %s356
  %s358 = vpop.sfrf %357
  %p359 = scmp.eq.s32.totalorder %s358, 0
  %p360 = pneg %p359
  %362 = shalt.err (%p360)
  %s363 = scalar_lea.sflag [#allocation3], 7
  %364 = vsyncmov %s363
  %s365 = vpop.sfrf %364
  %p366 = scmp.eq.s32.totalorder %s365, 0
  %p367 = pneg %p366
  %369 = shalt.err (%p367)

// kernel: decoder_forward.21
$region0: #{decoder_forward.21}
  #allocation0 [shape = 'u32[]', space=smem, size = 0x4, offset = 0x4, fixed_abs, tag = 'smem constant byte address 0x4 - core index']
  #allocation1 [shape = 'u32[144,128]{1,0:T(1,128)}', space=vmem, size = 0x12000, scoped, tag = 'internal scratch']
  #allocation2 [shape = 'f32[16,384]{1,0:T(8,128)}', space=vmem, size = 0x6000, scoped, tag = 'scratch operand']
  %s0 = inlined_call_operand.vmem [shape: f32[16,128], index: 0, kind: input, shape index: {}]
  %s1 = inlined_call_operand.vmem [shape: f32[128,384], index: 1, kind: input, shape index: {}]
  %s2 = inlined_call_operand.vmem [shape: f32[1,384], index: 2, kind: input, shape index: {}]
  %s3 = inlined_call_operand.vmem [shape: f32[16,384], index: 3, kind: output, shape index: {}]
  %s4 = sld [smem:[#allocation0]]
  $region30: #{decoder_forward.21} parent=0
    _
  %s6 = ssub.s32 1, %s4
  %s7 = scalar_select 0, %s6, %s4
  // Predicated region
  $region2: #{decoder_forward.21} parent=0 // pred_check
    _
  $region3: #{decoder_forward.21} parent=0 // pred_check_branch
    %9 = sbr.rel (0) target = $region5
  $region4: #{decoder_forward.21} parent=0 // pred_region
    _
  $region5: #{decoder_forward.21} parent=0 // pred_fallthru
    _
  // Predicated region
  $region6: #{decoder_forward.21} parent=0 // pred_check
    _
  $region7: #{decoder_forward.21} parent=0 // pred_check_branch
    %11 = sbr.rel (0) target = $region9
  $region8: #{decoder_forward.21} parent=0 // pred_region
    _
  $region9: #{decoder_forward.21} parent=0 // pred_fallthru
    _
  // Predicated region
  $region10: #{decoder_forward.21} parent=0 // pred_check
    _
  $region11: #{decoder_forward.21} parent=0 // pred_check_branch
    %13 = sbr.rel (0) target = $region13
  $region12: #{decoder_forward.21} parent=0 // pred_region
    _
  $region13: #{decoder_forward.21} parent=0 // pred_fallthru
    _
  %p14 = scmp.eq.s32.totalorder 0, 0
  // Predicated region
  $region14: #{decoder_forward.21} parent=0 // pred_check
    %p15 = pneg %p14
  $region15: #{decoder_forward.21} parent=0 // pred_check_branch
    %17 = sbr.rel (%p15) target = $region17
  $region16: #{decoder_forward.21} parent=0 // pred_region
    %18 = vst [vmem:[#allocation2] sm:$0xff] 0.0
    %19 = vst [vmem:[#allocation2 + $0x8] sm:$0xff] 0.0
    %20 = vst [vmem:[#allocation2 + $0x10] sm:$0xff] 0.0
    %21 = vst [vmem:[#allocation2 + $0x18] sm:$0xff] 0.0
    %22 = vst [vmem:[#allocation2 + $0x20] sm:$0xff] 0.0
    %23 = vst [vmem:[#allocation2 + $0x28] sm:$0xff] 0.0
  $region17: #{decoder_forward.21} parent=0 // pred_fallthru
    _
  %v24 = vld [vmem:[#allocation2] sm:$0xff]
  %v25 = vld [vmem:[#allocation2 + $0x8] sm:$0xff]
  %v26 = vld [vmem:[#allocation2 + $0x10] sm:$0xff]
  %v27 = vld [vmem:[#allocation2 + $0x18] sm:$0xff]
  %v28 = vld [vmem:[#allocation2 + $0x20] sm:$0xff]
  %v29 = vld [vmem:[#allocation2 + $0x28] sm:$0xff]
  %v30 = vld [vmem:[%s0] sm:$0xff]
  %v31 = vld [vmem:[%s0 + $0x8] sm:$0xff]
  %v32 = vld [vmem:[%s1] sm:$0xff]
  %v33 = vld [vmem:[%s1 + $0x8] sm:$0xff]
  %v34 = vld [vmem:[%s1 + $0x10] sm:$0xff]
  %v35 = vld [vmem:[%s1 + $0x18] sm:$0xff]
  %v36 = vld [vmem:[%s1 + $0x20] sm:$0xff]
  %v37 = vld [vmem:[%s1 + $0x28] sm:$0xff]
  %v38 = vld [vmem:[%s1 + $0x30] sm:$0xff]
  %v39 = vld [vmem:[%s1 + $0x38] sm:$0xff]
  %v40 = vld [vmem:[%s1 + $0x40] sm:$0xff]
  %v41 = vld [vmem:[%s1 + $0x48] sm:$0xff]
  %v42 = vld [vmem:[%s1 + $0x50] sm:$0xff]
  %v43 = vld [vmem:[%s1 + $0x58] sm:$0xff]
  %v44 = vld [vmem:[%s1 + $0x60] sm:$0xff]
  %v45 = vld [vmem:[%s1 + $0x68] sm:$0xff]
  %v46 = vld [vmem:[%s1 + $0x70] sm:$0xff]
  %v47 = vld [vmem:[%s1 + $0x78] sm:$0xff]
  %v48 = vld [vmem:[%s1 + $0x80] sm:$0xff]
  %v49 = vld [vmem:[%s1 + $0x88] sm:$0xff]
  %v50 = vld [vmem:[%s1 + $0x90] sm:$0xff]
  %v51 = vld [vmem:[%s1 + $0x98] sm:$0xff]
  %v52 = vld [vmem:[%s1 + $0xa0] sm:$0xff]
  %v53 = vld [vmem:[%s1 + $0xa8] sm:$0xff]
  %v54 = vld [vmem:[%s1 + $0xb0] sm:$0xff]
  %v55 = vld [vmem:[%s1 + $0xb8] sm:$0xff]
  %v56 = vld [vmem:[%s1 + $0xc0] sm:$0xff]
  %v57 = vld [vmem:[%s1 + $0xc8] sm:$0xff]
  %v58 = vld [vmem:[%s1 + $0xd0] sm:$0xff]
  %v59 = vld [vmem:[%s1 + $0xd8] sm:$0xff]
  %v60 = vld [vmem:[%s1 + $0xe0] sm:$0xff]
  %v61 = vld [vmem:[%s1 + $0xe8] sm:$0xff]
  %v62 = vld [vmem:[%s1 + $0xf0] sm:$0xff]
  %v63 = vld [vmem:[%s1 + $0xf8] sm:$0xff]
  %v64 = vld [vmem:[%s1 + $0x100] sm:$0xff]
  %v65 = vld [vmem:[%s1 + $0x108] sm:$0xff]
  %v66 = vld [vmem:[%s1 + $0x110] sm:$0xff]
  %v67 = vld [vmem:[%s1 + $0x118] sm:$0xff]
  %v68 = vld [vmem:[%s1 + $0x120] sm:$0xff]
  %v69 = vld [vmem:[%s1 + $0x128] sm:$0xff]
  %v70 = vld [vmem:[%s1 + $0x130] sm:$0xff]
  %v71 = vld [vmem:[%s1 + $0x138] sm:$0xff]
  %v72 = vld [vmem:[%s1 + $0x140] sm:$0xff]
  %v73 = vld [vmem:[%s1 + $0x148] sm:$0xff]
  %v74 = vld [vmem:[%s1 + $0x150] sm:$0xff]
  %v75 = vld [vmem:[%s1 + $0x158] sm:$0xff]
  %v76 = vld [vmem:[%s1 + $0x160] sm:$0xff]
  %v77 = vld [vmem:[%s1 + $0x168] sm:$0xff]
  %v78 = vld [vmem:[%s1 + $0x170] sm:$0xff]
  %v79 = vld [vmem:[%s1 + $0x178] sm:$0xff]
  %80 = vmatprep.subr.mxu0 %v33
  %81 = vmatpush1.msra.mxu0 %v32
  %82 = vmatprep.subr.mxu0 %v36
  %83 = vmatpush1.msra.mxu0 %v35
  %84 = vmatprep.subr.mxu0 %v39
  %85 = vmatpush1.msra.mxu0 %v38
  %86 = vmatprep.subr.mxu0 %v42
  %87 = vmatpush1.msra.mxu0 %v41
  %88 = vmatprep.subr.mxu0 %v45
  %89 = vmatpush1.msra.mxu0 %v44
  %90 = vmatprep.subr.mxu0 %v48
  %91 = vmatpush1.msra.mxu0 %v47
  %92 = vmatprep.subr.mxu0 %v51
  %93 = vmatpush1.msra.mxu0 %v50
  %94 = vmatprep.subr.mxu0 %v54
  %95 = vmatpush1.msra.mxu0 %v53
  %96 = vmatprep.subr.mxu0 %v57
  %97 = vmatpush1.msra.mxu0 %v56
  %98 = vmatprep.subr.mxu0 %v60
  %99 = vmatpush1.msra.mxu0 %v59
  %100 = vmatprep.subr.mxu0 %v63
  %101 = vmatpush1.msra.mxu0 %v62
  %102 = vmatprep.subr.mxu0 %v66
  %103 = vmatpush1.msra.mxu0 %v65
  %104 = vmatprep.subr.mxu0 %v69
  %105 = vmatpush1.msra.mxu0 %v68
  %106 = vmatprep.subr.mxu0 %v72
  %107 = vmatpush1.msra.mxu0 %v71
  %108 = vmatprep.subr.mxu0 %v75
  %109 = vmatpush1.msra.mxu0 %v74
  %110 = vmatprep.subr.mxu0 %v78
  %111 = vmatpush1.msra.mxu0 %v77
  %112 = vmatprep.subr.mxu0 0.0
  %113 = vmatpush1.msra.mxu0 0.0
  %114 = vmatprep.subr.mxu0 0.0
  %115 = vmatpush1.msra.mxu0 0.0
  %116 = vmatprep.subr.mxu0 0.0
  %117 = vmatpush1.msra.mxu0 0.0
  %118 = vmatprep.subr.mxu0 0.0
  %119 = vmatpush1.msra.mxu0 0.0
  %120 = vmatprep.subr.mxu0 0.0
  %121 = vmatpush1.msra.mxu0 0.0
  %122 = vmatprep.subr.mxu0 0.0
  %123 = vmatpush1.msra.mxu0 0.0
  %124 = vmatprep.subr.mxu0 0.0
  %125 = vmatpush1.msra.mxu0 0.0
  %126 = vmatprep.subr.mxu0 0.0
  %127 = vmatpush1.msra.mxu0 0.0
  %128 = vmatprep.subr.mxu0 0.0
  %129 = vmatpush1.msra.mxu0 0.0
  %130 = vmatprep.subr.mxu0 0.0
  %131 = vmatpush1.msra.mxu0 0.0
  %132 = vmatprep.subr.mxu0 0.0
  %133 = vmatpush1.msra.mxu0 0.0
  %134 = vmatprep.subr.mxu0 0.0
  %135 = vmatpush1.msra.mxu0 0.0
  %136 = vmatprep.subr.mxu0 0.0
  %137 = vmatpush1.msra.mxu0 0.0
  %138 = vmatprep.subr.mxu0 0.0
  %139 = vmatpush1.msra.mxu0 0.0
  %140 = vmatprep.subr.mxu0 0.0
  %141 = vmatpush1.msra.mxu0 0.0
  %142 = vmatprep.subr.mxu0 0.0
  %143 = vmatpush1.msra.mxu0 0.0
  %144 = vmatprep.mubr.f32.mxu0 0.0
  %145 = vmatmul.mubr.f32.gmra.mrb[0].mxu0 %v30
  %v146 = vpop.f32.mrb[0].mxu0
  %v147 = vadd.f32 0.0, %v146
  %v148 = vpop.f32.mrb[0].mxu0
  %v149 = vadd.f32 0.0, %v148
  %150 = vmatprep.mubr.f32.mxu0 0.0
  %151 = vmatmul.mubr.f32.gmra.mrb[0].mxu0 %v31
  %v152 = vpop.f32.mrb[0].mxu0
  %v153 = vadd.f32 0.0, %v152
  %v154 = vpop.f32.mrb[0].mxu0
  %v155 = vadd.f32 0.0, %v154
  %156 = vdwg.mxu0
  %157 = vmatprep.subr.mxu0 0.0
  %158 = vmatpush1.msra.mxu0 %v34
  %159 = vmatprep.subr.mxu0 0.0
  %160 = vmatpush1.msra.mxu0 %v37
  %161 = vmatprep.subr.mxu0 0.0
  %162 = vmatpush1.msra.mxu0 %v40
  %163 = vmatprep.subr.mxu0 0.0
  %164 = vmatpush1.msra.mxu0 %v43
  %165 = vmatprep.subr.mxu0 0.0
  %166 = vmatpush1.msra.mxu0 %v46
  %167 = vmatprep.subr.mxu0 0.0
  %168 = vmatpush1.msra.mxu0 %v49
  %169 = vmatprep.subr.mxu0 0.0
  %170 = vmatpush1.msra.mxu0 %v52
  %171 = vmatprep.subr.mxu0 0.0
  %172 = vmatpush1.msra.mxu0 %v55
  %173 = vmatprep.subr.mxu0 0.0
  %174 = vmatpush1.msra.mxu0 %v58
  %175 = vmatprep.subr.mxu0 0.0
  %176 = vmatpush1.msra.mxu0 %v61
  %177 = vmatprep.subr.mxu0 0.0
  %178 = vmatpush1.msra.mxu0 %v64
  %179 = vmatprep.subr.mxu0 0.0
  %180 = vmatpush1.msra.mxu0 %v67
  %181 = vmatprep.subr.mxu0 0.0
  %182 = vmatpush1.msra.mxu0 %v70
  %183 = vmatprep.subr.mxu0 0.0
  %184 = vmatpush1.msra.mxu0 %v73
  %185 = vmatprep.subr.mxu0 0.0
  %186 = vmatpush1.msra.mxu0 %v76
  %187 = vmatprep.subr.mxu0 0.0
  %188 = vmatpush1.msra.mxu0 %v79
  %189 = vmatprep.subr.mxu0 0.0
  %190 = vmatpush1.msra.mxu0 0.0
  %191 = vmatprep.subr.mxu0 0.0
  %192 = vmatpush1.msra.mxu0 0.0
  %193 = vmatprep.subr.mxu0 0.0
  %194 = vmatpush1.msra.mxu0 0.0
  %195 = vmatprep.subr.mxu0 0.0
  %196 = vmatpush1.msra.mxu0 0.0
  %197 = vmatprep.subr.mxu0 0.0
  %198 = vmatpush1.msra.mxu0 0.0
  %199 = vmatprep.subr.mxu0 0.0
  %200 = vmatpush1.msra.mxu0 0.0
  %201 = vmatprep.subr.mxu0 0.0
  %202 = vmatpush1.msra.mxu0 0.0
  %203 = vmatprep.subr.mxu0 0.0
  %204 = vmatpush1.msra.mxu0 0.0
  %205 = vmatprep.subr.mxu0 0.0
  %206 = vmatpush1.msra.mxu0 0.0
  %207 = vmatprep.subr.mxu0 0.0
  %208 = vmatpush1.msra.mxu0 0.0
  %209 = vmatprep.subr.mxu0 0.0
  %210 = vmatpush1.msra.mxu0 0.0
  %211 = vmatprep.subr.mxu0 0.0
  %212 = vmatpush1.msra.mxu0 0.0
  %213 = vmatprep.subr.mxu0 0.0
  %214 = vmatpush1.msra.mxu0 0.0
  %215 = vmatprep.subr.mxu0 0.0
  %216 = vmatpush1.msra.mxu0 0.0
  %217 = vmatprep.subr.mxu0 0.0
  %218 = vmatpush1.msra.mxu0 0.0
  %219 = vmatprep.subr.mxu0 0.0
  %220 = vmatpush1.msra.mxu0 0.0
  %221 = vmatprep.mubr.f32.mxu0 0.0
  %222 = vmatmul.mubr.f32.gmra.mrb[0].mxu0 %v30
  %v223 = vpop.f32.mrb[0].mxu0
  %v224 = vadd.f32 0.0, %v223
  %v225 = vpop.f32.mrb[0].mxu0
  %226 = vmatprep.mubr.f32.mxu0 0.0
  %227 = vmatmul.mubr.f32.gmra.mrb[0].mxu0 %v31
  %v228 = vpop.f32.mrb[0].mxu0
  %v229 = vadd.f32 0.0, %v228
  %v230 = vpop.f32.mrb[0].mxu0
  %231 = vdwg.mxu0
  %v232 = vadd.f32 %v24, %v147
  %v233 = vadd.f32 %v25, %v149
  %v234 = vadd.f32 %v26, %v224
  %v235 = vadd.f32 %v27, %v153
  %v236 = vadd.f32 %v28, %v155
  %v237 = vadd.f32 %v29, %v229
  %238 = vst [vmem:[#allocation2] sm:$0xff] %v232
  %239 = vst [vmem:[#allocation2 + $0x8] sm:$0xff] %v233
  %240 = vst [vmem:[#allocation2 + $0x10] sm:$0xff] %v234
  %241 = vst [vmem:[#allocation2 + $0x18] sm:$0xff] %v235
  %242 = vst [vmem:[#allocation2 + $0x20] sm:$0xff] %v236
  %243 = vst [vmem:[#allocation2 + $0x28] sm:$0xff] %v237
  // Predicated region
  $region18: #{decoder_forward.21} parent=0 // pred_check
    %p244 = pneg %p14
  $region19: #{decoder_forward.21} parent=0 // pred_check_branch
    %246 = sbr.rel (%p244) target = $region21
  $region20: #{decoder_forward.21} parent=0 // pred_region
    %v247 = vld [vmem:[#allocation2] sm:$0xff]
    %v248 = vld [vmem:[#allocation2 + $0x8] sm:$0xff]
    %v249 = vld [vmem:[#allocation2 + $0x10] sm:$0xff]
    %v250 = vld [vmem:[#allocation2 + $0x18] sm:$0xff]
    %v251 = vld [vmem:[#allocation2 + $0x20] sm:$0xff]
    %v252 = vld [vmem:[#allocation2 + $0x28] sm:$0xff]
    %v253 = vld [vmem:[%s2] sm:$0x7]
    %v255 = vlaneseq
    %v256 = vshrl.u32 %v255, 7
    %v257 = vsub.s32 0, %v256
    %v258 = vrot.slane %v253, %v257
    %v259 = vlaneseq
    %v260 = vshrl.u32 %v259, 7
    %v261 = vsub.s32 1, %v260
    %v262 = vrot.slane %v253, %v261
    %v263 = vlaneseq
    %v264 = vshrl.u32 %v263, 7
    %v265 = vsub.s32 2, %v264
    %v266 = vrot.slane %v253, %v265
    %v270 = vadd.f32 %v247, %v258
    %v271 = vadd.f32 %v248, %v262
    %v272 = vadd.f32 %v249, %v266
    %v273 = vadd.f32 %v250, %v258
    %v274 = vadd.f32 %v251, %v262
    %v275 = vadd.f32 %v252, %v266
    %276 = vst [vmem:[%s3] sm:$0xff] %v270
    %277 = vst [vmem:[%s3 + $0x8] sm:$0xff] %v271
    %278 = vst [vmem:[%s3 + $0x10] sm:$0xff] %v272
    %279 = vst [vmem:[%s3 + $0x18] sm:$0xff] %v273
    %280 = vst [vmem:[%s3 + $0x20] sm:$0xff] %v274
    %281 = vst [vmem:[%s3 + $0x28] sm:$0xff] %v275
  $region21: #{decoder_forward.21} parent=0 // pred_fallthru
    _
  // Predicated region
  $region22: #{decoder_forward.21} parent=0 // pred_check
    _
  $region23: #{decoder_forward.21} parent=0 // pred_check_branch
    %283 = sbr.rel (0) target = $region25
  $region24: #{decoder_forward.21} parent=0 // pred_region
    _
  $region25: #{decoder_forward.21} parent=0 // pred_fallthru
    _
  // Predicated region
  $region26: #{decoder_forward.21} parent=0 // pred_check
    _
  $region27: #{decoder_forward.21} parent=0 // pred_check_branch
    %285 = sbr.rel (0) target = $region29
  $region28: #{decoder_forward.21} parent=0 // pred_region
    _
  $region29: #{decoder_forward.21} parent=0 // pred_fallthru
    _

// kernel: decoder_forward.23
$region0: #{decoder_forward.23}
  #allocation0 [shape = 'u32[]', space=smem, size = 0x4, offset = 0x4, fixed_abs, tag = 'smem constant byte address 0x4 - core index']
  #allocation1 [shape = 'u32[144,128]{1,0:T(1,128)}', space=vmem, size = 0x12000, scoped, tag = 'internal scratch']
  #allocation2 [shape = 'f32[16,128]{1,0:T(8,128)}', space=vmem, size = 0x2000, scoped, tag = 'scratch operand']
  %s0 = inlined_call_operand.vmem [shape: f32[16,128], index: 0, kind: input, shape index: {}]
  %s1 = inlined_call_operand.vmem [shape: f32[128,128], index: 1, kind: input, shape index: {}]
  %s2 = inlined_call_operand.vmem [shape: f32[1,128], index: 2, kind: input, shape index: {}]
  %s3 = inlined_call_operand.vmem [shape: f32[16,128], index: 3, kind: input, shape index: {}]
  %s4 = inlined_call_operand.vmem [shape: f32[1,128], index: 4, kind: input, shape index: {}]
  %s5 = inlined_call_operand.vmem [shape: f32[1,128], index: 5, kind: input, shape index: {}]
  %s6 = inlined_call_operand.vmem [shape: f32[16,128], index: 6, kind: output, shape index: {}]
  %s7 = sld [smem:[#allocation0]]
  $region42: #{decoder_forward.23} parent=0
    _
  %s9 = ssub.s32 1, %s7
  %s10 = scalar_select 0, %s9, %s7
  // Predicated region
  $region2: #{decoder_forward.23} parent=0 // pred_check
    _
  $region3: #{decoder_forward.23} parent=0 // pred_check_branch
    %12 = sbr.rel (0) target = $region5
  $region4: #{decoder_forward.23} parent=0 // pred_region
    _
  $region5: #{decoder_forward.23} parent=0 // pred_fallthru
    _
  // Predicated region
  $region6: #{decoder_forward.23} parent=0 // pred_check
    _
  $region7: #{decoder_forward.23} parent=0 // pred_check_branch
    %14 = sbr.rel (0) target = $region9
  $region8: #{decoder_forward.23} parent=0 // pred_region
    _
  $region9: #{decoder_forward.23} parent=0 // pred_fallthru
    _
  // Predicated region
  $region10: #{decoder_forward.23} parent=0 // pred_check
    _
  $region11: #{decoder_forward.23} parent=0 // pred_check_branch
    %16 = sbr.rel (0) target = $region13
  $region12: #{decoder_forward.23} parent=0 // pred_region
    _
  $region13: #{decoder_forward.23} parent=0 // pred_fallthru
    _
  // Predicated region
  $region14: #{decoder_forward.23} parent=0 // pred_check
    _
  $region15: #{decoder_forward.23} parent=0 // pred_check_branch
    %18 = sbr.rel (0) target = $region17
  $region16: #{decoder_forward.23} parent=0 // pred_region
    _
  $region17: #{decoder_forward.23} parent=0 // pred_fallthru
    _
  // Predicated region
  $region18: #{decoder_forward.23} parent=0 // pred_check
    _
  $region19: #{decoder_forward.23} parent=0 // pred_check_branch
    %20 = sbr.rel (0) target = $region21
  $region20: #{decoder_forward.23} parent=0 // pred_region
    _
  $region21: #{decoder_forward.23} parent=0 // pred_fallthru
    _
  // Predicated region
  $region22: #{decoder_forward.23} parent=0 // pred_check
    _
  $region23: #{decoder_forward.23} parent=0 // pred_check_branch
    %22 = sbr.rel (0) target = $region25
  $region24: #{decoder_forward.23} parent=0 // pred_region
    _
  $region25: #{decoder_forward.23} parent=0 // pred_fallthru
    _
  %p23 = scmp.eq.s32.totalorder 0, 0
  // Predicated region
  $region26: #{decoder_forward.23} parent=0 // pred_check
    %p24 = pneg %p23
  $region27: #{decoder_forward.23} parent=0 // pred_check_branch
    %26 = sbr.rel (%p24) target = $region29
  $region28: #{decoder_forward.23} parent=0 // pred_region
    %27 = vst [vmem:[#allocation2] sm:$0xff] 0.0
    %28 = vst [vmem:[#allocation2 + $0x8] sm:$0xff] 0.0
  $region29: #{decoder_forward.23} parent=0 // pred_fallthru
    _
  %v29 = vld [vmem:[#allocation2] sm:$0xff]
  %v30 = vld [vmem:[#allocation2 + $0x8] sm:$0xff]
  %v31 = vld [vmem:[%s0] sm:$0xff]
  %v32 = vld [vmem:[%s0 + $0x8] sm:$0xff]
  %v33 = vld [vmem:[%s1] sm:$0xff]
  %v34 = vld [vmem:[%s1 + $0x8] sm:$0xff]
  %v35 = vld [vmem:[%s1 + $0x10] sm:$0xff]
  %v36 = vld [vmem:[%s1 + $0x18] sm:$0xff]
  %v37 = vld [vmem:[%s1 + $0x20] sm:$0xff]
  %v38 = vld [vmem:[%s1 + $0x28] sm:$0xff]
  %v39 = vld [vmem:[%s1 + $0x30] sm:$0xff]
  %v40 = vld [vmem:[%s1 + $0x38] sm:$0xff]
  %v41 = vld [vmem:[%s1 + $0x40] sm:$0xff]
  %v42 = vld [vmem:[%s1 + $0x48] sm:$0xff]
  %v43 = vld [vmem:[%s1 + $0x50] sm:$0xff]
  %v44 = vld [vmem:[%s1 + $0x58] sm:$0xff]
  %v45 = vld [vmem:[%s1 + $0x60] sm:$0xff]
  %v46 = vld [vmem:[%s1 + $0x68] sm:$0xff]
  %v47 = vld [vmem:[%s1 + $0x70] sm:$0xff]
  %v48 = vld [vmem:[%s1 + $0x78] sm:$0xff]
  %49 = vmatprep.subr.mxu0 0.0
  %50 = vmatpush1.msra.mxu0 %v33
  %51 = vmatprep.subr.mxu0 0.0
  %52 = vmatpush1.msra.mxu0 %v34
  %53 = vmatprep.subr.mxu0 0.0
  %54 = vmatpush1.msra.mxu0 %v35
  %55 = vmatprep.subr.mxu0 0.0
  %56 = vmatpush1.msra.mxu0 %v36
  %57 = vmatprep.subr.mxu0 0.0
  %58 = vmatpush1.msra.mxu0 %v37
  %59 = vmatprep.subr.mxu0 0.0
  %60 = vmatpush1.msra.mxu0 %v38
  %61 = vmatprep.subr.mxu0 0.0
  %62 = vmatpush1.msra.mxu0 %v39
  %63 = vmatprep.subr.mxu0 0.0
  %64 = vmatpush1.msra.mxu0 %v40
  %65 = vmatprep.subr.mxu0 0.0
  %66 = vmatpush1.msra.mxu0 %v41
  %67 = vmatprep.subr.mxu0 0.0
  %68 = vmatpush1.msra.mxu0 %v42
  %69 = vmatprep.subr.mxu0 0.0
  %70 = vmatpush1.msra.mxu0 %v43
  %71 = vmatprep.subr.mxu0 0.0
  %72 = vmatpush1.msra.mxu0 %v44
  %73 = vmatprep.subr.mxu0 0.0
  %74 = vmatpush1.msra.mxu0 %v45
  %75 = vmatprep.subr.mxu0 0.0
  %76 = vmatpush1.msra.mxu0 %v46
  %77 = vmatprep.subr.mxu0 0.0
  %78 = vmatpush1.msra.mxu0 %v47
  %79 = vmatprep.subr.mxu0 0.0
  %80 = vmatpush1.msra.mxu0 %v48
  %81 = vmatprep.subr.mxu0 0.0
  %82 = vmatpush1.msra.mxu0 0.0
  %83 = vmatprep.subr.mxu0 0.0
  %84 = vmatpush1.msra.mxu0 0.0
  %85 = vmatprep.subr.mxu0 0.0
  %86 = vmatpush1.msra.mxu0 0.0
  %87 = vmatprep.subr.mxu0 0.0
  %88 = vmatpush1.msra.mxu0 0.0
  %89 = vmatprep.subr.mxu0 0.0
  %90 = vmatpush1.msra.mxu0 0.0
  %91 = vmatprep.subr.mxu0 0.0
  %92 = vmatpush1.msra.mxu0 0.0
  %93 = vmatprep.subr.mxu0 0.0
  %94 = vmatpush1.msra.mxu0 0.0
  %95 = vmatprep.subr.mxu0 0.0
  %96 = vmatpush1.msra.mxu0 0.0
  %97 = vmatprep.subr.mxu0 0.0
  %98 = vmatpush1.msra.mxu0 0.0
  %99 = vmatprep.subr.mxu0 0.0
  %100 = vmatpush1.msra.mxu0 0.0
  %101 = vmatprep.subr.mxu0 0.0
  %102 = vmatpush1.msra.mxu0 0.0
  %103 = vmatprep.subr.mxu0 0.0
  %104 = vmatpush1.msra.mxu0 0.0
  %105 = vmatprep.subr.mxu0 0.0
  %106 = vmatpush1.msra.mxu0 0.0
  %107 = vmatprep.subr.mxu0 0.0
  %108 = vmatpush1.msra.mxu0 0.0
  %109 = vmatprep.subr.mxu0 0.0
  %110 = vmatpush1.msra.mxu0 0.0
  %111 = vmatprep.subr.mxu0 0.0
  %112 = vmatpush1.msra.mxu0 0.0
  %113 = vmatprep.mubr.f32.mxu0 0.0
  %114 = vmatmul.mubr.f32.gmra.mrb[0].mxu0 %v31
  %v115 = vpop.f32.mrb[0].mxu0
  %v116 = vadd.f32 0.0, %v115
  %v117 = vpop.f32.mrb[0].mxu0
  %118 = vmatprep.mubr.f32.mxu0 0.0
  %119 = vmatmul.mubr.f32.gmra.mrb[0].mxu0 %v32
  %v120 = vpop.f32.mrb[0].mxu0
  %v121 = vadd.f32 0.0, %v120
  %v122 = vpop.f32.mrb[0].mxu0
  %123 = vdwg.mxu0
  %v124 = vadd.f32 %v29, %v116
  %v125 = vadd.f32 %v30, %v121
  %126 = vst [vmem:[#allocation2] sm:$0xff] %v124
  %127 = vst [vmem:[#allocation2 + $0x8] sm:$0xff] %v125
  // Predicated region
  $region30: #{decoder_forward.23} parent=0 // pred_check
    %p128 = pneg %p23
  $region31: #{decoder_forward.23} parent=0 // pred_check_branch
    %130 = sbr.rel (%p128) target = $region33
  $region32: #{decoder_forward.23} parent=0 // pred_region
    %v131 = vld [vmem:[#allocation2] sm:$0xff]
    %v132 = vld [vmem:[#allocation2 + $0x8] sm:$0xff]
    %v133 = vld [vmem:[%s2] sm:$0x1]
    %v135 = vlaneseq
    %v136 = vshrl.u32 %v135, 7
    %v137 = vsub.s32 0, %v136
    %v138 = vrot.slane %v133, %v137
    %v140 = vadd.f32 %v131, %v138
    %v141 = vadd.f32 %v132, %v138
    %v142 = vld [vmem:[%s3] sm:$0xff]
    %v143 = vld [vmem:[%s3 + $0x8] sm:$0xff]
    %v144 = vadd.f32 %v140, %v142
    %v145 = vadd.f32 %v141, %v143
    %146 = vadd.xlane.f32.xlu0 %v144
    %v147 = vpop.xlane.xlu0 %146
    %148 = vadd.xlane.f32.xlu0 %v145
    %v149 = vpop.xlane.xlu0 %148
    %v150 = vrcp.pop 128.0
    %v151 = vmul.f32 %v147, %v150
    %v152 = vmul.f32 %v149, %v150
    %v153 = vsub.f32 %v144, %v151
    %v154 = vsub.f32 %v145, %v152
    %v155 = vmul.f32 %v153, %v153
    %v156 = vmul.f32 %v154, %v154
    %157 = vadd.xlane.f32.xlu0 %v155
    %v158 = vpop.xlane.xlu0 %157
    %159 = vadd.xlane.f32.xlu0 %v156
    %v160 = vpop.xlane.xlu0 %159
    %v161 = vmul.f32 %v158, %v150
    %v162 = vmul.f32 %v160, %v150
    %v163 = vadd.f32 %v161, 1e-05
    %v164 = vadd.f32 %v162, 1e-05
    %v165 = vrsqrt.pop %v163
    %v166 = vrsqrt.pop %v164
    %v167 = vmul.f32 %v153, %v165
    %v168 = vmul.f32 %v154, %v166
    %v169 = vld [vmem:[%s4] sm:$0x1]
    %v171 = vlaneseq
    %v172 = vshrl.u32 %v171, 7
    %v173 = vsub.s32 0, %v172
    %v174 = vrot.slane %v169, %v173
    %v176 = vmul.f32 %v167, %v174
    %v177 = vmul.f32 %v168, %v174
    %v178 = vld [vmem:[%s5] sm:$0x1]
    %v180 = vlaneseq
    %v181 = vshrl.u32 %v180, 7
    %v182 = vsub.s32 0, %v181
    %v183 = vrot.slane %v178, %v182
    %v185 = vadd.f32 %v176, %v183
    %v186 = vadd.f32 %v177, %v183
    %187 = vst [vmem:[%s6] sm:$0xff] %v185
    %188 = vst [vmem:[%s6 + $0x8] sm:$0xff] %v186
  $region33: #{decoder_forward.23} parent=0 // pred_fallthru
    _
  // Predicated region
  $region34: #{decoder_forward.23} parent=0 // pred_check
    _
  $region35: #{decoder_forward.23} parent=0 // pred_check_branch
    %190 = sbr.rel (0) target = $region37
  $region36: #{decoder_forward.23} parent=0 // pred_region
    _
  $region37: #{decoder_forward.23} parent=0 // pred_fallthru
    _
  // Predicated region
  $region38: #{decoder_forward.23} parent=0 // pred_check
    _
  $region39: #{decoder_forward.23} parent=0 // pred_check_branch
    %192 = sbr.rel (0) target = $region41
  $region40: #{decoder_forward.23} parent=0 // pred_region
    _
  $region41: #{decoder_forward.23} parent=0 // pred_fallthru
    _

// kernel: decoder_forward.24
$region0: #{decoder_forward.24}
  #allocation0 [shape = 'u32[]', space=smem, size = 0x4, offset = 0x4, fixed_abs, tag = 'smem constant byte address 0x4 - core index']
  #allocation1 [shape = 'u32[144,128]{1,0:T(1,128)}', space=vmem, size = 0x12000, scoped, tag = 'internal scratch']
  #allocation2 [shape = 'f32[16,128]{1,0:T(8,128)}', space=vmem, size = 0x2000, scoped, tag = 'scratch operand']
  %s0 = inlined_call_operand.vmem [shape: f32[16,128], index: 0, kind: input, shape index: {}]
  %s1 = inlined_call_operand.vmem [shape: f32[128,128], index: 1, kind: input, shape index: {}]
  %s2 = inlined_call_operand.vmem [shape: f32[1,128], index: 2, kind: input, shape index: {}]
  %s3 = inlined_call_operand.vmem [shape: f32[16,128], index: 3, kind: output, shape index: {}]
  %s4 = sld [smem:[#allocation0]]
  $region30: #{decoder_forward.24} parent=0
    _
  %s6 = ssub.s32 1, %s4
  %s7 = scalar_select 0, %s6, %s4
  // Predicated region
  $region2: #{decoder_forward.24} parent=0 // pred_check
    _
  $region3: #{decoder_forward.24} parent=0 // pred_check_branch
    %9 = sbr.rel (0) target = $region5
  $region4: #{decoder_forward.24} parent=0 // pred_region
    _
  $region5: #{decoder_forward.24} parent=0 // pred_fallthru
    _
  // Predicated region
  $region6: #{decoder_forward.24} parent=0 // pred_check
    _
  $region7: #{decoder_forward.24} parent=0 // pred_check_branch
    %11 = sbr.rel (0) target = $region9
  $region8: #{decoder_forward.24} parent=0 // pred_region
    _
  $region9: #{decoder_forward.24} parent=0 // pred_fallthru
    _
  // Predicated region
  $region10: #{decoder_forward.24} parent=0 // pred_check
    _
  $region11: #{decoder_forward.24} parent=0 // pred_check_branch
    %13 = sbr.rel (0) target = $region13
  $region12: #{decoder_forward.24} parent=0 // pred_region
    _
  $region13: #{decoder_forward.24} parent=0 // pred_fallthru
    _
  %p14 = scmp.eq.s32.totalorder 0, 0
  // Predicated region
  $region14: #{decoder_forward.24} parent=0 // pred_check
    %p15 = pneg %p14
  $region15: #{decoder_forward.24} parent=0 // pred_check_branch
    %17 = sbr.rel (%p15) target = $region17
  $region16: #{decoder_forward.24} parent=0 // pred_region
    %18 = vst [vmem:[#allocation2] sm:$0xff] 0.0
    %19 = vst [vmem:[#allocation2 + $0x8] sm:$0xff] 0.0
  $region17: #{decoder_forward.24} parent=0 // pred_fallthru
    _
  %v20 = vld [vmem:[#allocation2] sm:$0xff]
  %v21 = vld [vmem:[#allocation2 + $0x8] sm:$0xff]
  %v22 = vld [vmem:[%s0] sm:$0xff]
  %v23 = vld [vmem:[%s0 + $0x8] sm:$0xff]
  %v24 = vld [vmem:[%s1] sm:$0xff]
  %v25 = vld [vmem:[%s1 + $0x8] sm:$0xff]
  %v26 = vld [vmem:[%s1 + $0x10] sm:$0xff]
  %v27 = vld [vmem:[%s1 + $0x18] sm:$0xff]
  %v28 = vld [vmem:[%s1 + $0x20] sm:$0xff]
  %v29 = vld [vmem:[%s1 + $0x28] sm:$0xff]
  %v30 = vld [vmem:[%s1 + $0x30] sm:$0xff]
  %v31 = vld [vmem:[%s1 + $0x38] sm:$0xff]
  %v32 = vld [vmem:[%s1 + $0x40] sm:$0xff]
  %v33 = vld [vmem:[%s1 + $0x48] sm:$0xff]
  %v34 = vld [vmem:[%s1 + $0x50] sm:$0xff]
  %v35 = vld [vmem:[%s1 + $0x58] sm:$0xff]
  %v36 = vld [vmem:[%s1 + $0x60] sm:$0xff]
  %v37 = vld [vmem:[%s1 + $0x68] sm:$0xff]
  %v38 = vld [vmem:[%s1 + $0x70] sm:$0xff]
  %v39 = vld [vmem:[%s1 + $0x78] sm:$0xff]
  %40 = vmatprep.subr.mxu0 0.0
  %41 = vmatpush1.msra.mxu0 %v24
  %42 = vmatprep.subr.mxu0 0.0
  %43 = vmatpush1.msra.mxu0 %v25
  %44 = vmatprep.subr.mxu0 0.0
  %45 = vmatpush1.msra.mxu0 %v26
  %46 = vmatprep.subr.mxu0 0.0
  %47 = vmatpush1.msra.mxu0 %v27
  %48 = vmatprep.subr.mxu0 0.0
  %49 = vmatpush1.msra.mxu0 %v28
  %50 = vmatprep.subr.mxu0 0.0
  %51 = vmatpush1.msra.mxu0 %v29
  %52 = vmatprep.subr.mxu0 0.0
  %53 = vmatpush1.msra.mxu0 %v30
  %54 = vmatprep.subr.mxu0 0.0
  %55 = vmatpush1.msra.mxu0 %v31
  %56 = vmatprep.subr.mxu0 0.0
  %57 = vmatpush1.msra.mxu0 %v32
  %58 = vmatprep.subr.mxu0 0.0
  %59 = vmatpush1.msra.mxu0 %v33
  %60 = vmatprep.subr.mxu0 0.0
  %61 = vmatpush1.msra.mxu0 %v34
  %62 = vmatprep.subr.mxu0 0.0
  %63 = vmatpush1.msra.mxu0 %v35
  %64 = vmatprep.subr.mxu0 0.0
  %65 = vmatpush1.msra.mxu0 %v36
  %66 = vmatprep.subr.mxu0 0.0
  %67 = vmatpush1.msra.mxu0 %v37
  %68 = vmatprep.subr.mxu0 0.0
  %69 = vmatpush1.msra.mxu0 %v38
  %70 = vmatprep.subr.mxu0 0.0
  %71 = vmatpush1.msra.mxu0 %v39
  %72 = vmatprep.subr.mxu0 0.0
  %73 = vmatpush1.msra.mxu0 0.0
  %74 = vmatprep.subr.mxu0 0.0
  %75 = vmatpush1.msra.mxu0 0.0
  %76 = vmatprep.subr.mxu0 0.0
  %77 = vmatpush1.msra.mxu0 0.0
  %78 = vmatprep.subr.mxu0 0.0
  %79 = vmatpush1.msra.mxu0 0.0
  %80 = vmatprep.subr.mxu0 0.0
  %81 = vmatpush1.msra.mxu0 0.0
  %82 = vmatprep.subr.mxu0 0.0
  %83 = vmatpush1.msra.mxu0 0.0
  %84 = vmatprep.subr.mxu0 0.0
  %85 = vmatpush1.msra.mxu0 0.0
  %86 = vmatprep.subr.mxu0 0.0
  %87 = vmatpush1.msra.mxu0 0.0
  %88 = vmatprep.subr.mxu0 0.0
  %89 = vmatpush1.msra.mxu0 0.0
  %90 = vmatprep.subr.mxu0 0.0
  %91 = vmatpush1.msra.mxu0 0.0
  %92 = vmatprep.subr.mxu0 0.0
  %93 = vmatpush1.msra.mxu0 0.0
  %94 = vmatprep.subr.mxu0 0.0
  %95 = vmatpush1.msra.mxu0 0.0
  %96 = vmatprep.subr.mxu0 0.0
  %97 = vmatpush1.msra.mxu0 0.0
  %98 = vmatprep.subr.mxu0 0.0
  %99 = vmatpush1.msra.mxu0 0.0
  %100 = vmatprep.subr.mxu0 0.0
  %101 = vmatpush1.msra.mxu0 0.0
  %102 = vmatprep.subr.mxu0 0.0
  %103 = vmatpush1.msra.mxu0 0.0
  %104 = vmatprep.mubr.f32.mxu0 0.0
  %105 = vmatmul.mubr.f32.gmra.mrb[0].mxu0 %v22
  %v106 = vpop.f32.mrb[0].mxu0
  %v107 = vadd.f32 0.0, %v106
  %v108 = vpop.f32.mrb[0].mxu0
  %109 = vmatprep.mubr.f32.mxu0 0.0
  %110 = vmatmul.mubr.f32.gmra.mrb[0].mxu0 %v23
  %v111 = vpop.f32.mrb[0].mxu0
  %v112 = vadd.f32 0.0, %v111
  %v113 = vpop.f32.mrb[0].mxu0
  %114 = vdwg.mxu0
  %v115 = vadd.f32 %v20, %v107
  %v116 = vadd.f32 %v21, %v112
  %117 = vst [vmem:[#allocation2] sm:$0xff] %v115
  %118 = vst [vmem:[#allocation2 + $0x8] sm:$0xff] %v116
  // Predicated region
  $region18: #{decoder_forward.24} parent=0 // pred_check
    %p119 = pneg %p14
  $region19: #{decoder_forward.24} parent=0 // pred_check_branch
    %121 = sbr.rel (%p119) target = $region21
  $region20: #{decoder_forward.24} parent=0 // pred_region
    %v122 = vld [vmem:[#allocation2] sm:$0xff]
    %v123 = vld [vmem:[#allocation2 + $0x8] sm:$0xff]
    %v124 = vld [vmem:[%s2] sm:$0x1]
    %v126 = vlaneseq
    %v127 = vshrl.u32 %v126, 7
    %v128 = vsub.s32 0, %v127
    %v129 = vrot.slane %v124, %v128
    %v131 = vadd.f32 %v122, %v129
    %v132 = vadd.f32 %v123, %v129
    %133 = vst [vmem:[%s3] sm:$0xff] %v131
    %134 = vst [vmem:[%s3 + $0x8] sm:$0xff] %v132
  $region21: #{decoder_forward.24} parent=0 // pred_fallthru
    _
  // Predicated region
  $region22: #{decoder_forward.24} parent=0 // pred_check
    _
  $region23: #{decoder_forward.24} parent=0 // pred_check_branch
    %136 = sbr.rel (0) target = $region25
  $region24: #{decoder_forward.24} parent=0 // pred_region
    _
  $region25: #{decoder_forward.24} parent=0 // pred_fallthru
    _
  // Predicated region
  $region26: #{decoder_forward.24} parent=0 // pred_check
    _
  $region27: #{decoder_forward.24} parent=0 // pred_check_branch
    %138 = sbr.rel (0) target = $region29
  $region28: #{decoder_forward.24} parent=0 // pred_region
    _
  $region29: #{decoder_forward.24} parent=0 // pred_fallthru
    _

// kernel: decoder_forward.25
$region0: #{decoder_forward.25}
  #allocation0 [shape = 'u32[]', space=smem, size = 0x4, offset = 0x4, fixed_abs, tag = 'smem constant byte address 0x4 - core index']
  #allocation1 [shape = 'u32[144,128]{1,0:T(1,128)}', space=vmem, size = 0x12000, scoped, tag = 'internal scratch']
  #allocation2 [shape = 'f32[16,256]{1,0:T(8,128)}', space=vmem, size = 0x4000, scoped, tag = 'scratch operand']
  %s0 = inlined_call_operand.vmem [shape: f32[16,128], index: 0, kind: input, shape index: {}]
  %s1 = inlined_call_operand.vmem [shape: f32[128,256], index: 1, kind: input, shape index: {}]
  %s2 = inlined_call_operand.vmem [shape: f32[1,256], index: 2, kind: input, shape index: {}]
  %s3 = inlined_call_operand.vmem [shape: f32[16,256], index: 3, kind: output, shape index: {}]
  %s4 = sld [smem:[#allocation0]]
  $region30: #{decoder_forward.25} parent=0
    _
  %s6 = ssub.s32 1, %s4
  %s7 = scalar_select 0, %s6, %s4
  // Predicated region
  $region2: #{decoder_forward.25} parent=0 // pred_check
    _
  $region3: #{decoder_forward.25} parent=0 // pred_check_branch
    %9 = sbr.rel (0) target = $region5
  $region4: #{decoder_forward.25} parent=0 // pred_region
    _
  $region5: #{decoder_forward.25} parent=0 // pred_fallthru
    _
  // Predicated region
  $region6: #{decoder_forward.25} parent=0 // pred_check
    _
  $region7: #{decoder_forward.25} parent=0 // pred_check_branch
    %11 = sbr.rel (0) target = $region9
  $region8: #{decoder_forward.25} parent=0 // pred_region
    _
  $region9: #{decoder_forward.25} parent=0 // pred_fallthru
    _
  // Predicated region
  $region10: #{decoder_forward.25} parent=0 // pred_check
    _
  $region11: #{decoder_forward.25} parent=0 // pred_check_branch
    %13 = sbr.rel (0) target = $region13
  $region12: #{decoder_forward.25} parent=0 // pred_region
    _
  $region13: #{decoder_forward.25} parent=0 // pred_fallthru
    _
  %p14 = scmp.eq.s32.totalorder 0, 0
  // Predicated region
  $region14: #{decoder_forward.25} parent=0 // pred_check
    %p15 = pneg %p14
  $region15: #{decoder_forward.25} parent=0 // pred_check_branch
    %17 = sbr.rel (%p15) target = $region17
  $region16: #{decoder_forward.25} parent=0 // pred_region
    %18 = vst [vmem:[#allocation2] sm:$0xff] 0.0
    %19 = vst [vmem:[#allocation2 + $0x8] sm:$0xff] 0.0
    %20 = vst [vmem:[#allocation2 + $0x10] sm:$0xff] 0.0
    %21 = vst [vmem:[#allocation2 + $0x18] sm:$0xff] 0.0
  $region17: #{decoder_forward.25} parent=0 // pred_fallthru
    _
  %v22 = vld [vmem:[#allocation2] sm:$0xff]
  %v23 = vld [vmem:[#allocation2 + $0x8] sm:$0xff]
  %v24 = vld [vmem:[#allocation2 + $0x10] sm:$0xff]
  %v25 = vld [vmem:[#allocation2 + $0x18] sm:$0xff]
  %v26 = vld [vmem:[%s0] sm:$0xff]
  %v27 = vld [vmem:[%s0 + $0x8] sm:$0xff]
  %v28 = vld [vmem:[%s1] sm:$0xff]
  %v29 = vld [vmem:[%s1 + $0x8] sm:$0xff]
  %v30 = vld [vmem:[%s1 + $0x10] sm:$0xff]
  %v31 = vld [vmem:[%s1 + $0x18] sm:$0xff]
  %v32 = vld [vmem:[%s1 + $0x20] sm:$0xff]
  %v33 = vld [vmem:[%s1 + $0x28] sm:$0xff]
  %v34 = vld [vmem:[%s1 + $0x30] sm:$0xff]
  %v35 = vld [vmem:[%s1 + $0x38] sm:$0xff]
  %v36 = vld [vmem:[%s1 + $0x40] sm:$0xff]
  %v37 = vld [vmem:[%s1 + $0x48] sm:$0xff]
  %v38 = vld [vmem:[%s1 + $0x50] sm:$0xff]
  %v39 = vld [vmem:[%s1 + $0x58] sm:$0xff]
  %v40 = vld [vmem:[%s1 + $0x60] sm:$0xff]
  %v41 = vld [vmem:[%s1 + $0x68] sm:$0xff]
  %v42 = vld [vmem:[%s1 + $0x70] sm:$0xff]
  %v43 = vld [vmem:[%s1 + $0x78] sm:$0xff]
  %v44 = vld [vmem:[%s1 + $0x80] sm:$0xff]
  %v45 = vld [vmem:[%s1 + $0x88] sm:$0xff]
  %v46 = vld [vmem:[%s1 + $0x90] sm:$0xff]
  %v47 = vld [vmem:[%s1 + $0x98] sm:$0xff]
  %v48 = vld [vmem:[%s1 + $0xa0] sm:$0xff]
  %v49 = vld [vmem:[%s1 + $0xa8] sm:$0xff]
  %v50 = vld [vmem:[%s1 + $0xb0] sm:$0xff]
  %v51 = vld [vmem:[%s1 + $0xb8] sm:$0xff]
  %v52 = vld [vmem:[%s1 + $0xc0] sm:$0xff]
  %v53 = vld [vmem:[%s1 + $0xc8] sm:$0xff]
  %v54 = vld [vmem:[%s1 + $0xd0] sm:$0xff]
  %v55 = vld [vmem:[%s1 + $0xd8] sm:$0xff]
  %v56 = vld [vmem:[%s1 + $0xe0] sm:$0xff]
  %v57 = vld [vmem:[%s1 + $0xe8] sm:$0xff]
  %v58 = vld [vmem:[%s1 + $0xf0] sm:$0xff]
  %v59 = vld [vmem:[%s1 + $0xf8] sm:$0xff]
  %60 = vmatprep.subr.mxu0 %v29
  %61 = vmatpush1.msra.mxu0 %v28
  %62 = vmatprep.subr.mxu0 %v31
  %63 = vmatpush1.msra.mxu0 %v30
  %64 = vmatprep.subr.mxu0 %v33
  %65 = vmatpush1.msra.mxu0 %v32
  %66 = vmatprep.subr.mxu0 %v35
  %67 = vmatpush1.msra.mxu0 %v34
  %68 = vmatprep.subr.mxu0 %v37
  %69 = vmatpush1.msra.mxu0 %v36
  %70 = vmatprep.subr.mxu0 %v39
  %71 = vmatpush1.msra.mxu0 %v38
  %72 = vmatprep.subr.mxu0 %v41
  %73 = vmatpush1.msra.mxu0 %v40
  %74 = vmatprep.subr.mxu0 %v43
  %75 = vmatpush1.msra.mxu0 %v42
  %76 = vmatprep.subr.mxu0 %v45
  %77 = vmatpush1.msra.mxu0 %v44
  %78 = vmatprep.subr.mxu0 %v47
  %79 = vmatpush1.msra.mxu0 %v46
  %80 = vmatprep.subr.mxu0 %v49
  %81 = vmatpush1.msra.mxu0 %v48
  %82 = vmatprep.subr.mxu0 %v51
  %83 = vmatpush1.msra.mxu0 %v50
  %84 = vmatprep.subr.mxu0 %v53
  %85 = vmatpush1.msra.mxu0 %v52
  %86 = vmatprep.subr.mxu0 %v55
  %87 = vmatpush1.msra.mxu0 %v54
  %88 = vmatprep.subr.mxu0 %v57
  %89 = vmatpush1.msra.mxu0 %v56
  %90 = vmatprep.subr.mxu0 %v59
  %91 = vmatpush1.msra.mxu0 %v58
  %92 = vmatprep.subr.mxu0 0.0
  %93 = vmatpush1.msra.mxu0 0.0
  %94 = vmatprep.subr.mxu0 0.0
  %95 = vmatpush1.msra.mxu0 0.0
  %96 = vmatprep.subr.mxu0 0.0
  %97 = vmatpush1.msra.mxu0 0.0
  %98 = vmatprep.subr.mxu0 0.0
  %99 = vmatpush1.msra.mxu0 0.0
  %100 = vmatprep.subr.mxu0 0.0
  %101 = vmatpush1.msra.mxu0 0.0
  %102 = vmatprep.subr.mxu0 0.0
  %103 = vmatpush1.msra.mxu0 0.0
  %104 = vmatprep.subr.mxu0 0.0
  %105 = vmatpush1.msra.mxu0 0.0
  %106 = vmatprep.subr.mxu0 0.0
  %107 = vmatpush1.msra.mxu0 0.0
  %108 = vmatprep.subr.mxu0 0.0
  %109 = vmatpush1.msra.mxu0 0.0
  %110 = vmatprep.subr.mxu0 0.0
  %111 = vmatpush1.msra.mxu0 0.0
  %112 = vmatprep.subr.mxu0 0.0
  %113 = vmatpush1.msra.mxu0 0.0
  %114 = vmatprep.subr.mxu0 0.0
  %115 = vmatpush1.msra.mxu0 0.0
  %116 = vmatprep.subr.mxu0 0.0
  %117 = vmatpush1.msra.mxu0 0.0
  %118 = vmatprep.subr.mxu0 0.0
  %119 = vmatpush1.msra.mxu0 0.0
  %120 = vmatprep.subr.mxu0 0.0
  %121 = vmatpush1.msra.mxu0 0.0
  %122 = vmatprep.subr.mxu0 0.0
  %123 = vmatpush1.msra.mxu0 0.0
  %124 = vmatprep.mubr.f32.mxu0 0.0
  %125 = vmatmul.mubr.f32.gmra.mrb[0].mxu0 %v26
  %v126 = vpop.f32.mrb[0].mxu0
  %v127 = vadd.f32 0.0, %v126
  %v128 = vpop.f32.mrb[0].mxu0
  %v129 = vadd.f32 0.0, %v128
  %130 = vmatprep.mubr.f32.mxu0 0.0
  %131 = vmatmul.mubr.f32.gmra.mrb[0].mxu0 %v27
  %v132 = vpop.f32.mrb[0].mxu0
  %v133 = vadd.f32 0.0, %v132
  %v134 = vpop.f32.mrb[0].mxu0
  %v135 = vadd.f32 0.0, %v134
  %136 = vdwg.mxu0
  %v137 = vadd.f32 %v22, %v127
  %v138 = vadd.f32 %v23, %v129
  %v139 = vadd.f32 %v24, %v133
  %v140 = vadd.f32 %v25, %v135
  %141 = vst [vmem:[#allocation2] sm:$0xff] %v137
  %142 = vst [vmem:[#allocation2 + $0x8] sm:$0xff] %v138
  %143 = vst [vmem:[#allocation2 + $0x10] sm:$0xff] %v139
  %144 = vst [vmem:[#allocation2 + $0x18] sm:$0xff] %v140
  // Predicated region
  $region18: #{decoder_forward.25} parent=0 // pred_check
    %p145 = pneg %p14
  $region19: #{decoder_forward.25} parent=0 // pred_check_branch
    %147 = sbr.rel (%p145) target = $region21
  $region20: #{decoder_forward.25} parent=0 // pred_region
    %v148 = vld [vmem:[#allocation2] sm:$0xff]
    %v149 = vld [vmem:[#allocation2 + $0x8] sm:$0xff]
    %v150 = vld [vmem:[#allocation2 + $0x10] sm:$0xff]
    %v151 = vld [vmem:[#allocation2 + $0x18] sm:$0xff]
    %v152 = vld [vmem:[%s2] sm:$0x3]
    %v154 = vlaneseq
    %v155 = vshrl.u32 %v154, 7
    %v156 = vsub.s32 0, %v155
    %v157 = vrot.slane %v152, %v156
    %v158 = vlaneseq
    %v159 = vshrl.u32 %v158, 7
    %v160 = vsub.s32 1, %v159
    %v161 = vrot.slane %v152, %v160
    %v164 = vadd.f32 %v148, %v157
    %v165 = vadd.f32 %v149, %v161
    %v166 = vadd.f32 %v150, %v157
    %v167 = vadd.f32 %v151, %v161
    %168 = vst [vmem:[%s3] sm:$0xff] %v164
    %169 = vst [vmem:[%s3 + $0x8] sm:$0xff] %v165
    %170 = vst [vmem:[%s3 + $0x10] sm:$0xff] %v166
    %171 = vst [vmem:[%s3 + $0x18] sm:$0xff] %v167
  $region21: #{decoder_forward.25} parent=0 // pred_fallthru
    _
  // Predicated region
  $region22: #{decoder_forward.25} parent=0 // pred_check
    _
  $region23: #{decoder_forward.25} parent=0 // pred_check_branch
    %173 = sbr.rel (0) target = $region25
  $region24: #{decoder_forward.25} parent=0 // pred_region
    _
  $region25: #{decoder_forward.25} parent=0 // pred_fallthru
    _
  // Predicated region
  $region26: #{decoder_forward.25} parent=0 // pred_check
    _
  $region27: #{decoder_forward.25} parent=0 // pred_check_branch
    %175 = sbr.rel (0) target = $region29
  $region28: #{decoder_forward.25} parent=0 // pred_region
    _
  $region29: #{decoder_forward.25} parent=0 // pred_fallthru
    _

// kernel: decoder_forward.22
$region0: #{decoder_forward.22}
  #allocation0 [shape = 'u32[]', space=smem, size = 0x4, offset = 0x4, fixed_abs, tag = 'smem constant byte address 0x4 - core index']
  #allocation1 [shape = 'u32[144,128]{1,0:T(1,128)}', space=vmem, size = 0x12000, scoped, tag = 'internal scratch']
  #allocation2 [shape = 'f32[4,8,1]{2,1,0:T(8,128)}', space=vmem, size = 0x4000, scoped, tag = 'scratch operand']
  #allocation3 [shape = 'f32[4,8,1]{2,1,0:T(8,128)}', space=vmem, size = 0x4000, scoped, tag = 'scratch operand']
  #allocation4 [shape = 'f32[4,8,32]{2,1,0:T(8,128)}', space=vmem, size = 0x4000, scoped, tag = 'scratch operand']
  %s0 = inlined_call_operand.vmem [shape: s32[16,1], index: 0, kind: input, shape index: {}]
  %s1 = inlined_call_operand.vmem [shape: f32[16,384], index: 1, kind: input, shape index: {}, may-alias: {1,2,3}]
  %s2 = inlined_call_operand.vmem [shape: f32[16,384], index: 2, kind: input, shape index: {}, may-alias: {1,2,3}]
  %s3 = inlined_call_operand.vmem [shape: f32[16,384], index: 3, kind: input, shape index: {}, may-alias: {1,2,3}]
  %s4 = inlined_call_operand.vmem [shape: f32[16,128], index: 4, kind: output, shape index: {}]
  %s5 = sld [smem:[#allocation0]]
  $region57: #{decoder_forward.22} parent=0
    _
  %s7 = ssub.s32 1, %s5
  %s8 = scalar_select 0, %s7, %s5
  loop: start=0, step=1, limit=4
  $region2: #{decoder_forward.22} parent=0 // loop_pre_header
    _
  $region3: #{decoder_forward.22} parent=0 // loop_header
    %s10 = sphi 0, %s14
    %p11 = scmp.ge.s32.totalorder %s10, 4
    %s17 = sphi 0, %s36
    %s18 = sphi 0, %s32
    %s19 = sphi 0, %s28
    %s20 = sphi 0, %s17
    %s21 = sphi 0, %s18
    %s22 = sphi 0, %s19
    %s23 = sphi 0, %s20
    %s24 = sphi 0, %s21
    %s25 = sphi 0, %s22
    %s41 = sphi 0, %s43
    %s44 = sphi 0, %s41
    %s45 = sphi 0, %s44
    %s61 = sphi 0, %s45
    %s69 = sphi 0, %s71
    %s72 = sphi 0, %s69
    %s73 = sphi 0, %s72
    %s89 = sphi 0, %s73
    %s97 = sphi 0, %s99
    %s100 = sphi 0, %s97
    %s101 = sphi 0, %s100
    %s117 = sphi 0, %s101
    %s125 = sphi 0, %s127
    %s128 = sphi 0, %s125
    %s129 = sphi 0, %s128
    %s145 = sphi 0, %s129
    %s153 = sphi 0, %s155
    %s156 = sphi 0, %s153
    %s157 = sphi 0, %s156
    %s173 = sphi 0, %s157
  $region4: #{decoder_forward.22} parent=0 // loop_header_branch
    %13 = sbr.rel (%p11) target = $region8
  $region5: #{decoder_forward.22} parent=0 // loop_body
    %s15 = ssub.s32 %s10, 1
    %s16 = ssub.s32 %s10, 2
    %s26 = sadd.s32 1, %s19
    %p27 = scmp.ge.s32.totalorder %s26, 1
    %s28 = scalar_select %p27, 0, %s26
    %s29 = sadd.s32 1, %s18
    %s30 = scalar_select %p27, %s29, %s18
    %p31 = scmp.ge.s32.totalorder %s30, 1
    %s32 = scalar_select %p31, 0, %s30
    %s33 = sadd.s32 1, %s17
    %s34 = scalar_select %p31, %s33, %s17
    %p35 = scmp.ge.s32.totalorder %s34, 2
    %s36 = scalar_select %p35, 0, %s34
    %s37 = sadd.s32 %s17, %s18
    %s38 = sadd.s32 %s36, %s32
    %s39 = ssub.s32 %s37, %s38
    %p40 = scmp.eq.s32.totalorder %s39, 0
    %s42 = sadd.s32 %s41, 1
    %s43 = scalar_select %p40, %s41, %s42
    %p46 = pneg %p40
    %p47 = scmp.eq.s32.totalorder %s10, 1
    %p48 = por %p46, %p47
    %p49 = scmp.ne.s32.totalorder %s41, %s44
    %p50 = scmp.eq.s32.totalorder %s10, 0
    %p51 = por %p49, %p50
    %p52 = scmp.ne.s32.totalorder %s41, %s44
    %p53 = scmp.eq.s32.totalorder %s15, 1
    %p54 = por %p52, %p53
    %p55 = scmp.ne.s32.totalorder %s44, %s45
    %p56 = scmp.eq.s32.totalorder %s15, 0
    %p57 = por %p55, %p56
    %p58 = scmp.ne.s32.totalorder %s44, %s45
    %p59 = scmp.eq.s32.totalorder %s16, 1
    %p60 = por %p58, %p59
    %p62 = scmp.ne.s32.totalorder %s45, %s61
    %p63 = scmp.eq.s32.totalorder %s16, 0
    %p64 = por %p62, %p63
    %s65 = sadd.s32 %s17, %s18
    %s66 = sadd.s32 %s36, %s32
    %s67 = ssub.s32 %s65, %s66
    %p68 = scmp.eq.s32.totalorder %s67, 0
    %s70 = sadd.s32 %s69, 1
    %s71 = scalar_select %p68, %s69, %s70
    %p74 = pneg %p68
    %p75 = scmp.eq.s32.totalorder %s10, 1
    %p76 = por %p74, %p75
    %p77 = scmp.ne.s32.totalorder %s69, %s72
    %p78 = scmp.eq.s32.totalorder %s10, 0
    %p79 = por %p77, %p78
    %p80 = scmp.ne.s32.totalorder %s69, %s72
    %p81 = scmp.eq.s32.totalorder %s15, 1
    %p82 = por %p80, %p81
    %p83 = scmp.ne.s32.totalorder %s72, %s73
    %p84 = scmp.eq.s32.totalorder %s15, 0
    %p85 = por %p83, %p84
    %p86 = scmp.ne.s32.totalorder %s72, %s73
    %p87 = scmp.eq.s32.totalorder %s16, 1
    %p88 = por %p86, %p87
    %p90 = scmp.ne.s32.totalorder %s73, %s89
    %p91 = scmp.eq.s32.totalorder %s16, 0
    %p92 = por %p90, %p91
    %s93 = sadd.s32 %s17, %s19
    %s94 = sadd.s32 %s36, %s28
    %s95 = ssub.s32 %s93, %s94
    %p96 = scmp.eq.s32.totalorder %s95, 0
    %s98 = sadd.s32 %s97, 1
    %s99 = scalar_select %p96, %s97, %s98
    %p102 = pneg %p96
    %p103 = scmp.eq.s32.totalorder %s10, 1
    %p104 = por %p102, %p103
    %p105 = scmp.ne.s32.totalorder %s97, %s100
    %p106 = scmp.eq.s32.totalorder %s10, 0
    %p107 = por %p105, %p106
    %p108 = scmp.ne.s32.totalorder %s97, %s100
    %p109 = scmp.eq.s32.totalorder %s15, 1
    %p110 = por %p108, %p109
    %p111 = scmp.ne.s32.totalorder %s100, %s101
    %p112 = scmp.eq.s32.totalorder %s15, 0
    %p113 = por %p111, %p112
    %p114 = scmp.ne.s32.totalorder %s100, %s101
    %p115 = scmp.eq.s32.totalorder %s16, 1
    %p116 = por %p114, %p115
    %p118 = scmp.ne.s32.totalorder %s101, %s117
    %p119 = scmp.eq.s32.totalorder %s16, 0
    %p120 = por %p118, %p119
    %s121 = sadd.s32 %s17, %s19
    %s122 = sadd.s32 %s36, %s28
    %s123 = ssub.s32 %s121, %s122
    %p124 = scmp.eq.s32.totalorder %s123, 0
    %s126 = sadd.s32 %s125, 1
    %s127 = scalar_select %p124, %s125, %s126
    %p130 = pneg %p124
    %p131 = scmp.eq.s32.totalorder %s10, 1
    %p132 = por %p130, %p131
    %p133 = scmp.ne.s32.totalorder %s125, %s128
    %p134 = scmp.eq.s32.totalorder %s10, 0
    %p135 = por %p133, %p134
    %p136 = scmp.ne.s32.totalorder %s125, %s128
    %p137 = scmp.eq.s32.totalorder %s15, 1
    %p138 = por %p136, %p137
    %p139 = scmp.ne.s32.totalorder %s128, %s129
    %p140 = scmp.eq.s32.totalorder %s15, 0
    %p141 = por %p139, %p140
    %p142 = scmp.ne.s32.totalorder %s128, %s129
    %p143 = scmp.eq.s32.totalorder %s16, 1
    %p144 = por %p142, %p143
    %p146 = scmp.ne.s32.totalorder %s129, %s145
    %p147 = scmp.eq.s32.totalorder %s16, 0
    %p148 = por %p146, %p147
    %s149 = sadd.s32 %s17, %s18
    %s150 = sadd.s32 %s36, %s32
    %s151 = ssub.s32 %s149, %s150
    %p152 = scmp.eq.s32.totalorder %s151, 0
    %s154 = sadd.s32 %s153, 1
    %s155 = scalar_select %p152, %s153, %s154
    %p158 = pneg %p152
    %p159 = scmp.eq.s32.totalorder %s10, 1
    %p160 = por %p158, %p159
    %p161 = scmp.ne.s32.totalorder %s153, %s156
    %p162 = scmp.eq.s32.totalorder %s10, 0
    %p163 = por %p161, %p162
    %p164 = scmp.ne.s32.totalorder %s153, %s156
    %p165 = scmp.eq.s32.totalorder %s15, 1
    %p166 = por %p164, %p165
    %p167 = scmp.ne.s32.totalorder %s156, %s157
    %p168 = scmp.eq.s32.totalorder %s15, 0
    %p169 = por %p167, %p168
    %p170 = scmp.ne.s32.totalorder %s156, %s157
    %p171 = scmp.eq.s32.totalorder %s16, 1
    %p172 = por %p170, %p171
    %p174 = scmp.ne.s32.totalorder %s157, %s173
    %p175 = scmp.eq.s32.totalorder %s16, 0
    %p176 = por %p174, %p175
    %p177 = scmp.le.s32.totalorder 1, %s10
    %p178 = scmp.lt.s32.totalorder %s10, 3
    %p179 = pnand %p177, %p178
    %p180 = pneg %p179
    // Predicated region
    $region9: #{decoder_forward.22} parent=5 // pred_check
      _
    $region10: #{decoder_forward.22} parent=5 // pred_check_branch
      %182 = sbr.rel (%p179) target = $region12
    $region11: #{decoder_forward.22} parent=5 // pred_region
      %s183 = ssub.s32 %s10, 1
    $region12: #{decoder_forward.22} parent=5 // pred_fallthru
      _
    %p184 = scmp.lt.s32.totalorder %s10, 2
    // Predicated region
    $region13: #{decoder_forward.22} parent=5 // pred_check
      %p185 = pneg %p184
    $region14: #{decoder_forward.22} parent=5 // pred_check_branch
      %187 = sbr.rel (%p185) target = $region16
    $region15: #{decoder_forward.22} parent=5 // pred_region
      // Predicated region
      $region17: #{decoder_forward.22} parent=15 // pred_check
        %p188 = pneg %p51
      $region18: #{decoder_forward.22} parent=15 // pred_check_branch
        %190 = sbr.rel (%p188) target = $region20
      $region19: #{decoder_forward.22} parent=15 // pred_region
        %s191 = sadd.s32 %s17, %s18
        %p192 = scmp.lt.s32.totalorder %s191, 1
        %s193 = scalar_select %p192, %s191, 1
        %s194 = smul.addr %s193, 8
        %s195 = scalar_lea.vmem %s0, %s194
        %s196 = sadd.s32 %s17, %s18
      $region20: #{decoder_forward.22} parent=15 // pred_fallthru
        _
      // Predicated region
      $region21: #{decoder_forward.22} parent=15 // pred_check
        %p197 = pneg %p79
      $region22: #{decoder_forward.22} parent=15 // pred_check_branch
        %199 = sbr.rel (%p197) target = $region24
      $region23: #{decoder_forward.22} parent=15 // pred_region
        %s200 = sadd.s32 %s17, %s18
        %p201 = scmp.lt.s32.totalorder %s200, 1
        %s202 = scalar_select %p201, %s200, 1
        %s203 = smul.addr %s202, 3
        %s204 = smul.addr %s203, 8
        %s205 = scalar_lea.vmem %s1, %s204
        %s206 = sadd.s32 %s17, %s18
      $region24: #{decoder_forward.22} parent=15 // pred_fallthru
        _
      // Predicated region
      $region25: #{decoder_forward.22} parent=15 // pred_check
        %p207 = pneg %p107
      $region26: #{decoder_forward.22} parent=15 // pred_check_branch
        %209 = sbr.rel (%p207) target = $region28
      $region27: #{decoder_forward.22} parent=15 // pred_region
        %s210 = sadd.s32 %s17, %s19
        %p211 = scmp.lt.s32.totalorder %s210, 1
        %s212 = scalar_select %p211, %s210, 1
        %s213 = smul.addr %s212, 3
        %s214 = sadd.s32 1, %s213
        %s215 = smul.addr %s214, 8
        %s216 = scalar_lea.vmem %s2, %s215
        %s217 = sadd.s32 %s17, %s19
      $region28: #{decoder_forward.22} parent=15 // pred_fallthru
        _
      // Predicated region
      $region29: #{decoder_forward.22} parent=15 // pred_check
        %p218 = pneg %p135
      $region30: #{decoder_forward.22} parent=15 // pred_check_branch
        %220 = sbr.rel (%p218) target = $region32
      $region31: #{decoder_forward.22} parent=15 // pred_region
        %s221 = sadd.s32 %s17, %s19
        %p222 = scmp.lt.s32.totalorder %s221, 1
        %s223 = scalar_select %p222, %s221, 1
        %s224 = smul.addr %s223, 3
        %s225 = sadd.s32 2, %s224
        %s226 = smul.addr %s225, 8
        %s227 = scalar_lea.vmem %s3, %s226
        %s228 = sadd.s32 %s17, %s19
      $region32: #{decoder_forward.22} parent=15 // pred_fallthru
        _
    $region16: #{decoder_forward.22} parent=5 // pred_fallthru
      _
    %p229 = scmp.le.s32.totalorder 1, %s10
    %p230 = scmp.lt.s32.totalorder %s10, 3
    %p231 = pnand %p229, %p230
    %p232 = pneg %p231
    // Predicated region
    $region33: #{decoder_forward.22} parent=5 // pred_check
      _
    $region34: #{decoder_forward.22} parent=5 // pred_check_branch
      %234 = sbr.rel (%p231) target = $region36
    $region35: #{decoder_forward.22} parent=5 // pred_region
      %s235 = ssub.s32 %s10, 1
      %s236 = sadd.s32 %s20, %s21
      %p237 = scmp.lt.s32.totalorder %s236, 1
      %s238 = scalar_select %p237, %s236, 1
      %s239 = smul.addr %s238, 8
      %s240 = scalar_lea.vmem %s0, %s239
      %p241 = pneg %p57
      %p242 = pneg %p54
      %s243 = sadd.s32 %s20, %s21
      %p244 = scmp.lt.s32.totalorder %s243, 1
      %s245 = scalar_select %p244, %s243, 1
      %s246 = smul.addr %s245, 3
      %s247 = smul.addr %s246, 8
      %s248 = scalar_lea.vmem %s1, %s247
      %p249 = pneg %p85
      %p250 = pneg %p82
      %s251 = sadd.s32 %s20, %s22
      %p252 = scmp.lt.s32.totalorder %s251, 1
      %s253 = scalar_select %p252, %s251, 1
      %s254 = smul.addr %s253, 3
      %s255 = sadd.s32 1, %s254
      %s256 = smul.addr %s255, 8
      %s257 = scalar_lea.vmem %s2, %s256
      %p258 = pneg %p113
      %p259 = pneg %p110
      %s260 = sadd.s32 %s20, %s22
      %p261 = scmp.lt.s32.totalorder %s260, 1
      %s262 = scalar_select %p261, %s260, 1
      %s263 = smul.addr %s262, 3
      %s264 = sadd.s32 2, %s263
      %s265 = smul.addr %s264, 8
      %s266 = scalar_lea.vmem %s3, %s265
      %p267 = pneg %p141
      %p268 = pneg %p138
      %p269 = pneg %p169
      %p270 = pneg %p166
      %s271 = sadd.s32 %s20, %s21
      %p272 = scmp.lt.s32.totalorder %s271, 1
      %s273 = scalar_select %p272, %s271, 1
      %s274 = smul.addr %s273, 8
      %s275 = scalar_lea.vmem %s4, %s274
      %s276 = sadd.s32 %s20, %s21
      %p277 = scmp.lt.s32.totalorder %s276, 1
      %s278 = scalar_select %p277, %s276, 1
      %s279 = smul.addr %s278, 8
      %s280 = scalar_lea.vmem %s0, %s279
      %s281 = sadd.s32 %s20, %s21
      %s282 = sadd.s32 %s20, %s21
      %p283 = scmp.lt.s32.totalorder %s282, 1
      %s284 = scalar_select %p283, %s282, 1
      %s285 = smul.addr %s284, 3
      %s286 = smul.addr %s285, 8
      %s287 = scalar_lea.vmem %s1, %s286
      %s288 = sadd.s32 %s20, %s21
      %s289 = sadd.s32 %s20, %s22
      %p290 = scmp.lt.s32.totalorder %s289, 1
      %s291 = scalar_select %p290, %s289, 1
      %s292 = smul.addr %s291, 3
      %s293 = sadd.s32 1, %s292
      %s294 = smul.addr %s293, 8
      %s295 = scalar_lea.vmem %s2, %s294
      %s296 = sadd.s32 %s20, %s22
      %s297 = sadd.s32 %s20, %s22
      %p298 = scmp.lt.s32.totalorder %s297, 1
      %s299 = scalar_select %p298, %s297, 1
      %s300 = smul.addr %s299, 3
      %s301 = sadd.s32 2, %s300
      %s302 = smul.addr %s301, 8
      %s303 = scalar_lea.vmem %s3, %s302
      %s304 = sadd.s32 %s20, %s22
      %s305 = sadd.s32 %s20, %s21
      %p306 = scmp.lt.s32.totalorder %s305, 1
      %s307 = scalar_select %p306, %s305, 1
      %s308 = smul.addr %s307, 8
      %s309 = scalar_lea.vmem %s4, %s308
      %s310 = sadd.s32 %s20, %s21
      %p311 = scmp.eq.s32.totalorder %s22, 0
      // Predicated region
      $region37: #{decoder_forward.22} parent=35 // pred_check
        %p312 = pneg %p311
      $region38: #{decoder_forward.22} parent=35 // pred_check_branch
        %314 = sbr.rel (%p312) target = $region40
      $region39: #{decoder_forward.22} parent=35 // pred_region
        %vm315 = vcmask 7168
        %316 = vst.msk [vmem:[#allocation2] sm:$0xff] %vm315, -inf
        %317 = vst.msk [vmem:[#allocation2 + $0x8] sm:$0xff] %vm315, -inf
        %318 = vst.msk [vmem:[#allocation2 + $0x10] sm:$0xff] %vm315, -inf
        %319 = vst.msk [vmem:[#allocation2 + $0x18] sm:$0xff] %vm315, -inf
        %320 = vst.msk [vmem:[#allocation3] sm:$0xff] %vm315, 0.0
        %321 = vst.msk [vmem:[#allocation3 + $0x8] sm:$0xff] %vm315, 0.0
        %322 = vst.msk [vmem:[#allocation3 + $0x10] sm:$0xff] %vm315, 0.0
        %323 = vst.msk [vmem:[#allocation3 + $0x18] sm:$0xff] %vm315, 0.0
        %vm324 = vcmask 261120
        %325 = vst.msk [vmem:[#allocation4] sm:$0xff] %vm324, 0.0
        %326 = vst.msk [vmem:[#allocation4 + $0x8] sm:$0xff] %vm324, 0.0
        %327 = vst.msk [vmem:[#allocation4 + $0x10] sm:$0xff] %vm324, 0.0
        %328 = vst.msk [vmem:[#allocation4 + $0x18] sm:$0xff] %vm324, 0.0
      $region40: #{decoder_forward.22} parent=35 // pred_fallthru
        _
      %v329 = vlaneseq
      %v330 = vand.u32 %v329, 127
      %s331 = smul.u32 %s22, 8
      %v332 = vstv %s331
      %v333 = vadd.s32 %v330, %v332
      %v334 = vld [vmem:[%s280] sm:$0xff]
      %335 = vset.pattern.permute.xlu0 0
      %336 = vperm.xlu0 %335, %v334
      %v337 = vpop.permute.xlu0 %336
      %vm338 = vcmp.lt.s32.totalorder %v333, %v337
      %v339 = vld [vmem:[%s287] sm:$0xff]
      %v340 = vmul.f32 %v339, 0.17677669
      %v341 = vld [vmem:[%s295] sm:$0xff]
      %vm342 = vcmask 261120
      %v344 = vsel %vm342, %v340, 0
      %v347 = vsel %vm342, %v341, 0
      %349 = vmatprep.subr.mxu0 0.0
      %350 = vmatpush1.xpose.msra.mxu0 %v347
      %351 = vmatprep.subr.mxu0 0.0
      %352 = vmatpush1.xpose.msra.mxu0 0.0
      %353 = vmatprep.subr.mxu0 0.0
      %354 = vmatpush1.xpose.msra.mxu0 0.0
      %355 = vmatprep.subr.mxu0 0.0
      %356 = vmatpush1.xpose.msra.mxu0 0.0
      %357 = vmatprep.subr.mxu0 0.0
      %358 = vmatpush1.xpose.msra.mxu0 0.0
      %359 = vmatprep.subr.mxu0 0.0
      %360 = vmatpush1.xpose.msra.mxu0 0.0
      %361 = vmatprep.subr.mxu0 0.0
      %362 = vmatpush1.xpose.msra.mxu0 0.0
      %363 = vmatprep.subr.mxu0 0.0
      %364 = vmatpush1.xpose.msra.mxu0 0.0
      %365 = vmatprep.subr.mxu0 0.0
      %366 = vmatpush1.xpose.msra.mxu0 0.0
      %367 = vmatprep.subr.mxu0 0.0
      %368 = vmatpush1.xpose.msra.mxu0 0.0
      %369 = vmatprep.subr.mxu0 0.0
      %370 = vmatpush1.xpose.msra.mxu0 0.0
      %371 = vmatprep.subr.mxu0 0.0
      %372 = vmatpush1.xpose.msra.mxu0 0.0
      %373 = vmatprep.subr.mxu0 0.0
      %374 = vmatpush1.xpose.msra.mxu0 0.0
      %375 = vmatprep.subr.mxu0 0.0
      %376 = vmatpush1.xpose.msra.mxu0 0.0
      %377 = vmatprep.subr.mxu0 0.0
      %378 = vmatpush1.xpose.msra.mxu0 0.0
      %379 = vmatprep.subr.mxu0 0.0
      %380 = vmatpush1.xpose.msra.mxu0 0.0
      %381 = vmatprep.subr.mxu0 0.0
      %382 = vmatpush1.xpose.msra.mxu0 0.0
      %383 = vmatprep.subr.mxu0 0.0
      %384 = vmatpush1.xpose.msra.mxu0 0.0
      %385 = vmatprep.subr.mxu0 0.0
      %386 = vmatpush1.xpose.msra.mxu0 0.0
      %387 = vmatprep.subr.mxu0 0.0
      %388 = vmatpush1.xpose.msra.mxu0 0.0
      %389 = vmatprep.subr.mxu0 0.0
      %390 = vmatpush1.xpose.msra.mxu0 0.0
      %391 = vmatprep.subr.mxu0 0.0
      %392 = vmatpush1.xpose.msra.mxu0 0.0
      %393 = vmatprep.subr.mxu0 0.0
      %394 = vmatpush1.xpose.msra.mxu0 0.0
      %395 = vmatprep.subr.mxu0 0.0
      %396 = vmatpush1.xpose.msra.mxu0 0.0
      %397 = vmatprep.subr.mxu0 0.0
      %398 = vmatpush1.xpose.msra.mxu0 0.0
      %399 = vmatprep.subr.mxu0 0.0
      %400 = vmatpush1.xpose.msra.mxu0 0.0
      %401 = vmatprep.subr.mxu0 0.0
      %402 = vmatpush1.xpose.msra.mxu0 0.0
      %403 = vmatprep.subr.mxu0 0.0
      %404 = vmatpush1.xpose.msra.mxu0 0.0
      %405 = vmatprep.subr.mxu0 0.0
      %406 = vmatpush1.xpose.msra.mxu0 0.0
      %407 = vmatprep.subr.mxu0 0.0
      %408 = vmatpush1.xpose.msra.mxu0 0.0
      %409 = vmatprep.subr.mxu0 0.0
      %410 = vmatpush1.xpose.msra.mxu0 0.0
      %411 = vmatprep.subr.mxu0 0.0
      %412 = vmatpush1.xpose.msra.mxu0 0.0
      %413 = vmatprep.mubr.f32.mxu0 0.0
      %414 = vmatmul.mubr.f32.gmra.mrb[0].mxu0 %v344
      %v415 = vpop.f32.mrb[0].mxu0
      %v416 = vadd.f32 0.0, %v415
      %v417 = vpop.f32.mrb[0].mxu0
      %418 = vdwg.mxu0
      %v419 = vsel %vm338, %v416, -1e+30
      %v420 = vld [vmem:[#allocation2] sm:$0xff]
      %vm421 = vcmask 64512
      %v422 = vsel %vm421, %v419, -inf
      %423 = vmax.xlane.f32.xlu0 %v422
      %v424 = vpop.xlane.xlu0 %423
      %v425 = vmax.f32 %v420, %v424
      %v426 = vsub.f32 %v420, %v425
      %v427 = vmul.f32 %v426, 1.442695
      %v428 = vpow.pop %v427
      %430 = vset.pattern.permute.xlu0 0
      %431 = vperm.xlu0 %430, %v425
      %v432 = vpop.permute.xlu0 %431
      %v434 = vsub.f32 %v419, %v432
      %v435 = vmul.f32 %v434, 1.442695
      %v436 = vpow.pop %v435
      %v437 = vld [vmem:[#allocation3] sm:$0xff]
      %v438 = vmul.f32 %v428, %v437
      %v439 = vsel %vm421, %v436, 0.0
      %440 = vadd.xlane.f32.xlu0 %v439
      %v441 = vpop.xlane.xlu0 %440
      %v442 = vadd.f32 %v438, %v441
      %vm443 = vcmask 7168
      %444 = vst.msk [vmem:[#allocation3] sm:$0xff] %vm443, %v442
      %v445 = vld [vmem:[#allocation4] sm:$0xff]
      %447 = vset.pattern.permute.xlu0 0
      %448 = vperm.xlu0 %447, %v428
      %v449 = vpop.permute.xlu0 %448
      %v451 = vmul.f32 %v449, %v445
      %v452 = vld [vmem:[%s303] sm:$0xff]
      %v454 = vsel %vm421, %v436, 0
      %456 = vmatprep.subr.mxu0 0.0
      %457 = vmatpush1.msra.mxu0 %v452
      %458 = vmatprep.subr.mxu0 0.0
      %459 = vmatpush1.msra.mxu0 0.0
      %460 = vmatprep.subr.mxu0 0.0
      %461 = vmatpush1.msra.mxu0 0.0
      %462 = vmatprep.subr.mxu0 0.0
      %463 = vmatpush1.msra.mxu0 0.0
      %464 = vmatprep.subr.mxu0 0.0
      %465 = vmatpush1.msra.mxu0 0.0
      %466 = vmatprep.subr.mxu0 0.0
      %467 = vmatpush1.msra.mxu0 0.0
      %468 = vmatprep.subr.mxu0 0.0
      %469 = vmatpush1.msra.mxu0 0.0
      %470 = vmatprep.subr.mxu0 0.0
      %471 = vmatpush1.msra.mxu0 0.0
      %472 = vmatprep.subr.mxu0 0.0
      %473 = vmatpush1.msra.mxu0 0.0
      %474 = vmatprep.subr.mxu0 0.0
      %475 = vmatpush1.msra.mxu0 0.0
      %476 = vmatprep.subr.mxu0 0.0
      %477 = vmatpush1.msra.mxu0 0.0
      %478 = vmatprep.subr.mxu0 0.0
      %479 = vmatpush1.msra.mxu0 0.0
      %480 = vmatprep.subr.mxu0 0.0
      %481 = vmatpush1.msra.mxu0 0.0
      %482 = vmatprep.subr.mxu0 0.0
      %483 = vmatpush1.msra.mxu0 0.0
      %484 = vmatprep.subr.mxu0 0.0
      %485 = vmatpush1.msra.mxu0 0.0
      %486 = vmatprep.subr.mxu0 0.0
      %487 = vmatpush1.msra.mxu0 0.0
      %488 = vmatprep.subr.mxu0 0.0
      %489 = vmatpush1.msra.mxu0 0.0
      %490 = vmatprep.subr.mxu0 0.0
      %491 = vmatpush1.msra.mxu0 0.0
      %492 = vmatprep.subr.mxu0 0.0
      %493 = vmatpush1.msra.mxu0 0.0
      %494 = vmatprep.subr.mxu0 0.0
      %495 = vmatpush1.msra.mxu0 0.0
      %496 = vmatprep.subr.mxu0 0.0
      %497 = vmatpush1.msra.mxu0 0.0
      %498 = vmatprep.subr.mxu0 0.0
      %499 = vmatpush1.msra.mxu0 0.0
      %500 = vmatprep.subr.mxu0 0.0
      %501 = vmatpush1.msra.mxu0 0.0
      %502 = vmatprep.subr.mxu0 0.0
      %503 = vmatpush1.msra.mxu0 0.0
      %504 = vmatprep.subr.mxu0 0.0
      %505 = vmatpush1.msra.mxu0 0.0
      %506 = vmatprep.subr.mxu0 0.0
      %507 = vmatpush1.msra.mxu0 0.0
      %508 = vmatprep.subr.mxu0 0.0
      %509 = vmatpush1.msra.mxu0 0.0
      %510 = vmatprep.subr.mxu0 0.0
      %511 = vmatpush1.msra.mxu0 0.0
      %512 = vmatprep.subr.mxu0 0.0
      %513 = vmatpush1.msra.mxu0 0.0
      %514 = vmatprep.subr.mxu0 0.0
      %515 = vmatpush1.msra.mxu0 0.0
      %516 = vmatprep.subr.mxu0 0.0
      %517 = vmatpush1.msra.mxu0 0.0
      %518 = vmatprep.subr.mxu0 0.0
      %519 = vmatpush1.msra.mxu0 0.0
      %520 = vmatprep.mubr.f32.mxu0 0.0
      %521 = vmatmul.mubr.f32.gmra.mrb[0].mxu0 %v454
      %v522 = vpop.f32.mrb[0].mxu0
      %v523 = vadd.f32 0.0, %v522
      %v524 = vpop.f32.mrb[0].mxu0
      %525 = vdwg.mxu0
      %v526 = vadd.f32 %v451, %v523
      %527 = vst.msk [vmem:[#allocation4] sm:$0xff] %vm342, %v526
      %528 = vst.msk [vmem:[#allocation2] sm:$0xff] %vm443, %v425
      %v529 = vld [vmem:[%s287] sm:$0xff]
      %v530 = vmul.f32 %v529, 0.17677669
      %v531 = vld [vmem:[%s295] sm:$0xff]
      %533 = vrot.lane.b32.xlu0 %v530, 96
      %v534 = vpop.permute.xlu0 %533
      %536 = vrot.lane.b32.xlu0 %v531, 96
      %v537 = vpop.permute.xlu0 %536
      %v538 = vsel %vm342, %v534, 0
      %v540 = vsel %vm342, %v537, 0
      %542 = vmatprep.subr.mxu0 0.0
      %543 = vmatpush1.xpose.msra.mxu0 %v540
      %544 = vmatprep.subr.mxu0 0.0
      %545 = vmatpush1.xpose.msra.mxu0 0.0
      %546 = vmatprep.subr.mxu0 0.0
      %547 = vmatpush1.xpose.msra.mxu0 0.0
      %548 = vmatprep.subr.mxu0 0.0
      %549 = vmatpush1.xpose.msra.mxu0 0.0
      %550 = vmatprep.subr.mxu0 0.0
      %551 = vmatpush1.xpose.msra.mxu0 0.0
      %552 = vmatprep.subr.mxu0 0.0
      %553 = vmatpush1.xpose.msra.mxu0 0.0
      %554 = vmatprep.subr.mxu0 0.0
      %555 = vmatpush1.xpose.msra.mxu0 0.0
      %556 = vmatprep.subr.mxu0 0.0
      %557 = vmatpush1.xpose.msra.mxu0 0.0
      %558 = vmatprep.subr.mxu0 0.0
      %559 = vmatpush1.xpose.msra.mxu0 0.0
      %560 = vmatprep.subr.mxu0 0.0
      %561 = vmatpush1.xpose.msra.mxu0 0.0
      %562 = vmatprep.subr.mxu0 0.0
      %563 = vmatpush1.xpose.msra.mxu0 0.0
      %564 = vmatprep.subr.mxu0 0.0
      %565 = vmatpush1.xpose.msra.mxu0 0.0
      %566 = vmatprep.subr.mxu0 0.0
      %567 = vmatpush1.xpose.msra.mxu0 0.0
      %568 = vmatprep.subr.mxu0 0.0
      %569 = vmatpush1.xpose.msra.mxu0 0.0
      %570 = vmatprep.subr.mxu0 0.0
      %571 = vmatpush1.xpose.msra.mxu0 0.0
      %572 = vmatprep.subr.mxu0 0.0
      %573 = vmatpush1.xpose.msra.mxu0 0.0
      %574 = vmatprep.subr.mxu0 0.0
      %575 = vmatpush1.xpose.msra.mxu0 0.0
      %576 = vmatprep.subr.mxu0 0.0
      %577 = vmatpush1.xpose.msra.mxu0 0.0
      %578 = vmatprep.subr.mxu0 0.0
      %579 = vmatpush1.xpose.msra.mxu0 0.0
      %580 = vmatprep.subr.mxu0 0.0
      %581 = vmatpush1.xpose.msra.mxu0 0.0
      %582 = vmatprep.subr.mxu0 0.0
      %583 = vmatpush1.xpose.msra.mxu0 0.0
      %584 = vmatprep.subr.mxu0 0.0
      %585 = vmatpush1.xpose.msra.mxu0 0.0
      %586 = vmatprep.subr.mxu0 0.0
      %587 = vmatpush1.xpose.msra.mxu0 0.0
      %588 = vmatprep.subr.mxu0 0.0
      %589 = vmatpush1.xpose.msra.mxu0 0.0
      %590 = vmatprep.subr.mxu0 0.0
      %591 = vmatpush1.xpose.msra.mxu0 0.0
      %592 = vmatprep.subr.mxu0 0.0
      %593 = vmatpush1.xpose.msra.mxu0 0.0
      %594 = vmatprep.subr.mxu0 0.0
      %595 = vmatpush1.xpose.msra.mxu0 0.0
      %596 = vmatprep.subr.mxu0 0.0
      %597 = vmatpush1.xpose.msra.mxu0 0.0
      %598 = vmatprep.subr.mxu0 0.0
      %599 = vmatpush1.xpose.msra.mxu0 0.0
      %600 = vmatprep.subr.mxu0 0.0
      %601 = vmatpush1.xpose.msra.mxu0 0.0
      %602 = vmatprep.subr.mxu0 0.0
      %603 = vmatpush1.xpose.msra.mxu0 0.0
      %604 = vmatprep.subr.mxu0 0.0
      %605 = vmatpush1.xpose.msra.mxu0 0.0
      %606 = vmatprep.mubr.f32.mxu0 0.0
      %607 = vmatmul.mubr.f32.gmra.mrb[0].mxu0 %v538
      %v608 = vpop.f32.mrb[0].mxu0
      %v609 = vadd.f32 0.0, %v608
      %v610 = vpop.f32.mrb[0].mxu0
      %611 = vdwg.mxu0
      %v612 = vsel %vm338, %v609, -1e+30
      %s613 = scalar_lea.vmem [#allocation2], 8
      %v614 = vld [vmem:[%s613] sm:$0xff]
      %v615 = vsel %vm421, %v612, -inf
      %616 = vmax.xlane.f32.xlu0 %v615
      %v617 = vpop.xlane.xlu0 %616
      %v618 = vmax.f32 %v614, %v617
      %v619 = vsub.f32 %v614, %v618
      %v620 = vmul.f32 %v619, 1.442695
      %v621 = vpow.pop %v620
      %623 = vset.pattern.permute.xlu0 0
      %624 = vperm.xlu0 %623, %v618
      %v625 = vpop.permute.xlu0 %624
      %v627 = vsub.f32 %v612, %v625
      %v628 = vmul.f32 %v627, 1.442695
      %v629 = vpow.pop %v628
      %s630 = scalar_lea.vmem [#allocation3], 8
      %v631 = vld [vmem:[%s630] sm:$0xff]
      %v632 = vmul.f32 %v621, %v631
      %v633 = vsel %vm421, %v629, 0.0
      %634 = vadd.xlane.f32.xlu0 %v633
      %v635 = vpop.xlane.xlu0 %634
      %v636 = vadd.f32 %v632, %v635
      %637 = vst.msk [vmem:[%s630] sm:$0xff] %vm443, %v636
      %s638 = scalar_lea.vmem [#allocation4], 8
      %v639 = vld [vmem:[%s638] sm:$0xff]
      %641 = vset.pattern.permute.xlu0 0
      %642 = vperm.xlu0 %641, %v621
      %v643 = vpop.permute.xlu0 %642
      %v645 = vmul.f32 %v643, %v639
      %v646 = vld [vmem:[%s303] sm:$0xff]
      %648 = vrot.lane.b32.xlu0 %v646, 96
      %v649 = vpop.permute.xlu0 %648
      %v652 = vsel %vm421, %v629, 0
      %654 = vmatprep.subr.mxu0 0.0
      %655 = vmatpush1.msra.mxu0 %v649
      %656 = vmatprep.subr.mxu0 0.0
      %657 = vmatpush1.msra.mxu0 0.0
      %658 = vmatprep.subr.mxu0 0.0
      %659 = vmatpush1.msra.mxu0 0.0
      %660 = vmatprep.subr.mxu0 0.0
      %661 = vmatpush1.msra.mxu0 0.0
      %662 = vmatprep.subr.mxu0 0.0
      %663 = vmatpush1.msra.mxu0 0.0
      %664 = vmatprep.subr.mxu0 0.0
      %665 = vmatpush1.msra.mxu0 0.0
      %666 = vmatprep.subr.mxu0 0.0
      %667 = vmatpush1.msra.mxu0 0.0
      %668 = vmatprep.subr.mxu0 0.0
      %669 = vmatpush1.msra.mxu0 0.0
      %670 = vmatprep.subr.mxu0 0.0
      %671 = vmatpush1.msra.mxu0 0.0
      %672 = vmatprep.subr.mxu0 0.0
      %673 = vmatpush1.msra.mxu0 0.0
      %674 = vmatprep.subr.mxu0 0.0
      %675 = vmatpush1.msra.mxu0 0.0
      %676 = vmatprep.subr.mxu0 0.0
      %677 = vmatpush1.msra.mxu0 0.0
      %678 = vmatprep.subr.mxu0 0.0
      %679 = vmatpush1.msra.mxu0 0.0
      %680 = vmatprep.subr.mxu0 0.0
      %681 = vmatpush1.msra.mxu0 0.0
      %682 = vmatprep.subr.mxu0 0.0
      %683 = vmatpush1.msra.mxu0 0.0
      %684 = vmatprep.subr.mxu0 0.0
      %685 = vmatpush1.msra.mxu0 0.0
      %686 = vmatprep.subr.mxu0 0.0
      %687 = vmatpush1.msra.mxu0 0.0
      %688 = vmatprep.subr.mxu0 0.0
      %689 = vmatpush1.msra.mxu0 0.0
      %690 = vmatprep.subr.mxu0 0.0
      %691 = vmatpush1.msra.mxu0 0.0
      %692 = vmatprep.subr.mxu0 0.0
      %693 = vmatpush1.msra.mxu0 0.0
      %694 = vmatprep.subr.mxu0 0.0
      %695 = vmatpush1.msra.mxu0 0.0
      %696 = vmatprep.subr.mxu0 0.0
      %697 = vmatpush1.msra.mxu0 0.0
      %698 = vmatprep.subr.mxu0 0.0
      %699 = vmatpush1.msra.mxu0 0.0
      %700 = vmatprep.subr.mxu0 0.0
      %701 = vmatpush1.msra.mxu0 0.0
      %702 = vmatprep.subr.mxu0 0.0
      %703 = vmatpush1.msra.mxu0 0.0
      %704 = vmatprep.subr.mxu0 0.0
      %705 = vmatpush1.msra.mxu0 0.0
      %706 = vmatprep.subr.mxu0 0.0
      %707 = vmatpush1.msra.mxu0 0.0
      %708 = vmatprep.subr.mxu0 0.0
      %709 = vmatpush1.msra.mxu0 0.0
      %710 = vmatprep.subr.mxu0 0.0
      %711 = vmatpush1.msra.mxu0 0.0
      %712 = vmatprep.subr.mxu0 0.0
      %713 = vmatpush1.msra.mxu0 0.0
      %714 = vmatprep.subr.mxu0 0.0
      %715 = vmatpush1.msra.mxu0 0.0
      %716 = vmatprep.subr.mxu0 0.0
      %717 = vmatpush1.msra.mxu0 0.0
      %718 = vmatprep.mubr.f32.mxu0 0.0
      %719 = vmatmul.mubr.f32.gmra.mrb[0].mxu0 %v652
      %v720 = vpop.f32.mrb[0].mxu0
      %v721 = vadd.f32 0.0, %v720
      %v722 = vpop.f32.mrb[0].mxu0
      %723 = vdwg.mxu0
      %v724 = vadd.f32 %v645, %v721
      %725 = vst.msk [vmem:[%s638] sm:$0xff] %vm342, %v724
      %726 = vst.msk [vmem:[%s613] sm:$0xff] %vm443, %v618
      %v727 = vld [vmem:[%s287] sm:$0xff]
      %v728 = vmul.f32 %v727, 0.17677669
      %v729 = vld [vmem:[%s295] sm:$0xff]
      %731 = vrot.lane.b32.xlu0 %v728, 64
      %v732 = vpop.permute.xlu0 %731
      %734 = vrot.lane.b32.xlu0 %v729, 64
      %v735 = vpop.permute.xlu0 %734
      %v736 = vsel %vm342, %v732, 0
      %v738 = vsel %vm342, %v735, 0
      %740 = vmatprep.subr.mxu0 0.0
      %741 = vmatpush1.xpose.msra.mxu0 %v738
      %742 = vmatprep.subr.mxu0 0.0
      %743 = vmatpush1.xpose.msra.mxu0 0.0
      %744 = vmatprep.subr.mxu0 0.0
      %745 = vmatpush1.xpose.msra.mxu0 0.0
      %746 = vmatprep.subr.mxu0 0.0
      %747 = vmatpush1.xpose.msra.mxu0 0.0
      %748 = vmatprep.subr.mxu0 0.0
      %749 = vmatpush1.xpose.msra.mxu0 0.0
      %750 = vmatprep.subr.mxu0 0.0
      %751 = vmatpush1.xpose.msra.mxu0 0.0
      %752 = vmatprep.subr.mxu0 0.0
      %753 = vmatpush1.xpose.msra.mxu0 0.0
      %754 = vmatprep.subr.mxu0 0.0
      %755 = vmatpush1.xpose.msra.mxu0 0.0
      %756 = vmatprep.subr.mxu0 0.0
      %757 = vmatpush1.xpose.msra.mxu0 0.0
      %758 = vmatprep.subr.mxu0 0.0
      %759 = vmatpush1.xpose.msra.mxu0 0.0
      %760 = vmatprep.subr.mxu0 0.0
      %761 = vmatpush1.xpose.msra.mxu0 0.0
      %762 = vmatprep.subr.mxu0 0.0
      %763 = vmatpush1.xpose.msra.mxu0 0.0
      %764 = vmatprep.subr.mxu0 0.0
      %765 = vmatpush1.xpose.msra.mxu0 0.0
      %766 = vmatprep.subr.mxu0 0.0
      %767 = vmatpush1.xpose.msra.mxu0 0.0
      %768 = vmatprep.subr.mxu0 0.0
      %769 = vmatpush1.xpose.msra.mxu0 0.0
      %770 = vmatprep.subr.mxu0 0.0
      %771 = vmatpush1.xpose.msra.mxu0 0.0
      %772 = vmatprep.subr.mxu0 0.0
      %773 = vmatpush1.xpose.msra.mxu0 0.0
      %774 = vmatprep.subr.mxu0 0.0
      %775 = vmatpush1.xpose.msra.mxu0 0.0
      %776 = vmatprep.subr.mxu0 0.0
      %777 = vmatpush1.xpose.msra.mxu0 0.0
      %778 = vmatprep.subr.mxu0 0.0
      %779 = vmatpush1.xpose.msra.mxu0 0.0
      %780 = vmatprep.subr.mxu0 0.0
      %781 = vmatpush1.xpose.msra.mxu0 0.0
      %782 = vmatprep.subr.mxu0 0.0
      %783 = vmatpush1.xpose.msra.mxu0 0.0
      %784 = vmatprep.subr.mxu0 0.0
      %785 = vmatpush1.xpose.msra.mxu0 0.0
      %786 = vmatprep.subr.mxu0 0.0
      %787 = vmatpush1.xpose.msra.mxu0 0.0
      %788 = vmatprep.subr.mxu0 0.0
      %789 = vmatpush1.xpose.msra.mxu0 0.0
      %790 = vmatprep.subr.mxu0 0.0
      %791 = vmatpush1.xpose.msra.mxu0 0.0
      %792 = vmatprep.subr.mxu0 0.0
      %793 = vmatpush1.xpose.msra.mxu0 0.0
      %794 = vmatprep.subr.mxu0 0.0
      %795 = vmatpush1.xpose.msra.mxu0 0.0
      %796 = vmatprep.subr.mxu0 0.0
      %797 = vmatpush1.xpose.msra.mxu0 0.0
      %798 = vmatprep.subr.mxu0 0.0
      %799 = vmatpush1.xpose.msra.mxu0 0.0
      %800 = vmatprep.subr.mxu0 0.0
      %801 = vmatpush1.xpose.msra.mxu0 0.0
      %802 = vmatprep.subr.mxu0 0.0
      %803 = vmatpush1.xpose.msra.mxu0 0.0
      %804 = vmatprep.mubr.f32.mxu0 0.0
      %805 = vmatmul.mubr.f32.gmra.mrb[0].mxu0 %v736
      %v806 = vpop.f32.mrb[0].mxu0
      %v807 = vadd.f32 0.0, %v806
      %v808 = vpop.f32.mrb[0].mxu0
      %809 = vdwg.mxu0
      %v810 = vsel %vm338, %v807, -1e+30
      %s811 = scalar_lea.vmem [#allocation2], 16
      %v812 = vld [vmem:[%s811] sm:$0xff]
      %v813 = vsel %vm421, %v810, -inf
      %814 = vmax.xlane.f32.xlu0 %v813
      %v815 = vpop.xlane.xlu0 %814
      %v816 = vmax.f32 %v812, %v815
      %v817 = vsub.f32 %v812, %v816
      %v818 = vmul.f32 %v817, 1.442695
      %v819 = vpow.pop %v818
      %821 = vset.pattern.permute.xlu0 0
      %822 = vperm.xlu0 %821, %v816
      %v823 = vpop.permute.xlu0 %822
      %v825 = vsub.f32 %v810, %v823
      %v826 = vmul.f32 %v825, 1.442695
      %v827 = vpow.pop %v826
      %s828 = scalar_lea.vmem [#allocation3], 16
      %v829 = vld [vmem:[%s828] sm:$0xff]
      %v830 = vmul.f32 %v819, %v829
      %v831 = vsel %vm421, %v827, 0.0
      %832 = vadd.xlane.f32.xlu0 %v831
      %v833 = vpop.xlane.xlu0 %832
      %v834 = vadd.f32 %v830, %v833
      %835 = vst.msk [vmem:[%s828] sm:$0xff] %vm443, %v834
      %s836 = scalar_lea.vmem [#allocation4], 16
      %v837 = vld [vmem:[%s836] sm:$0xff]
      %839 = vset.pattern.permute.xlu0 0
      %840 = vperm.xlu0 %839, %v819
      %v841 = vpop.permute.xlu0 %840
      %v843 = vmul.f32 %v841, %v837
      %v844 = vld [vmem:[%s303] sm:$0xff]
      %846 = vrot.lane.b32.xlu0 %v844, 64
      %v847 = vpop.permute.xlu0 %846
      %v850 = vsel %vm421, %v827, 0
      %852 = vmatprep.subr.mxu0 0.0
      %853 = vmatpush1.msra.mxu0 %v847
      %854 = vmatprep.subr.mxu0 0.0
      %855 = vmatpush1.msra.mxu0 0.0
      %856 = vmatprep.subr.mxu0 0.0
      %857 = vmatpush1.msra.mxu0 0.0
      %858 = vmatprep.subr.mxu0 0.0
      %859 = vmatpush1.msra.mxu0 0.0
      %860 = vmatprep.subr.mxu0 0.0
      %861 = vmatpush1.msra.mxu0 0.0
      %862 = vmatprep.subr.mxu0 0.0
      %863 = vmatpush1.msra.mxu0 0.0
      %864 = vmatprep.subr.mxu0 0.0
      %865 = vmatpush1.msra.mxu0 0.0
      %866 = vmatprep.subr.mxu0 0.0
      %867 = vmatpush1.msra.mxu0 0.0
      %868 = vmatprep.subr.mxu0 0.0
      %869 = vmatpush1.msra.mxu0 0.0
      %870 = vmatprep.subr.mxu0 0.0
      %871 = vmatpush1.msra.mxu0 0.0
      %872 = vmatprep.subr.mxu0 0.0
      %873 = vmatpush1.msra.mxu0 0.0
      %874 = vmatprep.subr.mxu0 0.0
      %875 = vmatpush1.msra.mxu0 0.0
      %876 = vmatprep.subr.mxu0 0.0
      %877 = vmatpush1.msra.mxu0 0.0
      %878 = vmatprep.subr.mxu0 0.0
      %879 = vmatpush1.msra.mxu0 0.0
      %880 = vmatprep.subr.mxu0 0.0
      %881 = vmatpush1.msra.mxu0 0.0
      %882 = vmatprep.subr.mxu0 0.0
      %883 = vmatpush1.msra.mxu0 0.0
      %884 = vmatprep.subr.mxu0 0.0
      %885 = vmatpush1.msra.mxu0 0.0
      %886 = vmatprep.subr.mxu0 0.0
      %887 = vmatpush1.msra.mxu0 0.0
      %888 = vmatprep.subr.mxu0 0.0
      %889 = vmatpush1.msra.mxu0 0.0
      %890 = vmatprep.subr.mxu0 0.0
      %891 = vmatpush1.msra.mxu0 0.0
      %892 = vmatprep.subr.mxu0 0.0
      %893 = vmatpush1.msra.mxu0 0.0
      %894 = vmatprep.subr.mxu0 0.0
      %895 = vmatpush1.msra.mxu0 0.0
      %896 = vmatprep.subr.mxu0 0.0
      %897 = vmatpush1.msra.mxu0 0.0
      %898 = vmatprep.subr.mxu0 0.0
      %899 = vmatpush1.msra.mxu0 0.0
      %900 = vmatprep.subr.mxu0 0.0
      %901 = vmatpush1.msra.mxu0 0.0
      %902 = vmatprep.subr.mxu0 0.0
      %903 = vmatpush1.msra.mxu0 0.0
      %904 = vmatprep.subr.mxu0 0.0
      %905 = vmatpush1.msra.mxu0 0.0
      %906 = vmatprep.subr.mxu0 0.0
      %907 = vmatpush1.msra.mxu0 0.0
      %908 = vmatprep.subr.mxu0 0.0
      %909 = vmatpush1.msra.mxu0 0.0
      %910 = vmatprep.subr.mxu0 0.0
      %911 = vmatpush1.msra.mxu0 0.0
      %912 = vmatprep.subr.mxu0 0.0
      %913 = vmatpush1.msra.mxu0 0.0
      %914 = vmatprep.subr.mxu0 0.0
      %915 = vmatpush1.msra.mxu0 0.0
      %916 = vmatprep.mubr.f32.mxu0 0.0
      %917 = vmatmul.mubr.f32.gmra.mrb[0].mxu0 %v850
      %v918 = vpop.f32.mrb[0].mxu0
      %v919 = vadd.f32 0.0, %v918
      %v920 = vpop.f32.mrb[0].mxu0
      %921 = vdwg.mxu0
      %v922 = vadd.f32 %v843, %v919
      %923 = vst.msk [vmem:[%s836] sm:$0xff] %vm342, %v922
      %924 = vst.msk [vmem:[%s811] sm:$0xff] %vm443, %v816
      %v925 = vld [vmem:[%s287] sm:$0xff]
      %v926 = vmul.f32 %v925, 0.17677669
      %v927 = vld [vmem:[%s295] sm:$0xff]
      %929 = vrot.lane.b32.xlu0 %v926, 32
      %v930 = vpop.permute.xlu0 %929
      %932 = vrot.lane.b32.xlu0 %v927, 32
      %v933 = vpop.permute.xlu0 %932
      %v934 = vsel %vm342, %v930, 0
      %v936 = vsel %vm342, %v933, 0
      %938 = vmatprep.subr.mxu0 0.0
      %939 = vmatpush1.xpose.msra.mxu0 %v936
      %940 = vmatprep.subr.mxu0 0.0
      %941 = vmatpush1.xpose.msra.mxu0 0.0
      %942 = vmatprep.subr.mxu0 0.0
      %943 = vmatpush1.xpose.msra.mxu0 0.0
      %944 = vmatprep.subr.mxu0 0.0
      %945 = vmatpush1.xpose.msra.mxu0 0.0
      %946 = vmatprep.subr.mxu0 0.0
      %947 = vmatpush1.xpose.msra.mxu0 0.0
      %948 = vmatprep.subr.mxu0 0.0
      %949 = vmatpush1.xpose.msra.mxu0 0.0
      %950 = vmatprep.subr.mxu0 0.0
      %951 = vmatpush1.xpose.msra.mxu0 0.0
      %952 = vmatprep.subr.mxu0 0.0
      %953 = vmatpush1.xpose.msra.mxu0 0.0
      %954 = vmatprep.subr.mxu0 0.0
      %955 = vmatpush1.xpose.msra.mxu0 0.0
      %956 = vmatprep.subr.mxu0 0.0
      %957 = vmatpush1.xpose.msra.mxu0 0.0
      %958 = vmatprep.subr.mxu0 0.0
      %959 = vmatpush1.xpose.msra.mxu0 0.0
      %960 = vmatprep.subr.mxu0 0.0
      %961 = vmatpush1.xpose.msra.mxu0 0.0
      %962 = vmatprep.subr.mxu0 0.0
      %963 = vmatpush1.xpose.msra.mxu0 0.0
      %964 = vmatprep.subr.mxu0 0.0
      %965 = vmatpush1.xpose.msra.mxu0 0.0
      %966 = vmatprep.subr.mxu0 0.0
      %967 = vmatpush1.xpose.msra.mxu0 0.0
      %968 = vmatprep.subr.mxu0 0.0
      %969 = vmatpush1.xpose.msra.mxu0 0.0
      %970 = vmatprep.subr.mxu0 0.0
      %971 = vmatpush1.xpose.msra.mxu0 0.0
      %972 = vmatprep.subr.mxu0 0.0
      %973 = vmatpush1.xpose.msra.mxu0 0.0
      %974 = vmatprep.subr.mxu0 0.0
      %975 = vmatpush1.xpose.msra.mxu0 0.0
      %976 = vmatprep.subr.mxu0 0.0
      %977 = vmatpush1.xpose.msra.mxu0 0.0
      %978 = vmatprep.subr.mxu0 0.0
      %979 = vmatpush1.xpose.msra.mxu0 0.0
      %980 = vmatprep.subr.mxu0 0.0
      %981 = vmatpush1.xpose.msra.mxu0 0.0
      %982 = vmatprep.subr.mxu0 0.0
      %983 = vmatpush1.xpose.msra.mxu0 0.0
      %984 = vmatprep.subr.mxu0 0.0
      %985 = vmatpush1.xpose.msra.mxu0 0.0
      %986 = vmatprep.subr.mxu0 0.0
      %987 = vmatpush1.xpose.msra.mxu0 0.0
      %988 = vmatprep.subr.mxu0 0.0
      %989 = vmatpush1.xpose.msra.mxu0 0.0
      %990 = vmatprep.subr.mxu0 0.0
      %991 = vmatpush1.xpose.msra.mxu0 0.0
      %992 = vmatprep.subr.mxu0 0.0
      %993 = vmatpush1.xpose.msra.mxu0 0.0
      %994 = vmatprep.subr.mxu0 0.0
      %995 = vmatpush1.xpose.msra.mxu0 0.0
      %996 = vmatprep.subr.mxu0 0.0
      %997 = vmatpush1.xpose.msra.mxu0 0.0
      %998 = vmatprep.subr.mxu0 0.0
      %999 = vmatpush1.xpose.msra.mxu0 0.0
      %1000 = vmatprep.subr.mxu0 0.0
      %1001 = vmatpush1.xpose.msra.mxu0 0.0
      %1002 = vmatprep.mubr.f32.mxu0 0.0
      %1003 = vmatmul.mubr.f32.gmra.mrb[0].mxu0 %v934
      %v1004 = vpop.f32.mrb[0].mxu0
      %v1005 = vadd.f32 0.0, %v1004
      %v1006 = vpop.f32.mrb[0].mxu0
      %1007 = vdwg.mxu0
      %v1008 = vsel %vm338, %v1005, -1e+30
      %s1009 = scalar_lea.vmem [#allocation2], 24
      %v1010 = vld [vmem:[%s1009] sm:$0xff]
      %v1011 = vsel %vm421, %v1008, -inf
      %1012 = vmax.xlane.f32.xlu0 %v1011
      %v1013 = vpop.xlane.xlu0 %1012
      %v1014 = vmax.f32 %v1010, %v1013
      %v1015 = vsub.f32 %v1010, %v1014
      %v1016 = vmul.f32 %v1015, 1.442695
      %v1017 = vpow.pop %v1016
      %1019 = vset.pattern.permute.xlu0 0
      %1020 = vperm.xlu0 %1019, %v1014
      %v1021 = vpop.permute.xlu0 %1020
      %v1023 = vsub.f32 %v1008, %v1021
      %v1024 = vmul.f32 %v1023, 1.442695
      %v1025 = vpow.pop %v1024
      %s1026 = scalar_lea.vmem [#allocation3], 24
      %v1027 = vld [vmem:[%s1026] sm:$0xff]
      %v1028 = vmul.f32 %v1017, %v1027
      %v1029 = vsel %vm421, %v1025, 0.0
      %1030 = vadd.xlane.f32.xlu0 %v1029
      %v1031 = vpop.xlane.xlu0 %1030
      %v1032 = vadd.f32 %v1028, %v1031
      %1033 = vst.msk [vmem:[%s1026] sm:$0xff] %vm443, %v1032
      %s1034 = scalar_lea.vmem [#allocation4], 24
      %v1035 = vld [vmem:[%s1034] sm:$0xff]
      %1037 = vset.pattern.permute.xlu0 0
      %1038 = vperm.xlu0 %1037, %v1017
      %v1039 = vpop.permute.xlu0 %1038
      %v1041 = vmul.f32 %v1039, %v1035
      %v1042 = vld [vmem:[%s303] sm:$0xff]
      %1044 = vrot.lane.b32.xlu0 %v1042, 32
      %v1045 = vpop.permute.xlu0 %1044
      %v1048 = vsel %vm421, %v1025, 0
      %1050 = vmatprep.subr.mxu0 0.0
      %1051 = vmatpush1.msra.mxu0 %v1045
      %1052 = vmatprep.subr.mxu0 0.0
      %1053 = vmatpush1.msra.mxu0 0.0
      %1054 = vmatprep.subr.mxu0 0.0
      %1055 = vmatpush1.msra.mxu0 0.0
      %1056 = vmatprep.subr.mxu0 0.0
      %1057 = vmatpush1.msra.mxu0 0.0
      %1058 = vmatprep.subr.mxu0 0.0
      %1059 = vmatpush1.msra.mxu0 0.0
      %1060 = vmatprep.subr.mxu0 0.0
      %1061 = vmatpush1.msra.mxu0 0.0
      %1062 = vmatprep.subr.mxu0 0.0
      %1063 = vmatpush1.msra.mxu0 0.0
      %1064 = vmatprep.subr.mxu0 0.0
      %1065 = vmatpush1.msra.mxu0 0.0
      %1066 = vmatprep.subr.mxu0 0.0
      %1067 = vmatpush1.msra.mxu0 0.0
      %1068 = vmatprep.subr.mxu0 0.0
      %1069 = vmatpush1.msra.mxu0 0.0
      %1070 = vmatprep.subr.mxu0 0.0
      %1071 = vmatpush1.msra.mxu0 0.0
      %1072 = vmatprep.subr.mxu0 0.0
      %1073 = vmatpush1.msra.mxu0 0.0
      %1074 = vmatprep.subr.mxu0 0.0
      %1075 = vmatpush1.msra.mxu0 0.0
      %1076 = vmatprep.subr.mxu0 0.0
      %1077 = vmatpush1.msra.mxu0 0.0
      %1078 = vmatprep.subr.mxu0 0.0
      %1079 = vmatpush1.msra.mxu0 0.0
      %1080 = vmatprep.subr.mxu0 0.0
      %1081 = vmatpush1.msra.mxu0 0.0
      %1082 = vmatprep.subr.mxu0 0.0
      %1083 = vmatpush1.msra.mxu0 0.0
      %1084 = vmatprep.subr.mxu0 0.0
      %1085 = vmatpush1.msra.mxu0 0.0
      %1086 = vmatprep.subr.mxu0 0.0
      %1087 = vmatpush1.msra.mxu0 0.0
      %1088 = vmatprep.subr.mxu0 0.0
      %1089 = vmatpush1.msra.mxu0 0.0
      %1090 = vmatprep.subr.mxu0 0.0
      %1091 = vmatpush1.msra.mxu0 0.0
      %1092 = vmatprep.subr.mxu0 0.0
      %1093 = vmatpush1.msra.mxu0 0.0
      %1094 = vmatprep.subr.mxu0 0.0
      %1095 = vmatpush1.msra.mxu0 0.0
      %1096 = vmatprep.subr.mxu0 0.0
      %1097 = vmatpush1.msra.mxu0 0.0
      %1098 = vmatprep.subr.mxu0 0.0
      %1099 = vmatpush1.msra.mxu0 0.0
      %1100 = vmatprep.subr.mxu0 0.0
      %1101 = vmatpush1.msra.mxu0 0.0
      %1102 = vmatprep.subr.mxu0 0.0
      %1103 = vmatpush1.msra.mxu0 0.0
      %1104 = vmatprep.subr.mxu0 0.0
      %1105 = vmatpush1.msra.mxu0 0.0
      %1106 = vmatprep.subr.mxu0 0.0
      %1107 = vmatpush1.msra.mxu0 0.0
      %1108 = vmatprep.subr.mxu0 0.0
      %1109 = vmatpush1.msra.mxu0 0.0
      %1110 = vmatprep.subr.mxu0 0.0
      %1111 = vmatpush1.msra.mxu0 0.0
      %1112 = vmatprep.subr.mxu0 0.0
      %1113 = vmatpush1.msra.mxu0 0.0
      %1114 = vmatprep.mubr.f32.mxu0 0.0
      %1115 = vmatmul.mubr.f32.gmra.mrb[0].mxu0 %v1048
      %v1116 = vpop.f32.mrb[0].mxu0
      %v1117 = vadd.f32 0.0, %v1116
      %v1118 = vpop.f32.mrb[0].mxu0
      %1119 = vdwg.mxu0
      %v1120 = vadd.f32 %v1041, %v1117
      %1121 = vst.msk [vmem:[%s1034] sm:$0xff] %vm342, %v1120
      %1122 = vst.msk [vmem:[%s1009] sm:$0xff] %vm443, %v1014
      // Predicated region
      $region41: #{decoder_forward.22} parent=35 // pred_check
        %p1123 = pneg %p311
      $region42: #{decoder_forward.22} parent=35 // pred_check_branch
        %1125 = sbr.rel (%p1123) target = $region44
      $region43: #{decoder_forward.22} parent=35 // pred_region
        %v1126 = vld [vmem:[#allocation4] sm:$0xff]
        %v1127 = vld [vmem:[#allocation3] sm:$0xff]
        %v1128 = vrcp.pop %v1127
        %1130 = vset.pattern.permute.xlu0 0
        %1131 = vperm.xlu0 %1130, %v1128
        %v1132 = vpop.permute.xlu0 %1131
        %v1134 = vmul.f32 %v1126, %v1132
        %v1135 = vld [vmem:[%s638] sm:$0xff]
        %v1136 = vld [vmem:[%s630] sm:$0xff]
        %v1137 = vrcp.pop %v1136
        %1139 = vset.pattern.permute.xlu0 0
        %1140 = vperm.xlu0 %1139, %v1137
        %v1141 = vpop.permute.xlu0 %1140
        %v1143 = vmul.f32 %v1135, %v1141
        %v1144 = vld [vmem:[%s836] sm:$0xff]
        %v1145 = vld [vmem:[%s828] sm:$0xff]
        %v1146 = vrcp.pop %v1145
        %1148 = vset.pattern.permute.xlu0 0
        %1149 = vperm.xlu0 %1148, %v1146
        %v1150 = vpop.permute.xlu0 %1149
        %v1152 = vmul.f32 %v1144, %v1150
        %v1153 = vld [vmem:[%s1034] sm:$0xff]
        %v1154 = vld [vmem:[%s1026] sm:$0xff]
        %v1155 = vrcp.pop %v1154
        %1157 = vset.pattern.permute.xlu0 0
        %1158 = vperm.xlu0 %1157, %v1155
        %v1159 = vpop.permute.xlu0 %1158
        %v1161 = vmul.f32 %v1153, %v1159
        %1163 = vrot.lane.b32.xlu0 %v1143, 32
        %v1164 = vpop.permute.xlu0 %1163
        %1167 = vrot.lane.b32.xlu0 %v1152, 64
        %v1168 = vpop.permute.xlu0 %1167
        %1171 = vrot.lane.b32.xlu0 %v1161, 96
        %v1172 = vpop.permute.xlu0 %1171
        %v1174 = vsel %vm342, %v1134, %v1164
        %vm1175 = vcmask 523264
        %v1176 = vsel %vm1175, %v1174, %v1168
        %vm1177 = vcmask 785408
        %v1178 = vsel %vm1177, %v1176, %v1172
        %1179 = vst [vmem:[%s309] sm:$0xff] %v1178
      $region44: #{decoder_forward.22} parent=35 // pred_fallthru
        _
      %s1180 = sadd.s32 %s20, %s21
      %p1181 = scmp.lt.s32.totalorder %s1180, 1
      %s1182 = scalar_select %p1181, %s1180, 1
      %s1183 = smul.addr %s1182, 8
      %s1184 = scalar_lea.vmem %s4, %s1183
      // Predicated region
      $region45: #{decoder_forward.22} parent=35 // pred_check
        %p1185 = pneg %p166
      $region46: #{decoder_forward.22} parent=35 // pred_check_branch
        %1187 = sbr.rel (%p1185) target = $region48
      $region47: #{decoder_forward.22} parent=35 // pred_region
        %s1188 = sadd.s32 %s20, %s21
      $region48: #{decoder_forward.22} parent=35 // pred_fallthru
        _
    $region36: #{decoder_forward.22} parent=5 // pred_fallthru
      _
    %p1189 = scmp.le.s32.totalorder 2, %s10
    // Predicated region
    $region49: #{decoder_forward.22} parent=5 // pred_check
      %p1190 = pneg %p1189
    $region50: #{decoder_forward.22} parent=5 // pred_check_branch
      %1192 = sbr.rel (%p1190) target = $region52
    $region51: #{decoder_forward.22} parent=5 // pred_region
      %s1193 = ssub.s32 %s10, 2
      // Predicated region
      $region53: #{decoder_forward.22} parent=51 // pred_check
        %p1194 = pneg %p172
      $region54: #{decoder_forward.22} parent=51 // pred_check_branch
        %1196 = sbr.rel (%p1194) target = $region56
      $region55: #{decoder_forward.22} parent=51 // pred_region
        %s1197 = sadd.s32 %s23, %s24
        %p1198 = scmp.lt.s32.totalorder %s1197, 1
        %s1199 = scalar_select %p1198, %s1197, 1
        %s1200 = smul.addr %s1199, 8
        %s1201 = scalar_lea.vmem %s4, %s1200
      $region56: #{decoder_forward.22} parent=51 // pred_fallthru
        _
    $region52: #{decoder_forward.22} parent=5 // pred_fallthru
      _
  $region6: #{decoder_forward.22} parent=0 // loop_footer
    %s14 = sadd.s32 1, %s10
  $region7: #{decoder_forward.22} parent=0 // loop_footer_branch
    %9 = sbr.rel target = $region3
  $region8: #{decoder_forward.22} parent=0 // loop_exit
    _

// kernel: decoder_forward.28
$region0: #{decoder_forward.28}
  #allocation0 [shape = 'u32[]', space=smem, size = 0x4, offset = 0x4, fixed_abs, tag = 'smem constant byte address 0x4 - core index']
  #allocation1 [shape = 'u32[144,128]{1,0:T(1,128)}', space=vmem, size = 0x12000, scoped, tag = 'internal scratch']
  #allocation2 [shape = 'f32[16,256]{1,0:T(8,128)}', space=vmem, size = 0x4000, scoped, tag = 'scratch operand']
  %s0 = inlined_call_operand.vmem [shape: f32[16,128], index: 0, kind: input, shape index: {}]
  %s1 = inlined_call_operand.vmem [shape: f32[128,256], index: 1, kind: input, shape index: {}]
  %s2 = inlined_call_operand.vmem [shape: f32[1,256], index: 2, kind: input, shape index: {}]
  %s3 = inlined_call_operand.vmem [shape: f32[16,256], index: 3, kind: output, shape index: {}]
  %s4 = sld [smem:[#allocation0]]
  $region30: #{decoder_forward.28} parent=0
    _
  %s6 = ssub.s32 1, %s4
  %s7 = scalar_select 0, %s6, %s4
  // Predicated region
  $region2: #{decoder_forward.28} parent=0 // pred_check
    _
  $region3: #{decoder_forward.28} parent=0 // pred_check_branch
    %9 = sbr.rel (0) target = $region5
  $region4: #{decoder_forward.28} parent=0 // pred_region
    _
  $region5: #{decoder_forward.28} parent=0 // pred_fallthru
    _
  // Predicated region
  $region6: #{decoder_forward.28} parent=0 // pred_check
    _
  $region7: #{decoder_forward.28} parent=0 // pred_check_branch
    %11 = sbr.rel (0) target = $region9
  $region8: #{decoder_forward.28} parent=0 // pred_region
    _
  $region9: #{decoder_forward.28} parent=0 // pred_fallthru
    _
  // Predicated region
  $region10: #{decoder_forward.28} parent=0 // pred_check
    _
  $region11: #{decoder_forward.28} parent=0 // pred_check_branch
    %13 = sbr.rel (0) target = $region13
  $region12: #{decoder_forward.28} parent=0 // pred_region
    _
  $region13: #{decoder_forward.28} parent=0 // pred_fallthru
    _
  %p14 = scmp.eq.s32.totalorder 0, 0
  // Predicated region
  $region14: #{decoder_forward.28} parent=0 // pred_check
    %p15 = pneg %p14
  $region15: #{decoder_forward.28} parent=0 // pred_check_branch
    %17 = sbr.rel (%p15) target = $region17
  $region16: #{decoder_forward.28} parent=0 // pred_region
    %18 = vst [vmem:[#allocation2] sm:$0xff] 0.0
    %19 = vst [vmem:[#allocation2 + $0x8] sm:$0xff] 0.0
    %20 = vst [vmem:[#allocation2 + $0x10] sm:$0xff] 0.0
    %21 = vst [vmem:[#allocation2 + $0x18] sm:$0xff] 0.0
  $region17: #{decoder_forward.28} parent=0 // pred_fallthru
    _
  %v22 = vld [vmem:[#allocation2] sm:$0xff]
  %v23 = vld [vmem:[#allocation2 + $0x8] sm:$0xff]
  %v24 = vld [vmem:[#allocation2 + $0x10] sm:$0xff]
  %v25 = vld [vmem:[#allocation2 + $0x18] sm:$0xff]
  %v26 = vld [vmem:[%s0] sm:$0xff]
  %v27 = vld [vmem:[%s0 + $0x8] sm:$0xff]
  %v28 = vld [vmem:[%s1] sm:$0xff]
  %v29 = vld [vmem:[%s1 + $0x8] sm:$0xff]
  %v30 = vld [vmem:[%s1 + $0x10] sm:$0xff]
  %v31 = vld [vmem:[%s1 + $0x18] sm:$0xff]
  %v32 = vld [vmem:[%s1 + $0x20] sm:$0xff]
  %v33 = vld [vmem:[%s1 + $0x28] sm:$0xff]
  %v34 = vld [vmem:[%s1 + $0x30] sm:$0xff]
  %v35 = vld [vmem:[%s1 + $0x38] sm:$0xff]
  %v36 = vld [vmem:[%s1 + $0x40] sm:$0xff]
  %v37 = vld [vmem:[%s1 + $0x48] sm:$0xff]
  %v38 = vld [vmem:[%s1 + $0x50] sm:$0xff]
  %v39 = vld [vmem:[%s1 + $0x58] sm:$0xff]
  %v40 = vld [vmem:[%s1 + $0x60] sm:$0xff]
  %v41 = vld [vmem:[%s1 + $0x68] sm:$0xff]
  %v42 = vld [vmem:[%s1 + $0x70] sm:$0xff]
  %v43 = vld [vmem:[%s1 + $0x78] sm:$0xff]
  %v44 = vld [vmem:[%s1 + $0x80] sm:$0xff]
  %v45 = vld [vmem:[%s1 + $0x88] sm:$0xff]
  %v46 = vld [vmem:[%s1 + $0x90] sm:$0xff]
  %v47 = vld [vmem:[%s1 + $0x98] sm:$0xff]
  %v48 = vld [vmem:[%s1 + $0xa0] sm:$0xff]
  %v49 = vld [vmem:[%s1 + $0xa8] sm:$0xff]
  %v50 = vld [vmem:[%s1 + $0xb0] sm:$0xff]
  %v51 = vld [vmem:[%s1 + $0xb8] sm:$0xff]
  %v52 = vld [vmem:[%s1 + $0xc0] sm:$0xff]
  %v53 = vld [vmem:[%s1 + $0xc8] sm:$0xff]
  %v54 = vld [vmem:[%s1 + $0xd0] sm:$0xff]
  %v55 = vld [vmem:[%s1 + $0xd8] sm:$0xff]
  %v56 = vld [vmem:[%s1 + $0xe0] sm:$0xff]
  %v57 = vld [vmem:[%s1 + $0xe8] sm:$0xff]
  %v58 = vld [vmem:[%s1 + $0xf0] sm:$0xff]
  %v59 = vld [vmem:[%s1 + $0xf8] sm:$0xff]
  %60 = vmatprep.subr.mxu0 %v29
  %61 = vmatpush1.msra.mxu0 %v28
  %62 = vmatprep.subr.mxu0 %v31
  %63 = vmatpush1.msra.mxu0 %v30
  %64 = vmatprep.subr.mxu0 %v33
  %65 = vmatpush1.msra.mxu0 %v32
  %66 = vmatprep.subr.mxu0 %v35
  %67 = vmatpush1.msra.mxu0 %v34
  %68 = vmatprep.subr.mxu0 %v37
  %69 = vmatpush1.msra.mxu0 %v36
  %70 = vmatprep.subr.mxu0 %v39
  %71 = vmatpush1.msra.mxu0 %v38
  %72 = vmatprep.subr.mxu0 %v41
  %73 = vmatpush1.msra.mxu0 %v40
  %74 = vmatprep.subr.mxu0 %v43
  %75 = vmatpush1.msra.mxu0 %v42
  %76 = vmatprep.subr.mxu0 %v45
  %77 = vmatpush1.msra.mxu0 %v44
  %78 = vmatprep.subr.mxu0 %v47
  %79 = vmatpush1.msra.mxu0 %v46
  %80 = vmatprep.subr.mxu0 %v49
  %81 = vmatpush1.msra.mxu0 %v48
  %82 = vmatprep.subr.mxu0 %v51
  %83 = vmatpush1.msra.mxu0 %v50
  %84 = vmatprep.subr.mxu0 %v53
  %85 = vmatpush1.msra.mxu0 %v52
  %86 = vmatprep.subr.mxu0 %v55
  %87 = vmatpush1.msra.mxu0 %v54
  %88 = vmatprep.subr.mxu0 %v57
  %89 = vmatpush1.msra.mxu0 %v56
  %90 = vmatprep.subr.mxu0 %v59
  %91 = vmatpush1.msra.mxu0 %v58
  %92 = vmatprep.subr.mxu0 0.0
  %93 = vmatpush1.msra.mxu0 0.0
  %94 = vmatprep.subr.mxu0 0.0
  %95 = vmatpush1.msra.mxu0 0.0
  %96 = vmatprep.subr.mxu0 0.0
  %97 = vmatpush1.msra.mxu0 0.0
  %98 = vmatprep.subr.mxu0 0.0
  %99 = vmatpush1.msra.mxu0 0.0
  %100 = vmatprep.subr.mxu0 0.0
  %101 = vmatpush1.msra.mxu0 0.0
  %102 = vmatprep.subr.mxu0 0.0
  %103 = vmatpush1.msra.mxu0 0.0
  %104 = vmatprep.subr.mxu0 0.0
  %105 = vmatpush1.msra.mxu0 0.0
  %106 = vmatprep.subr.mxu0 0.0
  %107 = vmatpush1.msra.mxu0 0.0
  %108 = vmatprep.subr.mxu0 0.0
  %109 = vmatpush1.msra.mxu0 0.0
  %110 = vmatprep.subr.mxu0 0.0
  %111 = vmatpush1.msra.mxu0 0.0
  %112 = vmatprep.subr.mxu0 0.0
  %113 = vmatpush1.msra.mxu0 0.0
  %114 = vmatprep.subr.mxu0 0.0
  %115 = vmatpush1.msra.mxu0 0.0
  %116 = vmatprep.subr.mxu0 0.0
  %117 = vmatpush1.msra.mxu0 0.0
  %118 = vmatprep.subr.mxu0 0.0
  %119 = vmatpush1.msra.mxu0 0.0
  %120 = vmatprep.subr.mxu0 0.0
  %121 = vmatpush1.msra.mxu0 0.0
  %122 = vmatprep.subr.mxu0 0.0
  %123 = vmatpush1.msra.mxu0 0.0
  %124 = vmatprep.mubr.f32.mxu0 0.0
  %125 = vmatmul.mubr.f32.gmra.mrb[0].mxu0 %v26
  %v126 = vpop.f32.mrb[0].mxu0
  %v127 = vadd.f32 0.0, %v126
  %v128 = vpop.f32.mrb[0].mxu0
  %v129 = vadd.f32 0.0, %v128
  %130 = vmatprep.mubr.f32.mxu0 0.0
  %131 = vmatmul.mubr.f32.gmra.mrb[0].mxu0 %v27
  %v132 = vpop.f32.mrb[0].mxu0
  %v133 = vadd.f32 0.0, %v132
  %v134 = vpop.f32.mrb[0].mxu0
  %v135 = vadd.f32 0.0, %v134
  %136 = vdwg.mxu0
  %v137 = vadd.f32 %v22, %v127
  %v138 = vadd.f32 %v23, %v129
  %v139 = vadd.f32 %v24, %v133
  %v140 = vadd.f32 %v25, %v135
  %141 = vst [vmem:[#allocation2] sm:$0xff] %v137
  %142 = vst [vmem:[#allocation2 + $0x8] sm:$0xff] %v138
  %143 = vst [vmem:[#allocation2 + $0x10] sm:$0xff] %v139
  %144 = vst [vmem:[#allocation2 + $0x18] sm:$0xff] %v140
  // Predicated region
  $region18: #{decoder_forward.28} parent=0 // pred_check
    %p145 = pneg %p14
  $region19: #{decoder_forward.28} parent=0 // pred_check_branch
    %147 = sbr.rel (%p145) target = $region21
  $region20: #{decoder_forward.28} parent=0 // pred_region
    %v148 = vld [vmem:[#allocation2] sm:$0xff]
    %v149 = vld [vmem:[#allocation2 + $0x8] sm:$0xff]
    %v150 = vld [vmem:[#allocation2 + $0x10] sm:$0xff]
    %v151 = vld [vmem:[#allocation2 + $0x18] sm:$0xff]
    %v152 = vld [vmem:[%s2] sm:$0x3]
    %v154 = vlaneseq
    %v155 = vshrl.u32 %v154, 7
    %v156 = vsub.s32 0, %v155
    %v157 = vrot.slane %v152, %v156
    %v158 = vlaneseq
    %v159 = vshrl.u32 %v158, 7
    %v160 = vsub.s32 1, %v159
    %v161 = vrot.slane %v152, %v160
    %v164 = vadd.f32 %v148, %v157
    %v165 = vadd.f32 %v149, %v161
    %v166 = vadd.f32 %v150, %v157
    %v167 = vadd.f32 %v151, %v161
    %v168 = vmax.f32 %v164, 0.0
    %v169 = vmax.f32 %v165, 0.0
    %v170 = vmax.f32 %v166, 0.0
    %v171 = vmax.f32 %v167, 0.0
    %172 = vst [vmem:[%s3] sm:$0xff] %v168
    %173 = vst [vmem:[%s3 + $0x8] sm:$0xff] %v169
    %174 = vst [vmem:[%s3 + $0x10] sm:$0xff] %v170
    %175 = vst [vmem:[%s3 + $0x18] sm:$0xff] %v171
  $region21: #{decoder_forward.28} parent=0 // pred_fallthru
    _
  // Predicated region
  $region22: #{decoder_forward.28} parent=0 // pred_check
    _
  $region23: #{decoder_forward.28} parent=0 // pred_check_branch
    %177 = sbr.rel (0) target = $region25
  $region24: #{decoder_forward.28} parent=0 // pred_region
    _
  $region25: #{decoder_forward.28} parent=0 // pred_fallthru
    _
  // Predicated region
  $region26: #{decoder_forward.28} parent=0 // pred_check
    _
  $region27: #{decoder_forward.28} parent=0 // pred_check_branch
    %179 = sbr.rel (0) target = $region29
  $region28: #{decoder_forward.28} parent=0 // pred_region
    _
  $region29: #{decoder_forward.28} parent=0 // pred_fallthru
    _

// kernel: decoder_forward.26
$region0: #{decoder_forward.26}
  #allocation0 [shape = 'u32[]', space=smem, size = 0x4, offset = 0x4, fixed_abs, tag = 'smem constant byte address 0x4 - core index']
  #allocation1 [shape = 'u32[144,128]{1,0:T(1,128)}', space=vmem, size = 0x12000, scoped, tag = 'internal scratch']
  #allocation2 [shape = 'f32[4,8,1]{2,1,0:T(8,128)}', space=vmem, size = 0x4000, scoped, tag = 'scratch operand']
  #allocation3 [shape = 'f32[4,8,1]{2,1,0:T(8,128)}', space=vmem, size = 0x4000, scoped, tag = 'scratch operand']
  #allocation4 [shape = 'f32[4,8,32]{2,1,0:T(8,128)}', space=vmem, size = 0x4000, scoped, tag = 'scratch operand']
  %s0 = inlined_call_operand.vmem [shape: s32[16,1], index: 0, kind: input, shape index: {}]
  %s1 = inlined_call_operand.vmem [shape: f32[16,128], index: 1, kind: input, shape index: {}]
  %s2 = inlined_call_operand.vmem [shape: f32[16,256], index: 2, kind: input, shape index: {}, may-alias: {2,3}]
  %s3 = inlined_call_operand.vmem [shape: f32[16,256], index: 3, kind: input, shape index: {}, may-alias: {2,3}]
  %s4 = inlined_call_operand.vmem [shape: f32[16,128], index: 4, kind: output, shape index: {}]
  %s5 = sld [smem:[#allocation0]]
  $region57: #{decoder_forward.26} parent=0
    _
  %s7 = ssub.s32 1, %s5
  %s8 = scalar_select 0, %s7, %s5
  loop: start=0, step=1, limit=4
  $region2: #{decoder_forward.26} parent=0 // loop_pre_header
    _
  $region3: #{decoder_forward.26} parent=0 // loop_header
    %s10 = sphi 0, %s14
    %p11 = scmp.ge.s32.totalorder %s10, 4
    %s17 = sphi 0, %s36
    %s18 = sphi 0, %s32
    %s19 = sphi 0, %s28
    %s20 = sphi 0, %s17
    %s21 = sphi 0, %s18
    %s22 = sphi 0, %s19
    %s23 = sphi 0, %s20
    %s24 = sphi 0, %s21
    %s25 = sphi 0, %s22
    %s41 = sphi 0, %s43
    %s44 = sphi 0, %s41
    %s45 = sphi 0, %s44
    %s61 = sphi 0, %s45
    %s69 = sphi 0, %s71
    %s72 = sphi 0, %s69
    %s73 = sphi 0, %s72
    %s89 = sphi 0, %s73
    %s97 = sphi 0, %s99
    %s100 = sphi 0, %s97
    %s101 = sphi 0, %s100
    %s117 = sphi 0, %s101
    %s125 = sphi 0, %s127
    %s128 = sphi 0, %s125
    %s129 = sphi 0, %s128
    %s145 = sphi 0, %s129
    %s153 = sphi 0, %s155
    %s156 = sphi 0, %s153
    %s157 = sphi 0, %s156
    %s173 = sphi 0, %s157
  $region4: #{decoder_forward.26} parent=0 // loop_header_branch
    %13 = sbr.rel (%p11) target = $region8
  $region5: #{decoder_forward.26} parent=0 // loop_body
    %s15 = ssub.s32 %s10, 1
    %s16 = ssub.s32 %s10, 2
    %s26 = sadd.s32 1, %s19
    %p27 = scmp.ge.s32.totalorder %s26, 1
    %s28 = scalar_select %p27, 0, %s26
    %s29 = sadd.s32 1, %s18
    %s30 = scalar_select %p27, %s29, %s18
    %p31 = scmp.ge.s32.totalorder %s30, 1
    %s32 = scalar_select %p31, 0, %s30
    %s33 = sadd.s32 1, %s17
    %s34 = scalar_select %p31, %s33, %s17
    %p35 = scmp.ge.s32.totalorder %s34, 2
    %s36 = scalar_select %p35, 0, %s34
    %s37 = sadd.s32 %s17, %s18
    %s38 = sadd.s32 %s36, %s32
    %s39 = ssub.s32 %s37, %s38
    %p40 = scmp.eq.s32.totalorder %s39, 0
    %s42 = sadd.s32 %s41, 1
    %s43 = scalar_select %p40, %s41, %s42
    %p46 = pneg %p40
    %p47 = scmp.eq.s32.totalorder %s10, 1
    %p48 = por %p46, %p47
    %p49 = scmp.ne.s32.totalorder %s41, %s44
    %p50 = scmp.eq.s32.totalorder %s10, 0
    %p51 = por %p49, %p50
    %p52 = scmp.ne.s32.totalorder %s41, %s44
    %p53 = scmp.eq.s32.totalorder %s15, 1
    %p54 = por %p52, %p53
    %p55 = scmp.ne.s32.totalorder %s44, %s45
    %p56 = scmp.eq.s32.totalorder %s15, 0
    %p57 = por %p55, %p56
    %p58 = scmp.ne.s32.totalorder %s44, %s45
    %p59 = scmp.eq.s32.totalorder %s16, 1
    %p60 = por %p58, %p59
    %p62 = scmp.ne.s32.totalorder %s45, %s61
    %p63 = scmp.eq.s32.totalorder %s16, 0
    %p64 = por %p62, %p63
    %s65 = sadd.s32 %s17, %s18
    %s66 = sadd.s32 %s36, %s32
    %s67 = ssub.s32 %s65, %s66
    %p68 = scmp.eq.s32.totalorder %s67, 0
    %s70 = sadd.s32 %s69, 1
    %s71 = scalar_select %p68, %s69, %s70
    %p74 = pneg %p68
    %p75 = scmp.eq.s32.totalorder %s10, 1
    %p76 = por %p74, %p75
    %p77 = scmp.ne.s32.totalorder %s69, %s72
    %p78 = scmp.eq.s32.totalorder %s10, 0
    %p79 = por %p77, %p78
    %p80 = scmp.ne.s32.totalorder %s69, %s72
    %p81 = scmp.eq.s32.totalorder %s15, 1
    %p82 = por %p80, %p81
    %p83 = scmp.ne.s32.totalorder %s72, %s73
    %p84 = scmp.eq.s32.totalorder %s15, 0
    %p85 = por %p83, %p84
    %p86 = scmp.ne.s32.totalorder %s72, %s73
    %p87 = scmp.eq.s32.totalorder %s16, 1
    %p88 = por %p86, %p87
    %p90 = scmp.ne.s32.totalorder %s73, %s89
    %p91 = scmp.eq.s32.totalorder %s16, 0
    %p92 = por %p90, %p91
    %s93 = sadd.s32 %s17, %s19
    %s94 = sadd.s32 %s36, %s28
    %s95 = ssub.s32 %s93, %s94
    %p96 = scmp.eq.s32.totalorder %s95, 0
    %s98 = sadd.s32 %s97, 1
    %s99 = scalar_select %p96, %s97, %s98
    %p102 = pneg %p96
    %p103 = scmp.eq.s32.totalorder %s10, 1
    %p104 = por %p102, %p103
    %p105 = scmp.ne.s32.totalorder %s97, %s100
    %p106 = scmp.eq.s32.totalorder %s10, 0
    %p107 = por %p105, %p106
    %p108 = scmp.ne.s32.totalorder %s97, %s100
    %p109 = scmp.eq.s32.totalorder %s15, 1
    %p110 = por %p108, %p109
    %p111 = scmp.ne.s32.totalorder %s100, %s101
    %p112 = scmp.eq.s32.totalorder %s15, 0
    %p113 = por %p111, %p112
    %p114 = scmp.ne.s32.totalorder %s100, %s101
    %p115 = scmp.eq.s32.totalorder %s16, 1
    %p116 = por %p114, %p115
    %p118 = scmp.ne.s32.totalorder %s101, %s117
    %p119 = scmp.eq.s32.totalorder %s16, 0
    %p120 = por %p118, %p119
    %s121 = sadd.s32 %s17, %s19
    %s122 = sadd.s32 %s36, %s28
    %s123 = ssub.s32 %s121, %s122
    %p124 = scmp.eq.s32.totalorder %s123, 0
    %s126 = sadd.s32 %s125, 1
    %s127 = scalar_select %p124, %s125, %s126
    %p130 = pneg %p124
    %p131 = scmp.eq.s32.totalorder %s10, 1
    %p132 = por %p130, %p131
    %p133 = scmp.ne.s32.totalorder %s125, %s128
    %p134 = scmp.eq.s32.totalorder %s10, 0
    %p135 = por %p133, %p134
    %p136 = scmp.ne.s32.totalorder %s125, %s128
    %p137 = scmp.eq.s32.totalorder %s15, 1
    %p138 = por %p136, %p137
    %p139 = scmp.ne.s32.totalorder %s128, %s129
    %p140 = scmp.eq.s32.totalorder %s15, 0
    %p141 = por %p139, %p140
    %p142 = scmp.ne.s32.totalorder %s128, %s129
    %p143 = scmp.eq.s32.totalorder %s16, 1
    %p144 = por %p142, %p143
    %p146 = scmp.ne.s32.totalorder %s129, %s145
    %p147 = scmp.eq.s32.totalorder %s16, 0
    %p148 = por %p146, %p147
    %s149 = sadd.s32 %s17, %s18
    %s150 = sadd.s32 %s36, %s32
    %s151 = ssub.s32 %s149, %s150
    %p152 = scmp.eq.s32.totalorder %s151, 0
    %s154 = sadd.s32 %s153, 1
    %s155 = scalar_select %p152, %s153, %s154
    %p158 = pneg %p152
    %p159 = scmp.eq.s32.totalorder %s10, 1
    %p160 = por %p158, %p159
    %p161 = scmp.ne.s32.totalorder %s153, %s156
    %p162 = scmp.eq.s32.totalorder %s10, 0
    %p163 = por %p161, %p162
    %p164 = scmp.ne.s32.totalorder %s153, %s156
    %p165 = scmp.eq.s32.totalorder %s15, 1
    %p166 = por %p164, %p165
    %p167 = scmp.ne.s32.totalorder %s156, %s157
    %p168 = scmp.eq.s32.totalorder %s15, 0
    %p169 = por %p167, %p168
    %p170 = scmp.ne.s32.totalorder %s156, %s157
    %p171 = scmp.eq.s32.totalorder %s16, 1
    %p172 = por %p170, %p171
    %p174 = scmp.ne.s32.totalorder %s157, %s173
    %p175 = scmp.eq.s32.totalorder %s16, 0
    %p176 = por %p174, %p175
    %p177 = scmp.le.s32.totalorder 1, %s10
    %p178 = scmp.lt.s32.totalorder %s10, 3
    %p179 = pnand %p177, %p178
    %p180 = pneg %p179
    // Predicated region
    $region9: #{decoder_forward.26} parent=5 // pred_check
      _
    $region10: #{decoder_forward.26} parent=5 // pred_check_branch
      %182 = sbr.rel (%p179) target = $region12
    $region11: #{decoder_forward.26} parent=5 // pred_region
      %s183 = ssub.s32 %s10, 1
    $region12: #{decoder_forward.26} parent=5 // pred_fallthru
      _
    %p184 = scmp.lt.s32.totalorder %s10, 2
    // Predicated region
    $region13: #{decoder_forward.26} parent=5 // pred_check
      %p185 = pneg %p184
    $region14: #{decoder_forward.26} parent=5 // pred_check_branch
      %187 = sbr.rel (%p185) target = $region16
    $region15: #{decoder_forward.26} parent=5 // pred_region
      // Predicated region
      $region17: #{decoder_forward.26} parent=15 // pred_check
        %p188 = pneg %p51
      $region18: #{decoder_forward.26} parent=15 // pred_check_branch
        %190 = sbr.rel (%p188) target = $region20
      $region19: #{decoder_forward.26} parent=15 // pred_region
        %s191 = sadd.s32 %s17, %s18
        %p192 = scmp.lt.s32.totalorder %s191, 1
        %s193 = scalar_select %p192, %s191, 1
        %s194 = smul.addr %s193, 8
        %s195 = scalar_lea.vmem %s0, %s194
        %s196 = sadd.s32 %s17, %s18
      $region20: #{decoder_forward.26} parent=15 // pred_fallthru
        _
      // Predicated region
      $region21: #{decoder_forward.26} parent=15 // pred_check
        %p197 = pneg %p79
      $region22: #{decoder_forward.26} parent=15 // pred_check_branch
        %199 = sbr.rel (%p197) target = $region24
      $region23: #{decoder_forward.26} parent=15 // pred_region
        %s200 = sadd.s32 %s17, %s18
        %p201 = scmp.lt.s32.totalorder %s200, 1
        %s202 = scalar_select %p201, %s200, 1
        %s203 = smul.addr %s202, 8
        %s204 = scalar_lea.vmem %s1, %s203
        %s205 = sadd.s32 %s17, %s18
      $region24: #{decoder_forward.26} parent=15 // pred_fallthru
        _
      // Predicated region
      $region25: #{decoder_forward.26} parent=15 // pred_check
        %p206 = pneg %p107
      $region26: #{decoder_forward.26} parent=15 // pred_check_branch
        %208 = sbr.rel (%p206) target = $region28
      $region27: #{decoder_forward.26} parent=15 // pred_region
        %s209 = sadd.s32 %s17, %s19
        %p210 = scmp.lt.s32.totalorder %s209, 1
        %s211 = scalar_select %p210, %s209, 1
        %s212 = smul.addr %s211, 2
        %s213 = smul.addr %s212, 8
        %s214 = scalar_lea.vmem %s2, %s213
        %s215 = sadd.s32 %s17, %s19
      $region28: #{decoder_forward.26} parent=15 // pred_fallthru
        _
      // Predicated region
      $region29: #{decoder_forward.26} parent=15 // pred_check
        %p216 = pneg %p135
      $region30: #{decoder_forward.26} parent=15 // pred_check_branch
        %218 = sbr.rel (%p216) target = $region32
      $region31: #{decoder_forward.26} parent=15 // pred_region
        %s219 = sadd.s32 %s17, %s19
        %p220 = scmp.lt.s32.totalorder %s219, 1
        %s221 = scalar_select %p220, %s219, 1
        %s222 = smul.addr %s221, 2
        %s223 = sadd.s32 1, %s222
        %s224 = smul.addr %s223, 8
        %s225 = scalar_lea.vmem %s3, %s224
        %s226 = sadd.s32 %s17, %s19
      $region32: #{decoder_forward.26} parent=15 // pred_fallthru
        _
    $region16: #{decoder_forward.26} parent=5 // pred_fallthru
      _
    %p227 = scmp.le.s32.totalorder 1, %s10
    %p228 = scmp.lt.s32.totalorder %s10, 3
    %p229 = pnand %p227, %p228
    %p230 = pneg %p229
    // Predicated region
    $region33: #{decoder_forward.26} parent=5 // pred_check
      _
    $region34: #{decoder_forward.26} parent=5 // pred_check_branch
      %232 = sbr.rel (%p229) target = $region36
    $region35: #{decoder_forward.26} parent=5 // pred_region
      %s233 = ssub.s32 %s10, 1
      %s234 = sadd.s32 %s20, %s21
      %p235 = scmp.lt.s32.totalorder %s234, 1
      %s236 = scalar_select %p235, %s234, 1
      %s237 = smul.addr %s236, 8
      %s238 = scalar_lea.vmem %s0, %s237
      %p239 = pneg %p57
      %p240 = pneg %p54
      %s241 = sadd.s32 %s20, %s21
      %p242 = scmp.lt.s32.totalorder %s241, 1
      %s243 = scalar_select %p242, %s241, 1
      %s244 = smul.addr %s243, 8
      %s245 = scalar_lea.vmem %s1, %s244
      %p246 = pneg %p85
      %p247 = pneg %p82
      %s248 = sadd.s32 %s20, %s22
      %p249 = scmp.lt.s32.totalorder %s248, 1
      %s250 = scalar_select %p249, %s248, 1
      %s251 = smul.addr %s250, 2
      %s252 = smul.addr %s251, 8
      %s253 = scalar_lea.vmem %s2, %s252
      %p254 = pneg %p113
      %p255 = pneg %p110
      %s256 = sadd.s32 %s20, %s22
      %p257 = scmp.lt.s32.totalorder %s256, 1
      %s258 = scalar_select %p257, %s256, 1
      %s259 = smul.addr %s258, 2
      %s260 = sadd.s32 1, %s259
      %s261 = smul.addr %s260, 8
      %s262 = scalar_lea.vmem %s3, %s261
      %p263 = pneg %p141
      %p264 = pneg %p138
      %p265 = pneg %p169
      %p266 = pneg %p166
      %s267 = sadd.s32 %s20, %s21
      %p268 = scmp.lt.s32.totalorder %s267, 1
      %s269 = scalar_select %p268, %s267, 1
      %s270 = smul.addr %s269, 8
      %s271 = scalar_lea.vmem %s4, %s270
      %s272 = sadd.s32 %s20, %s21
      %p273 = scmp.lt.s32.totalorder %s272, 1
      %s274 = scalar_select %p273, %s272, 1
      %s275 = smul.addr %s274, 8
      %s276 = scalar_lea.vmem %s0, %s275
      %s277 = sadd.s32 %s20, %s21
      %s278 = sadd.s32 %s20, %s21
      %p279 = scmp.lt.s32.totalorder %s278, 1
      %s280 = scalar_select %p279, %s278, 1
      %s281 = smul.addr %s280, 8
      %s282 = scalar_lea.vmem %s1, %s281
      %s283 = sadd.s32 %s20, %s21
      %s284 = sadd.s32 %s20, %s22
      %p285 = scmp.lt.s32.totalorder %s284, 1
      %s286 = scalar_select %p285, %s284, 1
      %s287 = smul.addr %s286, 2
      %s288 = smul.addr %s287, 8
      %s289 = scalar_lea.vmem %s2, %s288
      %s290 = sadd.s32 %s20, %s22
      %s291 = sadd.s32 %s20, %s22
      %p292 = scmp.lt.s32.totalorder %s291, 1
      %s293 = scalar_select %p292, %s291, 1
      %s294 = smul.addr %s293, 2
      %s295 = sadd.s32 1, %s294
      %s296 = smul.addr %s295, 8
      %s297 = scalar_lea.vmem %s3, %s296
      %s298 = sadd.s32 %s20, %s22
      %s299 = sadd.s32 %s20, %s21
      %p300 = scmp.lt.s32.totalorder %s299, 1
      %s301 = scalar_select %p300, %s299, 1
      %s302 = smul.addr %s301, 8
      %s303 = scalar_lea.vmem %s4, %s302
      %s304 = sadd.s32 %s20, %s21
      %p305 = scmp.eq.s32.totalorder %s22, 0
      // Predicated region
      $region37: #{decoder_forward.26} parent=35 // pred_check
        %p306 = pneg %p305
      $region38: #{decoder_forward.26} parent=35 // pred_check_branch
        %308 = sbr.rel (%p306) target = $region40
      $region39: #{decoder_forward.26} parent=35 // pred_region
        %vm309 = vcmask 7168
        %310 = vst.msk [vmem:[#allocation2] sm:$0xff] %vm309, -inf
        %311 = vst.msk [vmem:[#allocation2 + $0x8] sm:$0xff] %vm309, -inf
        %312 = vst.msk [vmem:[#allocation2 + $0x10] sm:$0xff] %vm309, -inf
        %313 = vst.msk [vmem:[#allocation2 + $0x18] sm:$0xff] %vm309, -inf
        %314 = vst.msk [vmem:[#allocation3] sm:$0xff] %vm309, 0.0
        %315 = vst.msk [vmem:[#allocation3 + $0x8] sm:$0xff] %vm309, 0.0
        %316 = vst.msk [vmem:[#allocation3 + $0x10] sm:$0xff] %vm309, 0.0
        %317 = vst.msk [vmem:[#allocation3 + $0x18] sm:$0xff] %vm309, 0.0
        %vm318 = vcmask 261120
        %319 = vst.msk [vmem:[#allocation4] sm:$0xff] %vm318, 0.0
        %320 = vst.msk [vmem:[#allocation4 + $0x8] sm:$0xff] %vm318, 0.0
        %321 = vst.msk [vmem:[#allocation4 + $0x10] sm:$0xff] %vm318, 0.0
        %322 = vst.msk [vmem:[#allocation4 + $0x18] sm:$0xff] %vm318, 0.0
      $region40: #{decoder_forward.26} parent=35 // pred_fallthru
        _
      %v323 = vlaneseq
      %v324 = vand.u32 %v323, 127
      %s325 = smul.u32 %s22, 8
      %v326 = vstv %s325
      %v327 = vadd.s32 %v324, %v326
      %v328 = vld [vmem:[%s276] sm:$0xff]
      %329 = vset.pattern.permute.xlu0 0
      %330 = vperm.xlu0 %329, %v328
      %v331 = vpop.permute.xlu0 %330
      %vm332 = vcmp.lt.s32.totalorder %v327, %v331
      %v333 = vld [vmem:[%s282] sm:$0xff]
      %v334 = vmul.f32 %v333, 0.17677669
      %v335 = vld [vmem:[%s289] sm:$0xff]
      %vm336 = vcmask 261120
      %v338 = vsel %vm336, %v334, 0
      %v341 = vsel %vm336, %v335, 0
      %343 = vmatprep.subr.mxu0 0.0
      %344 = vmatpush1.xpose.msra.mxu0 %v341
      %345 = vmatprep.subr.mxu0 0.0
      %346 = vmatpush1.xpose.msra.mxu0 0.0
      %347 = vmatprep.subr.mxu0 0.0
      %348 = vmatpush1.xpose.msra.mxu0 0.0
      %349 = vmatprep.subr.mxu0 0.0
      %350 = vmatpush1.xpose.msra.mxu0 0.0
      %351 = vmatprep.subr.mxu0 0.0
      %352 = vmatpush1.xpose.msra.mxu0 0.0
      %353 = vmatprep.subr.mxu0 0.0
      %354 = vmatpush1.xpose.msra.mxu0 0.0
      %355 = vmatprep.subr.mxu0 0.0
      %356 = vmatpush1.xpose.msra.mxu0 0.0
      %357 = vmatprep.subr.mxu0 0.0
      %358 = vmatpush1.xpose.msra.mxu0 0.0
      %359 = vmatprep.subr.mxu0 0.0
      %360 = vmatpush1.xpose.msra.mxu0 0.0
      %361 = vmatprep.subr.mxu0 0.0
      %362 = vmatpush1.xpose.msra.mxu0 0.0
      %363 = vmatprep.subr.mxu0 0.0
      %364 = vmatpush1.xpose.msra.mxu0 0.0
      %365 = vmatprep.subr.mxu0 0.0
      %366 = vmatpush1.xpose.msra.mxu0 0.0
      %367 = vmatprep.subr.mxu0 0.0
      %368 = vmatpush1.xpose.msra.mxu0 0.0
      %369 = vmatprep.subr.mxu0 0.0
      %370 = vmatpush1.xpose.msra.mxu0 0.0
      %371 = vmatprep.subr.mxu0 0.0
      %372 = vmatpush1.xpose.msra.mxu0 0.0
      %373 = vmatprep.subr.mxu0 0.0
      %374 = vmatpush1.xpose.msra.mxu0 0.0
      %375 = vmatprep.subr.mxu0 0.0
      %376 = vmatpush1.xpose.msra.mxu0 0.0
      %377 = vmatprep.subr.mxu0 0.0
      %378 = vmatpush1.xpose.msra.mxu0 0.0
      %379 = vmatprep.subr.mxu0 0.0
      %380 = vmatpush1.xpose.msra.mxu0 0.0
      %381 = vmatprep.subr.mxu0 0.0
      %382 = vmatpush1.xpose.msra.mxu0 0.0
      %383 = vmatprep.subr.mxu0 0.0
      %384 = vmatpush1.xpose.msra.mxu0 0.0
      %385 = vmatprep.subr.mxu0 0.0
      %386 = vmatpush1.xpose.msra.mxu0 0.0
      %387 = vmatprep.subr.mxu0 0.0
      %388 = vmatpush1.xpose.msra.mxu0 0.0
      %389 = vmatprep.subr.mxu0 0.0
      %390 = vmatpush1.xpose.msra.mxu0 0.0
      %391 = vmatprep.subr.mxu0 0.0
      %392 = vmatpush1.xpose.msra.mxu0 0.0
      %393 = vmatprep.subr.mxu0 0.0
      %394 = vmatpush1.xpose.msra.mxu0 0.0
      %395 = vmatprep.subr.mxu0 0.0
      %396 = vmatpush1.xpose.msra.mxu0 0.0
      %397 = vmatprep.subr.mxu0 0.0
      %398 = vmatpush1.xpose.msra.mxu0 0.0
      %399 = vmatprep.subr.mxu0 0.0
      %400 = vmatpush1.xpose.msra.mxu0 0.0
      %401 = vmatprep.subr.mxu0 0.0
      %402 = vmatpush1.xpose.msra.mxu0 0.0
      %403 = vmatprep.subr.mxu0 0.0
      %404 = vmatpush1.xpose.msra.mxu0 0.0
      %405 = vmatprep.subr.mxu0 0.0
      %406 = vmatpush1.xpose.msra.mxu0 0.0
      %407 = vmatprep.mubr.f32.mxu0 0.0
      %408 = vmatmul.mubr.f32.gmra.mrb[0].mxu0 %v338
      %v409 = vpop.f32.mrb[0].mxu0
      %v410 = vadd.f32 0.0, %v409
      %v411 = vpop.f32.mrb[0].mxu0
      %412 = vdwg.mxu0
      %v413 = vsel %vm332, %v410, -1e+30
      %v414 = vld [vmem:[#allocation2] sm:$0xff]
      %vm415 = vcmask 64512
      %v416 = vsel %vm415, %v413, -inf
      %417 = vmax.xlane.f32.xlu0 %v416
      %v418 = vpop.xlane.xlu0 %417
      %v419 = vmax.f32 %v414, %v418
      %v420 = vsub.f32 %v414, %v419
      %v421 = vmul.f32 %v420, 1.442695
      %v422 = vpow.pop %v421
      %424 = vset.pattern.permute.xlu0 0
      %425 = vperm.xlu0 %424, %v419
      %v426 = vpop.permute.xlu0 %425
      %v428 = vsub.f32 %v413, %v426
      %v429 = vmul.f32 %v428, 1.442695
      %v430 = vpow.pop %v429
      %v431 = vld [vmem:[#allocation3] sm:$0xff]
      %v432 = vmul.f32 %v422, %v431
      %v433 = vsel %vm415, %v430, 0.0
      %434 = vadd.xlane.f32.xlu0 %v433
      %v435 = vpop.xlane.xlu0 %434
      %v436 = vadd.f32 %v432, %v435
      %vm437 = vcmask 7168
      %438 = vst.msk [vmem:[#allocation3] sm:$0xff] %vm437, %v436
      %v439 = vld [vmem:[#allocation4] sm:$0xff]
      %441 = vset.pattern.permute.xlu0 0
      %442 = vperm.xlu0 %441, %v422
      %v443 = vpop.permute.xlu0 %442
      %v445 = vmul.f32 %v443, %v439
      %v446 = vld [vmem:[%s297] sm:$0xff]
      %v448 = vsel %vm415, %v430, 0
      %450 = vmatprep.subr.mxu0 0.0
      %451 = vmatpush1.msra.mxu0 %v446
      %452 = vmatprep.subr.mxu0 0.0
      %453 = vmatpush1.msra.mxu0 0.0
      %454 = vmatprep.subr.mxu0 0.0
      %455 = vmatpush1.msra.mxu0 0.0
      %456 = vmatprep.subr.mxu0 0.0
      %457 = vmatpush1.msra.mxu0 0.0
      %458 = vmatprep.subr.mxu0 0.0
      %459 = vmatpush1.msra.mxu0 0.0
      %460 = vmatprep.subr.mxu0 0.0
      %461 = vmatpush1.msra.mxu0 0.0
      %462 = vmatprep.subr.mxu0 0.0
      %463 = vmatpush1.msra.mxu0 0.0
      %464 = vmatprep.subr.mxu0 0.0
      %465 = vmatpush1.msra.mxu0 0.0
      %466 = vmatprep.subr.mxu0 0.0
      %467 = vmatpush1.msra.mxu0 0.0
      %468 = vmatprep.subr.mxu0 0.0
      %469 = vmatpush1.msra.mxu0 0.0
      %470 = vmatprep.subr.mxu0 0.0
      %471 = vmatpush1.msra.mxu0 0.0
      %472 = vmatprep.subr.mxu0 0.0
      %473 = vmatpush1.msra.mxu0 0.0
      %474 = vmatprep.subr.mxu0 0.0
      %475 = vmatpush1.msra.mxu0 0.0
      %476 = vmatprep.subr.mxu0 0.0
      %477 = vmatpush1.msra.mxu0 0.0
      %478 = vmatprep.subr.mxu0 0.0
      %479 = vmatpush1.msra.mxu0 0.0
      %480 = vmatprep.subr.mxu0 0.0
      %481 = vmatpush1.msra.mxu0 0.0
      %482 = vmatprep.subr.mxu0 0.0
      %483 = vmatpush1.msra.mxu0 0.0
      %484 = vmatprep.subr.mxu0 0.0
      %485 = vmatpush1.msra.mxu0 0.0
      %486 = vmatprep.subr.mxu0 0.0
      %487 = vmatpush1.msra.mxu0 0.0
      %488 = vmatprep.subr.mxu0 0.0
      %489 = vmatpush1.msra.mxu0 0.0
      %490 = vmatprep.subr.mxu0 0.0
      %491 = vmatpush1.msra.mxu0 0.0
      %492 = vmatprep.subr.mxu0 0.0
      %493 = vmatpush1.msra.mxu0 0.0
      %494 = vmatprep.subr.mxu0 0.0
      %495 = vmatpush1.msra.mxu0 0.0
      %496 = vmatprep.subr.mxu0 0.0
      %497 = vmatpush1.msra.mxu0 0.0
      %498 = vmatprep.subr.mxu0 0.0
      %499 = vmatpush1.msra.mxu0 0.0
      %500 = vmatprep.subr.mxu0 0.0
      %501 = vmatpush1.msra.mxu0 0.0
      %502 = vmatprep.subr.mxu0 0.0
      %503 = vmatpush1.msra.mxu0 0.0
      %504 = vmatprep.subr.mxu0 0.0
      %505 = vmatpush1.msra.mxu0 0.0
      %506 = vmatprep.subr.mxu0 0.0
      %507 = vmatpush1.msra.mxu0 0.0
      %508 = vmatprep.subr.mxu0 0.0
      %509 = vmatpush1.msra.mxu0 0.0
      %510 = vmatprep.subr.mxu0 0.0
      %511 = vmatpush1.msra.mxu0 0.0
      %512 = vmatprep.subr.mxu0 0.0
      %513 = vmatpush1.msra.mxu0 0.0
      %514 = vmatprep.mubr.f32.mxu0 0.0
      %515 = vmatmul.mubr.f32.gmra.mrb[0].mxu0 %v448
      %v516 = vpop.f32.mrb[0].mxu0
      %v517 = vadd.f32 0.0, %v516
      %v518 = vpop.f32.mrb[0].mxu0
      %519 = vdwg.mxu0
      %v520 = vadd.f32 %v445, %v517
      %521 = vst.msk [vmem:[#allocation4] sm:$0xff] %vm336, %v520
      %522 = vst.msk [vmem:[#allocation2] sm:$0xff] %vm437, %v419
      %v523 = vld [vmem:[%s282] sm:$0xff]
      %v524 = vmul.f32 %v523, 0.17677669
      %v525 = vld [vmem:[%s289] sm:$0xff]
      %527 = vrot.lane.b32.xlu0 %v524, 96
      %v528 = vpop.permute.xlu0 %527
      %530 = vrot.lane.b32.xlu0 %v525, 96
      %v531 = vpop.permute.xlu0 %530
      %v532 = vsel %vm336, %v528, 0
      %v534 = vsel %vm336, %v531, 0
      %536 = vmatprep.subr.mxu0 0.0
      %537 = vmatpush1.xpose.msra.mxu0 %v534
      %538 = vmatprep.subr.mxu0 0.0
      %539 = vmatpush1.xpose.msra.mxu0 0.0
      %540 = vmatprep.subr.mxu0 0.0
      %541 = vmatpush1.xpose.msra.mxu0 0.0
      %542 = vmatprep.subr.mxu0 0.0
      %543 = vmatpush1.xpose.msra.mxu0 0.0
      %544 = vmatprep.subr.mxu0 0.0
      %545 = vmatpush1.xpose.msra.mxu0 0.0
      %546 = vmatprep.subr.mxu0 0.0
      %547 = vmatpush1.xpose.msra.mxu0 0.0
      %548 = vmatprep.subr.mxu0 0.0
      %549 = vmatpush1.xpose.msra.mxu0 0.0
      %550 = vmatprep.subr.mxu0 0.0
      %551 = vmatpush1.xpose.msra.mxu0 0.0
      %552 = vmatprep.subr.mxu0 0.0
      %553 = vmatpush1.xpose.msra.mxu0 0.0
      %554 = vmatprep.subr.mxu0 0.0
      %555 = vmatpush1.xpose.msra.mxu0 0.0
      %556 = vmatprep.subr.mxu0 0.0
      %557 = vmatpush1.xpose.msra.mxu0 0.0
      %558 = vmatprep.subr.mxu0 0.0
      %559 = vmatpush1.xpose.msra.mxu0 0.0
      %560 = vmatprep.subr.mxu0 0.0
      %561 = vmatpush1.xpose.msra.mxu0 0.0
      %562 = vmatprep.subr.mxu0 0.0
      %563 = vmatpush1.xpose.msra.mxu0 0.0
      %564 = vmatprep.subr.mxu0 0.0
      %565 = vmatpush1.xpose.msra.mxu0 0.0
      %566 = vmatprep.subr.mxu0 0.0
      %567 = vmatpush1.xpose.msra.mxu0 0.0
      %568 = vmatprep.subr.mxu0 0.0
      %569 = vmatpush1.xpose.msra.mxu0 0.0
      %570 = vmatprep.subr.mxu0 0.0
      %571 = vmatpush1.xpose.msra.mxu0 0.0
      %572 = vmatprep.subr.mxu0 0.0
      %573 = vmatpush1.xpose.msra.mxu0 0.0
      %574 = vmatprep.subr.mxu0 0.0
      %575 = vmatpush1.xpose.msra.mxu0 0.0
      %576 = vmatprep.subr.mxu0 0.0
      %577 = vmatpush1.xpose.msra.mxu0 0.0
      %578 = vmatprep.subr.mxu0 0.0
      %579 = vmatpush1.xpose.msra.mxu0 0.0
      %580 = vmatprep.subr.mxu0 0.0
      %581 = vmatpush1.xpose.msra.mxu0 0.0
      %582 = vmatprep.subr.mxu0 0.0
      %583 = vmatpush1.xpose.msra.mxu0 0.0
      %584 = vmatprep.subr.mxu0 0.0
      %585 = vmatpush1.xpose.msra.mxu0 0.0
      %586 = vmatprep.subr.mxu0 0.0
      %587 = vmatpush1.xpose.msra.mxu0 0.0
      %588 = vmatprep.subr.mxu0 0.0
      %589 = vmatpush1.xpose.msra.mxu0 0.0
      %590 = vmatprep.subr.mxu0 0.0
      %591 = vmatpush1.xpose.msra.mxu0 0.0
      %592 = vmatprep.subr.mxu0 0.0
      %593 = vmatpush1.xpose.msra.mxu0 0.0
      %594 = vmatprep.subr.mxu0 0.0
      %595 = vmatpush1.xpose.msra.mxu0 0.0
      %596 = vmatprep.subr.mxu0 0.0
      %597 = vmatpush1.xpose.msra.mxu0 0.0
      %598 = vmatprep.subr.mxu0 0.0
      %599 = vmatpush1.xpose.msra.mxu0 0.0
      %600 = vmatprep.mubr.f32.mxu0 0.0
      %601 = vmatmul.mubr.f32.gmra.mrb[0].mxu0 %v532
      %v602 = vpop.f32.mrb[0].mxu0
      %v603 = vadd.f32 0.0, %v602
      %v604 = vpop.f32.mrb[0].mxu0
      %605 = vdwg.mxu0
      %v606 = vsel %vm332, %v603, -1e+30
      %s607 = scalar_lea.vmem [#allocation2], 8
      %v608 = vld [vmem:[%s607] sm:$0xff]
      %v609 = vsel %vm415, %v606, -inf
      %610 = vmax.xlane.f32.xlu0 %v609
      %v611 = vpop.xlane.xlu0 %610
      %v612 = vmax.f32 %v608, %v611
      %v613 = vsub.f32 %v608, %v612
      %v614 = vmul.f32 %v613, 1.442695
      %v615 = vpow.pop %v614
      %617 = vset.pattern.permute.xlu0 0
      %618 = vperm.xlu0 %617, %v612
      %v619 = vpop.permute.xlu0 %618
      %v621 = vsub.f32 %v606, %v619
      %v622 = vmul.f32 %v621, 1.442695
      %v623 = vpow.pop %v622
      %s624 = scalar_lea.vmem [#allocation3], 8
      %v625 = vld [vmem:[%s624] sm:$0xff]
      %v626 = vmul.f32 %v615, %v625
      %v627 = vsel %vm415, %v623, 0.0
      %628 = vadd.xlane.f32.xlu0 %v627
      %v629 = vpop.xlane.xlu0 %628
      %v630 = vadd.f32 %v626, %v629
      %631 = vst.msk [vmem:[%s624] sm:$0xff] %vm437, %v630
      %s632 = scalar_lea.vmem [#allocation4], 8
      %v633 = vld [vmem:[%s632] sm:$0xff]
      %635 = vset.pattern.permute.xlu0 0
      %636 = vperm.xlu0 %635, %v615
      %v637 = vpop.permute.xlu0 %636
      %v639 = vmul.f32 %v637, %v633
      %v640 = vld [vmem:[%s297] sm:$0xff]
      %642 = vrot.lane.b32.xlu0 %v640, 96
      %v643 = vpop.permute.xlu0 %642
      %v646 = vsel %vm415, %v623, 0
      %648 = vmatprep.subr.mxu0 0.0
      %649 = vmatpush1.msra.mxu0 %v643
      %650 = vmatprep.subr.mxu0 0.0
      %651 = vmatpush1.msra.mxu0 0.0
      %652 = vmatprep.subr.mxu0 0.0
      %653 = vmatpush1.msra.mxu0 0.0
      %654 = vmatprep.subr.mxu0 0.0
      %655 = vmatpush1.msra.mxu0 0.0
      %656 = vmatprep.subr.mxu0 0.0
      %657 = vmatpush1.msra.mxu0 0.0
      %658 = vmatprep.subr.mxu0 0.0
      %659 = vmatpush1.msra.mxu0 0.0
      %660 = vmatprep.subr.mxu0 0.0
      %661 = vmatpush1.msra.mxu0 0.0
      %662 = vmatprep.subr.mxu0 0.0
      %663 = vmatpush1.msra.mxu0 0.0
      %664 = vmatprep.subr.mxu0 0.0
      %665 = vmatpush1.msra.mxu0 0.0
      %666 = vmatprep.subr.mxu0 0.0
      %667 = vmatpush1.msra.mxu0 0.0
      %668 = vmatprep.subr.mxu0 0.0
      %669 = vmatpush1.msra.mxu0 0.0
      %670 = vmatprep.subr.mxu0 0.0
      %671 = vmatpush1.msra.mxu0 0.0
      %672 = vmatprep.subr.mxu0 0.0
      %673 = vmatpush1.msra.mxu0 0.0
      %674 = vmatprep.subr.mxu0 0.0
      %675 = vmatpush1.msra.mxu0 0.0
      %676 = vmatprep.subr.mxu0 0.0
      %677 = vmatpush1.msra.mxu0 0.0
      %678 = vmatprep.subr.mxu0 0.0
      %679 = vmatpush1.msra.mxu0 0.0
      %680 = vmatprep.subr.mxu0 0.0
      %681 = vmatpush1.msra.mxu0 0.0
      %682 = vmatprep.subr.mxu0 0.0
      %683 = vmatpush1.msra.mxu0 0.0
      %684 = vmatprep.subr.mxu0 0.0
      %685 = vmatpush1.msra.mxu0 0.0
      %686 = vmatprep.subr.mxu0 0.0
      %687 = vmatpush1.msra.mxu0 0.0
      %688 = vmatprep.subr.mxu0 0.0
      %689 = vmatpush1.msra.mxu0 0.0
      %690 = vmatprep.subr.mxu0 0.0
      %691 = vmatpush1.msra.mxu0 0.0
      %692 = vmatprep.subr.mxu0 0.0
      %693 = vmatpush1.msra.mxu0 0.0
      %694 = vmatprep.subr.mxu0 0.0
      %695 = vmatpush1.msra.mxu0 0.0
      %696 = vmatprep.subr.mxu0 0.0
      %697 = vmatpush1.msra.mxu0 0.0
      %698 = vmatprep.subr.mxu0 0.0
      %699 = vmatpush1.msra.mxu0 0.0
      %700 = vmatprep.subr.mxu0 0.0
      %701 = vmatpush1.msra.mxu0 0.0
      %702 = vmatprep.subr.mxu0 0.0
      %703 = vmatpush1.msra.mxu0 0.0
      %704 = vmatprep.subr.mxu0 0.0
      %705 = vmatpush1.msra.mxu0 0.0
      %706 = vmatprep.subr.mxu0 0.0
      %707 = vmatpush1.msra.mxu0 0.0
      %708 = vmatprep.subr.mxu0 0.0
      %709 = vmatpush1.msra.mxu0 0.0
      %710 = vmatprep.subr.mxu0 0.0
      %711 = vmatpush1.msra.mxu0 0.0
      %712 = vmatprep.mubr.f32.mxu0 0.0
      %713 = vmatmul.mubr.f32.gmra.mrb[0].mxu0 %v646
      %v714 = vpop.f32.mrb[0].mxu0
      %v715 = vadd.f32 0.0, %v714
      %v716 = vpop.f32.mrb[0].mxu0
      %717 = vdwg.mxu0
      %v718 = vadd.f32 %v639, %v715
      %719 = vst.msk [vmem:[%s632] sm:$0xff] %vm336, %v718
      %720 = vst.msk [vmem:[%s607] sm:$0xff] %vm437, %v612
      %v721 = vld [vmem:[%s282] sm:$0xff]
      %v722 = vmul.f32 %v721, 0.17677669
      %v723 = vld [vmem:[%s289] sm:$0xff]
      %725 = vrot.lane.b32.xlu0 %v722, 64
      %v726 = vpop.permute.xlu0 %725
      %728 = vrot.lane.b32.xlu0 %v723, 64
      %v729 = vpop.permute.xlu0 %728
      %v730 = vsel %vm336, %v726, 0
      %v732 = vsel %vm336, %v729, 0
      %734 = vmatprep.subr.mxu0 0.0
      %735 = vmatpush1.xpose.msra.mxu0 %v732
      %736 = vmatprep.subr.mxu0 0.0
      %737 = vmatpush1.xpose.msra.mxu0 0.0
      %738 = vmatprep.subr.mxu0 0.0
      %739 = vmatpush1.xpose.msra.mxu0 0.0
      %740 = vmatprep.subr.mxu0 0.0
      %741 = vmatpush1.xpose.msra.mxu0 0.0
      %742 = vmatprep.subr.mxu0 0.0
      %743 = vmatpush1.xpose.msra.mxu0 0.0
      %744 = vmatprep.subr.mxu0 0.0
      %745 = vmatpush1.xpose.msra.mxu0 0.0
      %746 = vmatprep.subr.mxu0 0.0
      %747 = vmatpush1.xpose.msra.mxu0 0.0
      %748 = vmatprep.subr.mxu0 0.0
      %749 = vmatpush1.xpose.msra.mxu0 0.0
      %750 = vmatprep.subr.mxu0 0.0
      %751 = vmatpush1.xpose.msra.mxu0 0.0
      %752 = vmatprep.subr.mxu0 0.0
      %753 = vmatpush1.xpose.msra.mxu0 0.0
      %754 = vmatprep.subr.mxu0 0.0
      %755 = vmatpush1.xpose.msra.mxu0 0.0
      %756 = vmatprep.subr.mxu0 0.0
      %757 = vmatpush1.xpose.msra.mxu0 0.0
      %758 = vmatprep.subr.mxu0 0.0
      %759 = vmatpush1.xpose.msra.mxu0 0.0
      %760 = vmatprep.subr.mxu0 0.0
      %761 = vmatpush1.xpose.msra.mxu0 0.0
      %762 = vmatprep.subr.mxu0 0.0
      %763 = vmatpush1.xpose.msra.mxu0 0.0
      %764 = vmatprep.subr.mxu0 0.0
      %765 = vmatpush1.xpose.msra.mxu0 0.0
      %766 = vmatprep.subr.mxu0 0.0
      %767 = vmatpush1.xpose.msra.mxu0 0.0
      %768 = vmatprep.subr.mxu0 0.0
      %769 = vmatpush1.xpose.msra.mxu0 0.0
      %770 = vmatprep.subr.mxu0 0.0
      %771 = vmatpush1.xpose.msra.mxu0 0.0
      %772 = vmatprep.subr.mxu0 0.0
      %773 = vmatpush1.xpose.msra.mxu0 0.0
      %774 = vmatprep.subr.mxu0 0.0
      %775 = vmatpush1.xpose.msra.mxu0 0.0
      %776 = vmatprep.subr.mxu0 0.0
      %777 = vmatpush1.xpose.msra.mxu0 0.0
      %778 = vmatprep.subr.mxu0 0.0
      %779 = vmatpush1.xpose.msra.mxu0 0.0
      %780 = vmatprep.subr.mxu0 0.0
      %781 = vmatpush1.xpose.msra.mxu0 0.0
      %782 = vmatprep.subr.mxu0 0.0
      %783 = vmatpush1.xpose.msra.mxu0 0.0
      %784 = vmatprep.subr.mxu0 0.0
      %785 = vmatpush1.xpose.msra.mxu0 0.0
      %786 = vmatprep.subr.mxu0 0.0
      %787 = vmatpush1.xpose.msra.mxu0 0.0
      %788 = vmatprep.subr.mxu0 0.0
      %789 = vmatpush1.xpose.msra.mxu0 0.0
      %790 = vmatprep.subr.mxu0 0.0
      %791 = vmatpush1.xpose.msra.mxu0 0.0
      %792 = vmatprep.subr.mxu0 0.0
      %793 = vmatpush1.xpose.msra.mxu0 0.0
      %794 = vmatprep.subr.mxu0 0.0
      %795 = vmatpush1.xpose.msra.mxu0 0.0
      %796 = vmatprep.subr.mxu0 0.0
      %797 = vmatpush1.xpose.msra.mxu0 0.0
      %798 = vmatprep.mubr.f32.mxu0 0.0
      %799 = vmatmul.mubr.f32.gmra.mrb[0].mxu0 %v730
      %v800 = vpop.f32.mrb[0].mxu0
      %v801 = vadd.f32 0.0, %v800
      %v802 = vpop.f32.mrb[0].mxu0
      %803 = vdwg.mxu0
      %v804 = vsel %vm332, %v801, -1e+30
      %s805 = scalar_lea.vmem [#allocation2], 16
      %v806 = vld [vmem:[%s805] sm:$0xff]
      %v807 = vsel %vm415, %v804, -inf
      %808 = vmax.xlane.f32.xlu0 %v807
      %v809 = vpop.xlane.xlu0 %808
      %v810 = vmax.f32 %v806, %v809
      %v811 = vsub.f32 %v806, %v810
      %v812 = vmul.f32 %v811, 1.442695
      %v813 = vpow.pop %v812
      %815 = vset.pattern.permute.xlu0 0
      %816 = vperm.xlu0 %815, %v810
      %v817 = vpop.permute.xlu0 %816
      %v819 = vsub.f32 %v804, %v817
      %v820 = vmul.f32 %v819, 1.442695
      %v821 = vpow.pop %v820
      %s822 = scalar_lea.vmem [#allocation3], 16
      %v823 = vld [vmem:[%s822] sm:$0xff]
      %v824 = vmul.f32 %v813, %v823
      %v825 = vsel %vm415, %v821, 0.0
      %826 = vadd.xlane.f32.xlu0 %v825
      %v827 = vpop.xlane.xlu0 %826
      %v828 = vadd.f32 %v824, %v827
      %829 = vst.msk [vmem:[%s822] sm:$0xff] %vm437, %v828
      %s830 = scalar_lea.vmem [#allocation4], 16
      %v831 = vld [vmem:[%s830] sm:$0xff]
      %833 = vset.pattern.permute.xlu0 0
      %834 = vperm.xlu0 %833, %v813
      %v835 = vpop.permute.xlu0 %834
      %v837 = vmul.f32 %v835, %v831
      %v838 = vld [vmem:[%s297] sm:$0xff]
      %840 = vrot.lane.b32.xlu0 %v838, 64
      %v841 = vpop.permute.xlu0 %840
      %v844 = vsel %vm415, %v821, 0
      %846 = vmatprep.subr.mxu0 0.0
      %847 = vmatpush1.msra.mxu0 %v841
      %848 = vmatprep.subr.mxu0 0.0
      %849 = vmatpush1.msra.mxu0 0.0
      %850 = vmatprep.subr.mxu0 0.0
      %851 = vmatpush1.msra.mxu0 0.0
      %852 = vmatprep.subr.mxu0 0.0
      %853 = vmatpush1.msra.mxu0 0.0
      %854 = vmatprep.subr.mxu0 0.0
      %855 = vmatpush1.msra.mxu0 0.0
      %856 = vmatprep.subr.mxu0 0.0
      %857 = vmatpush1.msra.mxu0 0.0
      %858 = vmatprep.subr.mxu0 0.0
      %859 = vmatpush1.msra.mxu0 0.0
      %860 = vmatprep.subr.mxu0 0.0
      %861 = vmatpush1.msra.mxu0 0.0
      %862 = vmatprep.subr.mxu0 0.0
      %863 = vmatpush1.msra.mxu0 0.0
      %864 = vmatprep.subr.mxu0 0.0
      %865 = vmatpush1.msra.mxu0 0.0
      %866 = vmatprep.subr.mxu0 0.0
      %867 = vmatpush1.msra.mxu0 0.0
      %868 = vmatprep.subr.mxu0 0.0
      %869 = vmatpush1.msra.mxu0 0.0
      %870 = vmatprep.subr.mxu0 0.0
      %871 = vmatpush1.msra.mxu0 0.0
      %872 = vmatprep.subr.mxu0 0.0
      %873 = vmatpush1.msra.mxu0 0.0
      %874 = vmatprep.subr.mxu0 0.0
      %875 = vmatpush1.msra.mxu0 0.0
      %876 = vmatprep.subr.mxu0 0.0
      %877 = vmatpush1.msra.mxu0 0.0
      %878 = vmatprep.subr.mxu0 0.0
      %879 = vmatpush1.msra.mxu0 0.0
      %880 = vmatprep.subr.mxu0 0.0
      %881 = vmatpush1.msra.mxu0 0.0
      %882 = vmatprep.subr.mxu0 0.0
      %883 = vmatpush1.msra.mxu0 0.0
      %884 = vmatprep.subr.mxu0 0.0
      %885 = vmatpush1.msra.mxu0 0.0
      %886 = vmatprep.subr.mxu0 0.0
      %887 = vmatpush1.msra.mxu0 0.0
      %888 = vmatprep.subr.mxu0 0.0
      %889 = vmatpush1.msra.mxu0 0.0
      %890 = vmatprep.subr.mxu0 0.0
      %891 = vmatpush1.msra.mxu0 0.0
      %892 = vmatprep.subr.mxu0 0.0
      %893 = vmatpush1.msra.mxu0 0.0
      %894 = vmatprep.subr.mxu0 0.0
      %895 = vmatpush1.msra.mxu0 0.0
      %896 = vmatprep.subr.mxu0 0.0
      %897 = vmatpush1.msra.mxu0 0.0
      %898 = vmatprep.subr.mxu0 0.0
      %899 = vmatpush1.msra.mxu0 0.0
      %900 = vmatprep.subr.mxu0 0.0
      %901 = vmatpush1.msra.mxu0 0.0
      %902 = vmatprep.subr.mxu0 0.0
      %903 = vmatpush1.msra.mxu0 0.0
      %904 = vmatprep.subr.mxu0 0.0
      %905 = vmatpush1.msra.mxu0 0.0
      %906 = vmatprep.subr.mxu0 0.0
      %907 = vmatpush1.msra.mxu0 0.0
      %908 = vmatprep.subr.mxu0 0.0
      %909 = vmatpush1.msra.mxu0 0.0
      %910 = vmatprep.mubr.f32.mxu0 0.0
      %911 = vmatmul.mubr.f32.gmra.mrb[0].mxu0 %v844
      %v912 = vpop.f32.mrb[0].mxu0
      %v913 = vadd.f32 0.0, %v912
      %v914 = vpop.f32.mrb[0].mxu0
      %915 = vdwg.mxu0
      %v916 = vadd.f32 %v837, %v913
      %917 = vst.msk [vmem:[%s830] sm:$0xff] %vm336, %v916
      %918 = vst.msk [vmem:[%s805] sm:$0xff] %vm437, %v810
      %v919 = vld [vmem:[%s282] sm:$0xff]
      %v920 = vmul.f32 %v919, 0.17677669
      %v921 = vld [vmem:[%s289] sm:$0xff]
      %923 = vrot.lane.b32.xlu0 %v920, 32
      %v924 = vpop.permute.xlu0 %923
      %926 = vrot.lane.b32.xlu0 %v921, 32
      %v927 = vpop.permute.xlu0 %926
      %v928 = vsel %vm336, %v924, 0
      %v930 = vsel %vm336, %v927, 0
      %932 = vmatprep.subr.mxu0 0.0
      %933 = vmatpush1.xpose.msra.mxu0 %v930
      %934 = vmatprep.subr.mxu0 0.0
      %935 = vmatpush1.xpose.msra.mxu0 0.0
      %936 = vmatprep.subr.mxu0 0.0
      %937 = vmatpush1.xpose.msra.mxu0 0.0
      %938 = vmatprep.subr.mxu0 0.0
      %939 = vmatpush1.xpose.msra.mxu0 0.0
      %940 = vmatprep.subr.mxu0 0.0
      %941 = vmatpush1.xpose.msra.mxu0 0.0
      %942 = vmatprep.subr.mxu0 0.0
      %943 = vmatpush1.xpose.msra.mxu0 0.0
      %944 = vmatprep.subr.mxu0 0.0
      %945 = vmatpush1.xpose.msra.mxu0 0.0
      %946 = vmatprep.subr.mxu0 0.0
      %947 = vmatpush1.xpose.msra.mxu0 0.0
      %948 = vmatprep.subr.mxu0 0.0
      %949 = vmatpush1.xpose.msra.mxu0 0.0
      %950 = vmatprep.subr.mxu0 0.0
      %951 = vmatpush1.xpose.msra.mxu0 0.0
      %952 = vmatprep.subr.mxu0 0.0
      %953 = vmatpush1.xpose.msra.mxu0 0.0
      %954 = vmatprep.subr.mxu0 0.0
      %955 = vmatpush1.xpose.msra.mxu0 0.0
      %956 = vmatprep.subr.mxu0 0.0
      %957 = vmatpush1.xpose.msra.mxu0 0.0
      %958 = vmatprep.subr.mxu0 0.0
      %959 = vmatpush1.xpose.msra.mxu0 0.0
      %960 = vmatprep.subr.mxu0 0.0
      %961 = vmatpush1.xpose.msra.mxu0 0.0
      %962 = vmatprep.subr.mxu0 0.0
      %963 = vmatpush1.xpose.msra.mxu0 0.0
      %964 = vmatprep.subr.mxu0 0.0
      %965 = vmatpush1.xpose.msra.mxu0 0.0
      %966 = vmatprep.subr.mxu0 0.0
      %967 = vmatpush1.xpose.msra.mxu0 0.0
      %968 = vmatprep.subr.mxu0 0.0
      %969 = vmatpush1.xpose.msra.mxu0 0.0
      %970 = vmatprep.subr.mxu0 0.0
      %971 = vmatpush1.xpose.msra.mxu0 0.0
      %972 = vmatprep.subr.mxu0 0.0
      %973 = vmatpush1.xpose.msra.mxu0 0.0
      %974 = vmatprep.subr.mxu0 0.0
      %975 = vmatpush1.xpose.msra.mxu0 0.0
      %976 = vmatprep.subr.mxu0 0.0
      %977 = vmatpush1.xpose.msra.mxu0 0.0
      %978 = vmatprep.subr.mxu0 0.0
      %979 = vmatpush1.xpose.msra.mxu0 0.0
      %980 = vmatprep.subr.mxu0 0.0
      %981 = vmatpush1.xpose.msra.mxu0 0.0
      %982 = vmatprep.subr.mxu0 0.0
      %983 = vmatpush1.xpose.msra.mxu0 0.0
      %984 = vmatprep.subr.mxu0 0.0
      %985 = vmatpush1.xpose.msra.mxu0 0.0
      %986 = vmatprep.subr.mxu0 0.0
      %987 = vmatpush1.xpose.msra.mxu0 0.0
      %988 = vmatprep.subr.mxu0 0.0
      %989 = vmatpush1.xpose.msra.mxu0 0.0
      %990 = vmatprep.subr.mxu0 0.0
      %991 = vmatpush1.xpose.msra.mxu0 0.0
      %992 = vmatprep.subr.mxu0 0.0
      %993 = vmatpush1.xpose.msra.mxu0 0.0
      %994 = vmatprep.subr.mxu0 0.0
      %995 = vmatpush1.xpose.msra.mxu0 0.0
      %996 = vmatprep.mubr.f32.mxu0 0.0
      %997 = vmatmul.mubr.f32.gmra.mrb[0].mxu0 %v928
      %v998 = vpop.f32.mrb[0].mxu0
      %v999 = vadd.f32 0.0, %v998
      %v1000 = vpop.f32.mrb[0].mxu0
      %1001 = vdwg.mxu0
      %v1002 = vsel %vm332, %v999, -1e+30
      %s1003 = scalar_lea.vmem [#allocation2], 24
      %v1004 = vld [vmem:[%s1003] sm:$0xff]
      %v1005 = vsel %vm415, %v1002, -inf
      %1006 = vmax.xlane.f32.xlu0 %v1005
      %v1007 = vpop.xlane.xlu0 %1006
      %v1008 = vmax.f32 %v1004, %v1007
      %v1009 = vsub.f32 %v1004, %v1008
      %v1010 = vmul.f32 %v1009, 1.442695
      %v1011 = vpow.pop %v1010
      %1013 = vset.pattern.permute.xlu0 0
      %1014 = vperm.xlu0 %1013, %v1008
      %v1015 = vpop.permute.xlu0 %1014
      %v1017 = vsub.f32 %v1002, %v1015
      %v1018 = vmul.f32 %v1017, 1.442695
      %v1019 = vpow.pop %v1018
      %s1020 = scalar_lea.vmem [#allocation3], 24
      %v1021 = vld [vmem:[%s1020] sm:$0xff]
      %v1022 = vmul.f32 %v1011, %v1021
      %v1023 = vsel %vm415, %v1019, 0.0
      %1024 = vadd.xlane.f32.xlu0 %v1023
      %v1025 = vpop.xlane.xlu0 %1024
      %v1026 = vadd.f32 %v1022, %v1025
      %1027 = vst.msk [vmem:[%s1020] sm:$0xff] %vm437, %v1026
      %s1028 = scalar_lea.vmem [#allocation4], 24
      %v1029 = vld [vmem:[%s1028] sm:$0xff]
      %1031 = vset.pattern.permute.xlu0 0
      %1032 = vperm.xlu0 %1031, %v1011
      %v1033 = vpop.permute.xlu0 %1032
      %v1035 = vmul.f32 %v1033, %v1029
      %v1036 = vld [vmem:[%s297] sm:$0xff]
      %1038 = vrot.lane.b32.xlu0 %v1036, 32
      %v1039 = vpop.permute.xlu0 %1038
      %v1042 = vsel %vm415, %v1019, 0
      %1044 = vmatprep.subr.mxu0 0.0
      %1045 = vmatpush1.msra.mxu0 %v1039
      %1046 = vmatprep.subr.mxu0 0.0
      %1047 = vmatpush1.msra.mxu0 0.0
      %1048 = vmatprep.subr.mxu0 0.0
      %1049 = vmatpush1.msra.mxu0 0.0
      %1050 = vmatprep.subr.mxu0 0.0
      %1051 = vmatpush1.msra.mxu0 0.0
      %1052 = vmatprep.subr.mxu0 0.0
      %1053 = vmatpush1.msra.mxu0 0.0
      %1054 = vmatprep.subr.mxu0 0.0
      %1055 = vmatpush1.msra.mxu0 0.0
      %1056 = vmatprep.subr.mxu0 0.0
      %1057 = vmatpush1.msra.mxu0 0.0
      %1058 = vmatprep.subr.mxu0 0.0
      %1059 = vmatpush1.msra.mxu0 0.0
      %1060 = vmatprep.subr.mxu0 0.0
      %1061 = vmatpush1.msra.mxu0 0.0
      %1062 = vmatprep.subr.mxu0 0.0
      %1063 = vmatpush1.msra.mxu0 0.0
      %1064 = vmatprep.subr.mxu0 0.0
      %1065 = vmatpush1.msra.mxu0 0.0
      %1066 = vmatprep.subr.mxu0 0.0
      %1067 = vmatpush1.msra.mxu0 0.0
      %1068 = vmatprep.subr.mxu0 0.0
      %1069 = vmatpush1.msra.mxu0 0.0
      %1070 = vmatprep.subr.mxu0 0.0
      %1071 = vmatpush1.msra.mxu0 0.0
      %1072 = vmatprep.subr.mxu0 0.0
      %1073 = vmatpush1.msra.mxu0 0.0
      %1074 = vmatprep.subr.mxu0 0.0
      %1075 = vmatpush1.msra.mxu0 0.0
      %1076 = vmatprep.subr.mxu0 0.0
      %1077 = vmatpush1.msra.mxu0 0.0
      %1078 = vmatprep.subr.mxu0 0.0
      %1079 = vmatpush1.msra.mxu0 0.0
      %1080 = vmatprep.subr.mxu0 0.0
      %1081 = vmatpush1.msra.mxu0 0.0
      %1082 = vmatprep.subr.mxu0 0.0
      %1083 = vmatpush1.msra.mxu0 0.0
      %1084 = vmatprep.subr.mxu0 0.0
      %1085 = vmatpush1.msra.mxu0 0.0
      %1086 = vmatprep.subr.mxu0 0.0
      %1087 = vmatpush1.msra.mxu0 0.0
      %1088 = vmatprep.subr.mxu0 0.0
      %1089 = vmatpush1.msra.mxu0 0.0
      %1090 = vmatprep.subr.mxu0 0.0
      %1091 = vmatpush1.msra.mxu0 0.0
      %1092 = vmatprep.subr.mxu0 0.0
      %1093 = vmatpush1.msra.mxu0 0.0
      %1094 = vmatprep.subr.mxu0 0.0
      %1095 = vmatpush1.msra.mxu0 0.0
      %1096 = vmatprep.subr.mxu0 0.0
      %1097 = vmatpush1.msra.mxu0 0.0
      %1098 = vmatprep.subr.mxu0 0.0
      %1099 = vmatpush1.msra.mxu0 0.0
      %1100 = vmatprep.subr.mxu0 0.0
      %1101 = vmatpush1.msra.mxu0 0.0
      %1102 = vmatprep.subr.mxu0 0.0
      %1103 = vmatpush1.msra.mxu0 0.0
      %1104 = vmatprep.subr.mxu0 0.0
      %1105 = vmatpush1.msra.mxu0 0.0
      %1106 = vmatprep.subr.mxu0 0.0
      %1107 = vmatpush1.msra.mxu0 0.0
      %1108 = vmatprep.mubr.f32.mxu0 0.0
      %1109 = vmatmul.mubr.f32.gmra.mrb[0].mxu0 %v1042
      %v1110 = vpop.f32.mrb[0].mxu0
      %v1111 = vadd.f32 0.0, %v1110
      %v1112 = vpop.f32.mrb[0].mxu0
      %1113 = vdwg.mxu0
      %v1114 = vadd.f32 %v1035, %v1111
      %1115 = vst.msk [vmem:[%s1028] sm:$0xff] %vm336, %v1114
      %1116 = vst.msk [vmem:[%s1003] sm:$0xff] %vm437, %v1008
      // Predicated region
      $region41: #{decoder_forward.26} parent=35 // pred_check
        %p1117 = pneg %p305
      $region42: #{decoder_forward.26} parent=35 // pred_check_branch
        %1119 = sbr.rel (%p1117) target = $region44
      $region43: #{decoder_forward.26} parent=35 // pred_region
        %v1120 = vld [vmem:[#allocation4] sm:$0xff]
        %v1121 = vld [vmem:[#allocation3] sm:$0xff]
        %v1122 = vrcp.pop %v1121
        %1124 = vset.pattern.permute.xlu0 0
        %1125 = vperm.xlu0 %1124, %v1122
        %v1126 = vpop.permute.xlu0 %1125
        %v1128 = vmul.f32 %v1120, %v1126
        %v1129 = vld [vmem:[%s632] sm:$0xff]
        %v1130 = vld [vmem:[%s624] sm:$0xff]
        %v1131 = vrcp.pop %v1130
        %1133 = vset.pattern.permute.xlu0 0
        %1134 = vperm.xlu0 %1133, %v1131
        %v1135 = vpop.permute.xlu0 %1134
        %v1137 = vmul.f32 %v1129, %v1135
        %v1138 = vld [vmem:[%s830] sm:$0xff]
        %v1139 = vld [vmem:[%s822] sm:$0xff]
        %v1140 = vrcp.pop %v1139
        %1142 = vset.pattern.permute.xlu0 0
        %1143 = vperm.xlu0 %1142, %v1140
        %v1144 = vpop.permute.xlu0 %1143
        %v1146 = vmul.f32 %v1138, %v1144
        %v1147 = vld [vmem:[%s1028] sm:$0xff]
        %v1148 = vld [vmem:[%s1020] sm:$0xff]
        %v1149 = vrcp.pop %v1148
        %1151 = vset.pattern.permute.xlu0 0
        %1152 = vperm.xlu0 %1151, %v1149
        %v1153 = vpop.permute.xlu0 %1152
        %v1155 = vmul.f32 %v1147, %v1153
        %1157 = vrot.lane.b32.xlu0 %v1137, 32
        %v1158 = vpop.permute.xlu0 %1157
        %1161 = vrot.lane.b32.xlu0 %v1146, 64
        %v1162 = vpop.permute.xlu0 %1161
        %1165 = vrot.lane.b32.xlu0 %v1155, 96
        %v1166 = vpop.permute.xlu0 %1165
        %v1168 = vsel %vm336, %v1128, %v1158
        %vm1169 = vcmask 523264
        %v1170 = vsel %vm1169, %v1168, %v1162
        %vm1171 = vcmask 785408
        %v1172 = vsel %vm1171, %v1170, %v1166
        %1173 = vst [vmem:[%s303] sm:$0xff] %v1172
      $region44: #{decoder_forward.26} parent=35 // pred_fallthru
        _
      %s1174 = sadd.s32 %s20, %s21
      %p1175 = scmp.lt.s32.totalorder %s1174, 1
      %s1176 = scalar_select %p1175, %s1174, 1
      %s1177 = smul.addr %s1176, 8
      %s1178 = scalar_lea.vmem %s4, %s1177
      // Predicated region
      $region45: #{decoder_forward.26} parent=35 // pred_check
        %p1179 = pneg %p166
      $region46: #{decoder_forward.26} parent=35 // pred_check_branch
        %1181 = sbr.rel (%p1179) target = $region48
      $region47: #{decoder_forward.26} parent=35 // pred_region
        %s1182 = sadd.s32 %s20, %s21
      $region48: #{decoder_forward.26} parent=35 // pred_fallthru
        _
    $region36: #{decoder_forward.26} parent=5 // pred_fallthru
      _
    %p1183 = scmp.le.s32.totalorder 2, %s10
    // Predicated region
    $region49: #{decoder_forward.26} parent=5 // pred_check
      %p1184 = pneg %p1183
    $region50: #{decoder_forward.26} parent=5 // pred_check_branch
      %1186 = sbr.rel (%p1184) target = $region52
    $region51: #{decoder_forward.26} parent=5 // pred_region
      %s1187 = ssub.s32 %s10, 2
      // Predicated region
      $region53: #{decoder_forward.26} parent=51 // pred_check
        %p1188 = pneg %p172
      $region54: #{decoder_forward.26} parent=51 // pred_check_branch
        %1190 = sbr.rel (%p1188) target = $region56
      $region55: #{decoder_forward.26} parent=51 // pred_region
        %s1191 = sadd.s32 %s23, %s24
        %p1192 = scmp.lt.s32.totalorder %s1191, 1
        %s1193 = scalar_select %p1192, %s1191, 1
        %s1194 = smul.addr %s1193, 8
        %s1195 = scalar_lea.vmem %s4, %s1194
      $region56: #{decoder_forward.26} parent=51 // pred_fallthru
        _
    $region52: #{decoder_forward.26} parent=5 // pred_fallthru
      _
  $region6: #{decoder_forward.26} parent=0 // loop_footer
    %s14 = sadd.s32 1, %s10
  $region7: #{decoder_forward.26} parent=0 // loop_footer_branch
    %9 = sbr.rel target = $region3
  $region8: #{decoder_forward.26} parent=0 // loop_exit
    _

// kernel: decoder_forward.29
$region0: #{decoder_forward.29}
  #allocation0 [shape = 'u32[]', space=smem, size = 0x4, offset = 0x4, fixed_abs, tag = 'smem constant byte address 0x4 - core index']
  #allocation1 [shape = 'u32[144,128]{1,0:T(1,128)}', space=vmem, size = 0x12000, scoped, tag = 'internal scratch']
  #allocation2 [shape = 'f32[16,128]{1,0:T(8,128)}', space=vmem, size = 0x2000, scoped, tag = 'scratch operand']
  %s0 = inlined_call_operand.vmem [shape: f32[16,256], index: 0, kind: input, shape index: {}]
  %s1 = inlined_call_operand.vmem [shape: f32[256,128], index: 1, kind: input, shape index: {}]
  %s2 = inlined_call_operand.vmem [shape: f32[1,128], index: 2, kind: input, shape index: {}]
  %s3 = inlined_call_operand.vmem [shape: f32[16,128], index: 3, kind: input, shape index: {}]
  %s4 = inlined_call_operand.vmem [shape: f32[1,128], index: 4, kind: input, shape index: {}]
  %s5 = inlined_call_operand.vmem [shape: f32[1,128], index: 5, kind: input, shape index: {}]
  %s6 = inlined_call_operand.vmem [shape: f32[16,128], index: 6, kind: output, shape index: {}]
  %s7 = sld [smem:[#allocation0]]
  $region42: #{decoder_forward.29} parent=0
    _
  %s9 = ssub.s32 1, %s7
  %s10 = scalar_select 0, %s9, %s7
  // Predicated region
  $region2: #{decoder_forward.29} parent=0 // pred_check
    _
  $region3: #{decoder_forward.29} parent=0 // pred_check_branch
    %12 = sbr.rel (0) target = $region5
  $region4: #{decoder_forward.29} parent=0 // pred_region
    _
  $region5: #{decoder_forward.29} parent=0 // pred_fallthru
    _
  // Predicated region
  $region6: #{decoder_forward.29} parent=0 // pred_check
    _
  $region7: #{decoder_forward.29} parent=0 // pred_check_branch
    %14 = sbr.rel (0) target = $region9
  $region8: #{decoder_forward.29} parent=0 // pred_region
    _
  $region9: #{decoder_forward.29} parent=0 // pred_fallthru
    _
  // Predicated region
  $region10: #{decoder_forward.29} parent=0 // pred_check
    _
  $region11: #{decoder_forward.29} parent=0 // pred_check_branch
    %16 = sbr.rel (0) target = $region13
  $region12: #{decoder_forward.29} parent=0 // pred_region
    _
  $region13: #{decoder_forward.29} parent=0 // pred_fallthru
    _
  // Predicated region
  $region14: #{decoder_forward.29} parent=0 // pred_check
    _
  $region15: #{decoder_forward.29} parent=0 // pred_check_branch
    %18 = sbr.rel (0) target = $region17
  $region16: #{decoder_forward.29} parent=0 // pred_region
    _
  $region17: #{decoder_forward.29} parent=0 // pred_fallthru
    _
  // Predicated region
  $region18: #{decoder_forward.29} parent=0 // pred_check
    _
  $region19: #{decoder_forward.29} parent=0 // pred_check_branch
    %20 = sbr.rel (0) target = $region21
  $region20: #{decoder_forward.29} parent=0 // pred_region
    _
  $region21: #{decoder_forward.29} parent=0 // pred_fallthru
    _
  // Predicated region
  $region22: #{decoder_forward.29} parent=0 // pred_check
    _
  $region23: #{decoder_forward.29} parent=0 // pred_check_branch
    %22 = sbr.rel (0) target = $region25
  $region24: #{decoder_forward.29} parent=0 // pred_region
    _
  $region25: #{decoder_forward.29} parent=0 // pred_fallthru
    _
  %p23 = scmp.eq.s32.totalorder 0, 0
  // Predicated region
  $region26: #{decoder_forward.29} parent=0 // pred_check
    %p24 = pneg %p23
  $region27: #{decoder_forward.29} parent=0 // pred_check_branch
    %26 = sbr.rel (%p24) target = $region29
  $region28: #{decoder_forward.29} parent=0 // pred_region
    %27 = vst [vmem:[#allocation2] sm:$0xff] 0.0
    %28 = vst [vmem:[#allocation2 + $0x8] sm:$0xff] 0.0
  $region29: #{decoder_forward.29} parent=0 // pred_fallthru
    _
  %v29 = vld [vmem:[#allocation2] sm:$0xff]
  %v30 = vld [vmem:[#allocation2 + $0x8] sm:$0xff]
  %v31 = vld [vmem:[%s0] sm:$0xff]
  %v32 = vld [vmem:[%s0 + $0x8] sm:$0xff]
  %v33 = vld [vmem:[%s0 + $0x10] sm:$0xff]
  %v34 = vld [vmem:[%s0 + $0x18] sm:$0xff]
  %v35 = vld [vmem:[%s1] sm:$0xff]
  %v36 = vld [vmem:[%s1 + $0x8] sm:$0xff]
  %v37 = vld [vmem:[%s1 + $0x10] sm:$0xff]
  %v38 = vld [vmem:[%s1 + $0x18] sm:$0xff]
  %v39 = vld [vmem:[%s1 + $0x20] sm:$0xff]
  %v40 = vld [vmem:[%s1 + $0x28] sm:$0xff]
  %v41 = vld [vmem:[%s1 + $0x30] sm:$0xff]
  %v42 = vld [vmem:[%s1 + $0x38] sm:$0xff]
  %v43 = vld [vmem:[%s1 + $0x40] sm:$0xff]
  %v44 = vld [vmem:[%s1 + $0x48] sm:$0xff]
  %v45 = vld [vmem:[%s1 + $0x50] sm:$0xff]
  %v46 = vld [vmem:[%s1 + $0x58] sm:$0xff]
  %v47 = vld [vmem:[%s1 + $0x60] sm:$0xff]
  %v48 = vld [vmem:[%s1 + $0x68] sm:$0xff]
  %v49 = vld [vmem:[%s1 + $0x70] sm:$0xff]
  %v50 = vld [vmem:[%s1 + $0x78] sm:$0xff]
  %v51 = vld [vmem:[%s1 + $0x80] sm:$0xff]
  %v52 = vld [vmem:[%s1 + $0x88] sm:$0xff]
  %v53 = vld [vmem:[%s1 + $0x90] sm:$0xff]
  %v54 = vld [vmem:[%s1 + $0x98] sm:$0xff]
  %v55 = vld [vmem:[%s1 + $0xa0] sm:$0xff]
  %v56 = vld [vmem:[%s1 + $0xa8] sm:$0xff]
  %v57 = vld [vmem:[%s1 + $0xb0] sm:$0xff]
  %v58 = vld [vmem:[%s1 + $0xb8] sm:$0xff]
  %v59 = vld [vmem:[%s1 + $0xc0] sm:$0xff]
  %v60 = vld [vmem:[%s1 + $0xc8] sm:$0xff]
  %v61 = vld [vmem:[%s1 + $0xd0] sm:$0xff]
  %v62 = vld [vmem:[%s1 + $0xd8] sm:$0xff]
  %v63 = vld [vmem:[%s1 + $0xe0] sm:$0xff]
  %v64 = vld [vmem:[%s1 + $0xe8] sm:$0xff]
  %v65 = vld [vmem:[%s1 + $0xf0] sm:$0xff]
  %v66 = vld [vmem:[%s1 + $0xf8] sm:$0xff]
  %67 = vmatprep.subr.mxu0 0.0
  %68 = vmatpush1.msra.mxu0 %v35
  %69 = vmatprep.subr.mxu0 0.0
  %70 = vmatpush1.msra.mxu0 %v36
  %71 = vmatprep.subr.mxu0 0.0
  %72 = vmatpush1.msra.mxu0 %v37
  %73 = vmatprep.subr.mxu0 0.0
  %74 = vmatpush1.msra.mxu0 %v38
  %75 = vmatprep.subr.mxu0 0.0
  %76 = vmatpush1.msra.mxu0 %v39
  %77 = vmatprep.subr.mxu0 0.0
  %78 = vmatpush1.msra.mxu0 %v40
  %79 = vmatprep.subr.mxu0 0.0
  %80 = vmatpush1.msra.mxu0 %v41
  %81 = vmatprep.subr.mxu0 0.0
  %82 = vmatpush1.msra.mxu0 %v42
  %83 = vmatprep.subr.mxu0 0.0
  %84 = vmatpush1.msra.mxu0 %v43
  %85 = vmatprep.subr.mxu0 0.0
  %86 = vmatpush1.msra.mxu0 %v44
  %87 = vmatprep.subr.mxu0 0.0
  %88 = vmatpush1.msra.mxu0 %v45
  %89 = vmatprep.subr.mxu0 0.0
  %90 = vmatpush1.msra.mxu0 %v46
  %91 = vmatprep.subr.mxu0 0.0
  %92 = vmatpush1.msra.mxu0 %v47
  %93 = vmatprep.subr.mxu0 0.0
  %94 = vmatpush1.msra.mxu0 %v48
  %95 = vmatprep.subr.mxu0 0.0
  %96 = vmatpush1.msra.mxu0 %v49
  %97 = vmatprep.subr.mxu0 0.0
  %98 = vmatpush1.msra.mxu0 %v50
  %99 = vmatprep.subr.mxu0 0.0
  %100 = vmatpush1.msra.mxu0 %v51
  %101 = vmatprep.subr.mxu0 0.0
  %102 = vmatpush1.msra.mxu0 %v52
  %103 = vmatprep.subr.mxu0 0.0
  %104 = vmatpush1.msra.mxu0 %v53
  %105 = vmatprep.subr.mxu0 0.0
  %106 = vmatpush1.msra.mxu0 %v54
  %107 = vmatprep.subr.mxu0 0.0
  %108 = vmatpush1.msra.mxu0 %v55
  %109 = vmatprep.subr.mxu0 0.0
  %110 = vmatpush1.msra.mxu0 %v56
  %111 = vmatprep.subr.mxu0 0.0
  %112 = vmatpush1.msra.mxu0 %v57
  %113 = vmatprep.subr.mxu0 0.0
  %114 = vmatpush1.msra.mxu0 %v58
  %115 = vmatprep.subr.mxu0 0.0
  %116 = vmatpush1.msra.mxu0 %v59
  %117 = vmatprep.subr.mxu0 0.0
  %118 = vmatpush1.msra.mxu0 %v60
  %119 = vmatprep.subr.mxu0 0.0
  %120 = vmatpush1.msra.mxu0 %v61
  %121 = vmatprep.subr.mxu0 0.0
  %122 = vmatpush1.msra.mxu0 %v62
  %123 = vmatprep.subr.mxu0 0.0
  %124 = vmatpush1.msra.mxu0 %v63
  %125 = vmatprep.subr.mxu0 0.0
  %126 = vmatpush1.msra.mxu0 %v64
  %127 = vmatprep.subr.mxu0 0.0
  %128 = vmatpush1.msra.mxu0 %v65
  %129 = vmatprep.subr.mxu0 0.0
  %130 = vmatpush1.msra.mxu0 %v66
  %131 = vmatprep.mubr.f32.mxu0 %v32
  %132 = vmatmul.mubr.f32.gmra.mrb[0].mxu0 %v31
  %v133 = vpop.f32.mrb[0].mxu0
  %v134 = vadd.f32 0.0, %v133
  %v135 = vpop.f32.mrb[0].mxu0
  %136 = vmatprep.mubr.f32.mxu0 %v34
  %137 = vmatmul.mubr.f32.gmra.mrb[0].mxu0 %v33
  %v138 = vpop.f32.mrb[0].mxu0
  %v139 = vadd.f32 0.0, %v138
  %v140 = vpop.f32.mrb[0].mxu0
  %141 = vdwg.mxu0
  %v142 = vadd.f32 %v29, %v134
  %v143 = vadd.f32 %v30, %v139
  %144 = vst [vmem:[#allocation2] sm:$0xff] %v142
  %145 = vst [vmem:[#allocation2 + $0x8] sm:$0xff] %v143
  // Predicated region
  $region30: #{decoder_forward.29} parent=0 // pred_check
    %p146 = pneg %p23
  $region31: #{decoder_forward.29} parent=0 // pred_check_branch
    %148 = sbr.rel (%p146) target = $region33
  $region32: #{decoder_forward.29} parent=0 // pred_region
    %v149 = vld [vmem:[#allocation2] sm:$0xff]
    %v150 = vld [vmem:[#allocation2 + $0x8] sm:$0xff]
    %v151 = vld [vmem:[%s2] sm:$0x1]
    %v153 = vlaneseq
    %v154 = vshrl.u32 %v153, 7
    %v155 = vsub.s32 0, %v154
    %v156 = vrot.slane %v151, %v155
    %v158 = vadd.f32 %v149, %v156
    %v159 = vadd.f32 %v150, %v156
    %v160 = vld [vmem:[%s3] sm:$0xff]
    %v161 = vld [vmem:[%s3 + $0x8] sm:$0xff]
    %v162 = vadd.f32 %v158, %v160
    %v163 = vadd.f32 %v159, %v161
    %164 = vadd.xlane.f32.xlu0 %v162
    %v165 = vpop.xlane.xlu0 %164
    %166 = vadd.xlane.f32.xlu0 %v163
    %v167 = vpop.xlane.xlu0 %166
    %v168 = vrcp.pop 128.0
    %v169 = vmul.f32 %v165, %v168
    %v170 = vmul.f32 %v167, %v168
    %v171 = vsub.f32 %v162, %v169
    %v172 = vsub.f32 %v163, %v170
    %v173 = vmul.f32 %v171, %v171
    %v174 = vmul.f32 %v172, %v172
    %175 = vadd.xlane.f32.xlu0 %v173
    %v176 = vpop.xlane.xlu0 %175
    %177 = vadd.xlane.f32.xlu0 %v174
    %v178 = vpop.xlane.xlu0 %177
    %v179 = vmul.f32 %v176, %v168
    %v180 = vmul.f32 %v178, %v168
    %v181 = vadd.f32 %v179, 1e-05
    %v182 = vadd.f32 %v180, 1e-05
    %v183 = vrsqrt.pop %v181
    %v184 = vrsqrt.pop %v182
    %v185 = vmul.f32 %v171, %v183
    %v186 = vmul.f32 %v172, %v184
    %v187 = vld [vmem:[%s4] sm:$0x1]
    %v189 = vlaneseq
    %v190 = vshrl.u32 %v189, 7
    %v191 = vsub.s32 0, %v190
    %v192 = vrot.slane %v187, %v191
    %v194 = vmul.f32 %v185, %v192
    %v195 = vmul.f32 %v186, %v192
    %v196 = vld [vmem:[%s5] sm:$0x1]
    %v198 = vlaneseq
    %v199 = vshrl.u32 %v198, 7
    %v200 = vsub.s32 0, %v199
    %v201 = vrot.slane %v196, %v200
    %v203 = vadd.f32 %v194, %v201
    %v204 = vadd.f32 %v195, %v201
    %205 = vst [vmem:[%s6] sm:$0xff] %v203
    %206 = vst [vmem:[%s6 + $0x8] sm:$0xff] %v204
  $region33: #{decoder_forward.29} parent=0 // pred_fallthru
    _
  // Predicated region
  $region34: #{decoder_forward.29} parent=0 // pred_check
    _
  $region35: #{decoder_forward.29} parent=0 // pred_check_branch
    %208 = sbr.rel (0) target = $region37
  $region36: #{decoder_forward.29} parent=0 // pred_region
    _
  $region37: #{decoder_forward.29} parent=0 // pred_fallthru
    _
  // Predicated region
  $region38: #{decoder_forward.29} parent=0 // pred_check
    _
  $region39: #{decoder_forward.29} parent=0 // pred_check_branch
    %210 = sbr.rel (0) target = $region41
  $region40: #{decoder_forward.29} parent=0 // pred_region
    _
  $region41: #{decoder_forward.29} parent=0 // pred_fallthru
    _

// kernel: decoder_forward.39
$region0: #{decoder_forward.39}
  #allocation0 [shape = 'u32[]', space=smem, size = 0x4, offset = 0x4, fixed_abs, tag = 'smem constant byte address 0x4 - core index']
  #allocation1 [shape = 'u32[144,128]{1,0:T(1,128)}', space=vmem, size = 0x12000, scoped, tag = 'internal scratch']
  #allocation2 [shape = 'f32[16,256]{1,0:T(8,128)}', space=vmem, size = 0x4000, scoped, tag = 'scratch operand']
  %s0 = inlined_call_operand.vmem [shape: f32[16,128], index: 0, kind: input, shape index: {}]
  %s1 = inlined_call_operand.vmem [shape: f32[128,256], index: 1, kind: input, shape index: {}]
  %s2 = inlined_call_operand.vmem [shape: f32[1,256], index: 2, kind: input, shape index: {}]
  %s3 = inlined_call_operand.hbm [shape: f32[16,256], index: 3, kind: output, shape index: {}]
  %s4 = sld [smem:[#allocation0]]
  $region30: #{decoder_forward.39} parent=0
    _
  %s6 = ssub.s32 1, %s4
  %s7 = scalar_select 0, %s6, %s4
  $region1: #{decoder_forward.39} parent=0
    #allocation3 [shape = 'u8[16384]{0}', space=vmem, size = 0x4000, scoped, tag = 'output window, operand 0, single buffered']
    #allocation4 [shape = 's32[1]{0}', space=sflag, size = 0x4, scoped, tag = 'scoped memory for decoder_forward.39']
    %8 = vsyncpa [#allocation4], 0
    // Predicated region
    $region2: #{decoder_forward.39} parent=1 // pred_check
      _
    $region3: #{decoder_forward.39} parent=1 // pred_check_branch
      %10 = sbr.rel (0) target = $region5
    $region4: #{decoder_forward.39} parent=1 // pred_region
      _
    $region5: #{decoder_forward.39} parent=1 // pred_fallthru
      _
    // Predicated region
    $region6: #{decoder_forward.39} parent=1 // pred_check
      _
    $region7: #{decoder_forward.39} parent=1 // pred_check_branch
      %12 = sbr.rel (0) target = $region9
    $region8: #{decoder_forward.39} parent=1 // pred_region
      _
    $region9: #{decoder_forward.39} parent=1 // pred_fallthru
      _
    // Predicated region
    $region10: #{decoder_forward.39} parent=1 // pred_check
      _
    $region11: #{decoder_forward.39} parent=1 // pred_check_branch
      %14 = sbr.rel (0) target = $region13
    $region12: #{decoder_forward.39} parent=1 // pred_region
      _
    $region13: #{decoder_forward.39} parent=1 // pred_fallthru
      _
    %p15 = scmp.eq.s32.totalorder 0, 0
    // Predicated region
    $region14: #{decoder_forward.39} parent=1 // pred_check
      %p16 = pneg %p15
    $region15: #{decoder_forward.39} parent=1 // pred_check_branch
      %18 = sbr.rel (%p16) target = $region17
    $region16: #{decoder_forward.39} parent=1 // pred_region
      %19 = vst [vmem:[#allocation2] sm:$0xff] 0.0
      %20 = vst [vmem:[#allocation2 + $0x8] sm:$0xff] 0.0
      %21 = vst [vmem:[#allocation2 + $0x10] sm:$0xff] 0.0
      %22 = vst [vmem:[#allocation2 + $0x18] sm:$0xff] 0.0
    $region17: #{decoder_forward.39} parent=1 // pred_fallthru
      _
    %v23 = vld [vmem:[#allocation2] sm:$0xff]
    %v24 = vld [vmem:[#allocation2 + $0x8] sm:$0xff]
    %v25 = vld [vmem:[#allocation2 + $0x10] sm:$0xff]
    %v26 = vld [vmem:[#allocation2 + $0x18] sm:$0xff]
    %v27 = vld [vmem:[%s0] sm:$0xff]
    %v28 = vld [vmem:[%s0 + $0x8] sm:$0xff]
    %v29 = vld [vmem:[%s1] sm:$0xff]
    %v30 = vld [vmem:[%s1 + $0x8] sm:$0xff]
    %v31 = vld [vmem:[%s1 + $0x10] sm:$0xff]
    %v32 = vld [vmem:[%s1 + $0x18] sm:$0xff]
    %v33 = vld [vmem:[%s1 + $0x20] sm:$0xff]
    %v34 = vld [vmem:[%s1 + $0x28] sm:$0xff]
    %v35 = vld [vmem:[%s1 + $0x30] sm:$0xff]
    %v36 = vld [vmem:[%s1 + $0x38] sm:$0xff]
    %v37 = vld [vmem:[%s1 + $0x40] sm:$0xff]
    %v38 = vld [vmem:[%s1 + $0x48] sm:$0xff]
    %v39 = vld [vmem:[%s1 + $0x50] sm:$0xff]
    %v40 = vld [vmem:[%s1 + $0x58] sm:$0xff]
    %v41 = vld [vmem:[%s1 + $0x60] sm:$0xff]
    %v42 = vld [vmem:[%s1 + $0x68] sm:$0xff]
    %v43 = vld [vmem:[%s1 + $0x70] sm:$0xff]
    %v44 = vld [vmem:[%s1 + $0x78] sm:$0xff]
    %v45 = vld [vmem:[%s1 + $0x80] sm:$0xff]
    %v46 = vld [vmem:[%s1 + $0x88] sm:$0xff]
    %v47 = vld [vmem:[%s1 + $0x90] sm:$0xff]
    %v48 = vld [vmem:[%s1 + $0x98] sm:$0xff]
    %v49 = vld [vmem:[%s1 + $0xa0] sm:$0xff]
    %v50 = vld [vmem:[%s1 + $0xa8] sm:$0xff]
    %v51 = vld [vmem:[%s1 + $0xb0] sm:$0xff]
    %v52 = vld [vmem:[%s1 + $0xb8] sm:$0xff]
    %v53 = vld [vmem:[%s1 + $0xc0] sm:$0xff]
    %v54 = vld [vmem:[%s1 + $0xc8] sm:$0xff]
    %v55 = vld [vmem:[%s1 + $0xd0] sm:$0xff]
    %v56 = vld [vmem:[%s1 + $0xd8] sm:$0xff]
    %v57 = vld [vmem:[%s1 + $0xe0] sm:$0xff]
    %v58 = vld [vmem:[%s1 + $0xe8] sm:$0xff]
    %v59 = vld [vmem:[%s1 + $0xf0] sm:$0xff]
    %v60 = vld [vmem:[%s1 + $0xf8] sm:$0xff]
    %61 = vmatprep.subr.mxu0 %v30
    %62 = vmatpush1.msra.mxu0 %v29
    %63 = vmatprep.subr.mxu0 %v32
    %64 = vmatpush1.msra.mxu0 %v31
    %65 = vmatprep.subr.mxu0 %v34
    %66 = vmatpush1.msra.mxu0 %v33
    %67 = vmatprep.subr.mxu0 %v36
    %68 = vmatpush1.msra.mxu0 %v35
    %69 = vmatprep.subr.mxu0 %v38
    %70 = vmatpush1.msra.mxu0 %v37
    %71 = vmatprep.subr.mxu0 %v40
    %72 = vmatpush1.msra.mxu0 %v39
    %73 = vmatprep.subr.mxu0 %v42
    %74 = vmatpush1.msra.mxu0 %v41
    %75 = vmatprep.subr.mxu0 %v44
    %76 = vmatpush1.msra.mxu0 %v43
    %77 = vmatprep.subr.mxu0 %v46
    %78 = vmatpush1.msra.mxu0 %v45
    %79 = vmatprep.subr.mxu0 %v48
    %80 = vmatpush1.msra.mxu0 %v47
    %81 = vmatprep.subr.mxu0 %v50
    %82 = vmatpush1.msra.mxu0 %v49
    %83 = vmatprep.subr.mxu0 %v52
    %84 = vmatpush1.msra.mxu0 %v51
    %85 = vmatprep.subr.mxu0 %v54
    %86 = vmatpush1.msra.mxu0 %v53
    %87 = vmatprep.subr.mxu0 %v56
    %88 = vmatpush1.msra.mxu0 %v55
    %89 = vmatprep.subr.mxu0 %v58
    %90 = vmatpush1.msra.mxu0 %v57
    %91 = vmatprep.subr.mxu0 %v60
    %92 = vmatpush1.msra.mxu0 %v59
    %93 = vmatprep.subr.mxu0 0.0
    %94 = vmatpush1.msra.mxu0 0.0
    %95 = vmatprep.subr.mxu0 0.0
    %96 = vmatpush1.msra.mxu0 0.0
    %97 = vmatprep.subr.mxu0 0.0
    %98 = vmatpush1.msra.mxu0 0.0
    %99 = vmatprep.subr.mxu0 0.0
    %100 = vmatpush1.msra.mxu0 0.0
    %101 = vmatprep.subr.mxu0 0.0
    %102 = vmatpush1.msra.mxu0 0.0
    %103 = vmatprep.subr.mxu0 0.0
    %104 = vmatpush1.msra.mxu0 0.0
    %105 = vmatprep.subr.mxu0 0.0
    %106 = vmatpush1.msra.mxu0 0.0
    %107 = vmatprep.subr.mxu0 0.0
    %108 = vmatpush1.msra.mxu0 0.0
    %109 = vmatprep.subr.mxu0 0.0
    %110 = vmatpush1.msra.mxu0 0.0
    %111 = vmatprep.subr.mxu0 0.0
    %112 = vmatpush1.msra.mxu0 0.0
    %113 = vmatprep.subr.mxu0 0.0
    %114 = vmatpush1.msra.mxu0 0.0
    %115 = vmatprep.subr.mxu0 0.0
    %116 = vmatpush1.msra.mxu0 0.0
    %117 = vmatprep.subr.mxu0 0.0
    %118 = vmatpush1.msra.mxu0 0.0
    %119 = vmatprep.subr.mxu0 0.0
    %120 = vmatpush1.msra.mxu0 0.0
    %121 = vmatprep.subr.mxu0 0.0
    %122 = vmatpush1.msra.mxu0 0.0
    %123 = vmatprep.subr.mxu0 0.0
    %124 = vmatpush1.msra.mxu0 0.0
    %125 = vmatprep.mubr.f32.mxu0 0.0
    %126 = vmatmul.mubr.f32.gmra.mrb[0].mxu0 %v27
    %v127 = vpop.f32.mrb[0].mxu0
    %v128 = vadd.f32 0.0, %v127
    %v129 = vpop.f32.mrb[0].mxu0
    %v130 = vadd.f32 0.0, %v129
    %131 = vmatprep.mubr.f32.mxu0 0.0
    %132 = vmatmul.mubr.f32.gmra.mrb[0].mxu0 %v28
    %v133 = vpop.f32.mrb[0].mxu0
    %v134 = vadd.f32 0.0, %v133
    %v135 = vpop.f32.mrb[0].mxu0
    %v136 = vadd.f32 0.0, %v135
    %137 = vdwg.mxu0
    %v138 = vadd.f32 %v23, %v128
    %v139 = vadd.f32 %v24, %v130
    %v140 = vadd.f32 %v25, %v134
    %v141 = vadd.f32 %v26, %v136
    %142 = vst [vmem:[#allocation2] sm:$0xff] %v138
    %143 = vst [vmem:[#allocation2 + $0x8] sm:$0xff] %v139
    %144 = vst [vmem:[#allocation2 + $0x10] sm:$0xff] %v140
    %145 = vst [vmem:[#allocation2 + $0x18] sm:$0xff] %v141
    // Predicated region
    $region18: #{decoder_forward.39} parent=1 // pred_check
      %p146 = pneg %p15
    $region19: #{decoder_forward.39} parent=1 // pred_check_branch
      %148 = sbr.rel (%p146) target = $region21
    $region20: #{decoder_forward.39} parent=1 // pred_region
      %v149 = vld [vmem:[#allocation2] sm:$0xff]
      %v150 = vld [vmem:[#allocation2 + $0x8] sm:$0xff]
      %v151 = vld [vmem:[#allocation2 + $0x10] sm:$0xff]
      %v152 = vld [vmem:[#allocation2 + $0x18] sm:$0xff]
      %v153 = vld [vmem:[%s2] sm:$0x3]
      %v155 = vlaneseq
      %v156 = vshrl.u32 %v155, 7
      %v157 = vsub.s32 0, %v156
      %v158 = vrot.slane %v153, %v157
      %v159 = vlaneseq
      %v160 = vshrl.u32 %v159, 7
      %v161 = vsub.s32 1, %v160
      %v162 = vrot.slane %v153, %v161
      %v165 = vadd.f32 %v149, %v158
      %v166 = vadd.f32 %v150, %v162
      %v167 = vadd.f32 %v151, %v158
      %v168 = vadd.f32 %v152, %v162
      %169 = vst [vmem:[#allocation3] sm:$0xff] %v165
      %170 = vst [vmem:[#allocation3 + $0x8] sm:$0xff] %v166
      %171 = vst [vmem:[#allocation3 + $0x10] sm:$0xff] %v167
      %172 = vst [vmem:[#allocation3 + $0x18] sm:$0xff] %v168
    $region21: #{decoder_forward.39} parent=1 // pred_fallthru
      _
    // Predicated region
    $region22: #{decoder_forward.39} parent=1 // pred_check
      _
    $region23: #{decoder_forward.39} parent=1 // pred_check_branch
      %174 = sbr.rel (0) target = $region25
    $region24: #{decoder_forward.39} parent=1 // pred_region
      %s176 = ssub.s32 512, 512
      %177 = vsyncadd [#allocation4], %s176
      %s178 = sshll.u32 [#allocation3], 4
      %s179 = int_to_ptr.vmem [resolvable:$true] %s178
      %184 = dma.vmem_to_hbm [thread:$0]  %s179, 512, %s3, [#allocation4], 256, 256, 16
    $region25: #{decoder_forward.39} parent=1 // pred_fallthru
      _
    // Predicated region
    $region26: #{decoder_forward.39} parent=1 // pred_check
      _
    $region27: #{decoder_forward.39} parent=1 // pred_check_branch
      %186 = sbr.rel (0) target = $region29
    $region28: #{decoder_forward.39} parent=1 // pred_region
      %187 = dma.done [#allocation4], 512
    $region29: #{decoder_forward.39} parent=1 // pred_fallthru
      _
    %188 = vsyncpa [#allocation4], 1

</llo_original>
